<compile_context>
chip_gen: v7x
topology: tpu7x:2x2x1
jax: 0.10.0
libtpu: 0.0.40
codegen_flags: <defaults>
</compile_context>

<pallas_src>
import functools

import jax
import jax.numpy as jnp
from jax import lax
from jax.experimental import pallas as pl
from jax.experimental.pallas import tpu as pltpu


def _cross_attn_kernel(num_heads, batch_per_block, hw,
                       q_in_ref, sT_in_ref,
                       wq_ref, bq_ref,
                       wkv_ref, bkv_ref,
                       wp_ref, bp_ref,
                       out_ref,
                       o_scratch):
    """One grid step: `batch_per_block` batch elements, all heads."""
    dim = wq_ref.shape[0]
    hd = dim // num_heads

    x_q = q_in_ref[0]          # [M, dim]   M = batch_per_block * hw
    x_sT = sT_in_ref[0]        # [dim, M]   (sim, pre-transposed by wrapper)

    # Fat projections. `scale` is already folded into wq / bq by the wrapper.
    q = jnp.dot(x_q, wq_ref[...], preferred_element_type=jnp.float32) + bq_ref[...]      # [M, dim]
    # Fused k/v projection in transposed space: rows 0:dim are k^T, dim:2dim are v^T.
    kvT = jnp.dot(wkv_ref[...], x_sT, preferred_element_type=jnp.float32) + bkv_ref[...]  # [2*dim, M]

    # Per-(batch, head) attention; head outputs land in their lane slice of
    # o_scratch so a single full-depth out-proj matmul can follow.
    # (qh is a 32-lane slice at a nonzero offset; if the MLIR ever shows 8x
    #  lane rotates here, compute q in transposed space instead — layout swap
    #  in the wrapper only.)
    for g in range(batch_per_block):
        r0 = g * hw
        for h in range(num_heads):
            c0 = h * hd
            qh = q[r0:r0 + hw, c0:c0 + hd]                      # [hw, hd]
            khT = kvT[c0:c0 + hd, r0:r0 + hw]                   # [hd, hw]  == k_h^T
            vhT = kvT[dim + c0:dim + c0 + hd, r0:r0 + hw]       # [hd, hw]  == v_h^T

            # scores = q_h @ k_h^T — no transpose materialized.
            s = jnp.dot(qh, khT, preferred_element_type=jnp.float32)   # [hw, hw]
            s = s - jnp.max(s, axis=-1, keepdims=True)
            p = jnp.exp(s)
            d = jnp.sum(p, axis=-1, keepdims=True)
            r = pl.reciprocal(d, approx=True)
            r = r * (2.0 - d * r)                # one Newton step -> ~f32-exact
            p = p * r

            # o_h = p @ v_h  (v_h^T stored; contract last dims of both operands).
            oh = lax.dot_general(p, vhT, (((1,), (1,)), ((), ())),
                                 preferred_element_type=jnp.float32)   # [hw, hd]
            o_scratch[r0:r0 + hw, c0:c0 + hd] = oh

    # Single full-depth output projection: [M, dim] @ [dim, dim].
    y = jnp.dot(o_scratch[...], wp_ref[...],
                preferred_element_type=jnp.float32) + bp_ref[...]
    out_ref[0] = y.astype(out_ref.dtype)


def prepare_cross_attention_params(params, *, num_heads):
    """One-time weight prep (transpose / scale fold / reshape) — hoist out of
    the hot path so no per-call HLO ops sit in front of the Pallas call."""
    dim = params["q_w"].shape[0]
    hd = dim // num_heads
    scale = hd ** (-0.5)
    return {
        # PyTorch Linear weight is [out, in]; q used in natural space, scaled.
        "wq": params["q_w"].T * scale,                    # [in, out]
        "bq": (params["q_b"] * scale).reshape(1, dim),
        # kv used in transposed space: kvT = Wkv_pt @ x_s^T + b_kv[:, None].
        "wkv": params["kv_w"],                            # [2*dim, dim] (out, in)
        "bkv": params["kv_b"].reshape(2 * dim, 1),
        # Plain out-proj weight for one fat matmul.
        "wp": params["proj_w"].T,                         # [in, out]
        "bp": params["proj_b"].reshape(1, dim),
    }


def _default_fold_batch():
    """Fold B into one grid step on single-TensorCore chips (v5e/v6e);
    keep grid=(B,) 'parallel' on dual-core v7x."""
    try:
        kind = jax.devices()[0].device_kind.lower()
    except Exception:
        return True
    return "v7" not in kind


def cross_attention(query, sim, prepared, *, num_heads, fold_batch=None):
    """query, sim: [B, H, W, dim] -> [B, H, W, dim]. `prepared` comes from
    prepare_cross_attention_params()."""
    B, H, W, dim = query.shape
    assert dim % num_heads == 0, "dim must be divisible by num_heads"
    HW = H * W

    if fold_batch is None:
        fold_batch = _default_fold_batch()
    G = B if fold_batch else 1          # batches per grid step
    NB = B // G                          # grid size
    M = G * HW                           # rows per block

    # [NB, M, dim] query rows, batch-major within a block.
    qf = query.reshape(NB, M, dim)
    # [NB, dim, M] sim^T, columns grouped by batch within a block.
    sT = sim.reshape(NB, G, HW, dim).transpose(0, 3, 1, 2).reshape(NB, dim, M)

    kernel = functools.partial(_cross_attn_kernel, num_heads, G, HW)

    out = pl.pallas_call(
        kernel,
        out_shape=jax.ShapeDtypeStruct((NB, M, dim), query.dtype),
        grid_spec=pltpu.PrefetchScalarGridSpec(
            num_scalar_prefetch=0,
            grid=(NB,),
            in_specs=[
                pl.BlockSpec((1, M, dim), lambda b: (b, 0, 0)),        # query
                pl.BlockSpec((1, dim, M), lambda b: (b, 0, 0)),        # sim^T
                pl.BlockSpec((dim, dim), lambda b: (0, 0)),            # wq (scaled)
                pl.BlockSpec((1, dim), lambda b: (0, 0)),              # bq (scaled)
                pl.BlockSpec((2 * dim, dim), lambda b: (0, 0)),        # wkv fused
                pl.BlockSpec((2 * dim, 1), lambda b: (0, 0)),          # bkv (column)
                pl.BlockSpec((dim, dim), lambda b: (0, 0)),            # wp
                pl.BlockSpec((1, dim), lambda b: (0, 0)),              # bp
            ],
            out_specs=pl.BlockSpec((1, M, dim), lambda b: (b, 0, 0)),
            scratch_shapes=[pltpu.VMEM((M, dim), jnp.float32)],        # head-concat buffer
        ),
        compiler_params=pltpu.CompilerParams(
            dimension_semantics=("parallel",)),
    )(qf, sT,
      prepared["wq"], prepared["bq"],
      prepared["wkv"], prepared["bkv"],
      prepared["wp"], prepared["bp"])

    return out.reshape(B, H, W, dim)


def cross_attention_ref(query, sim, params, *, num_heads):
    """Pure-JAX reference mirroring the PyTorch forward exactly."""
    B, H, W, dim = query.shape
    HW = H * W
    hd = dim // num_heads
    scale = hd ** (-0.5)

    q = query.reshape(B, HW, dim) @ params["q_w"].T + params["q_b"]
    kv = sim.reshape(B, HW, dim) @ params["kv_w"].T + params["kv_b"]

    q = q.reshape(B, HW, 1, num_heads, hd).transpose(2, 0, 3, 1, 4)
    kv = kv.reshape(B, HW, 2, num_heads, hd).transpose(2, 0, 3, 1, 4)
    q = q.reshape(1, B * num_heads, HW, hd)[0]
    k = kv.reshape(2, B * num_heads, HW, hd)[0]
    v = kv.reshape(2, B * num_heads, HW, hd)[1]

    attn = (q * scale) @ jnp.swapaxes(k, -2, -1)
    attn = jax.nn.softmax(attn, axis=-1)
    x = (attn @ v).reshape(B, num_heads, H, W, hd)
    x = x.transpose(0, 2, 3, 1, 4).reshape(B, H, W, dim)
    return x @ params["proj_w"].T + params["proj_b"]


def init_params(key, dim):
    ks = jax.random.split(key, 6)
    s = 1.0 / (dim ** 0.5)
    return {
        "q_w": jax.random.uniform(ks[0], (dim, dim), jnp.float32, -s, s),
        "q_b": jax.random.uniform(ks[1], (dim,), jnp.float32, -s, s),
        "kv_w": jax.random.uniform(ks[2], (2 * dim, dim), jnp.float32, -s, s),
        "kv_b": jax.random.uniform(ks[3], (2 * dim,), jnp.float32, -s, s),
        "proj_w": jax.random.uniform(ks[4], (dim, dim), jnp.float32, -s, s),
        "proj_b": jax.random.uniform(ks[5], (dim,), jnp.float32, -s, s),
    }


if __name__ == "__main__":
    B, H, W = 2, 8, 8
    dim, num_heads = 256, 8

    key = jax.random.PRNGKey(0)
    k_q, k_s, k_p = jax.random.split(key, 3)
    query = jax.random.normal(k_q, (B, H, W, dim), jnp.float32)
    sim = jax.random.normal(k_s, (B, H, W, dim), jnp.float32)
    params = init_params(k_p, dim)

    prepared = prepare_cross_attention_params(params, num_heads=num_heads)
    ref = cross_attention_ref(query, sim, params, num_heads=num_heads)

    # Default path (auto: folded single-step on v5e/v6e, grid=(B,) on v7x).
    out = cross_attention(query, sim, prepared, num_heads=num_heads)
    out = jax.block_until_ready(out)
    assert out.shape == (B, H, W, dim)
    assert jnp.allclose(out, ref, atol=1e-3, rtol=1e-3), float(
        jnp.max(jnp.abs(out - ref)))

    # Exercise both tilings so either chip path is validated.
    for fold in (True, False):
        o = jax.block_until_ready(
            cross_attention(query, sim, prepared, num_heads=num_heads,
                            fold_batch=fold))
        assert jnp.allclose(o, ref, atol=1e-3, rtol=1e-3), float(
            jnp.max(jnp.abs(o - ref)))

    print("KERNEL_OK")
</pallas_src>

<mosaic_0001>
module attributes {stable_mosaic.version = 11 : i64} {
  func.func @_cross_attn_kernel(%arg0: i32, %arg1: memref<1x128x256xf32, #tpu.memory_space<vmem>>, %arg2: memref<1x256x128xf32, #tpu.memory_space<vmem>>, %arg3: memref<256x256xf32, #tpu.memory_space<vmem>>, %arg4: memref<1x256xf32, #tpu.memory_space<vmem>>, %arg5: memref<512x256xf32, #tpu.memory_space<vmem>>, %arg6: memref<512x1xf32, #tpu.memory_space<vmem>>, %arg7: memref<256x256xf32, #tpu.memory_space<vmem>>, %arg8: memref<1x256xf32, #tpu.memory_space<vmem>>, %arg9: memref<1x128x256xf32, #tpu.memory_space<vmem>>, %arg10: memref<128x256xf32, #tpu.memory_space<vmem>>) attributes {dimension_semantics = [#tpu.dimension_semantics<parallel>], iteration_bounds = array<i64: 1>, scalar_prefetch = 0 : i64, scratch_operands = 1 : i64, tpu.core_type = #tpu.core_type<tc>, window_params = [{transform_indices = @transform_0, window_bounds = array<i64: 1, 128, 256>}, {transform_indices = @transform_1, window_bounds = array<i64: 1, 256, 128>}, {pipeline_mode = #tpu.pipeline_mode<synchronous>, transform_indices = @transform_2, window_bounds = array<i64: 256, 256>}, {pipeline_mode = #tpu.pipeline_mode<synchronous>, transform_indices = @transform_3, window_bounds = array<i64: 1, 256>}, {pipeline_mode = #tpu.pipeline_mode<synchronous>, transform_indices = @transform_4, window_bounds = array<i64: 512, 256>}, {pipeline_mode = #tpu.pipeline_mode<synchronous>, transform_indices = @transform_5, window_bounds = array<i64: 512, 1>}, {pipeline_mode = #tpu.pipeline_mode<synchronous>, transform_indices = @transform_6, window_bounds = array<i64: 256, 256>}, {pipeline_mode = #tpu.pipeline_mode<synchronous>, transform_indices = @transform_7, window_bounds = array<i64: 1, 256>}, {transform_indices = @transform_8, window_bounds = array<i64: 1, 128, 256>}]} {
    %c0 = arith.constant 0 : index
    %c0_0 = arith.constant 0 : index
    %c0_1 = arith.constant 0 : index
    %0 = vector.load %arg1[%c0, %c0_0, %c0_1] : memref<1x128x256xf32, #tpu.memory_space<vmem>>, vector<1x128x256xf32>
    %1 = vector.shape_cast %0 : vector<1x128x256xf32> to vector<128x256xf32>
    %c0_2 = arith.constant 0 : index
    %c0_3 = arith.constant 0 : index
    %c0_4 = arith.constant 0 : index
    %2 = vector.load %arg2[%c0_2, %c0_3, %c0_4] : memref<1x256x128xf32, #tpu.memory_space<vmem>>, vector<1x256x128xf32>
    %3 = vector.shape_cast %2 : vector<1x256x128xf32> to vector<256x128xf32>
    %c0_5 = arith.constant 0 : index
    %c0_6 = arith.constant 0 : index
    %4 = vector.load %arg3[%c0_5, %c0_6] : memref<256x256xf32, #tpu.memory_space<vmem>>, vector<256x256xf32>
    %cst = arith.constant dense<0.000000e+00> : vector<128x256xf32>
    %5 = tpu.matmul %1, %4, %cst {dimension_numbers = #tpu.dot_dimension_numbers<[1], [0], [0], [1], [0, 0, 1, 1], [], []>} : vector<128x256xf32>, vector<256x256xf32>, vector<128x256xf32> -> vector<128x256xf32>
    %c0_7 = arith.constant 0 : index
    %c0_8 = arith.constant 0 : index
    %6 = vector.load %arg4[%c0_7, %c0_8] : memref<1x256xf32, #tpu.memory_space<vmem>>, vector<1x256xf32>
    %7 = vector.broadcast %6 : vector<1x256xf32> to vector<128x256xf32>
    %8 = arith.addf %5, %7 : vector<128x256xf32>
    %c0_9 = arith.constant 0 : index
    %c0_10 = arith.constant 0 : index
    %9 = vector.load %arg5[%c0_9, %c0_10] : memref<512x256xf32, #tpu.memory_space<vmem>>, vector<512x256xf32>
    %cst_11 = arith.constant dense<0.000000e+00> : vector<512x128xf32>
    %10 = tpu.matmul %9, %3, %cst_11 {dimension_numbers = #tpu.dot_dimension_numbers<[1], [0], [0], [1], [0, 0, 1, 1], [], []>} : vector<512x256xf32>, vector<256x128xf32>, vector<512x128xf32> -> vector<512x128xf32>
    %c0_12 = arith.constant 0 : index
    %c0_13 = arith.constant 0 : index
    %11 = vector.load %arg6[%c0_12, %c0_13] : memref<512x1xf32, #tpu.memory_space<vmem>>, vector<512x1xf32>
    %12 = vector.broadcast %11 : vector<512x1xf32> to vector<512x128xf32>
    %13 = arith.addf %10, %12 : vector<512x128xf32>
    %14 = vector.extract_strided_slice %8 {offsets = [0, 0], sizes = [64, 32], strides = [1, 1]} : vector<128x256xf32> to vector<64x32xf32>
    %15 = vector.extract_strided_slice %13 {offsets = [0, 0], sizes = [32, 64], strides = [1, 1]} : vector<512x128xf32> to vector<32x64xf32>
    %16 = vector.extract_strided_slice %13 {offsets = [256, 0], sizes = [32, 64], strides = [1, 1]} : vector<512x128xf32> to vector<32x64xf32>
    %cst_14 = arith.constant dense<0.000000e+00> : vector<64x64xf32>
    %17 = tpu.matmul %14, %15, %cst_14 {dimension_numbers = #tpu.dot_dimension_numbers<[1], [0], [0], [1], [0, 0, 1, 1], [], []>} : vector<64x32xf32>, vector<32x64xf32>, vector<64x64xf32> -> vector<64x64xf32>
    %cst_15 = arith.constant dense<0xFF800000> : vector<64xf32>
    %18 = vector.multi_reduction <maximumf>, %17, %cst_15 [1] : vector<64x64xf32> to vector<64xf32>
    %19 = vector.shape_cast %18 : vector<64xf32> to vector<64x1xf32>
    %20 = vector.broadcast %19 : vector<64x1xf32> to vector<64x64xf32>
    %21 = arith.subf %17, %20 : vector<64x64xf32>
    %22 = math.exp %21 : vector<64x64xf32>
    %cst_16 = arith.constant dense<0.000000e+00> : vector<64xf32>
    %23 = vector.multi_reduction <add>, %22, %cst_16 [1] : vector<64x64xf32> to vector<64xf32>
    %24 = vector.shape_cast %23 : vector<64xf32> to vector<64x1xf32>
    %25 = tpu.reciprocal %24 {approx = true} : vector<64x1xf32> -> vector<64x1xf32>
    %26 = arith.mulf %24, %25 : vector<64x1xf32>
    %cst_17 = arith.constant 2.000000e+00 : f32
    %27 = vector.broadcast %cst_17 : f32 to vector<64x1xf32>
    %28 = arith.subf %27, %26 : vector<64x1xf32>
    %29 = arith.mulf %25, %28 : vector<64x1xf32>
    %30 = vector.broadcast %29 : vector<64x1xf32> to vector<64x64xf32>
    %31 = arith.mulf %22, %30 : vector<64x64xf32>
    %cst_18 = arith.constant dense<0.000000e+00> : vector<64x32xf32>
    %32 = tpu.matmul %31, %16, %cst_18 {dimension_numbers = #tpu.dot_dimension_numbers<[1], [1], [0], [0], [0, 0, 1, 0], [], []>} : vector<64x64xf32>, vector<32x64xf32>, vector<64x32xf32> -> vector<64x32xf32>
    %c0_19 = arith.constant 0 : index
    %c0_20 = arith.constant 0 : index
    %33 = vector.load %arg10[%c0_19, %c0_20] : memref<128x256xf32, #tpu.memory_space<vmem>>, vector<64x32xf32>
    tpu.vector_store %arg10[%c0_19, %c0_20], %32 {strides = array<i32>} : memref<128x256xf32, #tpu.memory_space<vmem>>, vector<64x32xf32>,
    %34 = vector.extract_strided_slice %8 {offsets = [0, 32], sizes = [64, 32], strides = [1, 1]} : vector<128x256xf32> to vector<64x32xf32>
    %35 = vector.extract_strided_slice %13 {offsets = [32, 0], sizes = [32, 64], strides = [1, 1]} : vector<512x128xf32> to vector<32x64xf32>
    %36 = vector.extract_strided_slice %13 {offsets = [288, 0], sizes = [32, 64], strides = [1, 1]} : vector<512x128xf32> to vector<32x64xf32>
    %cst_21 = arith.constant dense<0.000000e+00> : vector<64x64xf32>
    %37 = tpu.matmul %34, %35, %cst_21 {dimension_numbers = #tpu.dot_dimension_numbers<[1], [0], [0], [1], [0, 0, 1, 1], [], []>} : vector<64x32xf32>, vector<32x64xf32>, vector<64x64xf32> -> vector<64x64xf32>
    %cst_22 = arith.constant dense<0xFF800000> : vector<64xf32>
    %38 = vector.multi_reduction <maximumf>, %37, %cst_22 [1] : vector<64x64xf32> to vector<64xf32>
    %39 = vector.shape_cast %38 : vector<64xf32> to vector<64x1xf32>
    %40 = vector.broadcast %39 : vector<64x1xf32> to vector<64x64xf32>
    %41 = arith.subf %37, %40 : vector<64x64xf32>
    %42 = math.exp %41 : vector<64x64xf32>
    %cst_23 = arith.constant dense<0.000000e+00> : vector<64xf32>
    %43 = vector.multi_reduction <add>, %42, %cst_23 [1] : vector<64x64xf32> to vector<64xf32>
    %44 = vector.shape_cast %43 : vector<64xf32> to vector<64x1xf32>
    %45 = tpu.reciprocal %44 {approx = true} : vector<64x1xf32> -> vector<64x1xf32>
    %46 = arith.mulf %44, %45 : vector<64x1xf32>
    %cst_24 = arith.constant 2.000000e+00 : f32
    %47 = vector.broadcast %cst_24 : f32 to vector<64x1xf32>
    %48 = arith.subf %47, %46 : vector<64x1xf32>
    %49 = arith.mulf %45, %48 : vector<64x1xf32>
    %50 = vector.broadcast %49 : vector<64x1xf32> to vector<64x64xf32>
    %51 = arith.mulf %42, %50 : vector<64x64xf32>
    %cst_25 = arith.constant dense<0.000000e+00> : vector<64x32xf32>
    %52 = tpu.matmul %51, %36, %cst_25 {dimension_numbers = #tpu.dot_dimension_numbers<[1], [1], [0], [0], [0, 0, 1, 0], [], []>} : vector<64x64xf32>, vector<32x64xf32>, vector<64x32xf32> -> vector<64x32xf32>
    %c0_26 = arith.constant 0 : index
    %c32 = arith.constant 32 : index
    %53 = vector.load %arg10[%c0_26, %c32] : memref<128x256xf32, #tpu.memory_space<vmem>>, vector<64x32xf32>
    tpu.vector_store %arg10[%c0_26, %c32], %52 {strides = array<i32>} : memref<128x256xf32, #tpu.memory_space<vmem>>, vector<64x32xf32>,
    %54 = vector.extract_strided_slice %8 {offsets = [0, 64], sizes = [64, 32], strides = [1, 1]} : vector<128x256xf32> to vector<64x32xf32>
    %55 = vector.extract_strided_slice %13 {offsets = [64, 0], sizes = [32, 64], strides = [1, 1]} : vector<512x128xf32> to vector<32x64xf32>
    %56 = vector.extract_strided_slice %13 {offsets = [320, 0], sizes = [32, 64], strides = [1, 1]} : vector<512x128xf32> to vector<32x64xf32>
    %cst_27 = arith.constant dense<0.000000e+00> : vector<64x64xf32>
    %57 = tpu.matmul %54, %55, %cst_27 {dimension_numbers = #tpu.dot_dimension_numbers<[1], [0], [0], [1], [0, 0, 1, 1], [], []>} : vector<64x32xf32>, vector<32x64xf32>, vector<64x64xf32> -> vector<64x64xf32>
    %cst_28 = arith.constant dense<0xFF800000> : vector<64xf32>
    %58 = vector.multi_reduction <maximumf>, %57, %cst_28 [1] : vector<64x64xf32> to vector<64xf32>
    %59 = vector.shape_cast %58 : vector<64xf32> to vector<64x1xf32>
    %60 = vector.broadcast %59 : vector<64x1xf32> to vector<64x64xf32>
    %61 = arith.subf %57, %60 : vector<64x64xf32>
    %62 = math.exp %61 : vector<64x64xf32>
    %cst_29 = arith.constant dense<0.000000e+00> : vector<64xf32>
    %63 = vector.multi_reduction <add>, %62, %cst_29 [1] : vector<64x64xf32> to vector<64xf32>
    %64 = vector.shape_cast %63 : vector<64xf32> to vector<64x1xf32>
    %65 = tpu.reciprocal %64 {approx = true} : vector<64x1xf32> -> vector<64x1xf32>
    %66 = arith.mulf %64, %65 : vector<64x1xf32>
    %cst_30 = arith.constant 2.000000e+00 : f32
    %67 = vector.broadcast %cst_30 : f32 to vector<64x1xf32>
    %68 = arith.subf %67, %66 : vector<64x1xf32>
    %69 = arith.mulf %65, %68 : vector<64x1xf32>
    %70 = vector.broadcast %69 : vector<64x1xf32> to vector<64x64xf32>
    %71 = arith.mulf %62, %70 : vector<64x64xf32>
    %cst_31 = arith.constant dense<0.000000e+00> : vector<64x32xf32>
    %72 = tpu.matmul %71, %56, %cst_31 {dimension_numbers = #tpu.dot_dimension_numbers<[1], [1], [0], [0], [0, 0, 1, 0], [], []>} : vector<64x64xf32>, vector<32x64xf32>, vector<64x32xf32> -> vector<64x32xf32>
    %c0_32 = arith.constant 0 : index
    %c64 = arith.constant 64 : index
    %73 = vector.load %arg10[%c0_32, %c64] : memref<128x256xf32, #tpu.memory_space<vmem>>, vector<64x32xf32>
    tpu.vector_store %arg10[%c0_32, %c64], %72 {strides = array<i32>} : memref<128x256xf32, #tpu.memory_space<vmem>>, vector<64x32xf32>,
    %74 = vector.extract_strided_slice %8 {offsets = [0, 96], sizes = [64, 32], strides = [1, 1]} : vector<128x256xf32> to vector<64x32xf32>
    %75 = vector.extract_strided_slice %13 {offsets = [96, 0], sizes = [32, 64], strides = [1, 1]} : vector<512x128xf32> to vector<32x64xf32>
    %76 = vector.extract_strided_slice %13 {offsets = [352, 0], sizes = [32, 64], strides = [1, 1]} : vector<512x128xf32> to vector<32x64xf32>
    %cst_33 = arith.constant dense<0.000000e+00> : vector<64x64xf32>
    %77 = tpu.matmul %74, %75, %cst_33 {dimension_numbers = #tpu.dot_dimension_numbers<[1], [0], [0], [1], [0, 0, 1, 1], [], []>} : vector<64x32xf32>, vector<32x64xf32>, vector<64x64xf32> -> vector<64x64xf32>
    %cst_34 = arith.constant dense<0xFF800000> : vector<64xf32>
    %78 = vector.multi_reduction <maximumf>, %77, %cst_34 [1] : vector<64x64xf32> to vector<64xf32>
    %79 = vector.shape_cast %78 : vector<64xf32> to vector<64x1xf32>
    %80 = vector.broadcast %79 : vector<64x1xf32> to vector<64x64xf32>
    %81 = arith.subf %77, %80 : vector<64x64xf32>
    %82 = math.exp %81 : vector<64x64xf32>
    %cst_35 = arith.constant dense<0.000000e+00> : vector<64xf32>
    %83 = vector.multi_reduction <add>, %82, %cst_35 [1] : vector<64x64xf32> to vector<64xf32>
    %84 = vector.shape_cast %83 : vector<64xf32> to vector<64x1xf32>
    %85 = tpu.reciprocal %84 {approx = true} : vector<64x1xf32> -> vector<64x1xf32>
    %86 = arith.mulf %84, %85 : vector<64x1xf32>
    %cst_36 = arith.constant 2.000000e+00 : f32
    %87 = vector.broadcast %cst_36 : f32 to vector<64x1xf32>
    %88 = arith.subf %87, %86 : vector<64x1xf32>
    %89 = arith.mulf %85, %88 : vector<64x1xf32>
    %90 = vector.broadcast %89 : vector<64x1xf32> to vector<64x64xf32>
    %91 = arith.mulf %82, %90 : vector<64x64xf32>
    %cst_37 = arith.constant dense<0.000000e+00> : vector<64x32xf32>
    %92 = tpu.matmul %91, %76, %cst_37 {dimension_numbers = #tpu.dot_dimension_numbers<[1], [1], [0], [0], [0, 0, 1, 0], [], []>} : vector<64x64xf32>, vector<32x64xf32>, vector<64x32xf32> -> vector<64x32xf32>
    %c0_38 = arith.constant 0 : index
    %c96 = arith.constant 96 : index
    %93 = vector.load %arg10[%c0_38, %c96] : memref<128x256xf32, #tpu.memory_space<vmem>>, vector<64x32xf32>
    tpu.vector_store %arg10[%c0_38, %c96], %92 {strides = array<i32>} : memref<128x256xf32, #tpu.memory_space<vmem>>, vector<64x32xf32>,
    %94 = vector.extract_strided_slice %8 {offsets = [0, 128], sizes = [64, 32], strides = [1, 1]} : vector<128x256xf32> to vector<64x32xf32>
    %95 = vector.extract_strided_slice %13 {offsets = [128, 0], sizes = [32, 64], strides = [1, 1]} : vector<512x128xf32> to vector<32x64xf32>
    %96 = vector.extract_strided_slice %13 {offsets = [384, 0], sizes = [32, 64], strides = [1, 1]} : vector<512x128xf32> to vector<32x64xf32>
    %cst_39 = arith.constant dense<0.000000e+00> : vector<64x64xf32>
    %97 = tpu.matmul %94, %95, %cst_39 {dimension_numbers = #tpu.dot_dimension_numbers<[1], [0], [0], [1], [0, 0, 1, 1], [], []>} : vector<64x32xf32>, vector<32x64xf32>, vector<64x64xf32> -> vector<64x64xf32>
    %cst_40 = arith.constant dense<0xFF800000> : vector<64xf32>
    %98 = vector.multi_reduction <maximumf>, %97, %cst_40 [1] : vector<64x64xf32> to vector<64xf32>
    %99 = vector.shape_cast %98 : vector<64xf32> to vector<64x1xf32>
    %100 = vector.broadcast %99 : vector<64x1xf32> to vector<64x64xf32>
    %101 = arith.subf %97, %100 : vector<64x64xf32>
    %102 = math.exp %101 : vector<64x64xf32>
    %cst_41 = arith.constant dense<0.000000e+00> : vector<64xf32>
    %103 = vector.multi_reduction <add>, %102, %cst_41 [1] : vector<64x64xf32> to vector<64xf32>
    %104 = vector.shape_cast %103 : vector<64xf32> to vector<64x1xf32>
    %105 = tpu.reciprocal %104 {approx = true} : vector<64x1xf32> -> vector<64x1xf32>
    %106 = arith.mulf %104, %105 : vector<64x1xf32>
    %cst_42 = arith.constant 2.000000e+00 : f32
    %107 = vector.broadcast %cst_42 : f32 to vector<64x1xf32>
    %108 = arith.subf %107, %106 : vector<64x1xf32>
    %109 = arith.mulf %105, %108 : vector<64x1xf32>
    %110 = vector.broadcast %109 : vector<64x1xf32> to vector<64x64xf32>
    %111 = arith.mulf %102, %110 : vector<64x64xf32>
    %cst_43 = arith.constant dense<0.000000e+00> : vector<64x32xf32>
    %112 = tpu.matmul %111, %96, %cst_43 {dimension_numbers = #tpu.dot_dimension_numbers<[1], [1], [0], [0], [0, 0, 1, 0], [], []>} : vector<64x64xf32>, vector<32x64xf32>, vector<64x32xf32> -> vector<64x32xf32>
    %c0_44 = arith.constant 0 : index
    %c128 = arith.constant 128 : index
    %113 = vector.load %arg10[%c0_44, %c128] : memref<128x256xf32, #tpu.memory_space<vmem>>, vector<64x32xf32>
    tpu.vector_store %arg10[%c0_44, %c128], %112 {strides = array<i32>} : memref<128x256xf32, #tpu.memory_space<vmem>>, vector<64x32xf32>,
    %114 = vector.extract_strided_slice %8 {offsets = [0, 160], sizes = [64, 32], strides = [1, 1]} : vector<128x256xf32> to vector<64x32xf32>
    %115 = vector.extract_strided_slice %13 {offsets = [160, 0], sizes = [32, 64], strides = [1, 1]} : vector<512x128xf32> to vector<32x64xf32>
    %116 = vector.extract_strided_slice %13 {offsets = [416, 0], sizes = [32, 64], strides = [1, 1]} : vector<512x128xf32> to vector<32x64xf32>
    %cst_45 = arith.constant dense<0.000000e+00> : vector<64x64xf32>
    %117 = tpu.matmul %114, %115, %cst_45 {dimension_numbers = #tpu.dot_dimension_numbers<[1], [0], [0], [1], [0, 0, 1, 1], [], []>} : vector<64x32xf32>, vector<32x64xf32>, vector<64x64xf32> -> vector<64x64xf32>
    %cst_46 = arith.constant dense<0xFF800000> : vector<64xf32>
    %118 = vector.multi_reduction <maximumf>, %117, %cst_46 [1] : vector<64x64xf32> to vector<64xf32>
    %119 = vector.shape_cast %118 : vector<64xf32> to vector<64x1xf32>
    %120 = vector.broadcast %119 : vector<64x1xf32> to vector<64x64xf32>
    %121 = arith.subf %117, %120 : vector<64x64xf32>
    %122 = math.exp %121 : vector<64x64xf32>
    %cst_47 = arith.constant dense<0.000000e+00> : vector<64xf32>
    %123 = vector.multi_reduction <add>, %122, %cst_47 [1] : vector<64x64xf32> to vector<64xf32>
    %124 = vector.shape_cast %123 : vector<64xf32> to vector<64x1xf32>
    %125 = tpu.reciprocal %124 {approx = true} : vector<64x1xf32> -> vector<64x1xf32>
    %126 = arith.mulf %124, %125 : vector<64x1xf32>
    %cst_48 = arith.constant 2.000000e+00 : f32
    %127 = vector.broadcast %cst_48 : f32 to vector<64x1xf32>
    %128 = arith.subf %127, %126 : vector<64x1xf32>
    %129 = arith.mulf %125, %128 : vector<64x1xf32>
    %130 = vector.broadcast %129 : vector<64x1xf32> to vector<64x64xf32>
    %131 = arith.mulf %122, %130 : vector<64x64xf32>
    %cst_49 = arith.constant dense<0.000000e+00> : vector<64x32xf32>
    %132 = tpu.matmul %131, %116, %cst_49 {dimension_numbers = #tpu.dot_dimension_numbers<[1], [1], [0], [0], [0, 0, 1, 0], [], []>} : vector<64x64xf32>, vector<32x64xf32>, vector<64x32xf32> -> vector<64x32xf32>
    %c0_50 = arith.constant 0 : index
    %c160 = arith.constant 160 : index
    %133 = vector.load %arg10[%c0_50, %c160] : memref<128x256xf32, #tpu.memory_space<vmem>>, vector<64x32xf32>
    tpu.vector_store %arg10[%c0_50, %c160], %132 {strides = array<i32>} : memref<128x256xf32, #tpu.memory_space<vmem>>, vector<64x32xf32>,
    %134 = vector.extract_strided_slice %8 {offsets = [0, 192], sizes = [64, 32], strides = [1, 1]} : vector<128x256xf32> to vector<64x32xf32>
    %135 = vector.extract_strided_slice %13 {offsets = [192, 0], sizes = [32, 64], strides = [1, 1]} : vector<512x128xf32> to vector<32x64xf32>
    %136 = vector.extract_strided_slice %13 {offsets = [448, 0], sizes = [32, 64], strides = [1, 1]} : vector<512x128xf32> to vector<32x64xf32>
    %cst_51 = arith.constant dense<0.000000e+00> : vector<64x64xf32>
    %137 = tpu.matmul %134, %135, %cst_51 {dimension_numbers = #tpu.dot_dimension_numbers<[1], [0], [0], [1], [0, 0, 1, 1], [], []>} : vector<64x32xf32>, vector<32x64xf32>, vector<64x64xf32> -> vector<64x64xf32>
    %cst_52 = arith.constant dense<0xFF800000> : vector<64xf32>
    %138 = vector.multi_reduction <maximumf>, %137, %cst_52 [1] : vector<64x64xf32> to vector<64xf32>
    %139 = vector.shape_cast %138 : vector<64xf32> to vector<64x1xf32>
    %140 = vector.broadcast %139 : vector<64x1xf32> to vector<64x64xf32>
    %141 = arith.subf %137, %140 : vector<64x64xf32>
    %142 = math.exp %141 : vector<64x64xf32>
    %cst_53 = arith.constant dense<0.000000e+00> : vector<64xf32>
    %143 = vector.multi_reduction <add>, %142, %cst_53 [1] : vector<64x64xf32> to vector<64xf32>
    %144 = vector.shape_cast %143 : vector<64xf32> to vector<64x1xf32>
    %145 = tpu.reciprocal %144 {approx = true} : vector<64x1xf32> -> vector<64x1xf32>
    %146 = arith.mulf %144, %145 : vector<64x1xf32>
    %cst_54 = arith.constant 2.000000e+00 : f32
    %147 = vector.broadcast %cst_54 : f32 to vector<64x1xf32>
    %148 = arith.subf %147, %146 : vector<64x1xf32>
    %149 = arith.mulf %145, %148 : vector<64x1xf32>
    %150 = vector.broadcast %149 : vector<64x1xf32> to vector<64x64xf32>
    %151 = arith.mulf %142, %150 : vector<64x64xf32>
    %cst_55 = arith.constant dense<0.000000e+00> : vector<64x32xf32>
    %152 = tpu.matmul %151, %136, %cst_55 {dimension_numbers = #tpu.dot_dimension_numbers<[1], [1], [0], [0], [0, 0, 1, 0], [], []>} : vector<64x64xf32>, vector<32x64xf32>, vector<64x32xf32> -> vector<64x32xf32>
    %c0_56 = arith.constant 0 : index
    %c192 = arith.constant 192 : index
    %153 = vector.load %arg10[%c0_56, %c192] : memref<128x256xf32, #tpu.memory_space<vmem>>, vector<64x32xf32>
    tpu.vector_store %arg10[%c0_56, %c192], %152 {strides = array<i32>} : memref<128x256xf32, #tpu.memory_space<vmem>>, vector<64x32xf32>,
    %154 = vector.extract_strided_slice %8 {offsets = [0, 224], sizes = [64, 32], strides = [1, 1]} : vector<128x256xf32> to vector<64x32xf32>
    %155 = vector.extract_strided_slice %13 {offsets = [224, 0], sizes = [32, 64], strides = [1, 1]} : vector<512x128xf32> to vector<32x64xf32>
    %156 = vector.extract_strided_slice %13 {offsets = [480, 0], sizes = [32, 64], strides = [1, 1]} : vector<512x128xf32> to vector<32x64xf32>
    %cst_57 = arith.constant dense<0.000000e+00> : vector<64x64xf32>
    %157 = tpu.matmul %154, %155, %cst_57 {dimension_numbers = #tpu.dot_dimension_numbers<[1], [0], [0], [1], [0, 0, 1, 1], [], []>} : vector<64x32xf32>, vector<32x64xf32>, vector<64x64xf32> -> vector<64x64xf32>
    %cst_58 = arith.constant dense<0xFF800000> : vector<64xf32>
    %158 = vector.multi_reduction <maximumf>, %157, %cst_58 [1] : vector<64x64xf32> to vector<64xf32>
    %159 = vector.shape_cast %158 : vector<64xf32> to vector<64x1xf32>
    %160 = vector.broadcast %159 : vector<64x1xf32> to vector<64x64xf32>
    %161 = arith.subf %157, %160 : vector<64x64xf32>
    %162 = math.exp %161 : vector<64x64xf32>
    %cst_59 = arith.constant dense<0.000000e+00> : vector<64xf32>
    %163 = vector.multi_reduction <add>, %162, %cst_59 [1] : vector<64x64xf32> to vector<64xf32>
    %164 = vector.shape_cast %163 : vector<64xf32> to vector<64x1xf32>
    %165 = tpu.reciprocal %164 {approx = true} : vector<64x1xf32> -> vector<64x1xf32>
    %166 = arith.mulf %164, %165 : vector<64x1xf32>
    %cst_60 = arith.constant 2.000000e+00 : f32
    %167 = vector.broadcast %cst_60 : f32 to vector<64x1xf32>
    %168 = arith.subf %167, %166 : vector<64x1xf32>
    %169 = arith.mulf %165, %168 : vector<64x1xf32>
    %170 = vector.broadcast %169 : vector<64x1xf32> to vector<64x64xf32>
    %171 = arith.mulf %162, %170 : vector<64x64xf32>
    %cst_61 = arith.constant dense<0.000000e+00> : vector<64x32xf32>
    %172 = tpu.matmul %171, %156, %cst_61 {dimension_numbers = #tpu.dot_dimension_numbers<[1], [1], [0], [0], [0, 0, 1, 0], [], []>} : vector<64x64xf32>, vector<32x64xf32>, vector<64x32xf32> -> vector<64x32xf32>
    %c0_62 = arith.constant 0 : index
    %c224 = arith.constant 224 : index
    %173 = vector.load %arg10[%c0_62, %c224] : memref<128x256xf32, #tpu.memory_space<vmem>>, vector<64x32xf32>
    tpu.vector_store %arg10[%c0_62, %c224], %172 {strides = array<i32>} : memref<128x256xf32, #tpu.memory_space<vmem>>, vector<64x32xf32>,
    %174 = vector.extract_strided_slice %8 {offsets = [64, 0], sizes = [64, 32], strides = [1, 1]} : vector<128x256xf32> to vector<64x32xf32>
    %175 = vector.extract_strided_slice %13 {offsets = [0, 64], sizes = [32, 64], strides = [1, 1]} : vector<512x128xf32> to vector<32x64xf32>
    %176 = vector.extract_strided_slice %13 {offsets = [256, 64], sizes = [32, 64], strides = [1, 1]} : vector<512x128xf32> to vector<32x64xf32>
    %cst_63 = arith.constant dense<0.000000e+00> : vector<64x64xf32>
    %177 = tpu.matmul %174, %175, %cst_63 {dimension_numbers = #tpu.dot_dimension_numbers<[1], [0], [0], [1], [0, 0, 1, 1], [], []>} : vector<64x32xf32>, vector<32x64xf32>, vector<64x64xf32> -> vector<64x64xf32>
    %cst_64 = arith.constant dense<0xFF800000> : vector<64xf32>
    %178 = vector.multi_reduction <maximumf>, %177, %cst_64 [1] : vector<64x64xf32> to vector<64xf32>
    %179 = vector.shape_cast %178 : vector<64xf32> to vector<64x1xf32>
    %180 = vector.broadcast %179 : vector<64x1xf32> to vector<64x64xf32>
    %181 = arith.subf %177, %180 : vector<64x64xf32>
    %182 = math.exp %181 : vector<64x64xf32>
    %cst_65 = arith.constant dense<0.000000e+00> : vector<64xf32>
    %183 = vector.multi_reduction <add>, %182, %cst_65 [1] : vector<64x64xf32> to vector<64xf32>
    %184 = vector.shape_cast %183 : vector<64xf32> to vector<64x1xf32>
    %185 = tpu.reciprocal %184 {approx = true} : vector<64x1xf32> -> vector<64x1xf32>
    %186 = arith.mulf %184, %185 : vector<64x1xf32>
    %cst_66 = arith.constant 2.000000e+00 : f32
    %187 = vector.broadcast %cst_66 : f32 to vector<64x1xf32>
    %188 = arith.subf %187, %186 : vector<64x1xf32>
    %189 = arith.mulf %185, %188 : vector<64x1xf32>
    %190 = vector.broadcast %189 : vector<64x1xf32> to vector<64x64xf32>
    %191 = arith.mulf %182, %190 : vector<64x64xf32>
    %cst_67 = arith.constant dense<0.000000e+00> : vector<64x32xf32>
    %192 = tpu.matmul %191, %176, %cst_67 {dimension_numbers = #tpu.dot_dimension_numbers<[1], [1], [0], [0], [0, 0, 1, 0], [], []>} : vector<64x64xf32>, vector<32x64xf32>, vector<64x32xf32> -> vector<64x32xf32>
    %c64_68 = arith.constant 64 : index
    %c0_69 = arith.constant 0 : index
    %193 = vector.load %arg10[%c64_68, %c0_69] : memref<128x256xf32, #tpu.memory_space<vmem>>, vector<64x32xf32>
    tpu.vector_store %arg10[%c64_68, %c0_69], %192 {strides = array<i32>} : memref<128x256xf32, #tpu.memory_space<vmem>>, vector<64x32xf32>,
    %194 = vector.extract_strided_slice %8 {offsets = [64, 32], sizes = [64, 32], strides = [1, 1]} : vector<128x256xf32> to vector<64x32xf32>
    %195 = vector.extract_strided_slice %13 {offsets = [32, 64], sizes = [32, 64], strides = [1, 1]} : vector<512x128xf32> to vector<32x64xf32>
    %196 = vector.extract_strided_slice %13 {offsets = [288, 64], sizes = [32, 64], strides = [1, 1]} : vector<512x128xf32> to vector<32x64xf32>
    %cst_70 = arith.constant dense<0.000000e+00> : vector<64x64xf32>
    %197 = tpu.matmul %194, %195, %cst_70 {dimension_numbers = #tpu.dot_dimension_numbers<[1], [0], [0], [1], [0, 0, 1, 1], [], []>} : vector<64x32xf32>, vector<32x64xf32>, vector<64x64xf32> -> vector<64x64xf32>
    %cst_71 = arith.constant dense<0xFF800000> : vector<64xf32>
    %198 = vector.multi_reduction <maximumf>, %197, %cst_71 [1] : vector<64x64xf32> to vector<64xf32>
    %199 = vector.shape_cast %198 : vector<64xf32> to vector<64x1xf32>
    %200 = vector.broadcast %199 : vector<64x1xf32> to vector<64x64xf32>
    %201 = arith.subf %197, %200 : vector<64x64xf32>
    %202 = math.exp %201 : vector<64x64xf32>
    %cst_72 = arith.constant dense<0.000000e+00> : vector<64xf32>
    %203 = vector.multi_reduction <add>, %202, %cst_72 [1] : vector<64x64xf32> to vector<64xf32>
    %204 = vector.shape_cast %203 : vector<64xf32> to vector<64x1xf32>
    %205 = tpu.reciprocal %204 {approx = true} : vector<64x1xf32> -> vector<64x1xf32>
    %206 = arith.mulf %204, %205 : vector<64x1xf32>
    %cst_73 = arith.constant 2.000000e+00 : f32
    %207 = vector.broadcast %cst_73 : f32 to vector<64x1xf32>
    %208 = arith.subf %207, %206 : vector<64x1xf32>
    %209 = arith.mulf %205, %208 : vector<64x1xf32>
    %210 = vector.broadcast %209 : vector<64x1xf32> to vector<64x64xf32>
    %211 = arith.mulf %202, %210 : vector<64x64xf32>
    %cst_74 = arith.constant dense<0.000000e+00> : vector<64x32xf32>
    %212 = tpu.matmul %211, %196, %cst_74 {dimension_numbers = #tpu.dot_dimension_numbers<[1], [1], [0], [0], [0, 0, 1, 0], [], []>} : vector<64x64xf32>, vector<32x64xf32>, vector<64x32xf32> -> vector<64x32xf32>
    %c64_75 = arith.constant 64 : index
    %c32_76 = arith.constant 32 : index
    %213 = vector.load %arg10[%c64_75, %c32_76] : memref<128x256xf32, #tpu.memory_space<vmem>>, vector<64x32xf32>
    tpu.vector_store %arg10[%c64_75, %c32_76], %212 {strides = array<i32>} : memref<128x256xf32, #tpu.memory_space<vmem>>, vector<64x32xf32>,
    %214 = vector.extract_strided_slice %8 {offsets = [64, 64], sizes = [64, 32], strides = [1, 1]} : vector<128x256xf32> to vector<64x32xf32>
    %215 = vector.extract_strided_slice %13 {offsets = [64, 64], sizes = [32, 64], strides = [1, 1]} : vector<512x128xf32> to vector<32x64xf32>
    %216 = vector.extract_strided_slice %13 {offsets = [320, 64], sizes = [32, 64], strides = [1, 1]} : vector<512x128xf32> to vector<32x64xf32>
    %cst_77 = arith.constant dense<0.000000e+00> : vector<64x64xf32>
    %217 = tpu.matmul %214, %215, %cst_77 {dimension_numbers = #tpu.dot_dimension_numbers<[1], [0], [0], [1], [0, 0, 1, 1], [], []>} : vector<64x32xf32>, vector<32x64xf32>, vector<64x64xf32> -> vector<64x64xf32>
    %cst_78 = arith.constant dense<0xFF800000> : vector<64xf32>
    %218 = vector.multi_reduction <maximumf>, %217, %cst_78 [1] : vector<64x64xf32> to vector<64xf32>
    %219 = vector.shape_cast %218 : vector<64xf32> to vector<64x1xf32>
    %220 = vector.broadcast %219 : vector<64x1xf32> to vector<64x64xf32>
    %221 = arith.subf %217, %220 : vector<64x64xf32>
    %222 = math.exp %221 : vector<64x64xf32>
    %cst_79 = arith.constant dense<0.000000e+00> : vector<64xf32>
    %223 = vector.multi_reduction <add>, %222, %cst_79 [1] : vector<64x64xf32> to vector<64xf32>
    %224 = vector.shape_cast %223 : vector<64xf32> to vector<64x1xf32>
    %225 = tpu.reciprocal %224 {approx = true} : vector<64x1xf32> -> vector<64x1xf32>
    %226 = arith.mulf %224, %225 : vector<64x1xf32>
    %cst_80 = arith.constant 2.000000e+00 : f32
    %227 = vector.broadcast %cst_80 : f32 to vector<64x1xf32>
    %228 = arith.subf %227, %226 : vector<64x1xf32>
    %229 = arith.mulf %225, %228 : vector<64x1xf32>
    %230 = vector.broadcast %229 : vector<64x1xf32> to vector<64x64xf32>
    %231 = arith.mulf %222, %230 : vector<64x64xf32>
    %cst_81 = arith.constant dense<0.000000e+00> : vector<64x32xf32>
    %232 = tpu.matmul %231, %216, %cst_81 {dimension_numbers = #tpu.dot_dimension_numbers<[1], [1], [0], [0], [0, 0, 1, 0], [], []>} : vector<64x64xf32>, vector<32x64xf32>, vector<64x32xf32> -> vector<64x32xf32>
    %c64_82 = arith.constant 64 : index
    %c64_83 = arith.constant 64 : index
    %233 = vector.load %arg10[%c64_82, %c64_83] : memref<128x256xf32, #tpu.memory_space<vmem>>, vector<64x32xf32>
    tpu.vector_store %arg10[%c64_82, %c64_83], %232 {strides = array<i32>} : memref<128x256xf32, #tpu.memory_space<vmem>>, vector<64x32xf32>,
    %234 = vector.extract_strided_slice %8 {offsets = [64, 96], sizes = [64, 32], strides = [1, 1]} : vector<128x256xf32> to vector<64x32xf32>
    %235 = vector.extract_strided_slice %13 {offsets = [96, 64], sizes = [32, 64], strides = [1, 1]} : vector<512x128xf32> to vector<32x64xf32>
    %236 = vector.extract_strided_slice %13 {offsets = [352, 64], sizes = [32, 64], strides = [1, 1]} : vector<512x128xf32> to vector<32x64xf32>
    %cst_84 = arith.constant dense<0.000000e+00> : vector<64x64xf32>
    %237 = tpu.matmul %234, %235, %cst_84 {dimension_numbers = #tpu.dot_dimension_numbers<[1], [0], [0], [1], [0, 0, 1, 1], [], []>} : vector<64x32xf32>, vector<32x64xf32>, vector<64x64xf32> -> vector<64x64xf32>
    %cst_85 = arith.constant dense<0xFF800000> : vector<64xf32>
    %238 = vector.multi_reduction <maximumf>, %237, %cst_85 [1] : vector<64x64xf32> to vector<64xf32>
    %239 = vector.shape_cast %238 : vector<64xf32> to vector<64x1xf32>
    %240 = vector.broadcast %239 : vector<64x1xf32> to vector<64x64xf32>
    %241 = arith.subf %237, %240 : vector<64x64xf32>
    %242 = math.exp %241 : vector<64x64xf32>
    %cst_86 = arith.constant dense<0.000000e+00> : vector<64xf32>
    %243 = vector.multi_reduction <add>, %242, %cst_86 [1] : vector<64x64xf32> to vector<64xf32>
    %244 = vector.shape_cast %243 : vector<64xf32> to vector<64x1xf32>
    %245 = tpu.reciprocal %244 {approx = true} : vector<64x1xf32> -> vector<64x1xf32>
    %246 = arith.mulf %244, %245 : vector<64x1xf32>
    %cst_87 = arith.constant 2.000000e+00 : f32
    %247 = vector.broadcast %cst_87 : f32 to vector<64x1xf32>
    %248 = arith.subf %247, %246 : vector<64x1xf32>
    %249 = arith.mulf %245, %248 : vector<64x1xf32>
    %250 = vector.broadcast %249 : vector<64x1xf32> to vector<64x64xf32>
    %251 = arith.mulf %242, %250 : vector<64x64xf32>
    %cst_88 = arith.constant dense<0.000000e+00> : vector<64x32xf32>
    %252 = tpu.matmul %251, %236, %cst_88 {dimension_numbers = #tpu.dot_dimension_numbers<[1], [1], [0], [0], [0, 0, 1, 0], [], []>} : vector<64x64xf32>, vector<32x64xf32>, vector<64x32xf32> -> vector<64x32xf32>
    %c64_89 = arith.constant 64 : index
    %c96_90 = arith.constant 96 : index
    %253 = vector.load %arg10[%c64_89, %c96_90] : memref<128x256xf32, #tpu.memory_space<vmem>>, vector<64x32xf32>
    tpu.vector_store %arg10[%c64_89, %c96_90], %252 {strides = array<i32>} : memref<128x256xf32, #tpu.memory_space<vmem>>, vector<64x32xf32>,
    %254 = vector.extract_strided_slice %8 {offsets = [64, 128], sizes = [64, 32], strides = [1, 1]} : vector<128x256xf32> to vector<64x32xf32>
    %255 = vector.extract_strided_slice %13 {offsets = [128, 64], sizes = [32, 64], strides = [1, 1]} : vector<512x128xf32> to vector<32x64xf32>
    %256 = vector.extract_strided_slice %13 {offsets = [384, 64], sizes = [32, 64], strides = [1, 1]} : vector<512x128xf32> to vector<32x64xf32>
    %cst_91 = arith.constant dense<0.000000e+00> : vector<64x64xf32>
    %257 = tpu.matmul %254, %255, %cst_91 {dimension_numbers = #tpu.dot_dimension_numbers<[1], [0], [0], [1], [0, 0, 1, 1], [], []>} : vector<64x32xf32>, vector<32x64xf32>, vector<64x64xf32> -> vector<64x64xf32>
    %cst_92 = arith.constant dense<0xFF800000> : vector<64xf32>
    %258 = vector.multi_reduction <maximumf>, %257, %cst_92 [1] : vector<64x64xf32> to vector<64xf32>
    %259 = vector.shape_cast %258 : vector<64xf32> to vector<64x1xf32>
    %260 = vector.broadcast %259 : vector<64x1xf32> to vector<64x64xf32>
    %261 = arith.subf %257, %260 : vector<64x64xf32>
    %262 = math.exp %261 : vector<64x64xf32>
    %cst_93 = arith.constant dense<0.000000e+00> : vector<64xf32>
    %263 = vector.multi_reduction <add>, %262, %cst_93 [1] : vector<64x64xf32> to vector<64xf32>
    %264 = vector.shape_cast %263 : vector<64xf32> to vector<64x1xf32>
    %265 = tpu.reciprocal %264 {approx = true} : vector<64x1xf32> -> vector<64x1xf32>
    %266 = arith.mulf %264, %265 : vector<64x1xf32>
    %cst_94 = arith.constant 2.000000e+00 : f32
    %267 = vector.broadcast %cst_94 : f32 to vector<64x1xf32>
    %268 = arith.subf %267, %266 : vector<64x1xf32>
    %269 = arith.mulf %265, %268 : vector<64x1xf32>
    %270 = vector.broadcast %269 : vector<64x1xf32> to vector<64x64xf32>
    %271 = arith.mulf %262, %270 : vector<64x64xf32>
    %cst_95 = arith.constant dense<0.000000e+00> : vector<64x32xf32>
    %272 = tpu.matmul %271, %256, %cst_95 {dimension_numbers = #tpu.dot_dimension_numbers<[1], [1], [0], [0], [0, 0, 1, 0], [], []>} : vector<64x64xf32>, vector<32x64xf32>, vector<64x32xf32> -> vector<64x32xf32>
    %c64_96 = arith.constant 64 : index
    %c128_97 = arith.constant 128 : index
    %273 = vector.load %arg10[%c64_96, %c128_97] : memref<128x256xf32, #tpu.memory_space<vmem>>, vector<64x32xf32>
    tpu.vector_store %arg10[%c64_96, %c128_97], %272 {strides = array<i32>} : memref<128x256xf32, #tpu.memory_space<vmem>>, vector<64x32xf32>,
    %274 = vector.extract_strided_slice %8 {offsets = [64, 160], sizes = [64, 32], strides = [1, 1]} : vector<128x256xf32> to vector<64x32xf32>
    %275 = vector.extract_strided_slice %13 {offsets = [160, 64], sizes = [32, 64], strides = [1, 1]} : vector<512x128xf32> to vector<32x64xf32>
    %276 = vector.extract_strided_slice %13 {offsets = [416, 64], sizes = [32, 64], strides = [1, 1]} : vector<512x128xf32> to vector<32x64xf32>
    %cst_98 = arith.constant dense<0.000000e+00> : vector<64x64xf32>
    %277 = tpu.matmul %274, %275, %cst_98 {dimension_numbers = #tpu.dot_dimension_numbers<[1], [0], [0], [1], [0, 0, 1, 1], [], []>} : vector<64x32xf32>, vector<32x64xf32>, vector<64x64xf32> -> vector<64x64xf32>
    %cst_99 = arith.constant dense<0xFF800000> : vector<64xf32>
    %278 = vector.multi_reduction <maximumf>, %277, %cst_99 [1] : vector<64x64xf32> to vector<64xf32>
    %279 = vector.shape_cast %278 : vector<64xf32> to vector<64x1xf32>
    %280 = vector.broadcast %279 : vector<64x1xf32> to vector<64x64xf32>
    %281 = arith.subf %277, %280 : vector<64x64xf32>
    %282 = math.exp %281 : vector<64x64xf32>
    %cst_100 = arith.constant dense<0.000000e+00> : vector<64xf32>
    %283 = vector.multi_reduction <add>, %282, %cst_100 [1] : vector<64x64xf32> to vector<64xf32>
    %284 = vector.shape_cast %283 : vector<64xf32> to vector<64x1xf32>
    %285 = tpu.reciprocal %284 {approx = true} : vector<64x1xf32> -> vector<64x1xf32>
    %286 = arith.mulf %284, %285 : vector<64x1xf32>
    %cst_101 = arith.constant 2.000000e+00 : f32
    %287 = vector.broadcast %cst_101 : f32 to vector<64x1xf32>
    %288 = arith.subf %287, %286 : vector<64x1xf32>
    %289 = arith.mulf %285, %288 : vector<64x1xf32>
    %290 = vector.broadcast %289 : vector<64x1xf32> to vector<64x64xf32>
    %291 = arith.mulf %282, %290 : vector<64x64xf32>
    %cst_102 = arith.constant dense<0.000000e+00> : vector<64x32xf32>
    %292 = tpu.matmul %291, %276, %cst_102 {dimension_numbers = #tpu.dot_dimension_numbers<[1], [1], [0], [0], [0, 0, 1, 0], [], []>} : vector<64x64xf32>, vector<32x64xf32>, vector<64x32xf32> -> vector<64x32xf32>
    %c64_103 = arith.constant 64 : index
    %c160_104 = arith.constant 160 : index
    %293 = vector.load %arg10[%c64_103, %c160_104] : memref<128x256xf32, #tpu.memory_space<vmem>>, vector<64x32xf32>
    tpu.vector_store %arg10[%c64_103, %c160_104], %292 {strides = array<i32>} : memref<128x256xf32, #tpu.memory_space<vmem>>, vector<64x32xf32>,
    %294 = vector.extract_strided_slice %8 {offsets = [64, 192], sizes = [64, 32], strides = [1, 1]} : vector<128x256xf32> to vector<64x32xf32>
    %295 = vector.extract_strided_slice %13 {offsets = [192, 64], sizes = [32, 64], strides = [1, 1]} : vector<512x128xf32> to vector<32x64xf32>
    %296 = vector.extract_strided_slice %13 {offsets = [448, 64], sizes = [32, 64], strides = [1, 1]} : vector<512x128xf32> to vector<32x64xf32>
    %cst_105 = arith.constant dense<0.000000e+00> : vector<64x64xf32>
    %297 = tpu.matmul %294, %295, %cst_105 {dimension_numbers = #tpu.dot_dimension_numbers<[1], [0], [0], [1], [0, 0, 1, 1], [], []>} : vector<64x32xf32>, vector<32x64xf32>, vector<64x64xf32> -> vector<64x64xf32>
    %cst_106 = arith.constant dense<0xFF800000> : vector<64xf32>
    %298 = vector.multi_reduction <maximumf>, %297, %cst_106 [1] : vector<64x64xf32> to vector<64xf32>
    %299 = vector.shape_cast %298 : vector<64xf32> to vector<64x1xf32>
    %300 = vector.broadcast %299 : vector<64x1xf32> to vector<64x64xf32>
    %301 = arith.subf %297, %300 : vector<64x64xf32>
    %302 = math.exp %301 : vector<64x64xf32>
    %cst_107 = arith.constant dense<0.000000e+00> : vector<64xf32>
    %303 = vector.multi_reduction <add>, %302, %cst_107 [1] : vector<64x64xf32> to vector<64xf32>
    %304 = vector.shape_cast %303 : vector<64xf32> to vector<64x1xf32>
    %305 = tpu.reciprocal %304 {approx = true} : vector<64x1xf32> -> vector<64x1xf32>
    %306 = arith.mulf %304, %305 : vector<64x1xf32>
    %cst_108 = arith.constant 2.000000e+00 : f32
    %307 = vector.broadcast %cst_108 : f32 to vector<64x1xf32>
    %308 = arith.subf %307, %306 : vector<64x1xf32>
    %309 = arith.mulf %305, %308 : vector<64x1xf32>
    %310 = vector.broadcast %309 : vector<64x1xf32> to vector<64x64xf32>
    %311 = arith.mulf %302, %310 : vector<64x64xf32>
    %cst_109 = arith.constant dense<0.000000e+00> : vector<64x32xf32>
    %312 = tpu.matmul %311, %296, %cst_109 {dimension_numbers = #tpu.dot_dimension_numbers<[1], [1], [0], [0], [0, 0, 1, 0], [], []>} : vector<64x64xf32>, vector<32x64xf32>, vector<64x32xf32> -> vector<64x32xf32>
    %c64_110 = arith.constant 64 : index
    %c192_111 = arith.constant 192 : index
    %313 = vector.load %arg10[%c64_110, %c192_111] : memref<128x256xf32, #tpu.memory_space<vmem>>, vector<64x32xf32>
    tpu.vector_store %arg10[%c64_110, %c192_111], %312 {strides = array<i32>} : memref<128x256xf32, #tpu.memory_space<vmem>>, vector<64x32xf32>,
    %314 = vector.extract_strided_slice %8 {offsets = [64, 224], sizes = [64, 32], strides = [1, 1]} : vector<128x256xf32> to vector<64x32xf32>
    %315 = vector.extract_strided_slice %13 {offsets = [224, 64], sizes = [32, 64], strides = [1, 1]} : vector<512x128xf32> to vector<32x64xf32>
    %316 = vector.extract_strided_slice %13 {offsets = [480, 64], sizes = [32, 64], strides = [1, 1]} : vector<512x128xf32> to vector<32x64xf32>
    %cst_112 = arith.constant dense<0.000000e+00> : vector<64x64xf32>
    %317 = tpu.matmul %314, %315, %cst_112 {dimension_numbers = #tpu.dot_dimension_numbers<[1], [0], [0], [1], [0, 0, 1, 1], [], []>} : vector<64x32xf32>, vector<32x64xf32>, vector<64x64xf32> -> vector<64x64xf32>
    %cst_113 = arith.constant dense<0xFF800000> : vector<64xf32>
    %318 = vector.multi_reduction <maximumf>, %317, %cst_113 [1] : vector<64x64xf32> to vector<64xf32>
    %319 = vector.shape_cast %318 : vector<64xf32> to vector<64x1xf32>
    %320 = vector.broadcast %319 : vector<64x1xf32> to vector<64x64xf32>
    %321 = arith.subf %317, %320 : vector<64x64xf32>
    %322 = math.exp %321 : vector<64x64xf32>
    %cst_114 = arith.constant dense<0.000000e+00> : vector<64xf32>
    %323 = vector.multi_reduction <add>, %322, %cst_114 [1] : vector<64x64xf32> to vector<64xf32>
    %324 = vector.shape_cast %323 : vector<64xf32> to vector<64x1xf32>
    %325 = tpu.reciprocal %324 {approx = true} : vector<64x1xf32> -> vector<64x1xf32>
    %326 = arith.mulf %324, %325 : vector<64x1xf32>
    %cst_115 = arith.constant 2.000000e+00 : f32
    %327 = vector.broadcast %cst_115 : f32 to vector<64x1xf32>
    %328 = arith.subf %327, %326 : vector<64x1xf32>
    %329 = arith.mulf %325, %328 : vector<64x1xf32>
    %330 = vector.broadcast %329 : vector<64x1xf32> to vector<64x64xf32>
    %331 = arith.mulf %322, %330 : vector<64x64xf32>
    %cst_116 = arith.constant dense<0.000000e+00> : vector<64x32xf32>
    %332 = tpu.matmul %331, %316, %cst_116 {dimension_numbers = #tpu.dot_dimension_numbers<[1], [1], [0], [0], [0, 0, 1, 0], [], []>} : vector<64x64xf32>, vector<32x64xf32>, vector<64x32xf32> -> vector<64x32xf32>
    %c64_117 = arith.constant 64 : index
    %c224_118 = arith.constant 224 : index
    %333 = vector.load %arg10[%c64_117, %c224_118] : memref<128x256xf32, #tpu.memory_space<vmem>>, vector<64x32xf32>
    tpu.vector_store %arg10[%c64_117, %c224_118], %332 {strides = array<i32>} : memref<128x256xf32, #tpu.memory_space<vmem>>, vector<64x32xf32>,
    %c0_119 = arith.constant 0 : index
    %c0_120 = arith.constant 0 : index
    %334 = vector.load %arg10[%c0_119, %c0_120] : memref<128x256xf32, #tpu.memory_space<vmem>>, vector<128x256xf32>
    %c0_121 = arith.constant 0 : index
    %c0_122 = arith.constant 0 : index
    %335 = vector.load %arg7[%c0_121, %c0_122] : memref<256x256xf32, #tpu.memory_space<vmem>>, vector<256x256xf32>
    %cst_123 = arith.constant dense<0.000000e+00> : vector<128x256xf32>
    %336 = tpu.matmul %334, %335, %cst_123 {dimension_numbers = #tpu.dot_dimension_numbers<[1], [0], [0], [1], [0, 0, 1, 1], [], []>} : vector<128x256xf32>, vector<256x256xf32>, vector<128x256xf32> -> vector<128x256xf32>
    %c0_124 = arith.constant 0 : index
    %c0_125 = arith.constant 0 : index
    %337 = vector.load %arg8[%c0_124, %c0_125] : memref<1x256xf32, #tpu.memory_space<vmem>>, vector<1x256xf32>
    %338 = vector.broadcast %337 : vector<1x256xf32> to vector<128x256xf32>
    %339 = arith.addf %336, %338 : vector<128x256xf32>
    %c0_126 = arith.constant 0 : index
    %c0_127 = arith.constant 0 : index
    %c0_128 = arith.constant 0 : index
    %340 = vector.load %arg9[%c0_126, %c0_127, %c0_128] : memref<1x128x256xf32, #tpu.memory_space<vmem>>, vector<1x128x256xf32>
    %341 = vector.shape_cast %340 : vector<1x128x256xf32> to vector<128x256xf32>
    %342 = vector.shape_cast %339 : vector<128x256xf32> to vector<1x128x256xf32>
    tpu.vector_store %arg9[%c0_126, %c0_127, %c0_128], %342 {strides = array<i32>} : memref<1x128x256xf32, #tpu.memory_space<vmem>>, vector<1x128x256xf32>,
    return
  }
  func.func @transform_0(%arg0: i32) -> (i32, i32, i32) {
    %c0_i32 = arith.constant 0 : i32
    %c0_i32_0 = arith.constant 0 : i32
    %c0_i32_1 = arith.constant 0 : i32
    return %arg0, %c0_i32, %c0_i32_0 : i32, i32, i32
  }
  func.func @transform_1(%arg0: i32) -> (i32, i32, i32) {
    %c0_i32 = arith.constant 0 : i32
    %c0_i32_0 = arith.constant 0 : i32
    %c0_i32_1 = arith.constant 0 : i32
    return %arg0, %c0_i32, %c0_i32_0 : i32, i32, i32
  }
  func.func @transform_2(%arg0: i32) -> (i32, i32) {
    %c0_i32 = arith.constant 0 : i32
    %c0_i32_0 = arith.constant 0 : i32
    %c0_i32_1 = arith.constant 0 : i32
    return %c0_i32, %c0_i32_0 : i32, i32
  }
  func.func @transform_3(%arg0: i32) -> (i32, i32) {
    %c0_i32 = arith.constant 0 : i32
    %c0_i32_0 = arith.constant 0 : i32
    %c0_i32_1 = arith.constant 0 : i32
    return %c0_i32, %c0_i32_0 : i32, i32
  }
  func.func @transform_4(%arg0: i32) -> (i32, i32) {
    %c0_i32 = arith.constant 0 : i32
    %c0_i32_0 = arith.constant 0 : i32
    %c0_i32_1 = arith.constant 0 : i32
    return %c0_i32, %c0_i32_0 : i32, i32
  }
  func.func @transform_5(%arg0: i32) -> (i32, i32) {
    %c0_i32 = arith.constant 0 : i32
    %c0_i32_0 = arith.constant 0 : i32
    %c0_i32_1 = arith.constant 0 : i32
    return %c0_i32, %c0_i32_0 : i32, i32
  }
  func.func @transform_6(%arg0: i32) -> (i32, i32) {
    %c0_i32 = arith.constant 0 : i32
    %c0_i32_0 = arith.constant 0 : i32
    %c0_i32_1 = arith.constant 0 : i32
    return %c0_i32, %c0_i32_0 : i32, i32
  }
  func.func @transform_7(%arg0: i32) -> (i32, i32) {
    %c0_i32 = arith.constant 0 : i32
    %c0_i32_0 = arith.constant 0 : i32
    %c0_i32_1 = arith.constant 0 : i32
    return %c0_i32, %c0_i32_0 : i32, i32
  }
  func.func @transform_8(%arg0: i32) -> (i32, i32, i32) {
    %c0_i32 = arith.constant 0 : i32
    %c0_i32_0 = arith.constant 0 : i32
    %c0_i32_1 = arith.constant 0 : i32
    return %arg0, %c0_i32, %c0_i32_0 : i32, i32, i32
  }
}

</mosaic_0001>

<llo_original>
// kernel: tpu_custom_call.1
$region0: #{tpu_custom_call.1}
  #allocation0 [shape = 'u32[]', space=smem, size = 0x4, offset = 0x4, fixed_abs, tag = 'smem constant byte address 0x4 - core index']
  #allocation1 [shape = 'u32[144,128]{1,0:T(1,128)}', space=vmem, size = 0x12000, scoped, tag = 'internal scratch']
  #allocation2 [shape = 'f32[128,256]{1,0:T(8,128)}', space=vmem, size = 0x20000, scoped, tag = 'scratch operand']
  %s0 = inlined_call_operand.hbm [shape: f32[1,128,256], index: 0, kind: input, shape index: {}]
  %s1 = inlined_call_operand.hbm [shape: f32[1,256,128], index: 1, kind: input, shape index: {}]
  %s2 = inlined_call_operand.vmem [shape: f32[256,256], index: 2, kind: input, shape index: {}]
  %s3 = inlined_call_operand.vmem [shape: f32[1,256], index: 3, kind: input, shape index: {}]
  %s4 = inlined_call_operand.hbm [shape: f32[512,256], index: 4, kind: input, shape index: {}]
  %s5 = inlined_call_operand.vmem [shape: f32[512,1], index: 5, kind: input, shape index: {}]
  %s6 = inlined_call_operand.hbm [shape: f32[256,256], index: 6, kind: input, shape index: {}]
  %s7 = inlined_call_operand.vmem [shape: f32[1,256], index: 7, kind: input, shape index: {}]
  %s8 = inlined_call_operand.hbm [shape: f32[1,128,256], index: 8, kind: output, shape index: {}]
  %s9 = sld [smem:[#allocation0]]
  $region58: #{tpu_custom_call.1} parent=0
    _
  %s11 = ssub.s32 1, %s9
  %s12 = scalar_select 0, %s11, %s9
  $region1: #{tpu_custom_call.1} parent=0
    #allocation3 [shape = 'u8[131072]{0}', space=vmem, size = 0x20000, scoped, tag = 'input window, operand 0, single buffered']
    #allocation4 [shape = 's32[1]{0}', space=sflag, size = 0x4, scoped, tag = 'scoped memory for tpu_custom_call.1']
    #allocation5 [shape = 's32[1]{0}', space=sflag, size = 0x4, scoped, tag = 'scoped memory for tpu_custom_call.1']
    #allocation6 [shape = 'u8[131072]{0}', space=vmem, size = 0x20000, scoped, tag = 'input window, operand 1, single buffered']
    #allocation7 [shape = 's32[1]{0}', space=sflag, size = 0x4, scoped, tag = 'scoped memory for tpu_custom_call.1']
    #allocation8 [shape = 'u8[524288]{0}', space=vmem, size = 0x80000, scoped, tag = 'input window, operand 4, single buffered']
    #allocation9 [shape = 'u8[262144]{0}', space=vmem, size = 0x40000, scoped, tag = 'input window, operand 6, single buffered']
    #allocation10 [shape = 's32[1]{0}', space=sflag, size = 0x4, scoped, tag = 'scoped memory for tpu_custom_call.1']
    #allocation11 [shape = 'u8[131072]{0}', space=vmem, size = 0x20000, scoped, tag = 'output window, operand 0, single buffered']
    %13 = vsyncpa [#allocation4], 0
    %14 = vsyncpa [#allocation7], 0
    %15 = vsyncpa [#allocation10], 0
    %16 = vsyncpa [#allocation5], 0
    // Predicated region
    $region2: #{tpu_custom_call.1} parent=1 // pred_check
      _
    $region3: #{tpu_custom_call.1} parent=1 // pred_check_branch
      %18 = sbr.rel (0) target = $region5
    $region4: #{tpu_custom_call.1} parent=1 // pred_region
      %s20 = ssub.s32 4096, 4096
      %21 = vsyncadd [#allocation4], %s20
      %s22 = sshll.u32 [#allocation3], 4
      %s23 = int_to_ptr.vmem [resolvable:$true] %s22
      %28 = dma.hbm_to_vmem [thread:$0]  %s0, 4096, %s23, [#allocation4], 256, 256, 16
    $region5: #{tpu_custom_call.1} parent=1 // pred_fallthru
      _
    // Predicated region
    $region6: #{tpu_custom_call.1} parent=1 // pred_check
      _
    $region7: #{tpu_custom_call.1} parent=1 // pred_check_branch
      %30 = sbr.rel (0) target = $region9
    $region8: #{tpu_custom_call.1} parent=1 // pred_region
      %s32 = ssub.s32 4096, 4096
      %33 = vsyncadd [#allocation7], %s32
      %s34 = sshll.u32 [#allocation6], 4
      %s35 = int_to_ptr.vmem [resolvable:$true] %s34
      %40 = dma.hbm_to_vmem [thread:$0]  %s1, 4096, %s35, [#allocation7], 128, 128, 8
    $region9: #{tpu_custom_call.1} parent=1 // pred_fallthru
      _
    // Predicated region
    $region10: #{tpu_custom_call.1} parent=1 // pred_check
      _
    $region11: #{tpu_custom_call.1} parent=1 // pred_check_branch
      %42 = sbr.rel (0) target = $region13
    $region12: #{tpu_custom_call.1} parent=1 // pred_region
      _
    $region13: #{tpu_custom_call.1} parent=1 // pred_fallthru
      _
    // Predicated region
    $region14: #{tpu_custom_call.1} parent=1 // pred_check
      _
    $region15: #{tpu_custom_call.1} parent=1 // pred_check_branch
      %44 = sbr.rel (0) target = $region17
    $region16: #{tpu_custom_call.1} parent=1 // pred_region
      _
    $region17: #{tpu_custom_call.1} parent=1 // pred_fallthru
      _
    // Predicated region
    $region18: #{tpu_custom_call.1} parent=1 // pred_check
      _
    $region19: #{tpu_custom_call.1} parent=1 // pred_check_branch
      %46 = sbr.rel (0) target = $region21
    $region20: #{tpu_custom_call.1} parent=1 // pred_region
      %s48 = ssub.s32 16384, 16384
      %49 = vsyncadd [#allocation7], %s48
      %s50 = sshll.u32 [#allocation8], 4
      %s51 = int_to_ptr.vmem [resolvable:$true] %s50
      %56 = dma.hbm_to_vmem [thread:$0]  %s4, 16384, %s51, [#allocation7], 256, 256, 16
    $region21: #{tpu_custom_call.1} parent=1 // pred_fallthru
      _
    // Predicated region
    $region22: #{tpu_custom_call.1} parent=1 // pred_check
      _
    $region23: #{tpu_custom_call.1} parent=1 // pred_check_branch
      %58 = sbr.rel (0) target = $region25
    $region24: #{tpu_custom_call.1} parent=1 // pred_region
      _
    $region25: #{tpu_custom_call.1} parent=1 // pred_fallthru
      _
    // Predicated region
    $region26: #{tpu_custom_call.1} parent=1 // pred_check
      _
    $region27: #{tpu_custom_call.1} parent=1 // pred_check_branch
      %60 = sbr.rel (0) target = $region29
    $region28: #{tpu_custom_call.1} parent=1 // pred_region
      %s62 = ssub.s32 8192, 8192
      %63 = vsyncadd [#allocation10], %s62
      %s64 = sshll.u32 [#allocation9], 4
      %s65 = int_to_ptr.vmem [resolvable:$true] %s64
      %70 = dma.hbm_to_vmem [thread:$0]  %s6, 8192, %s65, [#allocation10], 256, 256, 16
    $region29: #{tpu_custom_call.1} parent=1 // pred_fallthru
      _
    // Predicated region
    $region30: #{tpu_custom_call.1} parent=1 // pred_check
      _
    $region31: #{tpu_custom_call.1} parent=1 // pred_check_branch
      %72 = sbr.rel (0) target = $region33
    $region32: #{tpu_custom_call.1} parent=1 // pred_region
      _
    $region33: #{tpu_custom_call.1} parent=1 // pred_fallthru
      _
    // Predicated region
    $region34: #{tpu_custom_call.1} parent=1 // pred_check
      _
    $region35: #{tpu_custom_call.1} parent=1 // pred_check_branch
      %74 = sbr.rel (0) target = $region37
    $region36: #{tpu_custom_call.1} parent=1 // pred_region
      %75 = dma.done [#allocation4], 4096
    $region37: #{tpu_custom_call.1} parent=1 // pred_fallthru
      _
    // Predicated region
    $region38: #{tpu_custom_call.1} parent=1 // pred_check
      _
    $region39: #{tpu_custom_call.1} parent=1 // pred_check_branch
      %77 = sbr.rel (0) target = $region41
    $region40: #{tpu_custom_call.1} parent=1 // pred_region
      %78 = dma.done [#allocation7], 4096
    $region41: #{tpu_custom_call.1} parent=1 // pred_fallthru
      _
    // Predicated region
    $region42: #{tpu_custom_call.1} parent=1 // pred_check
      _
    $region43: #{tpu_custom_call.1} parent=1 // pred_check_branch
      %80 = sbr.rel (0) target = $region45
    $region44: #{tpu_custom_call.1} parent=1 // pred_region
      %81 = dma.done [#allocation7], 16384
    $region45: #{tpu_custom_call.1} parent=1 // pred_fallthru
      _
    // Predicated region
    $region46: #{tpu_custom_call.1} parent=1 // pred_check
      _
    $region47: #{tpu_custom_call.1} parent=1 // pred_check_branch
      %83 = sbr.rel (0) target = $region49
    $region48: #{tpu_custom_call.1} parent=1 // pred_region
      %84 = dma.done [#allocation10], 8192
    $region49: #{tpu_custom_call.1} parent=1 // pred_fallthru
      _
    %v85 = vld [vmem:[#allocation3] sm:$0xff]
    %v86 = vld [vmem:[#allocation3 + $0x8] sm:$0xff]
    %v87 = vld [vmem:[#allocation3 + $0x10] sm:$0xff]
    %v88 = vld [vmem:[#allocation3 + $0x18] sm:$0xff]
    %v89 = vld [vmem:[#allocation3 + $0x20] sm:$0xff]
    %v90 = vld [vmem:[#allocation3 + $0x28] sm:$0xff]
    %v91 = vld [vmem:[#allocation3 + $0x30] sm:$0xff]
    %v92 = vld [vmem:[#allocation3 + $0x38] sm:$0xff]
    %v93 = vld [vmem:[#allocation3 + $0x40] sm:$0xff]
    %v94 = vld [vmem:[#allocation3 + $0x48] sm:$0xff]
    %v95 = vld [vmem:[#allocation3 + $0x50] sm:$0xff]
    %v96 = vld [vmem:[#allocation3 + $0x58] sm:$0xff]
    %v97 = vld [vmem:[#allocation3 + $0x60] sm:$0xff]
    %v98 = vld [vmem:[#allocation3 + $0x68] sm:$0xff]
    %v99 = vld [vmem:[#allocation3 + $0x70] sm:$0xff]
    %v100 = vld [vmem:[#allocation3 + $0x78] sm:$0xff]
    %v101 = vld [vmem:[#allocation3 + $0x80] sm:$0xff]
    %v102 = vld [vmem:[#allocation3 + $0x88] sm:$0xff]
    %v103 = vld [vmem:[#allocation3 + $0x90] sm:$0xff]
    %v104 = vld [vmem:[#allocation3 + $0x98] sm:$0xff]
    %v105 = vld [vmem:[#allocation3 + $0xa0] sm:$0xff]
    %v106 = vld [vmem:[#allocation3 + $0xa8] sm:$0xff]
    %v107 = vld [vmem:[#allocation3 + $0xb0] sm:$0xff]
    %v108 = vld [vmem:[#allocation3 + $0xb8] sm:$0xff]
    %v109 = vld [vmem:[#allocation3 + $0xc0] sm:$0xff]
    %v110 = vld [vmem:[#allocation3 + $0xc8] sm:$0xff]
    %v111 = vld [vmem:[#allocation3 + $0xd0] sm:$0xff]
    %v112 = vld [vmem:[#allocation3 + $0xd8] sm:$0xff]
    %v113 = vld [vmem:[#allocation3 + $0xe0] sm:$0xff]
    %v114 = vld [vmem:[#allocation3 + $0xe8] sm:$0xff]
    %v115 = vld [vmem:[#allocation3 + $0xf0] sm:$0xff]
    %v116 = vld [vmem:[#allocation3 + $0xf8] sm:$0xff]
    %v117 = vld [vmem:[#allocation6] sm:$0xff]
    %v118 = vld [vmem:[#allocation6 + $0x8] sm:$0xff]
    %v119 = vld [vmem:[#allocation6 + $0x10] sm:$0xff]
    %v120 = vld [vmem:[#allocation6 + $0x18] sm:$0xff]
    %v121 = vld [vmem:[#allocation6 + $0x20] sm:$0xff]
    %v122 = vld [vmem:[#allocation6 + $0x28] sm:$0xff]
    %v123 = vld [vmem:[#allocation6 + $0x30] sm:$0xff]
    %v124 = vld [vmem:[#allocation6 + $0x38] sm:$0xff]
    %v125 = vld [vmem:[#allocation6 + $0x40] sm:$0xff]
    %v126 = vld [vmem:[#allocation6 + $0x48] sm:$0xff]
    %v127 = vld [vmem:[#allocation6 + $0x50] sm:$0xff]
    %v128 = vld [vmem:[#allocation6 + $0x58] sm:$0xff]
    %v129 = vld [vmem:[#allocation6 + $0x60] sm:$0xff]
    %v130 = vld [vmem:[#allocation6 + $0x68] sm:$0xff]
    %v131 = vld [vmem:[#allocation6 + $0x70] sm:$0xff]
    %v132 = vld [vmem:[#allocation6 + $0x78] sm:$0xff]
    %v133 = vld [vmem:[#allocation6 + $0x80] sm:$0xff]
    %v134 = vld [vmem:[#allocation6 + $0x88] sm:$0xff]
    %v135 = vld [vmem:[#allocation6 + $0x90] sm:$0xff]
    %v136 = vld [vmem:[#allocation6 + $0x98] sm:$0xff]
    %v137 = vld [vmem:[#allocation6 + $0xa0] sm:$0xff]
    %v138 = vld [vmem:[#allocation6 + $0xa8] sm:$0xff]
    %v139 = vld [vmem:[#allocation6 + $0xb0] sm:$0xff]
    %v140 = vld [vmem:[#allocation6 + $0xb8] sm:$0xff]
    %v141 = vld [vmem:[#allocation6 + $0xc0] sm:$0xff]
    %v142 = vld [vmem:[#allocation6 + $0xc8] sm:$0xff]
    %v143 = vld [vmem:[#allocation6 + $0xd0] sm:$0xff]
    %v144 = vld [vmem:[#allocation6 + $0xd8] sm:$0xff]
    %v145 = vld [vmem:[#allocation6 + $0xe0] sm:$0xff]
    %v146 = vld [vmem:[#allocation6 + $0xe8] sm:$0xff]
    %v147 = vld [vmem:[#allocation6 + $0xf0] sm:$0xff]
    %v148 = vld [vmem:[#allocation6 + $0xf8] sm:$0xff]
    %v149 = vld [vmem:[%s2] sm:$0xff]
    %v150 = vld [vmem:[%s2 + $0x8] sm:$0xff]
    %v151 = vld [vmem:[%s2 + $0x10] sm:$0xff]
    %v152 = vld [vmem:[%s2 + $0x18] sm:$0xff]
    %v153 = vld [vmem:[%s2 + $0x20] sm:$0xff]
    %v154 = vld [vmem:[%s2 + $0x28] sm:$0xff]
    %v155 = vld [vmem:[%s2 + $0x30] sm:$0xff]
    %v156 = vld [vmem:[%s2 + $0x38] sm:$0xff]
    %v157 = vld [vmem:[%s2 + $0x40] sm:$0xff]
    %v158 = vld [vmem:[%s2 + $0x48] sm:$0xff]
    %v159 = vld [vmem:[%s2 + $0x50] sm:$0xff]
    %v160 = vld [vmem:[%s2 + $0x58] sm:$0xff]
    %v161 = vld [vmem:[%s2 + $0x60] sm:$0xff]
    %v162 = vld [vmem:[%s2 + $0x68] sm:$0xff]
    %v163 = vld [vmem:[%s2 + $0x70] sm:$0xff]
    %v164 = vld [vmem:[%s2 + $0x78] sm:$0xff]
    %v165 = vld [vmem:[%s2 + $0x80] sm:$0xff]
    %v166 = vld [vmem:[%s2 + $0x88] sm:$0xff]
    %v167 = vld [vmem:[%s2 + $0x90] sm:$0xff]
    %v168 = vld [vmem:[%s2 + $0x98] sm:$0xff]
    %v169 = vld [vmem:[%s2 + $0xa0] sm:$0xff]
    %v170 = vld [vmem:[%s2 + $0xa8] sm:$0xff]
    %v171 = vld [vmem:[%s2 + $0xb0] sm:$0xff]
    %v172 = vld [vmem:[%s2 + $0xb8] sm:$0xff]
    %v173 = vld [vmem:[%s2 + $0xc0] sm:$0xff]
    %v174 = vld [vmem:[%s2 + $0xc8] sm:$0xff]
    %v175 = vld [vmem:[%s2 + $0xd0] sm:$0xff]
    %v176 = vld [vmem:[%s2 + $0xd8] sm:$0xff]
    %v177 = vld [vmem:[%s2 + $0xe0] sm:$0xff]
    %v178 = vld [vmem:[%s2 + $0xe8] sm:$0xff]
    %v179 = vld [vmem:[%s2 + $0xf0] sm:$0xff]
    %v180 = vld [vmem:[%s2 + $0xf8] sm:$0xff]
    %v181 = vld [vmem:[%s2 + $0x100] sm:$0xff]
    %v182 = vld [vmem:[%s2 + $0x108] sm:$0xff]
    %v183 = vld [vmem:[%s2 + $0x110] sm:$0xff]
    %v184 = vld [vmem:[%s2 + $0x118] sm:$0xff]
    %v185 = vld [vmem:[%s2 + $0x120] sm:$0xff]
    %v186 = vld [vmem:[%s2 + $0x128] sm:$0xff]
    %v187 = vld [vmem:[%s2 + $0x130] sm:$0xff]
    %v188 = vld [vmem:[%s2 + $0x138] sm:$0xff]
    %v189 = vld [vmem:[%s2 + $0x140] sm:$0xff]
    %v190 = vld [vmem:[%s2 + $0x148] sm:$0xff]
    %v191 = vld [vmem:[%s2 + $0x150] sm:$0xff]
    %v192 = vld [vmem:[%s2 + $0x158] sm:$0xff]
    %v193 = vld [vmem:[%s2 + $0x160] sm:$0xff]
    %v194 = vld [vmem:[%s2 + $0x168] sm:$0xff]
    %v195 = vld [vmem:[%s2 + $0x170] sm:$0xff]
    %v196 = vld [vmem:[%s2 + $0x178] sm:$0xff]
    %v197 = vld [vmem:[%s2 + $0x180] sm:$0xff]
    %v198 = vld [vmem:[%s2 + $0x188] sm:$0xff]
    %v199 = vld [vmem:[%s2 + $0x190] sm:$0xff]
    %v200 = vld [vmem:[%s2 + $0x198] sm:$0xff]
    %v201 = vld [vmem:[%s2 + $0x1a0] sm:$0xff]
    %v202 = vld [vmem:[%s2 + $0x1a8] sm:$0xff]
    %v203 = vld [vmem:[%s2 + $0x1b0] sm:$0xff]
    %v204 = vld [vmem:[%s2 + $0x1b8] sm:$0xff]
    %v205 = vld [vmem:[%s2 + $0x1c0] sm:$0xff]
    %v206 = vld [vmem:[%s2 + $0x1c8] sm:$0xff]
    %v207 = vld [vmem:[%s2 + $0x1d0] sm:$0xff]
    %v208 = vld [vmem:[%s2 + $0x1d8] sm:$0xff]
    %v209 = vld [vmem:[%s2 + $0x1e0] sm:$0xff]
    %v210 = vld [vmem:[%s2 + $0x1e8] sm:$0xff]
    %v211 = vld [vmem:[%s2 + $0x1f0] sm:$0xff]
    %v212 = vld [vmem:[%s2 + $0x1f8] sm:$0xff]
    %v213 = vld [vmem:[%s3] sm:$0x3]
    %v215 = vlaneseq
    %v216 = vshrl.u32 %v215, 7
    %v217 = vsub.s32 0, %v216
    %v218 = vrot.slane %v213, %v217
    %v219 = vlaneseq
    %v220 = vshrl.u32 %v219, 7
    %v221 = vsub.s32 1, %v220
    %v222 = vrot.slane %v213, %v221
    %225 = vmatprep.subr.mxu0 %v150
    %226 = vmatpush1.msra.mxu0 %v149
    %227 = vmatprep.subr.mxu0 %v152
    %228 = vmatpush1.msra.mxu0 %v151
    %229 = vmatprep.subr.mxu0 %v154
    %230 = vmatpush1.msra.mxu0 %v153
    %231 = vmatprep.subr.mxu0 %v156
    %232 = vmatpush1.msra.mxu0 %v155
    %233 = vmatprep.subr.mxu0 %v158
    %234 = vmatpush1.msra.mxu0 %v157
    %235 = vmatprep.subr.mxu0 %v160
    %236 = vmatpush1.msra.mxu0 %v159
    %237 = vmatprep.subr.mxu0 %v162
    %238 = vmatpush1.msra.mxu0 %v161
    %239 = vmatprep.subr.mxu0 %v164
    %240 = vmatpush1.msra.mxu0 %v163
    %241 = vmatprep.subr.mxu0 %v166
    %242 = vmatpush1.msra.mxu0 %v165
    %243 = vmatprep.subr.mxu0 %v168
    %244 = vmatpush1.msra.mxu0 %v167
    %245 = vmatprep.subr.mxu0 %v170
    %246 = vmatpush1.msra.mxu0 %v169
    %247 = vmatprep.subr.mxu0 %v172
    %248 = vmatpush1.msra.mxu0 %v171
    %249 = vmatprep.subr.mxu0 %v174
    %250 = vmatpush1.msra.mxu0 %v173
    %251 = vmatprep.subr.mxu0 %v176
    %252 = vmatpush1.msra.mxu0 %v175
    %253 = vmatprep.subr.mxu0 %v178
    %254 = vmatpush1.msra.mxu0 %v177
    %255 = vmatprep.subr.mxu0 %v180
    %256 = vmatpush1.msra.mxu0 %v179
    %257 = vmatprep.subr.mxu0 %v182
    %258 = vmatpush1.msra.mxu0 %v181
    %259 = vmatprep.subr.mxu0 %v184
    %260 = vmatpush1.msra.mxu0 %v183
    %261 = vmatprep.subr.mxu0 %v186
    %262 = vmatpush1.msra.mxu0 %v185
    %263 = vmatprep.subr.mxu0 %v188
    %264 = vmatpush1.msra.mxu0 %v187
    %265 = vmatprep.subr.mxu0 %v190
    %266 = vmatpush1.msra.mxu0 %v189
    %267 = vmatprep.subr.mxu0 %v192
    %268 = vmatpush1.msra.mxu0 %v191
    %269 = vmatprep.subr.mxu0 %v194
    %270 = vmatpush1.msra.mxu0 %v193
    %271 = vmatprep.subr.mxu0 %v196
    %272 = vmatpush1.msra.mxu0 %v195
    %273 = vmatprep.subr.mxu0 %v198
    %274 = vmatpush1.msra.mxu0 %v197
    %275 = vmatprep.subr.mxu0 %v200
    %276 = vmatpush1.msra.mxu0 %v199
    %277 = vmatprep.subr.mxu0 %v202
    %278 = vmatpush1.msra.mxu0 %v201
    %279 = vmatprep.subr.mxu0 %v204
    %280 = vmatpush1.msra.mxu0 %v203
    %281 = vmatprep.subr.mxu0 %v206
    %282 = vmatpush1.msra.mxu0 %v205
    %283 = vmatprep.subr.mxu0 %v208
    %284 = vmatpush1.msra.mxu0 %v207
    %285 = vmatprep.subr.mxu0 %v210
    %286 = vmatpush1.msra.mxu0 %v209
    %287 = vmatprep.subr.mxu0 %v212
    %288 = vmatpush1.msra.mxu0 %v211
    %289 = vmatprep.mubr.f32.mxu0 %v86
    %290 = vmatmul.mubr.f32.gmra.mrb[0].mxu0 %v85
    %v291 = vpop.f32.mrb[0].mxu0
    %v292 = vadd.f32 %v218, %v291
    %v293 = vpop.f32.mrb[0].mxu0
    %v294 = vadd.f32 %v222, %v293
    %295 = vmatprep.mubr.f32.mxu0 %v88
    %296 = vmatmul.mubr.f32.gmra.mrb[0].mxu0 %v87
    %v297 = vpop.f32.mrb[0].mxu0
    %v298 = vadd.f32 %v218, %v297
    %v299 = vpop.f32.mrb[0].mxu0
    %v300 = vadd.f32 %v222, %v299
    %301 = vmatprep.mubr.f32.mxu0 %v90
    %302 = vmatmul.mubr.f32.gmra.mrb[0].mxu0 %v89
    %v303 = vpop.f32.mrb[0].mxu0
    %v304 = vadd.f32 %v218, %v303
    %v305 = vpop.f32.mrb[0].mxu0
    %v306 = vadd.f32 %v222, %v305
    %307 = vmatprep.mubr.f32.mxu0 %v92
    %308 = vmatmul.mubr.f32.gmra.mrb[0].mxu0 %v91
    %v309 = vpop.f32.mrb[0].mxu0
    %v310 = vadd.f32 %v218, %v309
    %v311 = vpop.f32.mrb[0].mxu0
    %v312 = vadd.f32 %v222, %v311
    %313 = vmatprep.mubr.f32.mxu0 %v94
    %314 = vmatmul.mubr.f32.gmra.mrb[0].mxu0 %v93
    %v315 = vpop.f32.mrb[0].mxu0
    %v316 = vadd.f32 %v218, %v315
    %v317 = vpop.f32.mrb[0].mxu0
    %v318 = vadd.f32 %v222, %v317
    %319 = vmatprep.mubr.f32.mxu0 %v96
    %320 = vmatmul.mubr.f32.gmra.mrb[0].mxu0 %v95
    %v321 = vpop.f32.mrb[0].mxu0
    %v322 = vadd.f32 %v218, %v321
    %v323 = vpop.f32.mrb[0].mxu0
    %v324 = vadd.f32 %v222, %v323
    %325 = vmatprep.mubr.f32.mxu0 %v98
    %326 = vmatmul.mubr.f32.gmra.mrb[0].mxu0 %v97
    %v327 = vpop.f32.mrb[0].mxu0
    %v328 = vadd.f32 %v218, %v327
    %v329 = vpop.f32.mrb[0].mxu0
    %v330 = vadd.f32 %v222, %v329
    %331 = vmatprep.mubr.f32.mxu0 %v100
    %332 = vmatmul.mubr.f32.gmra.mrb[0].mxu0 %v99
    %v333 = vpop.f32.mrb[0].mxu0
    %v334 = vadd.f32 %v218, %v333
    %v335 = vpop.f32.mrb[0].mxu0
    %v336 = vadd.f32 %v222, %v335
    %337 = vmatprep.mubr.f32.mxu0 %v102
    %338 = vmatmul.mubr.f32.gmra.mrb[0].mxu0 %v101
    %v339 = vpop.f32.mrb[0].mxu0
    %v340 = vadd.f32 %v218, %v339
    %v341 = vpop.f32.mrb[0].mxu0
    %v342 = vadd.f32 %v222, %v341
    %343 = vmatprep.mubr.f32.mxu0 %v104
    %344 = vmatmul.mubr.f32.gmra.mrb[0].mxu0 %v103
    %v345 = vpop.f32.mrb[0].mxu0
    %v346 = vadd.f32 %v218, %v345
    %v347 = vpop.f32.mrb[0].mxu0
    %v348 = vadd.f32 %v222, %v347
    %349 = vmatprep.mubr.f32.mxu0 %v106
    %350 = vmatmul.mubr.f32.gmra.mrb[0].mxu0 %v105
    %v351 = vpop.f32.mrb[0].mxu0
    %v352 = vadd.f32 %v218, %v351
    %v353 = vpop.f32.mrb[0].mxu0
    %v354 = vadd.f32 %v222, %v353
    %355 = vmatprep.mubr.f32.mxu0 %v108
    %356 = vmatmul.mubr.f32.gmra.mrb[0].mxu0 %v107
    %v357 = vpop.f32.mrb[0].mxu0
    %v358 = vadd.f32 %v218, %v357
    %v359 = vpop.f32.mrb[0].mxu0
    %v360 = vadd.f32 %v222, %v359
    %361 = vmatprep.mubr.f32.mxu0 %v110
    %362 = vmatmul.mubr.f32.gmra.mrb[0].mxu0 %v109
    %v363 = vpop.f32.mrb[0].mxu0
    %v364 = vadd.f32 %v218, %v363
    %v365 = vpop.f32.mrb[0].mxu0
    %v366 = vadd.f32 %v222, %v365
    %367 = vmatprep.mubr.f32.mxu0 %v112
    %368 = vmatmul.mubr.f32.gmra.mrb[0].mxu0 %v111
    %v369 = vpop.f32.mrb[0].mxu0
    %v370 = vadd.f32 %v218, %v369
    %v371 = vpop.f32.mrb[0].mxu0
    %v372 = vadd.f32 %v222, %v371
    %373 = vmatprep.mubr.f32.mxu0 %v114
    %374 = vmatmul.mubr.f32.gmra.mrb[0].mxu0 %v113
    %v375 = vpop.f32.mrb[0].mxu0
    %v376 = vadd.f32 %v218, %v375
    %v377 = vpop.f32.mrb[0].mxu0
    %v378 = vadd.f32 %v222, %v377
    %379 = vmatprep.mubr.f32.mxu0 %v116
    %380 = vmatmul.mubr.f32.gmra.mrb[0].mxu0 %v115
    %v381 = vpop.f32.mrb[0].mxu0
    %v382 = vadd.f32 %v218, %v381
    %v383 = vpop.f32.mrb[0].mxu0
    %v384 = vadd.f32 %v222, %v383
    %385 = vdwg.mxu0
    %v386 = vld [vmem:[#allocation8] sm:$0xff]
    %v387 = vld [vmem:[#allocation8 + $0x8] sm:$0xff]
    %v388 = vld [vmem:[#allocation8 + $0x10] sm:$0xff]
    %v389 = vld [vmem:[#allocation8 + $0x18] sm:$0xff]
    %v390 = vld [vmem:[#allocation8 + $0x20] sm:$0xff]
    %v391 = vld [vmem:[#allocation8 + $0x28] sm:$0xff]
    %v392 = vld [vmem:[#allocation8 + $0x30] sm:$0xff]
    %v393 = vld [vmem:[#allocation8 + $0x38] sm:$0xff]
    %v394 = vld [vmem:[#allocation8 + $0x40] sm:$0xff]
    %v395 = vld [vmem:[#allocation8 + $0x48] sm:$0xff]
    %v396 = vld [vmem:[#allocation8 + $0x50] sm:$0xff]
    %v397 = vld [vmem:[#allocation8 + $0x58] sm:$0xff]
    %v398 = vld [vmem:[#allocation8 + $0x60] sm:$0xff]
    %v399 = vld [vmem:[#allocation8 + $0x68] sm:$0xff]
    %v400 = vld [vmem:[#allocation8 + $0x70] sm:$0xff]
    %v401 = vld [vmem:[#allocation8 + $0x78] sm:$0xff]
    %v402 = vld [vmem:[#allocation8 + $0x80] sm:$0xff]
    %v403 = vld [vmem:[#allocation8 + $0x88] sm:$0xff]
    %v404 = vld [vmem:[#allocation8 + $0x90] sm:$0xff]
    %v405 = vld [vmem:[#allocation8 + $0x98] sm:$0xff]
    %v406 = vld [vmem:[#allocation8 + $0xa0] sm:$0xff]
    %v407 = vld [vmem:[#allocation8 + $0xa8] sm:$0xff]
    %v408 = vld [vmem:[#allocation8 + $0xb0] sm:$0xff]
    %v409 = vld [vmem:[#allocation8 + $0xb8] sm:$0xff]
    %v410 = vld [vmem:[#allocation8 + $0xc0] sm:$0xff]
    %v411 = vld [vmem:[#allocation8 + $0xc8] sm:$0xff]
    %v412 = vld [vmem:[#allocation8 + $0xd0] sm:$0xff]
    %v413 = vld [vmem:[#allocation8 + $0xd8] sm:$0xff]
    %v414 = vld [vmem:[#allocation8 + $0xe0] sm:$0xff]
    %v415 = vld [vmem:[#allocation8 + $0xe8] sm:$0xff]
    %v416 = vld [vmem:[#allocation8 + $0xf0] sm:$0xff]
    %v417 = vld [vmem:[#allocation8 + $0xf8] sm:$0xff]
    %v418 = vld [vmem:[#allocation8 + $0x100] sm:$0xff]
    %v419 = vld [vmem:[#allocation8 + $0x108] sm:$0xff]
    %v420 = vld [vmem:[#allocation8 + $0x110] sm:$0xff]
    %v421 = vld [vmem:[#allocation8 + $0x118] sm:$0xff]
    %v422 = vld [vmem:[#allocation8 + $0x120] sm:$0xff]
    %v423 = vld [vmem:[#allocation8 + $0x128] sm:$0xff]
    %v424 = vld [vmem:[#allocation8 + $0x130] sm:$0xff]
    %v425 = vld [vmem:[#allocation8 + $0x138] sm:$0xff]
    %v426 = vld [vmem:[#allocation8 + $0x140] sm:$0xff]
    %v427 = vld [vmem:[#allocation8 + $0x148] sm:$0xff]
    %v428 = vld [vmem:[#allocation8 + $0x150] sm:$0xff]
    %v429 = vld [vmem:[#allocation8 + $0x158] sm:$0xff]
    %v430 = vld [vmem:[#allocation8 + $0x160] sm:$0xff]
    %v431 = vld [vmem:[#allocation8 + $0x168] sm:$0xff]
    %v432 = vld [vmem:[#allocation8 + $0x170] sm:$0xff]
    %v433 = vld [vmem:[#allocation8 + $0x178] sm:$0xff]
    %v434 = vld [vmem:[#allocation8 + $0x180] sm:$0xff]
    %v435 = vld [vmem:[#allocation8 + $0x188] sm:$0xff]
    %v436 = vld [vmem:[#allocation8 + $0x190] sm:$0xff]
    %v437 = vld [vmem:[#allocation8 + $0x198] sm:$0xff]
    %v438 = vld [vmem:[#allocation8 + $0x1a0] sm:$0xff]
    %v439 = vld [vmem:[#allocation8 + $0x1a8] sm:$0xff]
    %v440 = vld [vmem:[#allocation8 + $0x1b0] sm:$0xff]
    %v441 = vld [vmem:[#allocation8 + $0x1b8] sm:$0xff]
    %v442 = vld [vmem:[#allocation8 + $0x1c0] sm:$0xff]
    %v443 = vld [vmem:[#allocation8 + $0x1c8] sm:$0xff]
    %v444 = vld [vmem:[#allocation8 + $0x1d0] sm:$0xff]
    %v445 = vld [vmem:[#allocation8 + $0x1d8] sm:$0xff]
    %v446 = vld [vmem:[#allocation8 + $0x1e0] sm:$0xff]
    %v447 = vld [vmem:[#allocation8 + $0x1e8] sm:$0xff]
    %v448 = vld [vmem:[#allocation8 + $0x1f0] sm:$0xff]
    %v449 = vld [vmem:[#allocation8 + $0x1f8] sm:$0xff]
    %v450 = vld [vmem:[#allocation8 + $0x200] sm:$0xff]
    %v451 = vld [vmem:[#allocation8 + $0x208] sm:$0xff]
    %v452 = vld [vmem:[#allocation8 + $0x210] sm:$0xff]
    %v453 = vld [vmem:[#allocation8 + $0x218] sm:$0xff]
    %v454 = vld [vmem:[#allocation8 + $0x220] sm:$0xff]
    %v455 = vld [vmem:[#allocation8 + $0x228] sm:$0xff]
    %v456 = vld [vmem:[#allocation8 + $0x230] sm:$0xff]
    %v457 = vld [vmem:[#allocation8 + $0x238] sm:$0xff]
    %v458 = vld [vmem:[#allocation8 + $0x240] sm:$0xff]
    %v459 = vld [vmem:[#allocation8 + $0x248] sm:$0xff]
    %v460 = vld [vmem:[#allocation8 + $0x250] sm:$0xff]
    %v461 = vld [vmem:[#allocation8 + $0x258] sm:$0xff]
    %v462 = vld [vmem:[#allocation8 + $0x260] sm:$0xff]
    %v463 = vld [vmem:[#allocation8 + $0x268] sm:$0xff]
    %v464 = vld [vmem:[#allocation8 + $0x270] sm:$0xff]
    %v465 = vld [vmem:[#allocation8 + $0x278] sm:$0xff]
    %v466 = vld [vmem:[#allocation8 + $0x280] sm:$0xff]
    %v467 = vld [vmem:[#allocation8 + $0x288] sm:$0xff]
    %v468 = vld [vmem:[#allocation8 + $0x290] sm:$0xff]
    %v469 = vld [vmem:[#allocation8 + $0x298] sm:$0xff]
    %v470 = vld [vmem:[#allocation8 + $0x2a0] sm:$0xff]
    %v471 = vld [vmem:[#allocation8 + $0x2a8] sm:$0xff]
    %v472 = vld [vmem:[#allocation8 + $0x2b0] sm:$0xff]
    %v473 = vld [vmem:[#allocation8 + $0x2b8] sm:$0xff]
    %v474 = vld [vmem:[#allocation8 + $0x2c0] sm:$0xff]
    %v475 = vld [vmem:[#allocation8 + $0x2c8] sm:$0xff]
    %v476 = vld [vmem:[#allocation8 + $0x2d0] sm:$0xff]
    %v477 = vld [vmem:[#allocation8 + $0x2d8] sm:$0xff]
    %v478 = vld [vmem:[#allocation8 + $0x2e0] sm:$0xff]
    %v479 = vld [vmem:[#allocation8 + $0x2e8] sm:$0xff]
    %v480 = vld [vmem:[#allocation8 + $0x2f0] sm:$0xff]
    %v481 = vld [vmem:[#allocation8 + $0x2f8] sm:$0xff]
    %v482 = vld [vmem:[#allocation8 + $0x300] sm:$0xff]
    %v483 = vld [vmem:[#allocation8 + $0x308] sm:$0xff]
    %v484 = vld [vmem:[#allocation8 + $0x310] sm:$0xff]
    %v485 = vld [vmem:[#allocation8 + $0x318] sm:$0xff]
    %v486 = vld [vmem:[#allocation8 + $0x320] sm:$0xff]
    %v487 = vld [vmem:[#allocation8 + $0x328] sm:$0xff]
    %v488 = vld [vmem:[#allocation8 + $0x330] sm:$0xff]
    %v489 = vld [vmem:[#allocation8 + $0x338] sm:$0xff]
    %v490 = vld [vmem:[#allocation8 + $0x340] sm:$0xff]
    %v491 = vld [vmem:[#allocation8 + $0x348] sm:$0xff]
    %v492 = vld [vmem:[#allocation8 + $0x350] sm:$0xff]
    %v493 = vld [vmem:[#allocation8 + $0x358] sm:$0xff]
    %v494 = vld [vmem:[#allocation8 + $0x360] sm:$0xff]
    %v495 = vld [vmem:[#allocation8 + $0x368] sm:$0xff]
    %v496 = vld [vmem:[#allocation8 + $0x370] sm:$0xff]
    %v497 = vld [vmem:[#allocation8 + $0x378] sm:$0xff]
    %v498 = vld [vmem:[#allocation8 + $0x380] sm:$0xff]
    %v499 = vld [vmem:[#allocation8 + $0x388] sm:$0xff]
    %v500 = vld [vmem:[#allocation8 + $0x390] sm:$0xff]
    %v501 = vld [vmem:[#allocation8 + $0x398] sm:$0xff]
    %v502 = vld [vmem:[#allocation8 + $0x3a0] sm:$0xff]
    %v503 = vld [vmem:[#allocation8 + $0x3a8] sm:$0xff]
    %v504 = vld [vmem:[#allocation8 + $0x3b0] sm:$0xff]
    %v505 = vld [vmem:[#allocation8 + $0x3b8] sm:$0xff]
    %v506 = vld [vmem:[#allocation8 + $0x3c0] sm:$0xff]
    %v507 = vld [vmem:[#allocation8 + $0x3c8] sm:$0xff]
    %v508 = vld [vmem:[#allocation8 + $0x3d0] sm:$0xff]
    %v509 = vld [vmem:[#allocation8 + $0x3d8] sm:$0xff]
    %v510 = vld [vmem:[#allocation8 + $0x3e0] sm:$0xff]
    %v511 = vld [vmem:[#allocation8 + $0x3e8] sm:$0xff]
    %v512 = vld [vmem:[#allocation8 + $0x3f0] sm:$0xff]
    %v513 = vld [vmem:[#allocation8 + $0x3f8] sm:$0xff]
    %v514 = vld [vmem:[%s5] sm:$0xff]
    %v515 = vld [vmem:[%s5 + $0x8] sm:$0xff]
    %v516 = vld [vmem:[%s5 + $0x10] sm:$0xff]
    %v517 = vld [vmem:[%s5 + $0x18] sm:$0xff]
    %v518 = vld [vmem:[%s5 + $0x20] sm:$0xff]
    %v519 = vld [vmem:[%s5 + $0x28] sm:$0xff]
    %v520 = vld [vmem:[%s5 + $0x30] sm:$0xff]
    %v521 = vld [vmem:[%s5 + $0x38] sm:$0xff]
    %v522 = vld [vmem:[%s5 + $0x40] sm:$0xff]
    %v523 = vld [vmem:[%s5 + $0x48] sm:$0xff]
    %v524 = vld [vmem:[%s5 + $0x50] sm:$0xff]
    %v525 = vld [vmem:[%s5 + $0x58] sm:$0xff]
    %v526 = vld [vmem:[%s5 + $0x60] sm:$0xff]
    %v527 = vld [vmem:[%s5 + $0x68] sm:$0xff]
    %v528 = vld [vmem:[%s5 + $0x70] sm:$0xff]
    %v529 = vld [vmem:[%s5 + $0x78] sm:$0xff]
    %v530 = vld [vmem:[%s5 + $0x80] sm:$0xff]
    %v531 = vld [vmem:[%s5 + $0x88] sm:$0xff]
    %v532 = vld [vmem:[%s5 + $0x90] sm:$0xff]
    %v533 = vld [vmem:[%s5 + $0x98] sm:$0xff]
    %v534 = vld [vmem:[%s5 + $0xa0] sm:$0xff]
    %v535 = vld [vmem:[%s5 + $0xa8] sm:$0xff]
    %v536 = vld [vmem:[%s5 + $0xb0] sm:$0xff]
    %v537 = vld [vmem:[%s5 + $0xb8] sm:$0xff]
    %v538 = vld [vmem:[%s5 + $0xc0] sm:$0xff]
    %v539 = vld [vmem:[%s5 + $0xc8] sm:$0xff]
    %v540 = vld [vmem:[%s5 + $0xd0] sm:$0xff]
    %v541 = vld [vmem:[%s5 + $0xd8] sm:$0xff]
    %v542 = vld [vmem:[%s5 + $0xe0] sm:$0xff]
    %v543 = vld [vmem:[%s5 + $0xe8] sm:$0xff]
    %v544 = vld [vmem:[%s5 + $0xf0] sm:$0xff]
    %v545 = vld [vmem:[%s5 + $0xf8] sm:$0xff]
    %v546 = vld [vmem:[%s5 + $0x100] sm:$0xff]
    %v547 = vld [vmem:[%s5 + $0x108] sm:$0xff]
    %v548 = vld [vmem:[%s5 + $0x110] sm:$0xff]
    %v549 = vld [vmem:[%s5 + $0x118] sm:$0xff]
    %v550 = vld [vmem:[%s5 + $0x120] sm:$0xff]
    %v551 = vld [vmem:[%s5 + $0x128] sm:$0xff]
    %v552 = vld [vmem:[%s5 + $0x130] sm:$0xff]
    %v553 = vld [vmem:[%s5 + $0x138] sm:$0xff]
    %v554 = vld [vmem:[%s5 + $0x140] sm:$0xff]
    %v555 = vld [vmem:[%s5 + $0x148] sm:$0xff]
    %v556 = vld [vmem:[%s5 + $0x150] sm:$0xff]
    %v557 = vld [vmem:[%s5 + $0x158] sm:$0xff]
    %v558 = vld [vmem:[%s5 + $0x160] sm:$0xff]
    %v559 = vld [vmem:[%s5 + $0x168] sm:$0xff]
    %v560 = vld [vmem:[%s5 + $0x170] sm:$0xff]
    %v561 = vld [vmem:[%s5 + $0x178] sm:$0xff]
    %v562 = vld [vmem:[%s5 + $0x180] sm:$0xff]
    %v563 = vld [vmem:[%s5 + $0x188] sm:$0xff]
    %v564 = vld [vmem:[%s5 + $0x190] sm:$0xff]
    %v565 = vld [vmem:[%s5 + $0x198] sm:$0xff]
    %v566 = vld [vmem:[%s5 + $0x1a0] sm:$0xff]
    %v567 = vld [vmem:[%s5 + $0x1a8] sm:$0xff]
    %v568 = vld [vmem:[%s5 + $0x1b0] sm:$0xff]
    %v569 = vld [vmem:[%s5 + $0x1b8] sm:$0xff]
    %v570 = vld [vmem:[%s5 + $0x1c0] sm:$0xff]
    %v571 = vld [vmem:[%s5 + $0x1c8] sm:$0xff]
    %v572 = vld [vmem:[%s5 + $0x1d0] sm:$0xff]
    %v573 = vld [vmem:[%s5 + $0x1d8] sm:$0xff]
    %v574 = vld [vmem:[%s5 + $0x1e0] sm:$0xff]
    %v575 = vld [vmem:[%s5 + $0x1e8] sm:$0xff]
    %v576 = vld [vmem:[%s5 + $0x1f0] sm:$0xff]
    %v577 = vld [vmem:[%s5 + $0x1f8] sm:$0xff]
    %579 = vset.pattern.permute.xlu0 0
    %580 = vperm.xlu0 %579, %v514
    %v581 = vpop.permute.xlu0 %580
    %584 = vset.pattern.permute.xlu0 0
    %585 = vperm.xlu0 %584, %v515
    %v586 = vpop.permute.xlu0 %585
    %589 = vset.pattern.permute.xlu0 0
    %590 = vperm.xlu0 %589, %v516
    %v591 = vpop.permute.xlu0 %590
    %594 = vset.pattern.permute.xlu0 0
    %595 = vperm.xlu0 %594, %v517
    %v596 = vpop.permute.xlu0 %595
    %599 = vset.pattern.permute.xlu0 0
    %600 = vperm.xlu0 %599, %v518
    %v601 = vpop.permute.xlu0 %600
    %604 = vset.pattern.permute.xlu0 0
    %605 = vperm.xlu0 %604, %v519
    %v606 = vpop.permute.xlu0 %605
    %609 = vset.pattern.permute.xlu0 0
    %610 = vperm.xlu0 %609, %v520
    %v611 = vpop.permute.xlu0 %610
    %614 = vset.pattern.permute.xlu0 0
    %615 = vperm.xlu0 %614, %v521
    %v616 = vpop.permute.xlu0 %615
    %619 = vset.pattern.permute.xlu0 0
    %620 = vperm.xlu0 %619, %v522
    %v621 = vpop.permute.xlu0 %620
    %624 = vset.pattern.permute.xlu0 0
    %625 = vperm.xlu0 %624, %v523
    %v626 = vpop.permute.xlu0 %625
    %629 = vset.pattern.permute.xlu0 0
    %630 = vperm.xlu0 %629, %v524
    %v631 = vpop.permute.xlu0 %630
    %634 = vset.pattern.permute.xlu0 0
    %635 = vperm.xlu0 %634, %v525
    %v636 = vpop.permute.xlu0 %635
    %639 = vset.pattern.permute.xlu0 0
    %640 = vperm.xlu0 %639, %v526
    %v641 = vpop.permute.xlu0 %640
    %644 = vset.pattern.permute.xlu0 0
    %645 = vperm.xlu0 %644, %v527
    %v646 = vpop.permute.xlu0 %645
    %649 = vset.pattern.permute.xlu0 0
    %650 = vperm.xlu0 %649, %v528
    %v651 = vpop.permute.xlu0 %650
    %654 = vset.pattern.permute.xlu0 0
    %655 = vperm.xlu0 %654, %v529
    %v656 = vpop.permute.xlu0 %655
    %659 = vset.pattern.permute.xlu0 0
    %660 = vperm.xlu0 %659, %v530
    %v661 = vpop.permute.xlu0 %660
    %664 = vset.pattern.permute.xlu0 0
    %665 = vperm.xlu0 %664, %v531
    %v666 = vpop.permute.xlu0 %665
    %669 = vset.pattern.permute.xlu0 0
    %670 = vperm.xlu0 %669, %v532
    %v671 = vpop.permute.xlu0 %670
    %674 = vset.pattern.permute.xlu0 0
    %675 = vperm.xlu0 %674, %v533
    %v676 = vpop.permute.xlu0 %675
    %679 = vset.pattern.permute.xlu0 0
    %680 = vperm.xlu0 %679, %v534
    %v681 = vpop.permute.xlu0 %680
    %684 = vset.pattern.permute.xlu0 0
    %685 = vperm.xlu0 %684, %v535
    %v686 = vpop.permute.xlu0 %685
    %689 = vset.pattern.permute.xlu0 0
    %690 = vperm.xlu0 %689, %v536
    %v691 = vpop.permute.xlu0 %690
    %694 = vset.pattern.permute.xlu0 0
    %695 = vperm.xlu0 %694, %v537
    %v696 = vpop.permute.xlu0 %695
    %699 = vset.pattern.permute.xlu0 0
    %700 = vperm.xlu0 %699, %v538
    %v701 = vpop.permute.xlu0 %700
    %704 = vset.pattern.permute.xlu0 0
    %705 = vperm.xlu0 %704, %v539
    %v706 = vpop.permute.xlu0 %705
    %709 = vset.pattern.permute.xlu0 0
    %710 = vperm.xlu0 %709, %v540
    %v711 = vpop.permute.xlu0 %710
    %714 = vset.pattern.permute.xlu0 0
    %715 = vperm.xlu0 %714, %v541
    %v716 = vpop.permute.xlu0 %715
    %719 = vset.pattern.permute.xlu0 0
    %720 = vperm.xlu0 %719, %v542
    %v721 = vpop.permute.xlu0 %720
    %724 = vset.pattern.permute.xlu0 0
    %725 = vperm.xlu0 %724, %v543
    %v726 = vpop.permute.xlu0 %725
    %729 = vset.pattern.permute.xlu0 0
    %730 = vperm.xlu0 %729, %v544
    %v731 = vpop.permute.xlu0 %730
    %734 = vset.pattern.permute.xlu0 0
    %735 = vperm.xlu0 %734, %v545
    %v736 = vpop.permute.xlu0 %735
    %739 = vset.pattern.permute.xlu0 0
    %740 = vperm.xlu0 %739, %v546
    %v741 = vpop.permute.xlu0 %740
    %744 = vset.pattern.permute.xlu0 0
    %745 = vperm.xlu0 %744, %v547
    %v746 = vpop.permute.xlu0 %745
    %749 = vset.pattern.permute.xlu0 0
    %750 = vperm.xlu0 %749, %v548
    %v751 = vpop.permute.xlu0 %750
    %754 = vset.pattern.permute.xlu0 0
    %755 = vperm.xlu0 %754, %v549
    %v756 = vpop.permute.xlu0 %755
    %759 = vset.pattern.permute.xlu0 0
    %760 = vperm.xlu0 %759, %v550
    %v761 = vpop.permute.xlu0 %760
    %764 = vset.pattern.permute.xlu0 0
    %765 = vperm.xlu0 %764, %v551
    %v766 = vpop.permute.xlu0 %765
    %769 = vset.pattern.permute.xlu0 0
    %770 = vperm.xlu0 %769, %v552
    %v771 = vpop.permute.xlu0 %770
    %774 = vset.pattern.permute.xlu0 0
    %775 = vperm.xlu0 %774, %v553
    %v776 = vpop.permute.xlu0 %775
    %779 = vset.pattern.permute.xlu0 0
    %780 = vperm.xlu0 %779, %v554
    %v781 = vpop.permute.xlu0 %780
    %784 = vset.pattern.permute.xlu0 0
    %785 = vperm.xlu0 %784, %v555
    %v786 = vpop.permute.xlu0 %785
    %789 = vset.pattern.permute.xlu0 0
    %790 = vperm.xlu0 %789, %v556
    %v791 = vpop.permute.xlu0 %790
    %794 = vset.pattern.permute.xlu0 0
    %795 = vperm.xlu0 %794, %v557
    %v796 = vpop.permute.xlu0 %795
    %799 = vset.pattern.permute.xlu0 0
    %800 = vperm.xlu0 %799, %v558
    %v801 = vpop.permute.xlu0 %800
    %804 = vset.pattern.permute.xlu0 0
    %805 = vperm.xlu0 %804, %v559
    %v806 = vpop.permute.xlu0 %805
    %809 = vset.pattern.permute.xlu0 0
    %810 = vperm.xlu0 %809, %v560
    %v811 = vpop.permute.xlu0 %810
    %814 = vset.pattern.permute.xlu0 0
    %815 = vperm.xlu0 %814, %v561
    %v816 = vpop.permute.xlu0 %815
    %819 = vset.pattern.permute.xlu0 0
    %820 = vperm.xlu0 %819, %v562
    %v821 = vpop.permute.xlu0 %820
    %824 = vset.pattern.permute.xlu0 0
    %825 = vperm.xlu0 %824, %v563
    %v826 = vpop.permute.xlu0 %825
    %829 = vset.pattern.permute.xlu0 0
    %830 = vperm.xlu0 %829, %v564
    %v831 = vpop.permute.xlu0 %830
    %834 = vset.pattern.permute.xlu0 0
    %835 = vperm.xlu0 %834, %v565
    %v836 = vpop.permute.xlu0 %835
    %839 = vset.pattern.permute.xlu0 0
    %840 = vperm.xlu0 %839, %v566
    %v841 = vpop.permute.xlu0 %840
    %844 = vset.pattern.permute.xlu0 0
    %845 = vperm.xlu0 %844, %v567
    %v846 = vpop.permute.xlu0 %845
    %849 = vset.pattern.permute.xlu0 0
    %850 = vperm.xlu0 %849, %v568
    %v851 = vpop.permute.xlu0 %850
    %854 = vset.pattern.permute.xlu0 0
    %855 = vperm.xlu0 %854, %v569
    %v856 = vpop.permute.xlu0 %855
    %859 = vset.pattern.permute.xlu0 0
    %860 = vperm.xlu0 %859, %v570
    %v861 = vpop.permute.xlu0 %860
    %864 = vset.pattern.permute.xlu0 0
    %865 = vperm.xlu0 %864, %v571
    %v866 = vpop.permute.xlu0 %865
    %869 = vset.pattern.permute.xlu0 0
    %870 = vperm.xlu0 %869, %v572
    %v871 = vpop.permute.xlu0 %870
    %874 = vset.pattern.permute.xlu0 0
    %875 = vperm.xlu0 %874, %v573
    %v876 = vpop.permute.xlu0 %875
    %879 = vset.pattern.permute.xlu0 0
    %880 = vperm.xlu0 %879, %v574
    %v881 = vpop.permute.xlu0 %880
    %884 = vset.pattern.permute.xlu0 0
    %885 = vperm.xlu0 %884, %v575
    %v886 = vpop.permute.xlu0 %885
    %889 = vset.pattern.permute.xlu0 0
    %890 = vperm.xlu0 %889, %v576
    %v891 = vpop.permute.xlu0 %890
    %894 = vset.pattern.permute.xlu0 0
    %895 = vperm.xlu0 %894, %v577
    %v896 = vpop.permute.xlu0 %895
    %898 = vmatprep.subr.mxu0 0.0
    %899 = vmatpush1.msra.mxu0 %v117
    %900 = vmatprep.subr.mxu0 0.0
    %901 = vmatpush1.msra.mxu0 %v118
    %902 = vmatprep.subr.mxu0 0.0
    %903 = vmatpush1.msra.mxu0 %v119
    %904 = vmatprep.subr.mxu0 0.0
    %905 = vmatpush1.msra.mxu0 %v120
    %906 = vmatprep.subr.mxu0 0.0
    %907 = vmatpush1.msra.mxu0 %v121
    %908 = vmatprep.subr.mxu0 0.0
    %909 = vmatpush1.msra.mxu0 %v122
    %910 = vmatprep.subr.mxu0 0.0
    %911 = vmatpush1.msra.mxu0 %v123
    %912 = vmatprep.subr.mxu0 0.0
    %913 = vmatpush1.msra.mxu0 %v124
    %914 = vmatprep.subr.mxu0 0.0
    %915 = vmatpush1.msra.mxu0 %v125
    %916 = vmatprep.subr.mxu0 0.0
    %917 = vmatpush1.msra.mxu0 %v126
    %918 = vmatprep.subr.mxu0 0.0
    %919 = vmatpush1.msra.mxu0 %v127
    %920 = vmatprep.subr.mxu0 0.0
    %921 = vmatpush1.msra.mxu0 %v128
    %922 = vmatprep.subr.mxu0 0.0
    %923 = vmatpush1.msra.mxu0 %v129
    %924 = vmatprep.subr.mxu0 0.0
    %925 = vmatpush1.msra.mxu0 %v130
    %926 = vmatprep.subr.mxu0 0.0
    %927 = vmatpush1.msra.mxu0 %v131
    %928 = vmatprep.subr.mxu0 0.0
    %929 = vmatpush1.msra.mxu0 %v132
    %930 = vmatprep.subr.mxu0 0.0
    %931 = vmatpush1.msra.mxu0 %v133
    %932 = vmatprep.subr.mxu0 0.0
    %933 = vmatpush1.msra.mxu0 %v134
    %934 = vmatprep.subr.mxu0 0.0
    %935 = vmatpush1.msra.mxu0 %v135
    %936 = vmatprep.subr.mxu0 0.0
    %937 = vmatpush1.msra.mxu0 %v136
    %938 = vmatprep.subr.mxu0 0.0
    %939 = vmatpush1.msra.mxu0 %v137
    %940 = vmatprep.subr.mxu0 0.0
    %941 = vmatpush1.msra.mxu0 %v138
    %942 = vmatprep.subr.mxu0 0.0
    %943 = vmatpush1.msra.mxu0 %v139
    %944 = vmatprep.subr.mxu0 0.0
    %945 = vmatpush1.msra.mxu0 %v140
    %946 = vmatprep.subr.mxu0 0.0
    %947 = vmatpush1.msra.mxu0 %v141
    %948 = vmatprep.subr.mxu0 0.0
    %949 = vmatpush1.msra.mxu0 %v142
    %950 = vmatprep.subr.mxu0 0.0
    %951 = vmatpush1.msra.mxu0 %v143
    %952 = vmatprep.subr.mxu0 0.0
    %953 = vmatpush1.msra.mxu0 %v144
    %954 = vmatprep.subr.mxu0 0.0
    %955 = vmatpush1.msra.mxu0 %v145
    %956 = vmatprep.subr.mxu0 0.0
    %957 = vmatpush1.msra.mxu0 %v146
    %958 = vmatprep.subr.mxu0 0.0
    %959 = vmatpush1.msra.mxu0 %v147
    %960 = vmatprep.subr.mxu0 0.0
    %961 = vmatpush1.msra.mxu0 %v148
    %962 = vmatprep.mubr.f32.mxu0 %v387
    %963 = vmatmul.mubr.f32.gmra.mrb[0].mxu0 %v386
    %v964 = vpop.f32.mrb[0].mxu0
    %v965 = vadd.f32 %v581, %v964
    %v966 = vpop.f32.mrb[0].mxu0
    %967 = vmatprep.mubr.f32.mxu0 %v389
    %968 = vmatmul.mubr.f32.gmra.mrb[0].mxu0 %v388
    %v969 = vpop.f32.mrb[0].mxu0
    %v970 = vadd.f32 %v586, %v969
    %v971 = vpop.f32.mrb[0].mxu0
    %972 = vmatprep.mubr.f32.mxu0 %v391
    %973 = vmatmul.mubr.f32.gmra.mrb[0].mxu0 %v390
    %v974 = vpop.f32.mrb[0].mxu0
    %v975 = vadd.f32 %v591, %v974
    %v976 = vpop.f32.mrb[0].mxu0
    %977 = vmatprep.mubr.f32.mxu0 %v393
    %978 = vmatmul.mubr.f32.gmra.mrb[0].mxu0 %v392
    %v979 = vpop.f32.mrb[0].mxu0
    %v980 = vadd.f32 %v596, %v979
    %v981 = vpop.f32.mrb[0].mxu0
    %982 = vmatprep.mubr.f32.mxu0 %v395
    %983 = vmatmul.mubr.f32.gmra.mrb[0].mxu0 %v394
    %v984 = vpop.f32.mrb[0].mxu0
    %v985 = vadd.f32 %v601, %v984
    %v986 = vpop.f32.mrb[0].mxu0
    %987 = vmatprep.mubr.f32.mxu0 %v397
    %988 = vmatmul.mubr.f32.gmra.mrb[0].mxu0 %v396
    %v989 = vpop.f32.mrb[0].mxu0
    %v990 = vadd.f32 %v606, %v989
    %v991 = vpop.f32.mrb[0].mxu0
    %992 = vmatprep.mubr.f32.mxu0 %v399
    %993 = vmatmul.mubr.f32.gmra.mrb[0].mxu0 %v398
    %v994 = vpop.f32.mrb[0].mxu0
    %v995 = vadd.f32 %v611, %v994
    %v996 = vpop.f32.mrb[0].mxu0
    %997 = vmatprep.mubr.f32.mxu0 %v401
    %998 = vmatmul.mubr.f32.gmra.mrb[0].mxu0 %v400
    %v999 = vpop.f32.mrb[0].mxu0
    %v1000 = vadd.f32 %v616, %v999
    %v1001 = vpop.f32.mrb[0].mxu0
    %1002 = vmatprep.mubr.f32.mxu0 %v403
    %1003 = vmatmul.mubr.f32.gmra.mrb[0].mxu0 %v402
    %v1004 = vpop.f32.mrb[0].mxu0
    %v1005 = vadd.f32 %v621, %v1004
    %v1006 = vpop.f32.mrb[0].mxu0
    %1007 = vmatprep.mubr.f32.mxu0 %v405
    %1008 = vmatmul.mubr.f32.gmra.mrb[0].mxu0 %v404
    %v1009 = vpop.f32.mrb[0].mxu0
    %v1010 = vadd.f32 %v626, %v1009
    %v1011 = vpop.f32.mrb[0].mxu0
    %1012 = vmatprep.mubr.f32.mxu0 %v407
    %1013 = vmatmul.mubr.f32.gmra.mrb[0].mxu0 %v406
    %v1014 = vpop.f32.mrb[0].mxu0
    %v1015 = vadd.f32 %v631, %v1014
    %v1016 = vpop.f32.mrb[0].mxu0
    %1017 = vmatprep.mubr.f32.mxu0 %v409
    %1018 = vmatmul.mubr.f32.gmra.mrb[0].mxu0 %v408
    %v1019 = vpop.f32.mrb[0].mxu0
    %v1020 = vadd.f32 %v636, %v1019
    %v1021 = vpop.f32.mrb[0].mxu0
    %1022 = vmatprep.mubr.f32.mxu0 %v411
    %1023 = vmatmul.mubr.f32.gmra.mrb[0].mxu0 %v410
    %v1024 = vpop.f32.mrb[0].mxu0
    %v1025 = vadd.f32 %v641, %v1024
    %v1026 = vpop.f32.mrb[0].mxu0
    %1027 = vmatprep.mubr.f32.mxu0 %v413
    %1028 = vmatmul.mubr.f32.gmra.mrb[0].mxu0 %v412
    %v1029 = vpop.f32.mrb[0].mxu0
    %v1030 = vadd.f32 %v646, %v1029
    %v1031 = vpop.f32.mrb[0].mxu0
    %1032 = vmatprep.mubr.f32.mxu0 %v415
    %1033 = vmatmul.mubr.f32.gmra.mrb[0].mxu0 %v414
    %v1034 = vpop.f32.mrb[0].mxu0
    %v1035 = vadd.f32 %v651, %v1034
    %v1036 = vpop.f32.mrb[0].mxu0
    %1037 = vmatprep.mubr.f32.mxu0 %v417
    %1038 = vmatmul.mubr.f32.gmra.mrb[0].mxu0 %v416
    %v1039 = vpop.f32.mrb[0].mxu0
    %v1040 = vadd.f32 %v656, %v1039
    %v1041 = vpop.f32.mrb[0].mxu0
    %1042 = vmatprep.mubr.f32.mxu0 %v419
    %1043 = vmatmul.mubr.f32.gmra.mrb[0].mxu0 %v418
    %v1044 = vpop.f32.mrb[0].mxu0
    %v1045 = vadd.f32 %v661, %v1044
    %v1046 = vpop.f32.mrb[0].mxu0
    %1047 = vmatprep.mubr.f32.mxu0 %v421
    %1048 = vmatmul.mubr.f32.gmra.mrb[0].mxu0 %v420
    %v1049 = vpop.f32.mrb[0].mxu0
    %v1050 = vadd.f32 %v666, %v1049
    %v1051 = vpop.f32.mrb[0].mxu0
    %1052 = vmatprep.mubr.f32.mxu0 %v423
    %1053 = vmatmul.mubr.f32.gmra.mrb[0].mxu0 %v422
    %v1054 = vpop.f32.mrb[0].mxu0
    %v1055 = vadd.f32 %v671, %v1054
    %v1056 = vpop.f32.mrb[0].mxu0
    %1057 = vmatprep.mubr.f32.mxu0 %v425
    %1058 = vmatmul.mubr.f32.gmra.mrb[0].mxu0 %v424
    %v1059 = vpop.f32.mrb[0].mxu0
    %v1060 = vadd.f32 %v676, %v1059
    %v1061 = vpop.f32.mrb[0].mxu0
    %1062 = vmatprep.mubr.f32.mxu0 %v427
    %1063 = vmatmul.mubr.f32.gmra.mrb[0].mxu0 %v426
    %v1064 = vpop.f32.mrb[0].mxu0
    %v1065 = vadd.f32 %v681, %v1064
    %v1066 = vpop.f32.mrb[0].mxu0
    %1067 = vmatprep.mubr.f32.mxu0 %v429
    %1068 = vmatmul.mubr.f32.gmra.mrb[0].mxu0 %v428
    %v1069 = vpop.f32.mrb[0].mxu0
    %v1070 = vadd.f32 %v686, %v1069
    %v1071 = vpop.f32.mrb[0].mxu0
    %1072 = vmatprep.mubr.f32.mxu0 %v431
    %1073 = vmatmul.mubr.f32.gmra.mrb[0].mxu0 %v430
    %v1074 = vpop.f32.mrb[0].mxu0
    %v1075 = vadd.f32 %v691, %v1074
    %v1076 = vpop.f32.mrb[0].mxu0
    %1077 = vmatprep.mubr.f32.mxu0 %v433
    %1078 = vmatmul.mubr.f32.gmra.mrb[0].mxu0 %v432
    %v1079 = vpop.f32.mrb[0].mxu0
    %v1080 = vadd.f32 %v696, %v1079
    %v1081 = vpop.f32.mrb[0].mxu0
    %1082 = vmatprep.mubr.f32.mxu0 %v435
    %1083 = vmatmul.mubr.f32.gmra.mrb[0].mxu0 %v434
    %v1084 = vpop.f32.mrb[0].mxu0
    %v1085 = vadd.f32 %v701, %v1084
    %v1086 = vpop.f32.mrb[0].mxu0
    %1087 = vmatprep.mubr.f32.mxu0 %v437
    %1088 = vmatmul.mubr.f32.gmra.mrb[0].mxu0 %v436
    %v1089 = vpop.f32.mrb[0].mxu0
    %v1090 = vadd.f32 %v706, %v1089
    %v1091 = vpop.f32.mrb[0].mxu0
    %1092 = vmatprep.mubr.f32.mxu0 %v439
    %1093 = vmatmul.mubr.f32.gmra.mrb[0].mxu0 %v438
    %v1094 = vpop.f32.mrb[0].mxu0
    %v1095 = vadd.f32 %v711, %v1094
    %v1096 = vpop.f32.mrb[0].mxu0
    %1097 = vmatprep.mubr.f32.mxu0 %v441
    %1098 = vmatmul.mubr.f32.gmra.mrb[0].mxu0 %v440
    %v1099 = vpop.f32.mrb[0].mxu0
    %v1100 = vadd.f32 %v716, %v1099
    %v1101 = vpop.f32.mrb[0].mxu0
    %1102 = vmatprep.mubr.f32.mxu0 %v443
    %1103 = vmatmul.mubr.f32.gmra.mrb[0].mxu0 %v442
    %v1104 = vpop.f32.mrb[0].mxu0
    %v1105 = vadd.f32 %v721, %v1104
    %v1106 = vpop.f32.mrb[0].mxu0
    %1107 = vmatprep.mubr.f32.mxu0 %v445
    %1108 = vmatmul.mubr.f32.gmra.mrb[0].mxu0 %v444
    %v1109 = vpop.f32.mrb[0].mxu0
    %v1110 = vadd.f32 %v726, %v1109
    %v1111 = vpop.f32.mrb[0].mxu0
    %1112 = vmatprep.mubr.f32.mxu0 %v447
    %1113 = vmatmul.mubr.f32.gmra.mrb[0].mxu0 %v446
    %v1114 = vpop.f32.mrb[0].mxu0
    %v1115 = vadd.f32 %v731, %v1114
    %v1116 = vpop.f32.mrb[0].mxu0
    %1117 = vmatprep.mubr.f32.mxu0 %v449
    %1118 = vmatmul.mubr.f32.gmra.mrb[0].mxu0 %v448
    %v1119 = vpop.f32.mrb[0].mxu0
    %v1120 = vadd.f32 %v736, %v1119
    %v1121 = vpop.f32.mrb[0].mxu0
    %1122 = vmatprep.mubr.f32.mxu0 %v451
    %1123 = vmatmul.mubr.f32.gmra.mrb[0].mxu0 %v450
    %v1124 = vpop.f32.mrb[0].mxu0
    %v1125 = vadd.f32 %v741, %v1124
    %v1126 = vpop.f32.mrb[0].mxu0
    %1127 = vmatprep.mubr.f32.mxu0 %v453
    %1128 = vmatmul.mubr.f32.gmra.mrb[0].mxu0 %v452
    %v1129 = vpop.f32.mrb[0].mxu0
    %v1130 = vadd.f32 %v746, %v1129
    %v1131 = vpop.f32.mrb[0].mxu0
    %1132 = vmatprep.mubr.f32.mxu0 %v455
    %1133 = vmatmul.mubr.f32.gmra.mrb[0].mxu0 %v454
    %v1134 = vpop.f32.mrb[0].mxu0
    %v1135 = vadd.f32 %v751, %v1134
    %v1136 = vpop.f32.mrb[0].mxu0
    %1137 = vmatprep.mubr.f32.mxu0 %v457
    %1138 = vmatmul.mubr.f32.gmra.mrb[0].mxu0 %v456
    %v1139 = vpop.f32.mrb[0].mxu0
    %v1140 = vadd.f32 %v756, %v1139
    %v1141 = vpop.f32.mrb[0].mxu0
    %1142 = vmatprep.mubr.f32.mxu0 %v459
    %1143 = vmatmul.mubr.f32.gmra.mrb[0].mxu0 %v458
    %v1144 = vpop.f32.mrb[0].mxu0
    %v1145 = vadd.f32 %v761, %v1144
    %v1146 = vpop.f32.mrb[0].mxu0
    %1147 = vmatprep.mubr.f32.mxu0 %v461
    %1148 = vmatmul.mubr.f32.gmra.mrb[0].mxu0 %v460
    %v1149 = vpop.f32.mrb[0].mxu0
    %v1150 = vadd.f32 %v766, %v1149
    %v1151 = vpop.f32.mrb[0].mxu0
    %1152 = vmatprep.mubr.f32.mxu0 %v463
    %1153 = vmatmul.mubr.f32.gmra.mrb[0].mxu0 %v462
    %v1154 = vpop.f32.mrb[0].mxu0
    %v1155 = vadd.f32 %v771, %v1154
    %v1156 = vpop.f32.mrb[0].mxu0
    %1157 = vmatprep.mubr.f32.mxu0 %v465
    %1158 = vmatmul.mubr.f32.gmra.mrb[0].mxu0 %v464
    %v1159 = vpop.f32.mrb[0].mxu0
    %v1160 = vadd.f32 %v776, %v1159
    %v1161 = vpop.f32.mrb[0].mxu0
    %1162 = vmatprep.mubr.f32.mxu0 %v467
    %1163 = vmatmul.mubr.f32.gmra.mrb[0].mxu0 %v466
    %v1164 = vpop.f32.mrb[0].mxu0
    %v1165 = vadd.f32 %v781, %v1164
    %v1166 = vpop.f32.mrb[0].mxu0
    %1167 = vmatprep.mubr.f32.mxu0 %v469
    %1168 = vmatmul.mubr.f32.gmra.mrb[0].mxu0 %v468
    %v1169 = vpop.f32.mrb[0].mxu0
    %v1170 = vadd.f32 %v786, %v1169
    %v1171 = vpop.f32.mrb[0].mxu0
    %1172 = vmatprep.mubr.f32.mxu0 %v471
    %1173 = vmatmul.mubr.f32.gmra.mrb[0].mxu0 %v470
    %v1174 = vpop.f32.mrb[0].mxu0
    %v1175 = vadd.f32 %v791, %v1174
    %v1176 = vpop.f32.mrb[0].mxu0
    %1177 = vmatprep.mubr.f32.mxu0 %v473
    %1178 = vmatmul.mubr.f32.gmra.mrb[0].mxu0 %v472
    %v1179 = vpop.f32.mrb[0].mxu0
    %v1180 = vadd.f32 %v796, %v1179
    %v1181 = vpop.f32.mrb[0].mxu0
    %1182 = vmatprep.mubr.f32.mxu0 %v475
    %1183 = vmatmul.mubr.f32.gmra.mrb[0].mxu0 %v474
    %v1184 = vpop.f32.mrb[0].mxu0
    %v1185 = vadd.f32 %v801, %v1184
    %v1186 = vpop.f32.mrb[0].mxu0
    %1187 = vmatprep.mubr.f32.mxu0 %v477
    %1188 = vmatmul.mubr.f32.gmra.mrb[0].mxu0 %v476
    %v1189 = vpop.f32.mrb[0].mxu0
    %v1190 = vadd.f32 %v806, %v1189
    %v1191 = vpop.f32.mrb[0].mxu0
    %1192 = vmatprep.mubr.f32.mxu0 %v479
    %1193 = vmatmul.mubr.f32.gmra.mrb[0].mxu0 %v478
    %v1194 = vpop.f32.mrb[0].mxu0
    %v1195 = vadd.f32 %v811, %v1194
    %v1196 = vpop.f32.mrb[0].mxu0
    %1197 = vmatprep.mubr.f32.mxu0 %v481
    %1198 = vmatmul.mubr.f32.gmra.mrb[0].mxu0 %v480
    %v1199 = vpop.f32.mrb[0].mxu0
    %v1200 = vadd.f32 %v816, %v1199
    %v1201 = vpop.f32.mrb[0].mxu0
    %1202 = vmatprep.mubr.f32.mxu0 %v483
    %1203 = vmatmul.mubr.f32.gmra.mrb[0].mxu0 %v482
    %v1204 = vpop.f32.mrb[0].mxu0
    %v1205 = vadd.f32 %v821, %v1204
    %v1206 = vpop.f32.mrb[0].mxu0
    %1207 = vmatprep.mubr.f32.mxu0 %v485
    %1208 = vmatmul.mubr.f32.gmra.mrb[0].mxu0 %v484
    %v1209 = vpop.f32.mrb[0].mxu0
    %v1210 = vadd.f32 %v826, %v1209
    %v1211 = vpop.f32.mrb[0].mxu0
    %1212 = vmatprep.mubr.f32.mxu0 %v487
    %1213 = vmatmul.mubr.f32.gmra.mrb[0].mxu0 %v486
    %v1214 = vpop.f32.mrb[0].mxu0
    %v1215 = vadd.f32 %v831, %v1214
    %v1216 = vpop.f32.mrb[0].mxu0
    %1217 = vmatprep.mubr.f32.mxu0 %v489
    %1218 = vmatmul.mubr.f32.gmra.mrb[0].mxu0 %v488
    %v1219 = vpop.f32.mrb[0].mxu0
    %v1220 = vadd.f32 %v836, %v1219
    %v1221 = vpop.f32.mrb[0].mxu0
    %1222 = vmatprep.mubr.f32.mxu0 %v491
    %1223 = vmatmul.mubr.f32.gmra.mrb[0].mxu0 %v490
    %v1224 = vpop.f32.mrb[0].mxu0
    %v1225 = vadd.f32 %v841, %v1224
    %v1226 = vpop.f32.mrb[0].mxu0
    %1227 = vmatprep.mubr.f32.mxu0 %v493
    %1228 = vmatmul.mubr.f32.gmra.mrb[0].mxu0 %v492
    %v1229 = vpop.f32.mrb[0].mxu0
    %v1230 = vadd.f32 %v846, %v1229
    %v1231 = vpop.f32.mrb[0].mxu0
    %1232 = vmatprep.mubr.f32.mxu0 %v495
    %1233 = vmatmul.mubr.f32.gmra.mrb[0].mxu0 %v494
    %v1234 = vpop.f32.mrb[0].mxu0
    %v1235 = vadd.f32 %v851, %v1234
    %v1236 = vpop.f32.mrb[0].mxu0
    %1237 = vmatprep.mubr.f32.mxu0 %v497
    %1238 = vmatmul.mubr.f32.gmra.mrb[0].mxu0 %v496
    %v1239 = vpop.f32.mrb[0].mxu0
    %v1240 = vadd.f32 %v856, %v1239
    %v1241 = vpop.f32.mrb[0].mxu0
    %1242 = vmatprep.mubr.f32.mxu0 %v499
    %1243 = vmatmul.mubr.f32.gmra.mrb[0].mxu0 %v498
    %v1244 = vpop.f32.mrb[0].mxu0
    %v1245 = vadd.f32 %v861, %v1244
    %v1246 = vpop.f32.mrb[0].mxu0
    %1247 = vmatprep.mubr.f32.mxu0 %v501
    %1248 = vmatmul.mubr.f32.gmra.mrb[0].mxu0 %v500
    %v1249 = vpop.f32.mrb[0].mxu0
    %v1250 = vadd.f32 %v866, %v1249
    %v1251 = vpop.f32.mrb[0].mxu0
    %1252 = vmatprep.mubr.f32.mxu0 %v503
    %1253 = vmatmul.mubr.f32.gmra.mrb[0].mxu0 %v502
    %v1254 = vpop.f32.mrb[0].mxu0
    %v1255 = vadd.f32 %v871, %v1254
    %v1256 = vpop.f32.mrb[0].mxu0
    %1257 = vmatprep.mubr.f32.mxu0 %v505
    %1258 = vmatmul.mubr.f32.gmra.mrb[0].mxu0 %v504
    %v1259 = vpop.f32.mrb[0].mxu0
    %v1260 = vadd.f32 %v876, %v1259
    %v1261 = vpop.f32.mrb[0].mxu0
    %1262 = vmatprep.mubr.f32.mxu0 %v507
    %1263 = vmatmul.mubr.f32.gmra.mrb[0].mxu0 %v506
    %v1264 = vpop.f32.mrb[0].mxu0
    %v1265 = vadd.f32 %v881, %v1264
    %v1266 = vpop.f32.mrb[0].mxu0
    %1267 = vmatprep.mubr.f32.mxu0 %v509
    %1268 = vmatmul.mubr.f32.gmra.mrb[0].mxu0 %v508
    %v1269 = vpop.f32.mrb[0].mxu0
    %v1270 = vadd.f32 %v886, %v1269
    %v1271 = vpop.f32.mrb[0].mxu0
    %1272 = vmatprep.mubr.f32.mxu0 %v511
    %1273 = vmatmul.mubr.f32.gmra.mrb[0].mxu0 %v510
    %v1274 = vpop.f32.mrb[0].mxu0
    %v1275 = vadd.f32 %v891, %v1274
    %v1276 = vpop.f32.mrb[0].mxu0
    %1277 = vmatprep.mubr.f32.mxu0 %v513
    %1278 = vmatmul.mubr.f32.gmra.mrb[0].mxu0 %v512
    %v1279 = vpop.f32.mrb[0].mxu0
    %v1280 = vadd.f32 %v896, %v1279
    %v1281 = vpop.f32.mrb[0].mxu0
    %1282 = vdwg.mxu0
    %vm1283 = vcmask 261120
    %v1285 = vsel %vm1283, %v292, 0
    %v1288 = vsel %vm1283, %v298, 0
    %v1291 = vsel %vm1283, %v304, 0
    %v1294 = vsel %vm1283, %v310, 0
    %v1297 = vsel %vm1283, %v316, 0
    %v1300 = vsel %vm1283, %v322, 0
    %v1303 = vsel %vm1283, %v328, 0
    %v1306 = vsel %vm1283, %v334, 0
    %1308 = vmatprep.subr.mxu0 0.0
    %1309 = vmatpush1.msra.mxu0 %v965
    %1310 = vmatprep.subr.mxu0 0.0
    %1311 = vmatpush1.msra.mxu0 %v970
    %1312 = vmatprep.subr.mxu0 0.0
    %1313 = vmatpush1.msra.mxu0 %v975
    %1314 = vmatprep.subr.mxu0 0.0
    %1315 = vmatpush1.msra.mxu0 %v980
    %1316 = vmatprep.subr.mxu0 0.0
    %1317 = vmatpush1.msra.mxu0 0.0
    %1318 = vmatprep.subr.mxu0 0.0
    %1319 = vmatpush1.msra.mxu0 0.0
    %1320 = vmatprep.subr.mxu0 0.0
    %1321 = vmatpush1.msra.mxu0 0.0
    %1322 = vmatprep.subr.mxu0 0.0
    %1323 = vmatpush1.msra.mxu0 0.0
    %1324 = vmatprep.subr.mxu0 0.0
    %1325 = vmatpush1.msra.mxu0 0.0
    %1326 = vmatprep.subr.mxu0 0.0
    %1327 = vmatpush1.msra.mxu0 0.0
    %1328 = vmatprep.subr.mxu0 0.0
    %1329 = vmatpush1.msra.mxu0 0.0
    %1330 = vmatprep.subr.mxu0 0.0
    %1331 = vmatpush1.msra.mxu0 0.0
    %1332 = vmatprep.subr.mxu0 0.0
    %1333 = vmatpush1.msra.mxu0 0.0
    %1334 = vmatprep.subr.mxu0 0.0
    %1335 = vmatpush1.msra.mxu0 0.0
    %1336 = vmatprep.subr.mxu0 0.0
    %1337 = vmatpush1.msra.mxu0 0.0
    %1338 = vmatprep.subr.mxu0 0.0
    %1339 = vmatpush1.msra.mxu0 0.0
    %1340 = vmatprep.subr.mxu0 0.0
    %1341 = vmatpush1.msra.mxu0 0.0
    %1342 = vmatprep.subr.mxu0 0.0
    %1343 = vmatpush1.msra.mxu0 0.0
    %1344 = vmatprep.subr.mxu0 0.0
    %1345 = vmatpush1.msra.mxu0 0.0
    %1346 = vmatprep.subr.mxu0 0.0
    %1347 = vmatpush1.msra.mxu0 0.0
    %1348 = vmatprep.subr.mxu0 0.0
    %1349 = vmatpush1.msra.mxu0 0.0
    %1350 = vmatprep.subr.mxu0 0.0
    %1351 = vmatpush1.msra.mxu0 0.0
    %1352 = vmatprep.subr.mxu0 0.0
    %1353 = vmatpush1.msra.mxu0 0.0
    %1354 = vmatprep.subr.mxu0 0.0
    %1355 = vmatpush1.msra.mxu0 0.0
    %1356 = vmatprep.subr.mxu0 0.0
    %1357 = vmatpush1.msra.mxu0 0.0
    %1358 = vmatprep.subr.mxu0 0.0
    %1359 = vmatpush1.msra.mxu0 0.0
    %1360 = vmatprep.subr.mxu0 0.0
    %1361 = vmatpush1.msra.mxu0 0.0
    %1362 = vmatprep.subr.mxu0 0.0
    %1363 = vmatpush1.msra.mxu0 0.0
    %1364 = vmatprep.subr.mxu0 0.0
    %1365 = vmatpush1.msra.mxu0 0.0
    %1366 = vmatprep.subr.mxu0 0.0
    %1367 = vmatpush1.msra.mxu0 0.0
    %1368 = vmatprep.subr.mxu0 0.0
    %1369 = vmatpush1.msra.mxu0 0.0
    %1370 = vmatprep.subr.mxu0 0.0
    %1371 = vmatpush1.msra.mxu0 0.0
    %1372 = vmatprep.mubr.f32.mxu0 0.0
    %1373 = vmatmul.mubr.f32.gmra.mrb[0].mxu0 %v1285
    %v1374 = vpop.f32.mrb[0].mxu0
    %v1375 = vadd.f32 0.0, %v1374
    %v1376 = vpop.f32.mrb[0].mxu0
    %1377 = vmatprep.mubr.f32.mxu0 0.0
    %1378 = vmatmul.mubr.f32.gmra.mrb[0].mxu0 %v1288
    %v1379 = vpop.f32.mrb[0].mxu0
    %v1380 = vadd.f32 0.0, %v1379
    %v1381 = vpop.f32.mrb[0].mxu0
    %1382 = vmatprep.mubr.f32.mxu0 0.0
    %1383 = vmatmul.mubr.f32.gmra.mrb[0].mxu0 %v1291
    %v1384 = vpop.f32.mrb[0].mxu0
    %v1385 = vadd.f32 0.0, %v1384
    %v1386 = vpop.f32.mrb[0].mxu0
    %1387 = vmatprep.mubr.f32.mxu0 0.0
    %1388 = vmatmul.mubr.f32.gmra.mrb[0].mxu0 %v1294
    %v1389 = vpop.f32.mrb[0].mxu0
    %v1390 = vadd.f32 0.0, %v1389
    %v1391 = vpop.f32.mrb[0].mxu0
    %1392 = vmatprep.mubr.f32.mxu0 0.0
    %1393 = vmatmul.mubr.f32.gmra.mrb[0].mxu0 %v1297
    %v1394 = vpop.f32.mrb[0].mxu0
    %v1395 = vadd.f32 0.0, %v1394
    %v1396 = vpop.f32.mrb[0].mxu0
    %1397 = vmatprep.mubr.f32.mxu0 0.0
    %1398 = vmatmul.mubr.f32.gmra.mrb[0].mxu0 %v1300
    %v1399 = vpop.f32.mrb[0].mxu0
    %v1400 = vadd.f32 0.0, %v1399
    %v1401 = vpop.f32.mrb[0].mxu0
    %1402 = vmatprep.mubr.f32.mxu0 0.0
    %1403 = vmatmul.mubr.f32.gmra.mrb[0].mxu0 %v1303
    %v1404 = vpop.f32.mrb[0].mxu0
    %v1405 = vadd.f32 0.0, %v1404
    %v1406 = vpop.f32.mrb[0].mxu0
    %1407 = vmatprep.mubr.f32.mxu0 0.0
    %1408 = vmatmul.mubr.f32.gmra.mrb[0].mxu0 %v1306
    %v1409 = vpop.f32.mrb[0].mxu0
    %v1410 = vadd.f32 0.0, %v1409
    %v1411 = vpop.f32.mrb[0].mxu0
    %1412 = vdwg.mxu0
    %vm1413 = vcmask 523264
    %v1414 = vsel %vm1413, %v1375, -inf
    %1415 = vmax.xlane.f32.xlu0 %v1414
    %v1416 = vpop.xlane.xlu0 %1415
    %v1417 = vsel %vm1413, %v1380, -inf
    %1418 = vmax.xlane.f32.xlu0 %v1417
    %v1419 = vpop.xlane.xlu0 %1418
    %v1420 = vsel %vm1413, %v1385, -inf
    %1421 = vmax.xlane.f32.xlu0 %v1420
    %v1422 = vpop.xlane.xlu0 %1421
    %v1423 = vsel %vm1413, %v1390, -inf
    %1424 = vmax.xlane.f32.xlu0 %v1423
    %v1425 = vpop.xlane.xlu0 %1424
    %v1426 = vsel %vm1413, %v1395, -inf
    %1427 = vmax.xlane.f32.xlu0 %v1426
    %v1428 = vpop.xlane.xlu0 %1427
    %v1429 = vsel %vm1413, %v1400, -inf
    %1430 = vmax.xlane.f32.xlu0 %v1429
    %v1431 = vpop.xlane.xlu0 %1430
    %v1432 = vsel %vm1413, %v1405, -inf
    %1433 = vmax.xlane.f32.xlu0 %v1432
    %v1434 = vpop.xlane.xlu0 %1433
    %v1435 = vsel %vm1413, %v1410, -inf
    %1436 = vmax.xlane.f32.xlu0 %v1435
    %v1437 = vpop.xlane.xlu0 %1436
    %v1438 = vsub.f32 %v1375, %v1416
    %v1439 = vsub.f32 %v1380, %v1419
    %v1440 = vsub.f32 %v1385, %v1422
    %v1441 = vsub.f32 %v1390, %v1425
    %v1442 = vsub.f32 %v1395, %v1428
    %v1443 = vsub.f32 %v1400, %v1431
    %v1444 = vsub.f32 %v1405, %v1434
    %v1445 = vsub.f32 %v1410, %v1437
    %v1446 = vmul.f32 %v1438, 1.442695
    %v1447 = vpow.pop %v1446
    %v1448 = vmul.f32 %v1439, 1.442695
    %v1449 = vpow.pop %v1448
    %v1450 = vmul.f32 %v1440, 1.442695
    %v1451 = vpow.pop %v1450
    %v1452 = vmul.f32 %v1441, 1.442695
    %v1453 = vpow.pop %v1452
    %v1454 = vmul.f32 %v1442, 1.442695
    %v1455 = vpow.pop %v1454
    %v1456 = vmul.f32 %v1443, 1.442695
    %v1457 = vpow.pop %v1456
    %v1458 = vmul.f32 %v1444, 1.442695
    %v1459 = vpow.pop %v1458
    %v1460 = vmul.f32 %v1445, 1.442695
    %v1461 = vpow.pop %v1460
    %v1462 = vsel %vm1413, %v1447, 0.0
    %1463 = vadd.xlane.f32.xlu0 %v1462
    %v1464 = vpop.xlane.xlu0 %1463
    %v1465 = vsel %vm1413, %v1449, 0.0
    %1466 = vadd.xlane.f32.xlu0 %v1465
    %v1467 = vpop.xlane.xlu0 %1466
    %v1468 = vsel %vm1413, %v1451, 0.0
    %1469 = vadd.xlane.f32.xlu0 %v1468
    %v1470 = vpop.xlane.xlu0 %1469
    %v1471 = vsel %vm1413, %v1453, 0.0
    %1472 = vadd.xlane.f32.xlu0 %v1471
    %v1473 = vpop.xlane.xlu0 %1472
    %v1474 = vsel %vm1413, %v1455, 0.0
    %1475 = vadd.xlane.f32.xlu0 %v1474
    %v1476 = vpop.xlane.xlu0 %1475
    %v1477 = vsel %vm1413, %v1457, 0.0
    %1478 = vadd.xlane.f32.xlu0 %v1477
    %v1479 = vpop.xlane.xlu0 %1478
    %v1480 = vsel %vm1413, %v1459, 0.0
    %1481 = vadd.xlane.f32.xlu0 %v1480
    %v1482 = vpop.xlane.xlu0 %1481
    %v1483 = vsel %vm1413, %v1461, 0.0
    %1484 = vadd.xlane.f32.xlu0 %v1483
    %v1485 = vpop.xlane.xlu0 %1484
    %v1486 = vrcp.pop %v1464
    %v1487 = vrcp.pop %v1467
    %v1488 = vrcp.pop %v1470
    %v1489 = vrcp.pop %v1473
    %v1490 = vrcp.pop %v1476
    %v1491 = vrcp.pop %v1479
    %v1492 = vrcp.pop %v1482
    %v1493 = vrcp.pop %v1485
    %v1494 = vmul.f32 %v1464, %v1486
    %v1495 = vmul.f32 %v1467, %v1487
    %v1496 = vmul.f32 %v1470, %v1488
    %v1497 = vmul.f32 %v1473, %v1489
    %v1498 = vmul.f32 %v1476, %v1490
    %v1499 = vmul.f32 %v1479, %v1491
    %v1500 = vmul.f32 %v1482, %v1492
    %v1501 = vmul.f32 %v1485, %v1493
    %v1502 = vsub.f32 2.0, %v1494
    %v1503 = vsub.f32 2.0, %v1495
    %v1504 = vsub.f32 2.0, %v1496
    %v1505 = vsub.f32 2.0, %v1497
    %v1506 = vsub.f32 2.0, %v1498
    %v1507 = vsub.f32 2.0, %v1499
    %v1508 = vsub.f32 2.0, %v1500
    %v1509 = vsub.f32 2.0, %v1501
    %v1510 = vmul.f32 %v1486, %v1502
    %v1511 = vmul.f32 %v1487, %v1503
    %v1512 = vmul.f32 %v1488, %v1504
    %v1513 = vmul.f32 %v1489, %v1505
    %v1514 = vmul.f32 %v1490, %v1506
    %v1515 = vmul.f32 %v1491, %v1507
    %v1516 = vmul.f32 %v1492, %v1508
    %v1517 = vmul.f32 %v1493, %v1509
    %v1518 = vmul.f32 %v1447, %v1510
    %v1519 = vmul.f32 %v1449, %v1511
    %v1520 = vmul.f32 %v1451, %v1512
    %v1521 = vmul.f32 %v1453, %v1513
    %v1522 = vmul.f32 %v1455, %v1514
    %v1523 = vmul.f32 %v1457, %v1515
    %v1524 = vmul.f32 %v1459, %v1516
    %v1525 = vmul.f32 %v1461, %v1517
    %v1527 = vsel %vm1413, %v1518, 0
    %v1530 = vsel %vm1413, %v1519, 0
    %v1533 = vsel %vm1413, %v1520, 0
    %v1536 = vsel %vm1413, %v1521, 0
    %v1539 = vsel %vm1413, %v1522, 0
    %v1542 = vsel %vm1413, %v1523, 0
    %v1545 = vsel %vm1413, %v1524, 0
    %v1548 = vsel %vm1413, %v1525, 0
    %v1551 = vsel %vm1413, %v1125, 0
    %v1554 = vsel %vm1413, %v1130, 0
    %v1557 = vsel %vm1413, %v1135, 0
    %v1560 = vsel %vm1413, %v1140, 0
    %1562 = vmatprep.subr.mxu0 0.0
    %1563 = vmatpush1.xpose.msra.mxu0 %v1551
    %1564 = vmatprep.subr.mxu0 0.0
    %1565 = vmatpush1.xpose.msra.mxu0 %v1554
    %1566 = vmatprep.subr.mxu0 0.0
    %1567 = vmatpush1.xpose.msra.mxu0 %v1557
    %1568 = vmatprep.subr.mxu0 0.0
    %1569 = vmatpush1.xpose.msra.mxu0 %v1560
    %1570 = vmatprep.subr.mxu0 0.0
    %1571 = vmatpush1.xpose.msra.mxu0 0.0
    %1572 = vmatprep.subr.mxu0 0.0
    %1573 = vmatpush1.xpose.msra.mxu0 0.0
    %1574 = vmatprep.subr.mxu0 0.0
    %1575 = vmatpush1.xpose.msra.mxu0 0.0
    %1576 = vmatprep.subr.mxu0 0.0
    %1577 = vmatpush1.xpose.msra.mxu0 0.0
    %1578 = vmatprep.subr.mxu0 0.0
    %1579 = vmatpush1.xpose.msra.mxu0 0.0
    %1580 = vmatprep.subr.mxu0 0.0
    %1581 = vmatpush1.xpose.msra.mxu0 0.0
    %1582 = vmatprep.subr.mxu0 0.0
    %1583 = vmatpush1.xpose.msra.mxu0 0.0
    %1584 = vmatprep.subr.mxu0 0.0
    %1585 = vmatpush1.xpose.msra.mxu0 0.0
    %1586 = vmatprep.subr.mxu0 0.0
    %1587 = vmatpush1.xpose.msra.mxu0 0.0
    %1588 = vmatprep.subr.mxu0 0.0
    %1589 = vmatpush1.xpose.msra.mxu0 0.0
    %1590 = vmatprep.subr.mxu0 0.0
    %1591 = vmatpush1.xpose.msra.mxu0 0.0
    %1592 = vmatprep.subr.mxu0 0.0
    %1593 = vmatpush1.xpose.msra.mxu0 0.0
    %1594 = vmatprep.subr.mxu0 0.0
    %1595 = vmatpush1.xpose.msra.mxu0 0.0
    %1596 = vmatprep.subr.mxu0 0.0
    %1597 = vmatpush1.xpose.msra.mxu0 0.0
    %1598 = vmatprep.subr.mxu0 0.0
    %1599 = vmatpush1.xpose.msra.mxu0 0.0
    %1600 = vmatprep.subr.mxu0 0.0
    %1601 = vmatpush1.xpose.msra.mxu0 0.0
    %1602 = vmatprep.subr.mxu0 0.0
    %1603 = vmatpush1.xpose.msra.mxu0 0.0
    %1604 = vmatprep.subr.mxu0 0.0
    %1605 = vmatpush1.xpose.msra.mxu0 0.0
    %1606 = vmatprep.subr.mxu0 0.0
    %1607 = vmatpush1.xpose.msra.mxu0 0.0
    %1608 = vmatprep.subr.mxu0 0.0
    %1609 = vmatpush1.xpose.msra.mxu0 0.0
    %1610 = vmatprep.subr.mxu0 0.0
    %1611 = vmatpush1.xpose.msra.mxu0 0.0
    %1612 = vmatprep.subr.mxu0 0.0
    %1613 = vmatpush1.xpose.msra.mxu0 0.0
    %1614 = vmatprep.subr.mxu0 0.0
    %1615 = vmatpush1.xpose.msra.mxu0 0.0
    %1616 = vmatprep.subr.mxu0 0.0
    %1617 = vmatpush1.xpose.msra.mxu0 0.0
    %1618 = vmatprep.subr.mxu0 0.0
    %1619 = vmatpush1.xpose.msra.mxu0 0.0
    %1620 = vmatprep.subr.mxu0 0.0
    %1621 = vmatpush1.xpose.msra.mxu0 0.0
    %1622 = vmatprep.subr.mxu0 0.0
    %1623 = vmatpush1.xpose.msra.mxu0 0.0
    %1624 = vmatprep.subr.mxu0 0.0
    %1625 = vmatpush1.xpose.msra.mxu0 0.0
    %1626 = vmatprep.mubr.f32.mxu0 0.0
    %1627 = vmatmul.mubr.f32.gmra.mrb[0].mxu0 %v1527
    %v1628 = vpop.f32.mrb[0].mxu0
    %v1629 = vadd.f32 0.0, %v1628
    %v1630 = vpop.f32.mrb[0].mxu0
    %1631 = vmatprep.mubr.f32.mxu0 0.0
    %1632 = vmatmul.mubr.f32.gmra.mrb[0].mxu0 %v1530
    %v1633 = vpop.f32.mrb[0].mxu0
    %v1634 = vadd.f32 0.0, %v1633
    %v1635 = vpop.f32.mrb[0].mxu0
    %1636 = vmatprep.mubr.f32.mxu0 0.0
    %1637 = vmatmul.mubr.f32.gmra.mrb[0].mxu0 %v1533
    %v1638 = vpop.f32.mrb[0].mxu0
    %v1639 = vadd.f32 0.0, %v1638
    %v1640 = vpop.f32.mrb[0].mxu0
    %1641 = vmatprep.mubr.f32.mxu0 0.0
    %1642 = vmatmul.mubr.f32.gmra.mrb[0].mxu0 %v1536
    %v1643 = vpop.f32.mrb[0].mxu0
    %v1644 = vadd.f32 0.0, %v1643
    %v1645 = vpop.f32.mrb[0].mxu0
    %1646 = vmatprep.mubr.f32.mxu0 0.0
    %1647 = vmatmul.mubr.f32.gmra.mrb[0].mxu0 %v1539
    %v1648 = vpop.f32.mrb[0].mxu0
    %v1649 = vadd.f32 0.0, %v1648
    %v1650 = vpop.f32.mrb[0].mxu0
    %1651 = vmatprep.mubr.f32.mxu0 0.0
    %1652 = vmatmul.mubr.f32.gmra.mrb[0].mxu0 %v1542
    %v1653 = vpop.f32.mrb[0].mxu0
    %v1654 = vadd.f32 0.0, %v1653
    %v1655 = vpop.f32.mrb[0].mxu0
    %1656 = vmatprep.mubr.f32.mxu0 0.0
    %1657 = vmatmul.mubr.f32.gmra.mrb[0].mxu0 %v1545
    %v1658 = vpop.f32.mrb[0].mxu0
    %v1659 = vadd.f32 0.0, %v1658
    %v1660 = vpop.f32.mrb[0].mxu0
    %1661 = vmatprep.mubr.f32.mxu0 0.0
    %1662 = vmatmul.mubr.f32.gmra.mrb[0].mxu0 %v1548
    %v1663 = vpop.f32.mrb[0].mxu0
    %v1664 = vadd.f32 0.0, %v1663
    %v1665 = vpop.f32.mrb[0].mxu0
    %1666 = vdwg.mxu0
    %1667 = vst.msk [vmem:[#allocation2] sm:$0xff] %vm1283, %v1629
    %1668 = vst.msk [vmem:[#allocation2 + $0x10] sm:$0xff] %vm1283, %v1634
    %1669 = vst.msk [vmem:[#allocation2 + $0x20] sm:$0xff] %vm1283, %v1639
    %1670 = vst.msk [vmem:[#allocation2 + $0x30] sm:$0xff] %vm1283, %v1644
    %1671 = vst.msk [vmem:[#allocation2 + $0x40] sm:$0xff] %vm1283, %v1649
    %1672 = vst.msk [vmem:[#allocation2 + $0x50] sm:$0xff] %vm1283, %v1654
    %1673 = vst.msk [vmem:[#allocation2 + $0x60] sm:$0xff] %vm1283, %v1659
    %1674 = vst.msk [vmem:[#allocation2 + $0x70] sm:$0xff] %vm1283, %v1664
    %1675 = vrot.lane.b32.xlu0 %v292, 96
    %v1676 = vpop.permute.xlu0 %1675
    %1677 = vrot.lane.b32.xlu0 %v298, 96
    %v1678 = vpop.permute.xlu0 %1677
    %1679 = vrot.lane.b32.xlu0 %v304, 96
    %v1680 = vpop.permute.xlu0 %1679
    %1681 = vrot.lane.b32.xlu0 %v310, 96
    %v1682 = vpop.permute.xlu0 %1681
    %1683 = vrot.lane.b32.xlu0 %v316, 96
    %v1684 = vpop.permute.xlu0 %1683
    %1685 = vrot.lane.b32.xlu0 %v322, 96
    %v1686 = vpop.permute.xlu0 %1685
    %1687 = vrot.lane.b32.xlu0 %v328, 96
    %v1688 = vpop.permute.xlu0 %1687
    %1689 = vrot.lane.b32.xlu0 %v334, 96
    %v1690 = vpop.permute.xlu0 %1689
    %v1691 = vsel %vm1283, %v1676, 0
    %v1693 = vsel %vm1283, %v1678, 0
    %v1695 = vsel %vm1283, %v1680, 0
    %v1697 = vsel %vm1283, %v1682, 0
    %v1699 = vsel %vm1283, %v1684, 0
    %v1701 = vsel %vm1283, %v1686, 0
    %v1703 = vsel %vm1283, %v1688, 0
    %v1705 = vsel %vm1283, %v1690, 0
    %1707 = vmatprep.subr.mxu0 0.0
    %1708 = vmatpush1.msra.mxu0 %v985
    %1709 = vmatprep.subr.mxu0 0.0
    %1710 = vmatpush1.msra.mxu0 %v990
    %1711 = vmatprep.subr.mxu0 0.0
    %1712 = vmatpush1.msra.mxu0 %v995
    %1713 = vmatprep.subr.mxu0 0.0
    %1714 = vmatpush1.msra.mxu0 %v1000
    %1715 = vmatprep.subr.mxu0 0.0
    %1716 = vmatpush1.msra.mxu0 0.0
    %1717 = vmatprep.subr.mxu0 0.0
    %1718 = vmatpush1.msra.mxu0 0.0
    %1719 = vmatprep.subr.mxu0 0.0
    %1720 = vmatpush1.msra.mxu0 0.0
    %1721 = vmatprep.subr.mxu0 0.0
    %1722 = vmatpush1.msra.mxu0 0.0
    %1723 = vmatprep.subr.mxu0 0.0
    %1724 = vmatpush1.msra.mxu0 0.0
    %1725 = vmatprep.subr.mxu0 0.0
    %1726 = vmatpush1.msra.mxu0 0.0
    %1727 = vmatprep.subr.mxu0 0.0
    %1728 = vmatpush1.msra.mxu0 0.0
    %1729 = vmatprep.subr.mxu0 0.0
    %1730 = vmatpush1.msra.mxu0 0.0
    %1731 = vmatprep.subr.mxu0 0.0
    %1732 = vmatpush1.msra.mxu0 0.0
    %1733 = vmatprep.subr.mxu0 0.0
    %1734 = vmatpush1.msra.mxu0 0.0
    %1735 = vmatprep.subr.mxu0 0.0
    %1736 = vmatpush1.msra.mxu0 0.0
    %1737 = vmatprep.subr.mxu0 0.0
    %1738 = vmatpush1.msra.mxu0 0.0
    %1739 = vmatprep.subr.mxu0 0.0
    %1740 = vmatpush1.msra.mxu0 0.0
    %1741 = vmatprep.subr.mxu0 0.0
    %1742 = vmatpush1.msra.mxu0 0.0
    %1743 = vmatprep.subr.mxu0 0.0
    %1744 = vmatpush1.msra.mxu0 0.0
    %1745 = vmatprep.subr.mxu0 0.0
    %1746 = vmatpush1.msra.mxu0 0.0
    %1747 = vmatprep.subr.mxu0 0.0
    %1748 = vmatpush1.msra.mxu0 0.0
    %1749 = vmatprep.subr.mxu0 0.0
    %1750 = vmatpush1.msra.mxu0 0.0
    %1751 = vmatprep.subr.mxu0 0.0
    %1752 = vmatpush1.msra.mxu0 0.0
    %1753 = vmatprep.subr.mxu0 0.0
    %1754 = vmatpush1.msra.mxu0 0.0
    %1755 = vmatprep.subr.mxu0 0.0
    %1756 = vmatpush1.msra.mxu0 0.0
    %1757 = vmatprep.subr.mxu0 0.0
    %1758 = vmatpush1.msra.mxu0 0.0
    %1759 = vmatprep.subr.mxu0 0.0
    %1760 = vmatpush1.msra.mxu0 0.0
    %1761 = vmatprep.subr.mxu0 0.0
    %1762 = vmatpush1.msra.mxu0 0.0
    %1763 = vmatprep.subr.mxu0 0.0
    %1764 = vmatpush1.msra.mxu0 0.0
    %1765 = vmatprep.subr.mxu0 0.0
    %1766 = vmatpush1.msra.mxu0 0.0
    %1767 = vmatprep.subr.mxu0 0.0
    %1768 = vmatpush1.msra.mxu0 0.0
    %1769 = vmatprep.subr.mxu0 0.0
    %1770 = vmatpush1.msra.mxu0 0.0
    %1771 = vmatprep.mubr.f32.mxu0 0.0
    %1772 = vmatmul.mubr.f32.gmra.mrb[0].mxu0 %v1691
    %v1773 = vpop.f32.mrb[0].mxu0
    %v1774 = vadd.f32 0.0, %v1773
    %v1775 = vpop.f32.mrb[0].mxu0
    %1776 = vmatprep.mubr.f32.mxu0 0.0
    %1777 = vmatmul.mubr.f32.gmra.mrb[0].mxu0 %v1693
    %v1778 = vpop.f32.mrb[0].mxu0
    %v1779 = vadd.f32 0.0, %v1778
    %v1780 = vpop.f32.mrb[0].mxu0
    %1781 = vmatprep.mubr.f32.mxu0 0.0
    %1782 = vmatmul.mubr.f32.gmra.mrb[0].mxu0 %v1695
    %v1783 = vpop.f32.mrb[0].mxu0
    %v1784 = vadd.f32 0.0, %v1783
    %v1785 = vpop.f32.mrb[0].mxu0
    %1786 = vmatprep.mubr.f32.mxu0 0.0
    %1787 = vmatmul.mubr.f32.gmra.mrb[0].mxu0 %v1697
    %v1788 = vpop.f32.mrb[0].mxu0
    %v1789 = vadd.f32 0.0, %v1788
    %v1790 = vpop.f32.mrb[0].mxu0
    %1791 = vmatprep.mubr.f32.mxu0 0.0
    %1792 = vmatmul.mubr.f32.gmra.mrb[0].mxu0 %v1699
    %v1793 = vpop.f32.mrb[0].mxu0
    %v1794 = vadd.f32 0.0, %v1793
    %v1795 = vpop.f32.mrb[0].mxu0
    %1796 = vmatprep.mubr.f32.mxu0 0.0
    %1797 = vmatmul.mubr.f32.gmra.mrb[0].mxu0 %v1701
    %v1798 = vpop.f32.mrb[0].mxu0
    %v1799 = vadd.f32 0.0, %v1798
    %v1800 = vpop.f32.mrb[0].mxu0
    %1801 = vmatprep.mubr.f32.mxu0 0.0
    %1802 = vmatmul.mubr.f32.gmra.mrb[0].mxu0 %v1703
    %v1803 = vpop.f32.mrb[0].mxu0
    %v1804 = vadd.f32 0.0, %v1803
    %v1805 = vpop.f32.mrb[0].mxu0
    %1806 = vmatprep.mubr.f32.mxu0 0.0
    %1807 = vmatmul.mubr.f32.gmra.mrb[0].mxu0 %v1705
    %v1808 = vpop.f32.mrb[0].mxu0
    %v1809 = vadd.f32 0.0, %v1808
    %v1810 = vpop.f32.mrb[0].mxu0
    %1811 = vdwg.mxu0
    %v1812 = vsel %vm1413, %v1774, -inf
    %1813 = vmax.xlane.f32.xlu0 %v1812
    %v1814 = vpop.xlane.xlu0 %1813
    %v1815 = vsel %vm1413, %v1779, -inf
    %1816 = vmax.xlane.f32.xlu0 %v1815
    %v1817 = vpop.xlane.xlu0 %1816
    %v1818 = vsel %vm1413, %v1784, -inf
    %1819 = vmax.xlane.f32.xlu0 %v1818
    %v1820 = vpop.xlane.xlu0 %1819
    %v1821 = vsel %vm1413, %v1789, -inf
    %1822 = vmax.xlane.f32.xlu0 %v1821
    %v1823 = vpop.xlane.xlu0 %1822
    %v1824 = vsel %vm1413, %v1794, -inf
    %1825 = vmax.xlane.f32.xlu0 %v1824
    %v1826 = vpop.xlane.xlu0 %1825
    %v1827 = vsel %vm1413, %v1799, -inf
    %1828 = vmax.xlane.f32.xlu0 %v1827
    %v1829 = vpop.xlane.xlu0 %1828
    %v1830 = vsel %vm1413, %v1804, -inf
    %1831 = vmax.xlane.f32.xlu0 %v1830
    %v1832 = vpop.xlane.xlu0 %1831
    %v1833 = vsel %vm1413, %v1809, -inf
    %1834 = vmax.xlane.f32.xlu0 %v1833
    %v1835 = vpop.xlane.xlu0 %1834
    %v1836 = vsub.f32 %v1774, %v1814
    %v1837 = vsub.f32 %v1779, %v1817
    %v1838 = vsub.f32 %v1784, %v1820
    %v1839 = vsub.f32 %v1789, %v1823
    %v1840 = vsub.f32 %v1794, %v1826
    %v1841 = vsub.f32 %v1799, %v1829
    %v1842 = vsub.f32 %v1804, %v1832
    %v1843 = vsub.f32 %v1809, %v1835
    %v1844 = vmul.f32 %v1836, 1.442695
    %v1845 = vpow.pop %v1844
    %v1846 = vmul.f32 %v1837, 1.442695
    %v1847 = vpow.pop %v1846
    %v1848 = vmul.f32 %v1838, 1.442695
    %v1849 = vpow.pop %v1848
    %v1850 = vmul.f32 %v1839, 1.442695
    %v1851 = vpow.pop %v1850
    %v1852 = vmul.f32 %v1840, 1.442695
    %v1853 = vpow.pop %v1852
    %v1854 = vmul.f32 %v1841, 1.442695
    %v1855 = vpow.pop %v1854
    %v1856 = vmul.f32 %v1842, 1.442695
    %v1857 = vpow.pop %v1856
    %v1858 = vmul.f32 %v1843, 1.442695
    %v1859 = vpow.pop %v1858
    %v1860 = vsel %vm1413, %v1845, 0.0
    %1861 = vadd.xlane.f32.xlu0 %v1860
    %v1862 = vpop.xlane.xlu0 %1861
    %v1863 = vsel %vm1413, %v1847, 0.0
    %1864 = vadd.xlane.f32.xlu0 %v1863
    %v1865 = vpop.xlane.xlu0 %1864
    %v1866 = vsel %vm1413, %v1849, 0.0
    %1867 = vadd.xlane.f32.xlu0 %v1866
    %v1868 = vpop.xlane.xlu0 %1867
    %v1869 = vsel %vm1413, %v1851, 0.0
    %1870 = vadd.xlane.f32.xlu0 %v1869
    %v1871 = vpop.xlane.xlu0 %1870
    %v1872 = vsel %vm1413, %v1853, 0.0
    %1873 = vadd.xlane.f32.xlu0 %v1872
    %v1874 = vpop.xlane.xlu0 %1873
    %v1875 = vsel %vm1413, %v1855, 0.0
    %1876 = vadd.xlane.f32.xlu0 %v1875
    %v1877 = vpop.xlane.xlu0 %1876
    %v1878 = vsel %vm1413, %v1857, 0.0
    %1879 = vadd.xlane.f32.xlu0 %v1878
    %v1880 = vpop.xlane.xlu0 %1879
    %v1881 = vsel %vm1413, %v1859, 0.0
    %1882 = vadd.xlane.f32.xlu0 %v1881
    %v1883 = vpop.xlane.xlu0 %1882
    %v1884 = vrcp.pop %v1862
    %v1885 = vrcp.pop %v1865
    %v1886 = vrcp.pop %v1868
    %v1887 = vrcp.pop %v1871
    %v1888 = vrcp.pop %v1874
    %v1889 = vrcp.pop %v1877
    %v1890 = vrcp.pop %v1880
    %v1891 = vrcp.pop %v1883
    %v1892 = vmul.f32 %v1862, %v1884
    %v1893 = vmul.f32 %v1865, %v1885
    %v1894 = vmul.f32 %v1868, %v1886
    %v1895 = vmul.f32 %v1871, %v1887
    %v1896 = vmul.f32 %v1874, %v1888
    %v1897 = vmul.f32 %v1877, %v1889
    %v1898 = vmul.f32 %v1880, %v1890
    %v1899 = vmul.f32 %v1883, %v1891
    %v1900 = vsub.f32 2.0, %v1892
    %v1901 = vsub.f32 2.0, %v1893
    %v1902 = vsub.f32 2.0, %v1894
    %v1903 = vsub.f32 2.0, %v1895
    %v1904 = vsub.f32 2.0, %v1896
    %v1905 = vsub.f32 2.0, %v1897
    %v1906 = vsub.f32 2.0, %v1898
    %v1907 = vsub.f32 2.0, %v1899
    %v1908 = vmul.f32 %v1884, %v1900
    %v1909 = vmul.f32 %v1885, %v1901
    %v1910 = vmul.f32 %v1886, %v1902
    %v1911 = vmul.f32 %v1887, %v1903
    %v1912 = vmul.f32 %v1888, %v1904
    %v1913 = vmul.f32 %v1889, %v1905
    %v1914 = vmul.f32 %v1890, %v1906
    %v1915 = vmul.f32 %v1891, %v1907
    %v1916 = vmul.f32 %v1845, %v1908
    %v1917 = vmul.f32 %v1847, %v1909
    %v1918 = vmul.f32 %v1849, %v1910
    %v1919 = vmul.f32 %v1851, %v1911
    %v1920 = vmul.f32 %v1853, %v1912
    %v1921 = vmul.f32 %v1855, %v1913
    %v1922 = vmul.f32 %v1857, %v1914
    %v1923 = vmul.f32 %v1859, %v1915
    %v1925 = vsel %vm1413, %v1916, 0
    %v1928 = vsel %vm1413, %v1917, 0
    %v1931 = vsel %vm1413, %v1918, 0
    %v1934 = vsel %vm1413, %v1919, 0
    %v1937 = vsel %vm1413, %v1920, 0
    %v1940 = vsel %vm1413, %v1921, 0
    %v1943 = vsel %vm1413, %v1922, 0
    %v1946 = vsel %vm1413, %v1923, 0
    %v1949 = vsel %vm1413, %v1145, 0
    %v1952 = vsel %vm1413, %v1150, 0
    %v1955 = vsel %vm1413, %v1155, 0
    %v1958 = vsel %vm1413, %v1160, 0
    %1960 = vmatprep.subr.mxu0 0.0
    %1961 = vmatpush1.xpose.msra.mxu0 %v1949
    %1962 = vmatprep.subr.mxu0 0.0
    %1963 = vmatpush1.xpose.msra.mxu0 %v1952
    %1964 = vmatprep.subr.mxu0 0.0
    %1965 = vmatpush1.xpose.msra.mxu0 %v1955
    %1966 = vmatprep.subr.mxu0 0.0
    %1967 = vmatpush1.xpose.msra.mxu0 %v1958
    %1968 = vmatprep.subr.mxu0 0.0
    %1969 = vmatpush1.xpose.msra.mxu0 0.0
    %1970 = vmatprep.subr.mxu0 0.0
    %1971 = vmatpush1.xpose.msra.mxu0 0.0
    %1972 = vmatprep.subr.mxu0 0.0
    %1973 = vmatpush1.xpose.msra.mxu0 0.0
    %1974 = vmatprep.subr.mxu0 0.0
    %1975 = vmatpush1.xpose.msra.mxu0 0.0
    %1976 = vmatprep.subr.mxu0 0.0
    %1977 = vmatpush1.xpose.msra.mxu0 0.0
    %1978 = vmatprep.subr.mxu0 0.0
    %1979 = vmatpush1.xpose.msra.mxu0 0.0
    %1980 = vmatprep.subr.mxu0 0.0
    %1981 = vmatpush1.xpose.msra.mxu0 0.0
    %1982 = vmatprep.subr.mxu0 0.0
    %1983 = vmatpush1.xpose.msra.mxu0 0.0
    %1984 = vmatprep.subr.mxu0 0.0
    %1985 = vmatpush1.xpose.msra.mxu0 0.0
    %1986 = vmatprep.subr.mxu0 0.0
    %1987 = vmatpush1.xpose.msra.mxu0 0.0
    %1988 = vmatprep.subr.mxu0 0.0
    %1989 = vmatpush1.xpose.msra.mxu0 0.0
    %1990 = vmatprep.subr.mxu0 0.0
    %1991 = vmatpush1.xpose.msra.mxu0 0.0
    %1992 = vmatprep.subr.mxu0 0.0
    %1993 = vmatpush1.xpose.msra.mxu0 0.0
    %1994 = vmatprep.subr.mxu0 0.0
    %1995 = vmatpush1.xpose.msra.mxu0 0.0
    %1996 = vmatprep.subr.mxu0 0.0
    %1997 = vmatpush1.xpose.msra.mxu0 0.0
    %1998 = vmatprep.subr.mxu0 0.0
    %1999 = vmatpush1.xpose.msra.mxu0 0.0
    %2000 = vmatprep.subr.mxu0 0.0
    %2001 = vmatpush1.xpose.msra.mxu0 0.0
    %2002 = vmatprep.subr.mxu0 0.0
    %2003 = vmatpush1.xpose.msra.mxu0 0.0
    %2004 = vmatprep.subr.mxu0 0.0
    %2005 = vmatpush1.xpose.msra.mxu0 0.0
    %2006 = vmatprep.subr.mxu0 0.0
    %2007 = vmatpush1.xpose.msra.mxu0 0.0
    %2008 = vmatprep.subr.mxu0 0.0
    %2009 = vmatpush1.xpose.msra.mxu0 0.0
    %2010 = vmatprep.subr.mxu0 0.0
    %2011 = vmatpush1.xpose.msra.mxu0 0.0
    %2012 = vmatprep.subr.mxu0 0.0
    %2013 = vmatpush1.xpose.msra.mxu0 0.0
    %2014 = vmatprep.subr.mxu0 0.0
    %2015 = vmatpush1.xpose.msra.mxu0 0.0
    %2016 = vmatprep.subr.mxu0 0.0
    %2017 = vmatpush1.xpose.msra.mxu0 0.0
    %2018 = vmatprep.subr.mxu0 0.0
    %2019 = vmatpush1.xpose.msra.mxu0 0.0
    %2020 = vmatprep.subr.mxu0 0.0
    %2021 = vmatpush1.xpose.msra.mxu0 0.0
    %2022 = vmatprep.subr.mxu0 0.0
    %2023 = vmatpush1.xpose.msra.mxu0 0.0
    %2024 = vmatprep.mubr.f32.mxu0 0.0
    %2025 = vmatmul.mubr.f32.gmra.mrb[0].mxu0 %v1925
    %v2026 = vpop.f32.mrb[0].mxu0
    %v2027 = vadd.f32 0.0, %v2026
    %v2028 = vpop.f32.mrb[0].mxu0
    %2029 = vmatprep.mubr.f32.mxu0 0.0
    %2030 = vmatmul.mubr.f32.gmra.mrb[0].mxu0 %v1928
    %v2031 = vpop.f32.mrb[0].mxu0
    %v2032 = vadd.f32 0.0, %v2031
    %v2033 = vpop.f32.mrb[0].mxu0
    %2034 = vmatprep.mubr.f32.mxu0 0.0
    %2035 = vmatmul.mubr.f32.gmra.mrb[0].mxu0 %v1931
    %v2036 = vpop.f32.mrb[0].mxu0
    %v2037 = vadd.f32 0.0, %v2036
    %v2038 = vpop.f32.mrb[0].mxu0
    %2039 = vmatprep.mubr.f32.mxu0 0.0
    %2040 = vmatmul.mubr.f32.gmra.mrb[0].mxu0 %v1934
    %v2041 = vpop.f32.mrb[0].mxu0
    %v2042 = vadd.f32 0.0, %v2041
    %v2043 = vpop.f32.mrb[0].mxu0
    %2044 = vmatprep.mubr.f32.mxu0 0.0
    %2045 = vmatmul.mubr.f32.gmra.mrb[0].mxu0 %v1937
    %v2046 = vpop.f32.mrb[0].mxu0
    %v2047 = vadd.f32 0.0, %v2046
    %v2048 = vpop.f32.mrb[0].mxu0
    %2049 = vmatprep.mubr.f32.mxu0 0.0
    %2050 = vmatmul.mubr.f32.gmra.mrb[0].mxu0 %v1940
    %v2051 = vpop.f32.mrb[0].mxu0
    %v2052 = vadd.f32 0.0, %v2051
    %v2053 = vpop.f32.mrb[0].mxu0
    %2054 = vmatprep.mubr.f32.mxu0 0.0
    %2055 = vmatmul.mubr.f32.gmra.mrb[0].mxu0 %v1943
    %v2056 = vpop.f32.mrb[0].mxu0
    %v2057 = vadd.f32 0.0, %v2056
    %v2058 = vpop.f32.mrb[0].mxu0
    %2059 = vmatprep.mubr.f32.mxu0 0.0
    %2060 = vmatmul.mubr.f32.gmra.mrb[0].mxu0 %v1946
    %v2061 = vpop.f32.mrb[0].mxu0
    %v2062 = vadd.f32 0.0, %v2061
    %v2063 = vpop.f32.mrb[0].mxu0
    %2064 = vdwg.mxu0
    %2073 = vrot.lane.b32.xlu0 %v2027, 32
    %v2074 = vpop.permute.xlu0 %2073
    %2075 = vrot.lane.b32.xlu0 %v2032, 32
    %v2076 = vpop.permute.xlu0 %2075
    %2077 = vrot.lane.b32.xlu0 %v2037, 32
    %v2078 = vpop.permute.xlu0 %2077
    %2079 = vrot.lane.b32.xlu0 %v2042, 32
    %v2080 = vpop.permute.xlu0 %2079
    %2081 = vrot.lane.b32.xlu0 %v2047, 32
    %v2082 = vpop.permute.xlu0 %2081
    %2083 = vrot.lane.b32.xlu0 %v2052, 32
    %v2084 = vpop.permute.xlu0 %2083
    %2085 = vrot.lane.b32.xlu0 %v2057, 32
    %v2086 = vpop.permute.xlu0 %2085
    %2087 = vrot.lane.b32.xlu0 %v2062, 32
    %v2088 = vpop.permute.xlu0 %2087
    %vm2097 = vcmask 523520
    %2098 = vst.msk [vmem:[#allocation2] sm:$0xff] %vm2097, %v2074
    %2099 = vst.msk [vmem:[#allocation2 + $0x10] sm:$0xff] %vm2097, %v2076
    %2100 = vst.msk [vmem:[#allocation2 + $0x20] sm:$0xff] %vm2097, %v2078
    %2101 = vst.msk [vmem:[#allocation2 + $0x30] sm:$0xff] %vm2097, %v2080
    %2102 = vst.msk [vmem:[#allocation2 + $0x40] sm:$0xff] %vm2097, %v2082
    %2103 = vst.msk [vmem:[#allocation2 + $0x50] sm:$0xff] %vm2097, %v2084
    %2104 = vst.msk [vmem:[#allocation2 + $0x60] sm:$0xff] %vm2097, %v2086
    %2105 = vst.msk [vmem:[#allocation2 + $0x70] sm:$0xff] %vm2097, %v2088
    %2106 = vrot.lane.b32.xlu0 %v292, 64
    %v2107 = vpop.permute.xlu0 %2106
    %2108 = vrot.lane.b32.xlu0 %v298, 64
    %v2109 = vpop.permute.xlu0 %2108
    %2110 = vrot.lane.b32.xlu0 %v304, 64
    %v2111 = vpop.permute.xlu0 %2110
    %2112 = vrot.lane.b32.xlu0 %v310, 64
    %v2113 = vpop.permute.xlu0 %2112
    %2114 = vrot.lane.b32.xlu0 %v316, 64
    %v2115 = vpop.permute.xlu0 %2114
    %2116 = vrot.lane.b32.xlu0 %v322, 64
    %v2117 = vpop.permute.xlu0 %2116
    %2118 = vrot.lane.b32.xlu0 %v328, 64
    %v2119 = vpop.permute.xlu0 %2118
    %2120 = vrot.lane.b32.xlu0 %v334, 64
    %v2121 = vpop.permute.xlu0 %2120
    %v2122 = vsel %vm1283, %v2107, 0
    %v2124 = vsel %vm1283, %v2109, 0
    %v2126 = vsel %vm1283, %v2111, 0
    %v2128 = vsel %vm1283, %v2113, 0
    %v2130 = vsel %vm1283, %v2115, 0
    %v2132 = vsel %vm1283, %v2117, 0
    %v2134 = vsel %vm1283, %v2119, 0
    %v2136 = vsel %vm1283, %v2121, 0
    %2138 = vmatprep.subr.mxu0 0.0
    %2139 = vmatpush1.msra.mxu0 %v1005
    %2140 = vmatprep.subr.mxu0 0.0
    %2141 = vmatpush1.msra.mxu0 %v1010
    %2142 = vmatprep.subr.mxu0 0.0
    %2143 = vmatpush1.msra.mxu0 %v1015
    %2144 = vmatprep.subr.mxu0 0.0
    %2145 = vmatpush1.msra.mxu0 %v1020
    %2146 = vmatprep.subr.mxu0 0.0
    %2147 = vmatpush1.msra.mxu0 0.0
    %2148 = vmatprep.subr.mxu0 0.0
    %2149 = vmatpush1.msra.mxu0 0.0
    %2150 = vmatprep.subr.mxu0 0.0
    %2151 = vmatpush1.msra.mxu0 0.0
    %2152 = vmatprep.subr.mxu0 0.0
    %2153 = vmatpush1.msra.mxu0 0.0
    %2154 = vmatprep.subr.mxu0 0.0
    %2155 = vmatpush1.msra.mxu0 0.0
    %2156 = vmatprep.subr.mxu0 0.0
    %2157 = vmatpush1.msra.mxu0 0.0
    %2158 = vmatprep.subr.mxu0 0.0
    %2159 = vmatpush1.msra.mxu0 0.0
    %2160 = vmatprep.subr.mxu0 0.0
    %2161 = vmatpush1.msra.mxu0 0.0
    %2162 = vmatprep.subr.mxu0 0.0
    %2163 = vmatpush1.msra.mxu0 0.0
    %2164 = vmatprep.subr.mxu0 0.0
    %2165 = vmatpush1.msra.mxu0 0.0
    %2166 = vmatprep.subr.mxu0 0.0
    %2167 = vmatpush1.msra.mxu0 0.0
    %2168 = vmatprep.subr.mxu0 0.0
    %2169 = vmatpush1.msra.mxu0 0.0
    %2170 = vmatprep.subr.mxu0 0.0
    %2171 = vmatpush1.msra.mxu0 0.0
    %2172 = vmatprep.subr.mxu0 0.0
    %2173 = vmatpush1.msra.mxu0 0.0
    %2174 = vmatprep.subr.mxu0 0.0
    %2175 = vmatpush1.msra.mxu0 0.0
    %2176 = vmatprep.subr.mxu0 0.0
    %2177 = vmatpush1.msra.mxu0 0.0
    %2178 = vmatprep.subr.mxu0 0.0
    %2179 = vmatpush1.msra.mxu0 0.0
    %2180 = vmatprep.subr.mxu0 0.0
    %2181 = vmatpush1.msra.mxu0 0.0
    %2182 = vmatprep.subr.mxu0 0.0
    %2183 = vmatpush1.msra.mxu0 0.0
    %2184 = vmatprep.subr.mxu0 0.0
    %2185 = vmatpush1.msra.mxu0 0.0
    %2186 = vmatprep.subr.mxu0 0.0
    %2187 = vmatpush1.msra.mxu0 0.0
    %2188 = vmatprep.subr.mxu0 0.0
    %2189 = vmatpush1.msra.mxu0 0.0
    %2190 = vmatprep.subr.mxu0 0.0
    %2191 = vmatpush1.msra.mxu0 0.0
    %2192 = vmatprep.subr.mxu0 0.0
    %2193 = vmatpush1.msra.mxu0 0.0
    %2194 = vmatprep.subr.mxu0 0.0
    %2195 = vmatpush1.msra.mxu0 0.0
    %2196 = vmatprep.subr.mxu0 0.0
    %2197 = vmatpush1.msra.mxu0 0.0
    %2198 = vmatprep.subr.mxu0 0.0
    %2199 = vmatpush1.msra.mxu0 0.0
    %2200 = vmatprep.subr.mxu0 0.0
    %2201 = vmatpush1.msra.mxu0 0.0
    %2202 = vmatprep.mubr.f32.mxu0 0.0
    %2203 = vmatmul.mubr.f32.gmra.mrb[0].mxu0 %v2122
    %v2204 = vpop.f32.mrb[0].mxu0
    %v2205 = vadd.f32 0.0, %v2204
    %v2206 = vpop.f32.mrb[0].mxu0
    %2207 = vmatprep.mubr.f32.mxu0 0.0
    %2208 = vmatmul.mubr.f32.gmra.mrb[0].mxu0 %v2124
    %v2209 = vpop.f32.mrb[0].mxu0
    %v2210 = vadd.f32 0.0, %v2209
    %v2211 = vpop.f32.mrb[0].mxu0
    %2212 = vmatprep.mubr.f32.mxu0 0.0
    %2213 = vmatmul.mubr.f32.gmra.mrb[0].mxu0 %v2126
    %v2214 = vpop.f32.mrb[0].mxu0
    %v2215 = vadd.f32 0.0, %v2214
    %v2216 = vpop.f32.mrb[0].mxu0
    %2217 = vmatprep.mubr.f32.mxu0 0.0
    %2218 = vmatmul.mubr.f32.gmra.mrb[0].mxu0 %v2128
    %v2219 = vpop.f32.mrb[0].mxu0
    %v2220 = vadd.f32 0.0, %v2219
    %v2221 = vpop.f32.mrb[0].mxu0
    %2222 = vmatprep.mubr.f32.mxu0 0.0
    %2223 = vmatmul.mubr.f32.gmra.mrb[0].mxu0 %v2130
    %v2224 = vpop.f32.mrb[0].mxu0
    %v2225 = vadd.f32 0.0, %v2224
    %v2226 = vpop.f32.mrb[0].mxu0
    %2227 = vmatprep.mubr.f32.mxu0 0.0
    %2228 = vmatmul.mubr.f32.gmra.mrb[0].mxu0 %v2132
    %v2229 = vpop.f32.mrb[0].mxu0
    %v2230 = vadd.f32 0.0, %v2229
    %v2231 = vpop.f32.mrb[0].mxu0
    %2232 = vmatprep.mubr.f32.mxu0 0.0
    %2233 = vmatmul.mubr.f32.gmra.mrb[0].mxu0 %v2134
    %v2234 = vpop.f32.mrb[0].mxu0
    %v2235 = vadd.f32 0.0, %v2234
    %v2236 = vpop.f32.mrb[0].mxu0
    %2237 = vmatprep.mubr.f32.mxu0 0.0
    %2238 = vmatmul.mubr.f32.gmra.mrb[0].mxu0 %v2136
    %v2239 = vpop.f32.mrb[0].mxu0
    %v2240 = vadd.f32 0.0, %v2239
    %v2241 = vpop.f32.mrb[0].mxu0
    %2242 = vdwg.mxu0
    %v2243 = vsel %vm1413, %v2205, -inf
    %2244 = vmax.xlane.f32.xlu0 %v2243
    %v2245 = vpop.xlane.xlu0 %2244
    %v2246 = vsel %vm1413, %v2210, -inf
    %2247 = vmax.xlane.f32.xlu0 %v2246
    %v2248 = vpop.xlane.xlu0 %2247
    %v2249 = vsel %vm1413, %v2215, -inf
    %2250 = vmax.xlane.f32.xlu0 %v2249
    %v2251 = vpop.xlane.xlu0 %2250
    %v2252 = vsel %vm1413, %v2220, -inf
    %2253 = vmax.xlane.f32.xlu0 %v2252
    %v2254 = vpop.xlane.xlu0 %2253
    %v2255 = vsel %vm1413, %v2225, -inf
    %2256 = vmax.xlane.f32.xlu0 %v2255
    %v2257 = vpop.xlane.xlu0 %2256
    %v2258 = vsel %vm1413, %v2230, -inf
    %2259 = vmax.xlane.f32.xlu0 %v2258
    %v2260 = vpop.xlane.xlu0 %2259
    %v2261 = vsel %vm1413, %v2235, -inf
    %2262 = vmax.xlane.f32.xlu0 %v2261
    %v2263 = vpop.xlane.xlu0 %2262
    %v2264 = vsel %vm1413, %v2240, -inf
    %2265 = vmax.xlane.f32.xlu0 %v2264
    %v2266 = vpop.xlane.xlu0 %2265
    %v2267 = vsub.f32 %v2205, %v2245
    %v2268 = vsub.f32 %v2210, %v2248
    %v2269 = vsub.f32 %v2215, %v2251
    %v2270 = vsub.f32 %v2220, %v2254
    %v2271 = vsub.f32 %v2225, %v2257
    %v2272 = vsub.f32 %v2230, %v2260
    %v2273 = vsub.f32 %v2235, %v2263
    %v2274 = vsub.f32 %v2240, %v2266
    %v2275 = vmul.f32 %v2267, 1.442695
    %v2276 = vpow.pop %v2275
    %v2277 = vmul.f32 %v2268, 1.442695
    %v2278 = vpow.pop %v2277
    %v2279 = vmul.f32 %v2269, 1.442695
    %v2280 = vpow.pop %v2279
    %v2281 = vmul.f32 %v2270, 1.442695
    %v2282 = vpow.pop %v2281
    %v2283 = vmul.f32 %v2271, 1.442695
    %v2284 = vpow.pop %v2283
    %v2285 = vmul.f32 %v2272, 1.442695
    %v2286 = vpow.pop %v2285
    %v2287 = vmul.f32 %v2273, 1.442695
    %v2288 = vpow.pop %v2287
    %v2289 = vmul.f32 %v2274, 1.442695
    %v2290 = vpow.pop %v2289
    %v2291 = vsel %vm1413, %v2276, 0.0
    %2292 = vadd.xlane.f32.xlu0 %v2291
    %v2293 = vpop.xlane.xlu0 %2292
    %v2294 = vsel %vm1413, %v2278, 0.0
    %2295 = vadd.xlane.f32.xlu0 %v2294
    %v2296 = vpop.xlane.xlu0 %2295
    %v2297 = vsel %vm1413, %v2280, 0.0
    %2298 = vadd.xlane.f32.xlu0 %v2297
    %v2299 = vpop.xlane.xlu0 %2298
    %v2300 = vsel %vm1413, %v2282, 0.0
    %2301 = vadd.xlane.f32.xlu0 %v2300
    %v2302 = vpop.xlane.xlu0 %2301
    %v2303 = vsel %vm1413, %v2284, 0.0
    %2304 = vadd.xlane.f32.xlu0 %v2303
    %v2305 = vpop.xlane.xlu0 %2304
    %v2306 = vsel %vm1413, %v2286, 0.0
    %2307 = vadd.xlane.f32.xlu0 %v2306
    %v2308 = vpop.xlane.xlu0 %2307
    %v2309 = vsel %vm1413, %v2288, 0.0
    %2310 = vadd.xlane.f32.xlu0 %v2309
    %v2311 = vpop.xlane.xlu0 %2310
    %v2312 = vsel %vm1413, %v2290, 0.0
    %2313 = vadd.xlane.f32.xlu0 %v2312
    %v2314 = vpop.xlane.xlu0 %2313
    %v2315 = vrcp.pop %v2293
    %v2316 = vrcp.pop %v2296
    %v2317 = vrcp.pop %v2299
    %v2318 = vrcp.pop %v2302
    %v2319 = vrcp.pop %v2305
    %v2320 = vrcp.pop %v2308
    %v2321 = vrcp.pop %v2311
    %v2322 = vrcp.pop %v2314
    %v2323 = vmul.f32 %v2293, %v2315
    %v2324 = vmul.f32 %v2296, %v2316
    %v2325 = vmul.f32 %v2299, %v2317
    %v2326 = vmul.f32 %v2302, %v2318
    %v2327 = vmul.f32 %v2305, %v2319
    %v2328 = vmul.f32 %v2308, %v2320
    %v2329 = vmul.f32 %v2311, %v2321
    %v2330 = vmul.f32 %v2314, %v2322
    %v2331 = vsub.f32 2.0, %v2323
    %v2332 = vsub.f32 2.0, %v2324
    %v2333 = vsub.f32 2.0, %v2325
    %v2334 = vsub.f32 2.0, %v2326
    %v2335 = vsub.f32 2.0, %v2327
    %v2336 = vsub.f32 2.0, %v2328
    %v2337 = vsub.f32 2.0, %v2329
    %v2338 = vsub.f32 2.0, %v2330
    %v2339 = vmul.f32 %v2315, %v2331
    %v2340 = vmul.f32 %v2316, %v2332
    %v2341 = vmul.f32 %v2317, %v2333
    %v2342 = vmul.f32 %v2318, %v2334
    %v2343 = vmul.f32 %v2319, %v2335
    %v2344 = vmul.f32 %v2320, %v2336
    %v2345 = vmul.f32 %v2321, %v2337
    %v2346 = vmul.f32 %v2322, %v2338
    %v2347 = vmul.f32 %v2276, %v2339
    %v2348 = vmul.f32 %v2278, %v2340
    %v2349 = vmul.f32 %v2280, %v2341
    %v2350 = vmul.f32 %v2282, %v2342
    %v2351 = vmul.f32 %v2284, %v2343
    %v2352 = vmul.f32 %v2286, %v2344
    %v2353 = vmul.f32 %v2288, %v2345
    %v2354 = vmul.f32 %v2290, %v2346
    %v2356 = vsel %vm1413, %v2347, 0
    %v2359 = vsel %vm1413, %v2348, 0
    %v2362 = vsel %vm1413, %v2349, 0
    %v2365 = vsel %vm1413, %v2350, 0
    %v2368 = vsel %vm1413, %v2351, 0
    %v2371 = vsel %vm1413, %v2352, 0
    %v2374 = vsel %vm1413, %v2353, 0
    %v2377 = vsel %vm1413, %v2354, 0
    %v2380 = vsel %vm1413, %v1165, 0
    %v2383 = vsel %vm1413, %v1170, 0
    %v2386 = vsel %vm1413, %v1175, 0
    %v2389 = vsel %vm1413, %v1180, 0
    %2391 = vmatprep.subr.mxu0 0.0
    %2392 = vmatpush1.xpose.msra.mxu0 %v2380
    %2393 = vmatprep.subr.mxu0 0.0
    %2394 = vmatpush1.xpose.msra.mxu0 %v2383
    %2395 = vmatprep.subr.mxu0 0.0
    %2396 = vmatpush1.xpose.msra.mxu0 %v2386
    %2397 = vmatprep.subr.mxu0 0.0
    %2398 = vmatpush1.xpose.msra.mxu0 %v2389
    %2399 = vmatprep.subr.mxu0 0.0
    %2400 = vmatpush1.xpose.msra.mxu0 0.0
    %2401 = vmatprep.subr.mxu0 0.0
    %2402 = vmatpush1.xpose.msra.mxu0 0.0
    %2403 = vmatprep.subr.mxu0 0.0
    %2404 = vmatpush1.xpose.msra.mxu0 0.0
    %2405 = vmatprep.subr.mxu0 0.0
    %2406 = vmatpush1.xpose.msra.mxu0 0.0
    %2407 = vmatprep.subr.mxu0 0.0
    %2408 = vmatpush1.xpose.msra.mxu0 0.0
    %2409 = vmatprep.subr.mxu0 0.0
    %2410 = vmatpush1.xpose.msra.mxu0 0.0
    %2411 = vmatprep.subr.mxu0 0.0
    %2412 = vmatpush1.xpose.msra.mxu0 0.0
    %2413 = vmatprep.subr.mxu0 0.0
    %2414 = vmatpush1.xpose.msra.mxu0 0.0
    %2415 = vmatprep.subr.mxu0 0.0
    %2416 = vmatpush1.xpose.msra.mxu0 0.0
    %2417 = vmatprep.subr.mxu0 0.0
    %2418 = vmatpush1.xpose.msra.mxu0 0.0
    %2419 = vmatprep.subr.mxu0 0.0
    %2420 = vmatpush1.xpose.msra.mxu0 0.0
    %2421 = vmatprep.subr.mxu0 0.0
    %2422 = vmatpush1.xpose.msra.mxu0 0.0
    %2423 = vmatprep.subr.mxu0 0.0
    %2424 = vmatpush1.xpose.msra.mxu0 0.0
    %2425 = vmatprep.subr.mxu0 0.0
    %2426 = vmatpush1.xpose.msra.mxu0 0.0
    %2427 = vmatprep.subr.mxu0 0.0
    %2428 = vmatpush1.xpose.msra.mxu0 0.0
    %2429 = vmatprep.subr.mxu0 0.0
    %2430 = vmatpush1.xpose.msra.mxu0 0.0
    %2431 = vmatprep.subr.mxu0 0.0
    %2432 = vmatpush1.xpose.msra.mxu0 0.0
    %2433 = vmatprep.subr.mxu0 0.0
    %2434 = vmatpush1.xpose.msra.mxu0 0.0
    %2435 = vmatprep.subr.mxu0 0.0
    %2436 = vmatpush1.xpose.msra.mxu0 0.0
    %2437 = vmatprep.subr.mxu0 0.0
    %2438 = vmatpush1.xpose.msra.mxu0 0.0
    %2439 = vmatprep.subr.mxu0 0.0
    %2440 = vmatpush1.xpose.msra.mxu0 0.0
    %2441 = vmatprep.subr.mxu0 0.0
    %2442 = vmatpush1.xpose.msra.mxu0 0.0
    %2443 = vmatprep.subr.mxu0 0.0
    %2444 = vmatpush1.xpose.msra.mxu0 0.0
    %2445 = vmatprep.subr.mxu0 0.0
    %2446 = vmatpush1.xpose.msra.mxu0 0.0
    %2447 = vmatprep.subr.mxu0 0.0
    %2448 = vmatpush1.xpose.msra.mxu0 0.0
    %2449 = vmatprep.subr.mxu0 0.0
    %2450 = vmatpush1.xpose.msra.mxu0 0.0
    %2451 = vmatprep.subr.mxu0 0.0
    %2452 = vmatpush1.xpose.msra.mxu0 0.0
    %2453 = vmatprep.subr.mxu0 0.0
    %2454 = vmatpush1.xpose.msra.mxu0 0.0
    %2455 = vmatprep.mubr.f32.mxu0 0.0
    %2456 = vmatmul.mubr.f32.gmra.mrb[0].mxu0 %v2356
    %v2457 = vpop.f32.mrb[0].mxu0
    %v2458 = vadd.f32 0.0, %v2457
    %v2459 = vpop.f32.mrb[0].mxu0
    %2460 = vmatprep.mubr.f32.mxu0 0.0
    %2461 = vmatmul.mubr.f32.gmra.mrb[0].mxu0 %v2359
    %v2462 = vpop.f32.mrb[0].mxu0
    %v2463 = vadd.f32 0.0, %v2462
    %v2464 = vpop.f32.mrb[0].mxu0
    %2465 = vmatprep.mubr.f32.mxu0 0.0
    %2466 = vmatmul.mubr.f32.gmra.mrb[0].mxu0 %v2362
    %v2467 = vpop.f32.mrb[0].mxu0
    %v2468 = vadd.f32 0.0, %v2467
    %v2469 = vpop.f32.mrb[0].mxu0
    %2470 = vmatprep.mubr.f32.mxu0 0.0
    %2471 = vmatmul.mubr.f32.gmra.mrb[0].mxu0 %v2365
    %v2472 = vpop.f32.mrb[0].mxu0
    %v2473 = vadd.f32 0.0, %v2472
    %v2474 = vpop.f32.mrb[0].mxu0
    %2475 = vmatprep.mubr.f32.mxu0 0.0
    %2476 = vmatmul.mubr.f32.gmra.mrb[0].mxu0 %v2368
    %v2477 = vpop.f32.mrb[0].mxu0
    %v2478 = vadd.f32 0.0, %v2477
    %v2479 = vpop.f32.mrb[0].mxu0
    %2480 = vmatprep.mubr.f32.mxu0 0.0
    %2481 = vmatmul.mubr.f32.gmra.mrb[0].mxu0 %v2371
    %v2482 = vpop.f32.mrb[0].mxu0
    %v2483 = vadd.f32 0.0, %v2482
    %v2484 = vpop.f32.mrb[0].mxu0
    %2485 = vmatprep.mubr.f32.mxu0 0.0
    %2486 = vmatmul.mubr.f32.gmra.mrb[0].mxu0 %v2374
    %v2487 = vpop.f32.mrb[0].mxu0
    %v2488 = vadd.f32 0.0, %v2487
    %v2489 = vpop.f32.mrb[0].mxu0
    %2490 = vmatprep.mubr.f32.mxu0 0.0
    %2491 = vmatmul.mubr.f32.gmra.mrb[0].mxu0 %v2377
    %v2492 = vpop.f32.mrb[0].mxu0
    %v2493 = vadd.f32 0.0, %v2492
    %v2494 = vpop.f32.mrb[0].mxu0
    %2495 = vdwg.mxu0
    %2504 = vrot.lane.b32.xlu0 %v2458, 64
    %v2505 = vpop.permute.xlu0 %2504
    %2506 = vrot.lane.b32.xlu0 %v2463, 64
    %v2507 = vpop.permute.xlu0 %2506
    %2508 = vrot.lane.b32.xlu0 %v2468, 64
    %v2509 = vpop.permute.xlu0 %2508
    %2510 = vrot.lane.b32.xlu0 %v2473, 64
    %v2511 = vpop.permute.xlu0 %2510
    %2512 = vrot.lane.b32.xlu0 %v2478, 64
    %v2513 = vpop.permute.xlu0 %2512
    %2514 = vrot.lane.b32.xlu0 %v2483, 64
    %v2515 = vpop.permute.xlu0 %2514
    %2516 = vrot.lane.b32.xlu0 %v2488, 64
    %v2517 = vpop.permute.xlu0 %2516
    %2518 = vrot.lane.b32.xlu0 %v2493, 64
    %v2519 = vpop.permute.xlu0 %2518
    %vm2528 = vcmask 785920
    %2529 = vst.msk [vmem:[#allocation2] sm:$0xff] %vm2528, %v2505
    %2530 = vst.msk [vmem:[#allocation2 + $0x10] sm:$0xff] %vm2528, %v2507
    %2531 = vst.msk [vmem:[#allocation2 + $0x20] sm:$0xff] %vm2528, %v2509
    %2532 = vst.msk [vmem:[#allocation2 + $0x30] sm:$0xff] %vm2528, %v2511
    %2533 = vst.msk [vmem:[#allocation2 + $0x40] sm:$0xff] %vm2528, %v2513
    %2534 = vst.msk [vmem:[#allocation2 + $0x50] sm:$0xff] %vm2528, %v2515
    %2535 = vst.msk [vmem:[#allocation2 + $0x60] sm:$0xff] %vm2528, %v2517
    %2536 = vst.msk [vmem:[#allocation2 + $0x70] sm:$0xff] %vm2528, %v2519
    %2537 = vrot.lane.b32.xlu0 %v292, 32
    %v2538 = vpop.permute.xlu0 %2537
    %2539 = vrot.lane.b32.xlu0 %v298, 32
    %v2540 = vpop.permute.xlu0 %2539
    %2541 = vrot.lane.b32.xlu0 %v304, 32
    %v2542 = vpop.permute.xlu0 %2541
    %2543 = vrot.lane.b32.xlu0 %v310, 32
    %v2544 = vpop.permute.xlu0 %2543
    %2545 = vrot.lane.b32.xlu0 %v316, 32
    %v2546 = vpop.permute.xlu0 %2545
    %2547 = vrot.lane.b32.xlu0 %v322, 32
    %v2548 = vpop.permute.xlu0 %2547
    %2549 = vrot.lane.b32.xlu0 %v328, 32
    %v2550 = vpop.permute.xlu0 %2549
    %2551 = vrot.lane.b32.xlu0 %v334, 32
    %v2552 = vpop.permute.xlu0 %2551
    %v2553 = vsel %vm1283, %v2538, 0
    %v2555 = vsel %vm1283, %v2540, 0
    %v2557 = vsel %vm1283, %v2542, 0
    %v2559 = vsel %vm1283, %v2544, 0
    %v2561 = vsel %vm1283, %v2546, 0
    %v2563 = vsel %vm1283, %v2548, 0
    %v2565 = vsel %vm1283, %v2550, 0
    %v2567 = vsel %vm1283, %v2552, 0
    %2569 = vmatprep.subr.mxu0 0.0
    %2570 = vmatpush1.msra.mxu0 %v1025
    %2571 = vmatprep.subr.mxu0 0.0
    %2572 = vmatpush1.msra.mxu0 %v1030
    %2573 = vmatprep.subr.mxu0 0.0
    %2574 = vmatpush1.msra.mxu0 %v1035
    %2575 = vmatprep.subr.mxu0 0.0
    %2576 = vmatpush1.msra.mxu0 %v1040
    %2577 = vmatprep.subr.mxu0 0.0
    %2578 = vmatpush1.msra.mxu0 0.0
    %2579 = vmatprep.subr.mxu0 0.0
    %2580 = vmatpush1.msra.mxu0 0.0
    %2581 = vmatprep.subr.mxu0 0.0
    %2582 = vmatpush1.msra.mxu0 0.0
    %2583 = vmatprep.subr.mxu0 0.0
    %2584 = vmatpush1.msra.mxu0 0.0
    %2585 = vmatprep.subr.mxu0 0.0
    %2586 = vmatpush1.msra.mxu0 0.0
    %2587 = vmatprep.subr.mxu0 0.0
    %2588 = vmatpush1.msra.mxu0 0.0
    %2589 = vmatprep.subr.mxu0 0.0
    %2590 = vmatpush1.msra.mxu0 0.0
    %2591 = vmatprep.subr.mxu0 0.0
    %2592 = vmatpush1.msra.mxu0 0.0
    %2593 = vmatprep.subr.mxu0 0.0
    %2594 = vmatpush1.msra.mxu0 0.0
    %2595 = vmatprep.subr.mxu0 0.0
    %2596 = vmatpush1.msra.mxu0 0.0
    %2597 = vmatprep.subr.mxu0 0.0
    %2598 = vmatpush1.msra.mxu0 0.0
    %2599 = vmatprep.subr.mxu0 0.0
    %2600 = vmatpush1.msra.mxu0 0.0
    %2601 = vmatprep.subr.mxu0 0.0
    %2602 = vmatpush1.msra.mxu0 0.0
    %2603 = vmatprep.subr.mxu0 0.0
    %2604 = vmatpush1.msra.mxu0 0.0
    %2605 = vmatprep.subr.mxu0 0.0
    %2606 = vmatpush1.msra.mxu0 0.0
    %2607 = vmatprep.subr.mxu0 0.0
    %2608 = vmatpush1.msra.mxu0 0.0
    %2609 = vmatprep.subr.mxu0 0.0
    %2610 = vmatpush1.msra.mxu0 0.0
    %2611 = vmatprep.subr.mxu0 0.0
    %2612 = vmatpush1.msra.mxu0 0.0
    %2613 = vmatprep.subr.mxu0 0.0
    %2614 = vmatpush1.msra.mxu0 0.0
    %2615 = vmatprep.subr.mxu0 0.0
    %2616 = vmatpush1.msra.mxu0 0.0
    %2617 = vmatprep.subr.mxu0 0.0
    %2618 = vmatpush1.msra.mxu0 0.0
    %2619 = vmatprep.subr.mxu0 0.0
    %2620 = vmatpush1.msra.mxu0 0.0
    %2621 = vmatprep.subr.mxu0 0.0
    %2622 = vmatpush1.msra.mxu0 0.0
    %2623 = vmatprep.subr.mxu0 0.0
    %2624 = vmatpush1.msra.mxu0 0.0
    %2625 = vmatprep.subr.mxu0 0.0
    %2626 = vmatpush1.msra.mxu0 0.0
    %2627 = vmatprep.subr.mxu0 0.0
    %2628 = vmatpush1.msra.mxu0 0.0
    %2629 = vmatprep.subr.mxu0 0.0
    %2630 = vmatpush1.msra.mxu0 0.0
    %2631 = vmatprep.subr.mxu0 0.0
    %2632 = vmatpush1.msra.mxu0 0.0
    %2633 = vmatprep.mubr.f32.mxu0 0.0
    %2634 = vmatmul.mubr.f32.gmra.mrb[0].mxu0 %v2553
    %v2635 = vpop.f32.mrb[0].mxu0
    %v2636 = vadd.f32 0.0, %v2635
    %v2637 = vpop.f32.mrb[0].mxu0
    %2638 = vmatprep.mubr.f32.mxu0 0.0
    %2639 = vmatmul.mubr.f32.gmra.mrb[0].mxu0 %v2555
    %v2640 = vpop.f32.mrb[0].mxu0
    %v2641 = vadd.f32 0.0, %v2640
    %v2642 = vpop.f32.mrb[0].mxu0
    %2643 = vmatprep.mubr.f32.mxu0 0.0
    %2644 = vmatmul.mubr.f32.gmra.mrb[0].mxu0 %v2557
    %v2645 = vpop.f32.mrb[0].mxu0
    %v2646 = vadd.f32 0.0, %v2645
    %v2647 = vpop.f32.mrb[0].mxu0
    %2648 = vmatprep.mubr.f32.mxu0 0.0
    %2649 = vmatmul.mubr.f32.gmra.mrb[0].mxu0 %v2559
    %v2650 = vpop.f32.mrb[0].mxu0
    %v2651 = vadd.f32 0.0, %v2650
    %v2652 = vpop.f32.mrb[0].mxu0
    %2653 = vmatprep.mubr.f32.mxu0 0.0
    %2654 = vmatmul.mubr.f32.gmra.mrb[0].mxu0 %v2561
    %v2655 = vpop.f32.mrb[0].mxu0
    %v2656 = vadd.f32 0.0, %v2655
    %v2657 = vpop.f32.mrb[0].mxu0
    %2658 = vmatprep.mubr.f32.mxu0 0.0
    %2659 = vmatmul.mubr.f32.gmra.mrb[0].mxu0 %v2563
    %v2660 = vpop.f32.mrb[0].mxu0
    %v2661 = vadd.f32 0.0, %v2660
    %v2662 = vpop.f32.mrb[0].mxu0
    %2663 = vmatprep.mubr.f32.mxu0 0.0
    %2664 = vmatmul.mubr.f32.gmra.mrb[0].mxu0 %v2565
    %v2665 = vpop.f32.mrb[0].mxu0
    %v2666 = vadd.f32 0.0, %v2665
    %v2667 = vpop.f32.mrb[0].mxu0
    %2668 = vmatprep.mubr.f32.mxu0 0.0
    %2669 = vmatmul.mubr.f32.gmra.mrb[0].mxu0 %v2567
    %v2670 = vpop.f32.mrb[0].mxu0
    %v2671 = vadd.f32 0.0, %v2670
    %v2672 = vpop.f32.mrb[0].mxu0
    %2673 = vdwg.mxu0
    %v2674 = vsel %vm1413, %v2636, -inf
    %2675 = vmax.xlane.f32.xlu0 %v2674
    %v2676 = vpop.xlane.xlu0 %2675
    %v2677 = vsel %vm1413, %v2641, -inf
    %2678 = vmax.xlane.f32.xlu0 %v2677
    %v2679 = vpop.xlane.xlu0 %2678
    %v2680 = vsel %vm1413, %v2646, -inf
    %2681 = vmax.xlane.f32.xlu0 %v2680
    %v2682 = vpop.xlane.xlu0 %2681
    %v2683 = vsel %vm1413, %v2651, -inf
    %2684 = vmax.xlane.f32.xlu0 %v2683
    %v2685 = vpop.xlane.xlu0 %2684
    %v2686 = vsel %vm1413, %v2656, -inf
    %2687 = vmax.xlane.f32.xlu0 %v2686
    %v2688 = vpop.xlane.xlu0 %2687
    %v2689 = vsel %vm1413, %v2661, -inf
    %2690 = vmax.xlane.f32.xlu0 %v2689
    %v2691 = vpop.xlane.xlu0 %2690
    %v2692 = vsel %vm1413, %v2666, -inf
    %2693 = vmax.xlane.f32.xlu0 %v2692
    %v2694 = vpop.xlane.xlu0 %2693
    %v2695 = vsel %vm1413, %v2671, -inf
    %2696 = vmax.xlane.f32.xlu0 %v2695
    %v2697 = vpop.xlane.xlu0 %2696
    %v2698 = vsub.f32 %v2636, %v2676
    %v2699 = vsub.f32 %v2641, %v2679
    %v2700 = vsub.f32 %v2646, %v2682
    %v2701 = vsub.f32 %v2651, %v2685
    %v2702 = vsub.f32 %v2656, %v2688
    %v2703 = vsub.f32 %v2661, %v2691
    %v2704 = vsub.f32 %v2666, %v2694
    %v2705 = vsub.f32 %v2671, %v2697
    %v2706 = vmul.f32 %v2698, 1.442695
    %v2707 = vpow.pop %v2706
    %v2708 = vmul.f32 %v2699, 1.442695
    %v2709 = vpow.pop %v2708
    %v2710 = vmul.f32 %v2700, 1.442695
    %v2711 = vpow.pop %v2710
    %v2712 = vmul.f32 %v2701, 1.442695
    %v2713 = vpow.pop %v2712
    %v2714 = vmul.f32 %v2702, 1.442695
    %v2715 = vpow.pop %v2714
    %v2716 = vmul.f32 %v2703, 1.442695
    %v2717 = vpow.pop %v2716
    %v2718 = vmul.f32 %v2704, 1.442695
    %v2719 = vpow.pop %v2718
    %v2720 = vmul.f32 %v2705, 1.442695
    %v2721 = vpow.pop %v2720
    %v2722 = vsel %vm1413, %v2707, 0.0
    %2723 = vadd.xlane.f32.xlu0 %v2722
    %v2724 = vpop.xlane.xlu0 %2723
    %v2725 = vsel %vm1413, %v2709, 0.0
    %2726 = vadd.xlane.f32.xlu0 %v2725
    %v2727 = vpop.xlane.xlu0 %2726
    %v2728 = vsel %vm1413, %v2711, 0.0
    %2729 = vadd.xlane.f32.xlu0 %v2728
    %v2730 = vpop.xlane.xlu0 %2729
    %v2731 = vsel %vm1413, %v2713, 0.0
    %2732 = vadd.xlane.f32.xlu0 %v2731
    %v2733 = vpop.xlane.xlu0 %2732
    %v2734 = vsel %vm1413, %v2715, 0.0
    %2735 = vadd.xlane.f32.xlu0 %v2734
    %v2736 = vpop.xlane.xlu0 %2735
    %v2737 = vsel %vm1413, %v2717, 0.0
    %2738 = vadd.xlane.f32.xlu0 %v2737
    %v2739 = vpop.xlane.xlu0 %2738
    %v2740 = vsel %vm1413, %v2719, 0.0
    %2741 = vadd.xlane.f32.xlu0 %v2740
    %v2742 = vpop.xlane.xlu0 %2741
    %v2743 = vsel %vm1413, %v2721, 0.0
    %2744 = vadd.xlane.f32.xlu0 %v2743
    %v2745 = vpop.xlane.xlu0 %2744
    %v2746 = vrcp.pop %v2724
    %v2747 = vrcp.pop %v2727
    %v2748 = vrcp.pop %v2730
    %v2749 = vrcp.pop %v2733
    %v2750 = vrcp.pop %v2736
    %v2751 = vrcp.pop %v2739
    %v2752 = vrcp.pop %v2742
    %v2753 = vrcp.pop %v2745
    %v2754 = vmul.f32 %v2724, %v2746
    %v2755 = vmul.f32 %v2727, %v2747
    %v2756 = vmul.f32 %v2730, %v2748
    %v2757 = vmul.f32 %v2733, %v2749
    %v2758 = vmul.f32 %v2736, %v2750
    %v2759 = vmul.f32 %v2739, %v2751
    %v2760 = vmul.f32 %v2742, %v2752
    %v2761 = vmul.f32 %v2745, %v2753
    %v2762 = vsub.f32 2.0, %v2754
    %v2763 = vsub.f32 2.0, %v2755
    %v2764 = vsub.f32 2.0, %v2756
    %v2765 = vsub.f32 2.0, %v2757
    %v2766 = vsub.f32 2.0, %v2758
    %v2767 = vsub.f32 2.0, %v2759
    %v2768 = vsub.f32 2.0, %v2760
    %v2769 = vsub.f32 2.0, %v2761
    %v2770 = vmul.f32 %v2746, %v2762
    %v2771 = vmul.f32 %v2747, %v2763
    %v2772 = vmul.f32 %v2748, %v2764
    %v2773 = vmul.f32 %v2749, %v2765
    %v2774 = vmul.f32 %v2750, %v2766
    %v2775 = vmul.f32 %v2751, %v2767
    %v2776 = vmul.f32 %v2752, %v2768
    %v2777 = vmul.f32 %v2753, %v2769
    %v2778 = vmul.f32 %v2707, %v2770
    %v2779 = vmul.f32 %v2709, %v2771
    %v2780 = vmul.f32 %v2711, %v2772
    %v2781 = vmul.f32 %v2713, %v2773
    %v2782 = vmul.f32 %v2715, %v2774
    %v2783 = vmul.f32 %v2717, %v2775
    %v2784 = vmul.f32 %v2719, %v2776
    %v2785 = vmul.f32 %v2721, %v2777
    %v2787 = vsel %vm1413, %v2778, 0
    %v2790 = vsel %vm1413, %v2779, 0
    %v2793 = vsel %vm1413, %v2780, 0
    %v2796 = vsel %vm1413, %v2781, 0
    %v2799 = vsel %vm1413, %v2782, 0
    %v2802 = vsel %vm1413, %v2783, 0
    %v2805 = vsel %vm1413, %v2784, 0
    %v2808 = vsel %vm1413, %v2785, 0
    %v2811 = vsel %vm1413, %v1185, 0
    %v2814 = vsel %vm1413, %v1190, 0
    %v2817 = vsel %vm1413, %v1195, 0
    %v2820 = vsel %vm1413, %v1200, 0
    %2822 = vmatprep.subr.mxu0 0.0
    %2823 = vmatpush1.xpose.msra.mxu0 %v2811
    %2824 = vmatprep.subr.mxu0 0.0
    %2825 = vmatpush1.xpose.msra.mxu0 %v2814
    %2826 = vmatprep.subr.mxu0 0.0
    %2827 = vmatpush1.xpose.msra.mxu0 %v2817
    %2828 = vmatprep.subr.mxu0 0.0
    %2829 = vmatpush1.xpose.msra.mxu0 %v2820
    %2830 = vmatprep.subr.mxu0 0.0
    %2831 = vmatpush1.xpose.msra.mxu0 0.0
    %2832 = vmatprep.subr.mxu0 0.0
    %2833 = vmatpush1.xpose.msra.mxu0 0.0
    %2834 = vmatprep.subr.mxu0 0.0
    %2835 = vmatpush1.xpose.msra.mxu0 0.0
    %2836 = vmatprep.subr.mxu0 0.0
    %2837 = vmatpush1.xpose.msra.mxu0 0.0
    %2838 = vmatprep.subr.mxu0 0.0
    %2839 = vmatpush1.xpose.msra.mxu0 0.0
    %2840 = vmatprep.subr.mxu0 0.0
    %2841 = vmatpush1.xpose.msra.mxu0 0.0
    %2842 = vmatprep.subr.mxu0 0.0
    %2843 = vmatpush1.xpose.msra.mxu0 0.0
    %2844 = vmatprep.subr.mxu0 0.0
    %2845 = vmatpush1.xpose.msra.mxu0 0.0
    %2846 = vmatprep.subr.mxu0 0.0
    %2847 = vmatpush1.xpose.msra.mxu0 0.0
    %2848 = vmatprep.subr.mxu0 0.0
    %2849 = vmatpush1.xpose.msra.mxu0 0.0
    %2850 = vmatprep.subr.mxu0 0.0
    %2851 = vmatpush1.xpose.msra.mxu0 0.0
    %2852 = vmatprep.subr.mxu0 0.0
    %2853 = vmatpush1.xpose.msra.mxu0 0.0
    %2854 = vmatprep.subr.mxu0 0.0
    %2855 = vmatpush1.xpose.msra.mxu0 0.0
    %2856 = vmatprep.subr.mxu0 0.0
    %2857 = vmatpush1.xpose.msra.mxu0 0.0
    %2858 = vmatprep.subr.mxu0 0.0
    %2859 = vmatpush1.xpose.msra.mxu0 0.0
    %2860 = vmatprep.subr.mxu0 0.0
    %2861 = vmatpush1.xpose.msra.mxu0 0.0
    %2862 = vmatprep.subr.mxu0 0.0
    %2863 = vmatpush1.xpose.msra.mxu0 0.0
    %2864 = vmatprep.subr.mxu0 0.0
    %2865 = vmatpush1.xpose.msra.mxu0 0.0
    %2866 = vmatprep.subr.mxu0 0.0
    %2867 = vmatpush1.xpose.msra.mxu0 0.0
    %2868 = vmatprep.subr.mxu0 0.0
    %2869 = vmatpush1.xpose.msra.mxu0 0.0
    %2870 = vmatprep.subr.mxu0 0.0
    %2871 = vmatpush1.xpose.msra.mxu0 0.0
    %2872 = vmatprep.subr.mxu0 0.0
    %2873 = vmatpush1.xpose.msra.mxu0 0.0
    %2874 = vmatprep.subr.mxu0 0.0
    %2875 = vmatpush1.xpose.msra.mxu0 0.0
    %2876 = vmatprep.subr.mxu0 0.0
    %2877 = vmatpush1.xpose.msra.mxu0 0.0
    %2878 = vmatprep.subr.mxu0 0.0
    %2879 = vmatpush1.xpose.msra.mxu0 0.0
    %2880 = vmatprep.subr.mxu0 0.0
    %2881 = vmatpush1.xpose.msra.mxu0 0.0
    %2882 = vmatprep.subr.mxu0 0.0
    %2883 = vmatpush1.xpose.msra.mxu0 0.0
    %2884 = vmatprep.subr.mxu0 0.0
    %2885 = vmatpush1.xpose.msra.mxu0 0.0
    %2886 = vmatprep.mubr.f32.mxu0 0.0
    %2887 = vmatmul.mubr.f32.gmra.mrb[0].mxu0 %v2787
    %v2888 = vpop.f32.mrb[0].mxu0
    %v2889 = vadd.f32 0.0, %v2888
    %v2890 = vpop.f32.mrb[0].mxu0
    %2891 = vmatprep.mubr.f32.mxu0 0.0
    %2892 = vmatmul.mubr.f32.gmra.mrb[0].mxu0 %v2790
    %v2893 = vpop.f32.mrb[0].mxu0
    %v2894 = vadd.f32 0.0, %v2893
    %v2895 = vpop.f32.mrb[0].mxu0
    %2896 = vmatprep.mubr.f32.mxu0 0.0
    %2897 = vmatmul.mubr.f32.gmra.mrb[0].mxu0 %v2793
    %v2898 = vpop.f32.mrb[0].mxu0
    %v2899 = vadd.f32 0.0, %v2898
    %v2900 = vpop.f32.mrb[0].mxu0
    %2901 = vmatprep.mubr.f32.mxu0 0.0
    %2902 = vmatmul.mubr.f32.gmra.mrb[0].mxu0 %v2796
    %v2903 = vpop.f32.mrb[0].mxu0
    %v2904 = vadd.f32 0.0, %v2903
    %v2905 = vpop.f32.mrb[0].mxu0
    %2906 = vmatprep.mubr.f32.mxu0 0.0
    %2907 = vmatmul.mubr.f32.gmra.mrb[0].mxu0 %v2799
    %v2908 = vpop.f32.mrb[0].mxu0
    %v2909 = vadd.f32 0.0, %v2908
    %v2910 = vpop.f32.mrb[0].mxu0
    %2911 = vmatprep.mubr.f32.mxu0 0.0
    %2912 = vmatmul.mubr.f32.gmra.mrb[0].mxu0 %v2802
    %v2913 = vpop.f32.mrb[0].mxu0
    %v2914 = vadd.f32 0.0, %v2913
    %v2915 = vpop.f32.mrb[0].mxu0
    %2916 = vmatprep.mubr.f32.mxu0 0.0
    %2917 = vmatmul.mubr.f32.gmra.mrb[0].mxu0 %v2805
    %v2918 = vpop.f32.mrb[0].mxu0
    %v2919 = vadd.f32 0.0, %v2918
    %v2920 = vpop.f32.mrb[0].mxu0
    %2921 = vmatprep.mubr.f32.mxu0 0.0
    %2922 = vmatmul.mubr.f32.gmra.mrb[0].mxu0 %v2808
    %v2923 = vpop.f32.mrb[0].mxu0
    %v2924 = vadd.f32 0.0, %v2923
    %v2925 = vpop.f32.mrb[0].mxu0
    %2926 = vdwg.mxu0
    %2935 = vrot.lane.b32.xlu0 %v2889, 96
    %v2936 = vpop.permute.xlu0 %2935
    %2937 = vrot.lane.b32.xlu0 %v2894, 96
    %v2938 = vpop.permute.xlu0 %2937
    %2939 = vrot.lane.b32.xlu0 %v2899, 96
    %v2940 = vpop.permute.xlu0 %2939
    %2941 = vrot.lane.b32.xlu0 %v2904, 96
    %v2942 = vpop.permute.xlu0 %2941
    %2943 = vrot.lane.b32.xlu0 %v2909, 96
    %v2944 = vpop.permute.xlu0 %2943
    %2945 = vrot.lane.b32.xlu0 %v2914, 96
    %v2946 = vpop.permute.xlu0 %2945
    %2947 = vrot.lane.b32.xlu0 %v2919, 96
    %v2948 = vpop.permute.xlu0 %2947
    %2949 = vrot.lane.b32.xlu0 %v2924, 96
    %v2950 = vpop.permute.xlu0 %2949
    %vm2959 = vcmask 1048320
    %2960 = vst.msk [vmem:[#allocation2] sm:$0xff] %vm2959, %v2936
    %2961 = vst.msk [vmem:[#allocation2 + $0x10] sm:$0xff] %vm2959, %v2938
    %2962 = vst.msk [vmem:[#allocation2 + $0x20] sm:$0xff] %vm2959, %v2940
    %2963 = vst.msk [vmem:[#allocation2 + $0x30] sm:$0xff] %vm2959, %v2942
    %2964 = vst.msk [vmem:[#allocation2 + $0x40] sm:$0xff] %vm2959, %v2944
    %2965 = vst.msk [vmem:[#allocation2 + $0x50] sm:$0xff] %vm2959, %v2946
    %2966 = vst.msk [vmem:[#allocation2 + $0x60] sm:$0xff] %vm2959, %v2948
    %2967 = vst.msk [vmem:[#allocation2 + $0x70] sm:$0xff] %vm2959, %v2950
    %v2969 = vsel %vm1283, %v294, 0
    %v2972 = vsel %vm1283, %v300, 0
    %v2975 = vsel %vm1283, %v306, 0
    %v2978 = vsel %vm1283, %v312, 0
    %v2981 = vsel %vm1283, %v318, 0
    %v2984 = vsel %vm1283, %v324, 0
    %v2987 = vsel %vm1283, %v330, 0
    %v2990 = vsel %vm1283, %v336, 0
    %2992 = vmatprep.subr.mxu0 0.0
    %2993 = vmatpush1.msra.mxu0 %v1045
    %2994 = vmatprep.subr.mxu0 0.0
    %2995 = vmatpush1.msra.mxu0 %v1050
    %2996 = vmatprep.subr.mxu0 0.0
    %2997 = vmatpush1.msra.mxu0 %v1055
    %2998 = vmatprep.subr.mxu0 0.0
    %2999 = vmatpush1.msra.mxu0 %v1060
    %3000 = vmatprep.subr.mxu0 0.0
    %3001 = vmatpush1.msra.mxu0 0.0
    %3002 = vmatprep.subr.mxu0 0.0
    %3003 = vmatpush1.msra.mxu0 0.0
    %3004 = vmatprep.subr.mxu0 0.0
    %3005 = vmatpush1.msra.mxu0 0.0
    %3006 = vmatprep.subr.mxu0 0.0
    %3007 = vmatpush1.msra.mxu0 0.0
    %3008 = vmatprep.subr.mxu0 0.0
    %3009 = vmatpush1.msra.mxu0 0.0
    %3010 = vmatprep.subr.mxu0 0.0
    %3011 = vmatpush1.msra.mxu0 0.0
    %3012 = vmatprep.subr.mxu0 0.0
    %3013 = vmatpush1.msra.mxu0 0.0
    %3014 = vmatprep.subr.mxu0 0.0
    %3015 = vmatpush1.msra.mxu0 0.0
    %3016 = vmatprep.subr.mxu0 0.0
    %3017 = vmatpush1.msra.mxu0 0.0
    %3018 = vmatprep.subr.mxu0 0.0
    %3019 = vmatpush1.msra.mxu0 0.0
    %3020 = vmatprep.subr.mxu0 0.0
    %3021 = vmatpush1.msra.mxu0 0.0
    %3022 = vmatprep.subr.mxu0 0.0
    %3023 = vmatpush1.msra.mxu0 0.0
    %3024 = vmatprep.subr.mxu0 0.0
    %3025 = vmatpush1.msra.mxu0 0.0
    %3026 = vmatprep.subr.mxu0 0.0
    %3027 = vmatpush1.msra.mxu0 0.0
    %3028 = vmatprep.subr.mxu0 0.0
    %3029 = vmatpush1.msra.mxu0 0.0
    %3030 = vmatprep.subr.mxu0 0.0
    %3031 = vmatpush1.msra.mxu0 0.0
    %3032 = vmatprep.subr.mxu0 0.0
    %3033 = vmatpush1.msra.mxu0 0.0
    %3034 = vmatprep.subr.mxu0 0.0
    %3035 = vmatpush1.msra.mxu0 0.0
    %3036 = vmatprep.subr.mxu0 0.0
    %3037 = vmatpush1.msra.mxu0 0.0
    %3038 = vmatprep.subr.mxu0 0.0
    %3039 = vmatpush1.msra.mxu0 0.0
    %3040 = vmatprep.subr.mxu0 0.0
    %3041 = vmatpush1.msra.mxu0 0.0
    %3042 = vmatprep.subr.mxu0 0.0
    %3043 = vmatpush1.msra.mxu0 0.0
    %3044 = vmatprep.subr.mxu0 0.0
    %3045 = vmatpush1.msra.mxu0 0.0
    %3046 = vmatprep.subr.mxu0 0.0
    %3047 = vmatpush1.msra.mxu0 0.0
    %3048 = vmatprep.subr.mxu0 0.0
    %3049 = vmatpush1.msra.mxu0 0.0
    %3050 = vmatprep.subr.mxu0 0.0
    %3051 = vmatpush1.msra.mxu0 0.0
    %3052 = vmatprep.subr.mxu0 0.0
    %3053 = vmatpush1.msra.mxu0 0.0
    %3054 = vmatprep.subr.mxu0 0.0
    %3055 = vmatpush1.msra.mxu0 0.0
    %3056 = vmatprep.mubr.f32.mxu0 0.0
    %3057 = vmatmul.mubr.f32.gmra.mrb[0].mxu0 %v2969
    %v3058 = vpop.f32.mrb[0].mxu0
    %v3059 = vadd.f32 0.0, %v3058
    %v3060 = vpop.f32.mrb[0].mxu0
    %3061 = vmatprep.mubr.f32.mxu0 0.0
    %3062 = vmatmul.mubr.f32.gmra.mrb[0].mxu0 %v2972
    %v3063 = vpop.f32.mrb[0].mxu0
    %v3064 = vadd.f32 0.0, %v3063
    %v3065 = vpop.f32.mrb[0].mxu0
    %3066 = vmatprep.mubr.f32.mxu0 0.0
    %3067 = vmatmul.mubr.f32.gmra.mrb[0].mxu0 %v2975
    %v3068 = vpop.f32.mrb[0].mxu0
    %v3069 = vadd.f32 0.0, %v3068
    %v3070 = vpop.f32.mrb[0].mxu0
    %3071 = vmatprep.mubr.f32.mxu0 0.0
    %3072 = vmatmul.mubr.f32.gmra.mrb[0].mxu0 %v2978
    %v3073 = vpop.f32.mrb[0].mxu0
    %v3074 = vadd.f32 0.0, %v3073
    %v3075 = vpop.f32.mrb[0].mxu0
    %3076 = vmatprep.mubr.f32.mxu0 0.0
    %3077 = vmatmul.mubr.f32.gmra.mrb[0].mxu0 %v2981
    %v3078 = vpop.f32.mrb[0].mxu0
    %v3079 = vadd.f32 0.0, %v3078
    %v3080 = vpop.f32.mrb[0].mxu0
    %3081 = vmatprep.mubr.f32.mxu0 0.0
    %3082 = vmatmul.mubr.f32.gmra.mrb[0].mxu0 %v2984
    %v3083 = vpop.f32.mrb[0].mxu0
    %v3084 = vadd.f32 0.0, %v3083
    %v3085 = vpop.f32.mrb[0].mxu0
    %3086 = vmatprep.mubr.f32.mxu0 0.0
    %3087 = vmatmul.mubr.f32.gmra.mrb[0].mxu0 %v2987
    %v3088 = vpop.f32.mrb[0].mxu0
    %v3089 = vadd.f32 0.0, %v3088
    %v3090 = vpop.f32.mrb[0].mxu0
    %3091 = vmatprep.mubr.f32.mxu0 0.0
    %3092 = vmatmul.mubr.f32.gmra.mrb[0].mxu0 %v2990
    %v3093 = vpop.f32.mrb[0].mxu0
    %v3094 = vadd.f32 0.0, %v3093
    %v3095 = vpop.f32.mrb[0].mxu0
    %3096 = vdwg.mxu0
    %v3097 = vsel %vm1413, %v3059, -inf
    %3098 = vmax.xlane.f32.xlu0 %v3097
    %v3099 = vpop.xlane.xlu0 %3098
    %v3100 = vsel %vm1413, %v3064, -inf
    %3101 = vmax.xlane.f32.xlu0 %v3100
    %v3102 = vpop.xlane.xlu0 %3101
    %v3103 = vsel %vm1413, %v3069, -inf
    %3104 = vmax.xlane.f32.xlu0 %v3103
    %v3105 = vpop.xlane.xlu0 %3104
    %v3106 = vsel %vm1413, %v3074, -inf
    %3107 = vmax.xlane.f32.xlu0 %v3106
    %v3108 = vpop.xlane.xlu0 %3107
    %v3109 = vsel %vm1413, %v3079, -inf
    %3110 = vmax.xlane.f32.xlu0 %v3109
    %v3111 = vpop.xlane.xlu0 %3110
    %v3112 = vsel %vm1413, %v3084, -inf
    %3113 = vmax.xlane.f32.xlu0 %v3112
    %v3114 = vpop.xlane.xlu0 %3113
    %v3115 = vsel %vm1413, %v3089, -inf
    %3116 = vmax.xlane.f32.xlu0 %v3115
    %v3117 = vpop.xlane.xlu0 %3116
    %v3118 = vsel %vm1413, %v3094, -inf
    %3119 = vmax.xlane.f32.xlu0 %v3118
    %v3120 = vpop.xlane.xlu0 %3119
    %v3121 = vsub.f32 %v3059, %v3099
    %v3122 = vsub.f32 %v3064, %v3102
    %v3123 = vsub.f32 %v3069, %v3105
    %v3124 = vsub.f32 %v3074, %v3108
    %v3125 = vsub.f32 %v3079, %v3111
    %v3126 = vsub.f32 %v3084, %v3114
    %v3127 = vsub.f32 %v3089, %v3117
    %v3128 = vsub.f32 %v3094, %v3120
    %v3129 = vmul.f32 %v3121, 1.442695
    %v3130 = vpow.pop %v3129
    %v3131 = vmul.f32 %v3122, 1.442695
    %v3132 = vpow.pop %v3131
    %v3133 = vmul.f32 %v3123, 1.442695
    %v3134 = vpow.pop %v3133
    %v3135 = vmul.f32 %v3124, 1.442695
    %v3136 = vpow.pop %v3135
    %v3137 = vmul.f32 %v3125, 1.442695
    %v3138 = vpow.pop %v3137
    %v3139 = vmul.f32 %v3126, 1.442695
    %v3140 = vpow.pop %v3139
    %v3141 = vmul.f32 %v3127, 1.442695
    %v3142 = vpow.pop %v3141
    %v3143 = vmul.f32 %v3128, 1.442695
    %v3144 = vpow.pop %v3143
    %v3145 = vsel %vm1413, %v3130, 0.0
    %3146 = vadd.xlane.f32.xlu0 %v3145
    %v3147 = vpop.xlane.xlu0 %3146
    %v3148 = vsel %vm1413, %v3132, 0.0
    %3149 = vadd.xlane.f32.xlu0 %v3148
    %v3150 = vpop.xlane.xlu0 %3149
    %v3151 = vsel %vm1413, %v3134, 0.0
    %3152 = vadd.xlane.f32.xlu0 %v3151
    %v3153 = vpop.xlane.xlu0 %3152
    %v3154 = vsel %vm1413, %v3136, 0.0
    %3155 = vadd.xlane.f32.xlu0 %v3154
    %v3156 = vpop.xlane.xlu0 %3155
    %v3157 = vsel %vm1413, %v3138, 0.0
    %3158 = vadd.xlane.f32.xlu0 %v3157
    %v3159 = vpop.xlane.xlu0 %3158
    %v3160 = vsel %vm1413, %v3140, 0.0
    %3161 = vadd.xlane.f32.xlu0 %v3160
    %v3162 = vpop.xlane.xlu0 %3161
    %v3163 = vsel %vm1413, %v3142, 0.0
    %3164 = vadd.xlane.f32.xlu0 %v3163
    %v3165 = vpop.xlane.xlu0 %3164
    %v3166 = vsel %vm1413, %v3144, 0.0
    %3167 = vadd.xlane.f32.xlu0 %v3166
    %v3168 = vpop.xlane.xlu0 %3167
    %v3169 = vrcp.pop %v3147
    %v3170 = vrcp.pop %v3150
    %v3171 = vrcp.pop %v3153
    %v3172 = vrcp.pop %v3156
    %v3173 = vrcp.pop %v3159
    %v3174 = vrcp.pop %v3162
    %v3175 = vrcp.pop %v3165
    %v3176 = vrcp.pop %v3168
    %v3177 = vmul.f32 %v3147, %v3169
    %v3178 = vmul.f32 %v3150, %v3170
    %v3179 = vmul.f32 %v3153, %v3171
    %v3180 = vmul.f32 %v3156, %v3172
    %v3181 = vmul.f32 %v3159, %v3173
    %v3182 = vmul.f32 %v3162, %v3174
    %v3183 = vmul.f32 %v3165, %v3175
    %v3184 = vmul.f32 %v3168, %v3176
    %v3185 = vsub.f32 2.0, %v3177
    %v3186 = vsub.f32 2.0, %v3178
    %v3187 = vsub.f32 2.0, %v3179
    %v3188 = vsub.f32 2.0, %v3180
    %v3189 = vsub.f32 2.0, %v3181
    %v3190 = vsub.f32 2.0, %v3182
    %v3191 = vsub.f32 2.0, %v3183
    %v3192 = vsub.f32 2.0, %v3184
    %v3193 = vmul.f32 %v3169, %v3185
    %v3194 = vmul.f32 %v3170, %v3186
    %v3195 = vmul.f32 %v3171, %v3187
    %v3196 = vmul.f32 %v3172, %v3188
    %v3197 = vmul.f32 %v3173, %v3189
    %v3198 = vmul.f32 %v3174, %v3190
    %v3199 = vmul.f32 %v3175, %v3191
    %v3200 = vmul.f32 %v3176, %v3192
    %v3201 = vmul.f32 %v3130, %v3193
    %v3202 = vmul.f32 %v3132, %v3194
    %v3203 = vmul.f32 %v3134, %v3195
    %v3204 = vmul.f32 %v3136, %v3196
    %v3205 = vmul.f32 %v3138, %v3197
    %v3206 = vmul.f32 %v3140, %v3198
    %v3207 = vmul.f32 %v3142, %v3199
    %v3208 = vmul.f32 %v3144, %v3200
    %v3210 = vsel %vm1413, %v3201, 0
    %v3213 = vsel %vm1413, %v3202, 0
    %v3216 = vsel %vm1413, %v3203, 0
    %v3219 = vsel %vm1413, %v3204, 0
    %v3222 = vsel %vm1413, %v3205, 0
    %v3225 = vsel %vm1413, %v3206, 0
    %v3228 = vsel %vm1413, %v3207, 0
    %v3231 = vsel %vm1413, %v3208, 0
    %v3234 = vsel %vm1413, %v1205, 0
    %v3237 = vsel %vm1413, %v1210, 0
    %v3240 = vsel %vm1413, %v1215, 0
    %v3243 = vsel %vm1413, %v1220, 0
    %3245 = vmatprep.subr.mxu0 0.0
    %3246 = vmatpush1.xpose.msra.mxu0 %v3234
    %3247 = vmatprep.subr.mxu0 0.0
    %3248 = vmatpush1.xpose.msra.mxu0 %v3237
    %3249 = vmatprep.subr.mxu0 0.0
    %3250 = vmatpush1.xpose.msra.mxu0 %v3240
    %3251 = vmatprep.subr.mxu0 0.0
    %3252 = vmatpush1.xpose.msra.mxu0 %v3243
    %3253 = vmatprep.subr.mxu0 0.0
    %3254 = vmatpush1.xpose.msra.mxu0 0.0
    %3255 = vmatprep.subr.mxu0 0.0
    %3256 = vmatpush1.xpose.msra.mxu0 0.0
    %3257 = vmatprep.subr.mxu0 0.0
    %3258 = vmatpush1.xpose.msra.mxu0 0.0
    %3259 = vmatprep.subr.mxu0 0.0
    %3260 = vmatpush1.xpose.msra.mxu0 0.0
    %3261 = vmatprep.subr.mxu0 0.0
    %3262 = vmatpush1.xpose.msra.mxu0 0.0
    %3263 = vmatprep.subr.mxu0 0.0
    %3264 = vmatpush1.xpose.msra.mxu0 0.0
    %3265 = vmatprep.subr.mxu0 0.0
    %3266 = vmatpush1.xpose.msra.mxu0 0.0
    %3267 = vmatprep.subr.mxu0 0.0
    %3268 = vmatpush1.xpose.msra.mxu0 0.0
    %3269 = vmatprep.subr.mxu0 0.0
    %3270 = vmatpush1.xpose.msra.mxu0 0.0
    %3271 = vmatprep.subr.mxu0 0.0
    %3272 = vmatpush1.xpose.msra.mxu0 0.0
    %3273 = vmatprep.subr.mxu0 0.0
    %3274 = vmatpush1.xpose.msra.mxu0 0.0
    %3275 = vmatprep.subr.mxu0 0.0
    %3276 = vmatpush1.xpose.msra.mxu0 0.0
    %3277 = vmatprep.subr.mxu0 0.0
    %3278 = vmatpush1.xpose.msra.mxu0 0.0
    %3279 = vmatprep.subr.mxu0 0.0
    %3280 = vmatpush1.xpose.msra.mxu0 0.0
    %3281 = vmatprep.subr.mxu0 0.0
    %3282 = vmatpush1.xpose.msra.mxu0 0.0
    %3283 = vmatprep.subr.mxu0 0.0
    %3284 = vmatpush1.xpose.msra.mxu0 0.0
    %3285 = vmatprep.subr.mxu0 0.0
    %3286 = vmatpush1.xpose.msra.mxu0 0.0
    %3287 = vmatprep.subr.mxu0 0.0
    %3288 = vmatpush1.xpose.msra.mxu0 0.0
    %3289 = vmatprep.subr.mxu0 0.0
    %3290 = vmatpush1.xpose.msra.mxu0 0.0
    %3291 = vmatprep.subr.mxu0 0.0
    %3292 = vmatpush1.xpose.msra.mxu0 0.0
    %3293 = vmatprep.subr.mxu0 0.0
    %3294 = vmatpush1.xpose.msra.mxu0 0.0
    %3295 = vmatprep.subr.mxu0 0.0
    %3296 = vmatpush1.xpose.msra.mxu0 0.0
    %3297 = vmatprep.subr.mxu0 0.0
    %3298 = vmatpush1.xpose.msra.mxu0 0.0
    %3299 = vmatprep.subr.mxu0 0.0
    %3300 = vmatpush1.xpose.msra.mxu0 0.0
    %3301 = vmatprep.subr.mxu0 0.0
    %3302 = vmatpush1.xpose.msra.mxu0 0.0
    %3303 = vmatprep.subr.mxu0 0.0
    %3304 = vmatpush1.xpose.msra.mxu0 0.0
    %3305 = vmatprep.subr.mxu0 0.0
    %3306 = vmatpush1.xpose.msra.mxu0 0.0
    %3307 = vmatprep.subr.mxu0 0.0
    %3308 = vmatpush1.xpose.msra.mxu0 0.0
    %3309 = vmatprep.mubr.f32.mxu0 0.0
    %3310 = vmatmul.mubr.f32.gmra.mrb[0].mxu0 %v3210
    %v3311 = vpop.f32.mrb[0].mxu0
    %v3312 = vadd.f32 0.0, %v3311
    %v3313 = vpop.f32.mrb[0].mxu0
    %3314 = vmatprep.mubr.f32.mxu0 0.0
    %3315 = vmatmul.mubr.f32.gmra.mrb[0].mxu0 %v3213
    %v3316 = vpop.f32.mrb[0].mxu0
    %v3317 = vadd.f32 0.0, %v3316
    %v3318 = vpop.f32.mrb[0].mxu0
    %3319 = vmatprep.mubr.f32.mxu0 0.0
    %3320 = vmatmul.mubr.f32.gmra.mrb[0].mxu0 %v3216
    %v3321 = vpop.f32.mrb[0].mxu0
    %v3322 = vadd.f32 0.0, %v3321
    %v3323 = vpop.f32.mrb[0].mxu0
    %3324 = vmatprep.mubr.f32.mxu0 0.0
    %3325 = vmatmul.mubr.f32.gmra.mrb[0].mxu0 %v3219
    %v3326 = vpop.f32.mrb[0].mxu0
    %v3327 = vadd.f32 0.0, %v3326
    %v3328 = vpop.f32.mrb[0].mxu0
    %3329 = vmatprep.mubr.f32.mxu0 0.0
    %3330 = vmatmul.mubr.f32.gmra.mrb[0].mxu0 %v3222
    %v3331 = vpop.f32.mrb[0].mxu0
    %v3332 = vadd.f32 0.0, %v3331
    %v3333 = vpop.f32.mrb[0].mxu0
    %3334 = vmatprep.mubr.f32.mxu0 0.0
    %3335 = vmatmul.mubr.f32.gmra.mrb[0].mxu0 %v3225
    %v3336 = vpop.f32.mrb[0].mxu0
    %v3337 = vadd.f32 0.0, %v3336
    %v3338 = vpop.f32.mrb[0].mxu0
    %3339 = vmatprep.mubr.f32.mxu0 0.0
    %3340 = vmatmul.mubr.f32.gmra.mrb[0].mxu0 %v3228
    %v3341 = vpop.f32.mrb[0].mxu0
    %v3342 = vadd.f32 0.0, %v3341
    %v3343 = vpop.f32.mrb[0].mxu0
    %3344 = vmatprep.mubr.f32.mxu0 0.0
    %3345 = vmatmul.mubr.f32.gmra.mrb[0].mxu0 %v3231
    %v3346 = vpop.f32.mrb[0].mxu0
    %v3347 = vadd.f32 0.0, %v3346
    %v3348 = vpop.f32.mrb[0].mxu0
    %3349 = vdwg.mxu0
    %3350 = vst.msk [vmem:[#allocation2 + $0x8] sm:$0xff] %vm1283, %v3312
    %3351 = vst.msk [vmem:[#allocation2 + $0x18] sm:$0xff] %vm1283, %v3317
    %3352 = vst.msk [vmem:[#allocation2 + $0x28] sm:$0xff] %vm1283, %v3322
    %3353 = vst.msk [vmem:[#allocation2 + $0x38] sm:$0xff] %vm1283, %v3327
    %3354 = vst.msk [vmem:[#allocation2 + $0x48] sm:$0xff] %vm1283, %v3332
    %3355 = vst.msk [vmem:[#allocation2 + $0x58] sm:$0xff] %vm1283, %v3337
    %3356 = vst.msk [vmem:[#allocation2 + $0x68] sm:$0xff] %vm1283, %v3342
    %3357 = vst.msk [vmem:[#allocation2 + $0x78] sm:$0xff] %vm1283, %v3347
    %3358 = vrot.lane.b32.xlu0 %v294, 96
    %v3359 = vpop.permute.xlu0 %3358
    %3360 = vrot.lane.b32.xlu0 %v300, 96
    %v3361 = vpop.permute.xlu0 %3360
    %3362 = vrot.lane.b32.xlu0 %v306, 96
    %v3363 = vpop.permute.xlu0 %3362
    %3364 = vrot.lane.b32.xlu0 %v312, 96
    %v3365 = vpop.permute.xlu0 %3364
    %3366 = vrot.lane.b32.xlu0 %v318, 96
    %v3367 = vpop.permute.xlu0 %3366
    %3368 = vrot.lane.b32.xlu0 %v324, 96
    %v3369 = vpop.permute.xlu0 %3368
    %3370 = vrot.lane.b32.xlu0 %v330, 96
    %v3371 = vpop.permute.xlu0 %3370
    %3372 = vrot.lane.b32.xlu0 %v336, 96
    %v3373 = vpop.permute.xlu0 %3372
    %v3374 = vsel %vm1283, %v3359, 0
    %v3376 = vsel %vm1283, %v3361, 0
    %v3378 = vsel %vm1283, %v3363, 0
    %v3380 = vsel %vm1283, %v3365, 0
    %v3382 = vsel %vm1283, %v3367, 0
    %v3384 = vsel %vm1283, %v3369, 0
    %v3386 = vsel %vm1283, %v3371, 0
    %v3388 = vsel %vm1283, %v3373, 0
    %3390 = vmatprep.subr.mxu0 0.0
    %3391 = vmatpush1.msra.mxu0 %v1065
    %3392 = vmatprep.subr.mxu0 0.0
    %3393 = vmatpush1.msra.mxu0 %v1070
    %3394 = vmatprep.subr.mxu0 0.0
    %3395 = vmatpush1.msra.mxu0 %v1075
    %3396 = vmatprep.subr.mxu0 0.0
    %3397 = vmatpush1.msra.mxu0 %v1080
    %3398 = vmatprep.subr.mxu0 0.0
    %3399 = vmatpush1.msra.mxu0 0.0
    %3400 = vmatprep.subr.mxu0 0.0
    %3401 = vmatpush1.msra.mxu0 0.0
    %3402 = vmatprep.subr.mxu0 0.0
    %3403 = vmatpush1.msra.mxu0 0.0
    %3404 = vmatprep.subr.mxu0 0.0
    %3405 = vmatpush1.msra.mxu0 0.0
    %3406 = vmatprep.subr.mxu0 0.0
    %3407 = vmatpush1.msra.mxu0 0.0
    %3408 = vmatprep.subr.mxu0 0.0
    %3409 = vmatpush1.msra.mxu0 0.0
    %3410 = vmatprep.subr.mxu0 0.0
    %3411 = vmatpush1.msra.mxu0 0.0
    %3412 = vmatprep.subr.mxu0 0.0
    %3413 = vmatpush1.msra.mxu0 0.0
    %3414 = vmatprep.subr.mxu0 0.0
    %3415 = vmatpush1.msra.mxu0 0.0
    %3416 = vmatprep.subr.mxu0 0.0
    %3417 = vmatpush1.msra.mxu0 0.0
    %3418 = vmatprep.subr.mxu0 0.0
    %3419 = vmatpush1.msra.mxu0 0.0
    %3420 = vmatprep.subr.mxu0 0.0
    %3421 = vmatpush1.msra.mxu0 0.0
    %3422 = vmatprep.subr.mxu0 0.0
    %3423 = vmatpush1.msra.mxu0 0.0
    %3424 = vmatprep.subr.mxu0 0.0
    %3425 = vmatpush1.msra.mxu0 0.0
    %3426 = vmatprep.subr.mxu0 0.0
    %3427 = vmatpush1.msra.mxu0 0.0
    %3428 = vmatprep.subr.mxu0 0.0
    %3429 = vmatpush1.msra.mxu0 0.0
    %3430 = vmatprep.subr.mxu0 0.0
    %3431 = vmatpush1.msra.mxu0 0.0
    %3432 = vmatprep.subr.mxu0 0.0
    %3433 = vmatpush1.msra.mxu0 0.0
    %3434 = vmatprep.subr.mxu0 0.0
    %3435 = vmatpush1.msra.mxu0 0.0
    %3436 = vmatprep.subr.mxu0 0.0
    %3437 = vmatpush1.msra.mxu0 0.0
    %3438 = vmatprep.subr.mxu0 0.0
    %3439 = vmatpush1.msra.mxu0 0.0
    %3440 = vmatprep.subr.mxu0 0.0
    %3441 = vmatpush1.msra.mxu0 0.0
    %3442 = vmatprep.subr.mxu0 0.0
    %3443 = vmatpush1.msra.mxu0 0.0
    %3444 = vmatprep.subr.mxu0 0.0
    %3445 = vmatpush1.msra.mxu0 0.0
    %3446 = vmatprep.subr.mxu0 0.0
    %3447 = vmatpush1.msra.mxu0 0.0
    %3448 = vmatprep.subr.mxu0 0.0
    %3449 = vmatpush1.msra.mxu0 0.0
    %3450 = vmatprep.subr.mxu0 0.0
    %3451 = vmatpush1.msra.mxu0 0.0
    %3452 = vmatprep.subr.mxu0 0.0
    %3453 = vmatpush1.msra.mxu0 0.0
    %3454 = vmatprep.mubr.f32.mxu0 0.0
    %3455 = vmatmul.mubr.f32.gmra.mrb[0].mxu0 %v3374
    %v3456 = vpop.f32.mrb[0].mxu0
    %v3457 = vadd.f32 0.0, %v3456
    %v3458 = vpop.f32.mrb[0].mxu0
    %3459 = vmatprep.mubr.f32.mxu0 0.0
    %3460 = vmatmul.mubr.f32.gmra.mrb[0].mxu0 %v3376
    %v3461 = vpop.f32.mrb[0].mxu0
    %v3462 = vadd.f32 0.0, %v3461
    %v3463 = vpop.f32.mrb[0].mxu0
    %3464 = vmatprep.mubr.f32.mxu0 0.0
    %3465 = vmatmul.mubr.f32.gmra.mrb[0].mxu0 %v3378
    %v3466 = vpop.f32.mrb[0].mxu0
    %v3467 = vadd.f32 0.0, %v3466
    %v3468 = vpop.f32.mrb[0].mxu0
    %3469 = vmatprep.mubr.f32.mxu0 0.0
    %3470 = vmatmul.mubr.f32.gmra.mrb[0].mxu0 %v3380
    %v3471 = vpop.f32.mrb[0].mxu0
    %v3472 = vadd.f32 0.0, %v3471
    %v3473 = vpop.f32.mrb[0].mxu0
    %3474 = vmatprep.mubr.f32.mxu0 0.0
    %3475 = vmatmul.mubr.f32.gmra.mrb[0].mxu0 %v3382
    %v3476 = vpop.f32.mrb[0].mxu0
    %v3477 = vadd.f32 0.0, %v3476
    %v3478 = vpop.f32.mrb[0].mxu0
    %3479 = vmatprep.mubr.f32.mxu0 0.0
    %3480 = vmatmul.mubr.f32.gmra.mrb[0].mxu0 %v3384
    %v3481 = vpop.f32.mrb[0].mxu0
    %v3482 = vadd.f32 0.0, %v3481
    %v3483 = vpop.f32.mrb[0].mxu0
    %3484 = vmatprep.mubr.f32.mxu0 0.0
    %3485 = vmatmul.mubr.f32.gmra.mrb[0].mxu0 %v3386
    %v3486 = vpop.f32.mrb[0].mxu0
    %v3487 = vadd.f32 0.0, %v3486
    %v3488 = vpop.f32.mrb[0].mxu0
    %3489 = vmatprep.mubr.f32.mxu0 0.0
    %3490 = vmatmul.mubr.f32.gmra.mrb[0].mxu0 %v3388
    %v3491 = vpop.f32.mrb[0].mxu0
    %v3492 = vadd.f32 0.0, %v3491
    %v3493 = vpop.f32.mrb[0].mxu0
    %3494 = vdwg.mxu0
    %v3495 = vsel %vm1413, %v3457, -inf
    %3496 = vmax.xlane.f32.xlu0 %v3495
    %v3497 = vpop.xlane.xlu0 %3496
    %v3498 = vsel %vm1413, %v3462, -inf
    %3499 = vmax.xlane.f32.xlu0 %v3498
    %v3500 = vpop.xlane.xlu0 %3499
    %v3501 = vsel %vm1413, %v3467, -inf
    %3502 = vmax.xlane.f32.xlu0 %v3501
    %v3503 = vpop.xlane.xlu0 %3502
    %v3504 = vsel %vm1413, %v3472, -inf
    %3505 = vmax.xlane.f32.xlu0 %v3504
    %v3506 = vpop.xlane.xlu0 %3505
    %v3507 = vsel %vm1413, %v3477, -inf
    %3508 = vmax.xlane.f32.xlu0 %v3507
    %v3509 = vpop.xlane.xlu0 %3508
    %v3510 = vsel %vm1413, %v3482, -inf
    %3511 = vmax.xlane.f32.xlu0 %v3510
    %v3512 = vpop.xlane.xlu0 %3511
    %v3513 = vsel %vm1413, %v3487, -inf
    %3514 = vmax.xlane.f32.xlu0 %v3513
    %v3515 = vpop.xlane.xlu0 %3514
    %v3516 = vsel %vm1413, %v3492, -inf
    %3517 = vmax.xlane.f32.xlu0 %v3516
    %v3518 = vpop.xlane.xlu0 %3517
    %v3519 = vsub.f32 %v3457, %v3497
    %v3520 = vsub.f32 %v3462, %v3500
    %v3521 = vsub.f32 %v3467, %v3503
    %v3522 = vsub.f32 %v3472, %v3506
    %v3523 = vsub.f32 %v3477, %v3509
    %v3524 = vsub.f32 %v3482, %v3512
    %v3525 = vsub.f32 %v3487, %v3515
    %v3526 = vsub.f32 %v3492, %v3518
    %v3527 = vmul.f32 %v3519, 1.442695
    %v3528 = vpow.pop %v3527
    %v3529 = vmul.f32 %v3520, 1.442695
    %v3530 = vpow.pop %v3529
    %v3531 = vmul.f32 %v3521, 1.442695
    %v3532 = vpow.pop %v3531
    %v3533 = vmul.f32 %v3522, 1.442695
    %v3534 = vpow.pop %v3533
    %v3535 = vmul.f32 %v3523, 1.442695
    %v3536 = vpow.pop %v3535
    %v3537 = vmul.f32 %v3524, 1.442695
    %v3538 = vpow.pop %v3537
    %v3539 = vmul.f32 %v3525, 1.442695
    %v3540 = vpow.pop %v3539
    %v3541 = vmul.f32 %v3526, 1.442695
    %v3542 = vpow.pop %v3541
    %v3543 = vsel %vm1413, %v3528, 0.0
    %3544 = vadd.xlane.f32.xlu0 %v3543
    %v3545 = vpop.xlane.xlu0 %3544
    %v3546 = vsel %vm1413, %v3530, 0.0
    %3547 = vadd.xlane.f32.xlu0 %v3546
    %v3548 = vpop.xlane.xlu0 %3547
    %v3549 = vsel %vm1413, %v3532, 0.0
    %3550 = vadd.xlane.f32.xlu0 %v3549
    %v3551 = vpop.xlane.xlu0 %3550
    %v3552 = vsel %vm1413, %v3534, 0.0
    %3553 = vadd.xlane.f32.xlu0 %v3552
    %v3554 = vpop.xlane.xlu0 %3553
    %v3555 = vsel %vm1413, %v3536, 0.0
    %3556 = vadd.xlane.f32.xlu0 %v3555
    %v3557 = vpop.xlane.xlu0 %3556
    %v3558 = vsel %vm1413, %v3538, 0.0
    %3559 = vadd.xlane.f32.xlu0 %v3558
    %v3560 = vpop.xlane.xlu0 %3559
    %v3561 = vsel %vm1413, %v3540, 0.0
    %3562 = vadd.xlane.f32.xlu0 %v3561
    %v3563 = vpop.xlane.xlu0 %3562
    %v3564 = vsel %vm1413, %v3542, 0.0
    %3565 = vadd.xlane.f32.xlu0 %v3564
    %v3566 = vpop.xlane.xlu0 %3565
    %v3567 = vrcp.pop %v3545
    %v3568 = vrcp.pop %v3548
    %v3569 = vrcp.pop %v3551
    %v3570 = vrcp.pop %v3554
    %v3571 = vrcp.pop %v3557
    %v3572 = vrcp.pop %v3560
    %v3573 = vrcp.pop %v3563
    %v3574 = vrcp.pop %v3566
    %v3575 = vmul.f32 %v3545, %v3567
    %v3576 = vmul.f32 %v3548, %v3568
    %v3577 = vmul.f32 %v3551, %v3569
    %v3578 = vmul.f32 %v3554, %v3570
    %v3579 = vmul.f32 %v3557, %v3571
    %v3580 = vmul.f32 %v3560, %v3572
    %v3581 = vmul.f32 %v3563, %v3573
    %v3582 = vmul.f32 %v3566, %v3574
    %v3583 = vsub.f32 2.0, %v3575
    %v3584 = vsub.f32 2.0, %v3576
    %v3585 = vsub.f32 2.0, %v3577
    %v3586 = vsub.f32 2.0, %v3578
    %v3587 = vsub.f32 2.0, %v3579
    %v3588 = vsub.f32 2.0, %v3580
    %v3589 = vsub.f32 2.0, %v3581
    %v3590 = vsub.f32 2.0, %v3582
    %v3591 = vmul.f32 %v3567, %v3583
    %v3592 = vmul.f32 %v3568, %v3584
    %v3593 = vmul.f32 %v3569, %v3585
    %v3594 = vmul.f32 %v3570, %v3586
    %v3595 = vmul.f32 %v3571, %v3587
    %v3596 = vmul.f32 %v3572, %v3588
    %v3597 = vmul.f32 %v3573, %v3589
    %v3598 = vmul.f32 %v3574, %v3590
    %v3599 = vmul.f32 %v3528, %v3591
    %v3600 = vmul.f32 %v3530, %v3592
    %v3601 = vmul.f32 %v3532, %v3593
    %v3602 = vmul.f32 %v3534, %v3594
    %v3603 = vmul.f32 %v3536, %v3595
    %v3604 = vmul.f32 %v3538, %v3596
    %v3605 = vmul.f32 %v3540, %v3597
    %v3606 = vmul.f32 %v3542, %v3598
    %v3608 = vsel %vm1413, %v3599, 0
    %v3611 = vsel %vm1413, %v3600, 0
    %v3614 = vsel %vm1413, %v3601, 0
    %v3617 = vsel %vm1413, %v3602, 0
    %v3620 = vsel %vm1413, %v3603, 0
    %v3623 = vsel %vm1413, %v3604, 0
    %v3626 = vsel %vm1413, %v3605, 0
    %v3629 = vsel %vm1413, %v3606, 0
    %v3632 = vsel %vm1413, %v1225, 0
    %v3635 = vsel %vm1413, %v1230, 0
    %v3638 = vsel %vm1413, %v1235, 0
    %v3641 = vsel %vm1413, %v1240, 0
    %3643 = vmatprep.subr.mxu0 0.0
    %3644 = vmatpush1.xpose.msra.mxu0 %v3632
    %3645 = vmatprep.subr.mxu0 0.0
    %3646 = vmatpush1.xpose.msra.mxu0 %v3635
    %3647 = vmatprep.subr.mxu0 0.0
    %3648 = vmatpush1.xpose.msra.mxu0 %v3638
    %3649 = vmatprep.subr.mxu0 0.0
    %3650 = vmatpush1.xpose.msra.mxu0 %v3641
    %3651 = vmatprep.subr.mxu0 0.0
    %3652 = vmatpush1.xpose.msra.mxu0 0.0
    %3653 = vmatprep.subr.mxu0 0.0
    %3654 = vmatpush1.xpose.msra.mxu0 0.0
    %3655 = vmatprep.subr.mxu0 0.0
    %3656 = vmatpush1.xpose.msra.mxu0 0.0
    %3657 = vmatprep.subr.mxu0 0.0
    %3658 = vmatpush1.xpose.msra.mxu0 0.0
    %3659 = vmatprep.subr.mxu0 0.0
    %3660 = vmatpush1.xpose.msra.mxu0 0.0
    %3661 = vmatprep.subr.mxu0 0.0
    %3662 = vmatpush1.xpose.msra.mxu0 0.0
    %3663 = vmatprep.subr.mxu0 0.0
    %3664 = vmatpush1.xpose.msra.mxu0 0.0
    %3665 = vmatprep.subr.mxu0 0.0
    %3666 = vmatpush1.xpose.msra.mxu0 0.0
    %3667 = vmatprep.subr.mxu0 0.0
    %3668 = vmatpush1.xpose.msra.mxu0 0.0
    %3669 = vmatprep.subr.mxu0 0.0
    %3670 = vmatpush1.xpose.msra.mxu0 0.0
    %3671 = vmatprep.subr.mxu0 0.0
    %3672 = vmatpush1.xpose.msra.mxu0 0.0
    %3673 = vmatprep.subr.mxu0 0.0
    %3674 = vmatpush1.xpose.msra.mxu0 0.0
    %3675 = vmatprep.subr.mxu0 0.0
    %3676 = vmatpush1.xpose.msra.mxu0 0.0
    %3677 = vmatprep.subr.mxu0 0.0
    %3678 = vmatpush1.xpose.msra.mxu0 0.0
    %3679 = vmatprep.subr.mxu0 0.0
    %3680 = vmatpush1.xpose.msra.mxu0 0.0
    %3681 = vmatprep.subr.mxu0 0.0
    %3682 = vmatpush1.xpose.msra.mxu0 0.0
    %3683 = vmatprep.subr.mxu0 0.0
    %3684 = vmatpush1.xpose.msra.mxu0 0.0
    %3685 = vmatprep.subr.mxu0 0.0
    %3686 = vmatpush1.xpose.msra.mxu0 0.0
    %3687 = vmatprep.subr.mxu0 0.0
    %3688 = vmatpush1.xpose.msra.mxu0 0.0
    %3689 = vmatprep.subr.mxu0 0.0
    %3690 = vmatpush1.xpose.msra.mxu0 0.0
    %3691 = vmatprep.subr.mxu0 0.0
    %3692 = vmatpush1.xpose.msra.mxu0 0.0
    %3693 = vmatprep.subr.mxu0 0.0
    %3694 = vmatpush1.xpose.msra.mxu0 0.0
    %3695 = vmatprep.subr.mxu0 0.0
    %3696 = vmatpush1.xpose.msra.mxu0 0.0
    %3697 = vmatprep.subr.mxu0 0.0
    %3698 = vmatpush1.xpose.msra.mxu0 0.0
    %3699 = vmatprep.subr.mxu0 0.0
    %3700 = vmatpush1.xpose.msra.mxu0 0.0
    %3701 = vmatprep.subr.mxu0 0.0
    %3702 = vmatpush1.xpose.msra.mxu0 0.0
    %3703 = vmatprep.subr.mxu0 0.0
    %3704 = vmatpush1.xpose.msra.mxu0 0.0
    %3705 = vmatprep.subr.mxu0 0.0
    %3706 = vmatpush1.xpose.msra.mxu0 0.0
    %3707 = vmatprep.mubr.f32.mxu0 0.0
    %3708 = vmatmul.mubr.f32.gmra.mrb[0].mxu0 %v3608
    %v3709 = vpop.f32.mrb[0].mxu0
    %v3710 = vadd.f32 0.0, %v3709
    %v3711 = vpop.f32.mrb[0].mxu0
    %3712 = vmatprep.mubr.f32.mxu0 0.0
    %3713 = vmatmul.mubr.f32.gmra.mrb[0].mxu0 %v3611
    %v3714 = vpop.f32.mrb[0].mxu0
    %v3715 = vadd.f32 0.0, %v3714
    %v3716 = vpop.f32.mrb[0].mxu0
    %3717 = vmatprep.mubr.f32.mxu0 0.0
    %3718 = vmatmul.mubr.f32.gmra.mrb[0].mxu0 %v3614
    %v3719 = vpop.f32.mrb[0].mxu0
    %v3720 = vadd.f32 0.0, %v3719
    %v3721 = vpop.f32.mrb[0].mxu0
    %3722 = vmatprep.mubr.f32.mxu0 0.0
    %3723 = vmatmul.mubr.f32.gmra.mrb[0].mxu0 %v3617
    %v3724 = vpop.f32.mrb[0].mxu0
    %v3725 = vadd.f32 0.0, %v3724
    %v3726 = vpop.f32.mrb[0].mxu0
    %3727 = vmatprep.mubr.f32.mxu0 0.0
    %3728 = vmatmul.mubr.f32.gmra.mrb[0].mxu0 %v3620
    %v3729 = vpop.f32.mrb[0].mxu0
    %v3730 = vadd.f32 0.0, %v3729
    %v3731 = vpop.f32.mrb[0].mxu0
    %3732 = vmatprep.mubr.f32.mxu0 0.0
    %3733 = vmatmul.mubr.f32.gmra.mrb[0].mxu0 %v3623
    %v3734 = vpop.f32.mrb[0].mxu0
    %v3735 = vadd.f32 0.0, %v3734
    %v3736 = vpop.f32.mrb[0].mxu0
    %3737 = vmatprep.mubr.f32.mxu0 0.0
    %3738 = vmatmul.mubr.f32.gmra.mrb[0].mxu0 %v3626
    %v3739 = vpop.f32.mrb[0].mxu0
    %v3740 = vadd.f32 0.0, %v3739
    %v3741 = vpop.f32.mrb[0].mxu0
    %3742 = vmatprep.mubr.f32.mxu0 0.0
    %3743 = vmatmul.mubr.f32.gmra.mrb[0].mxu0 %v3629
    %v3744 = vpop.f32.mrb[0].mxu0
    %v3745 = vadd.f32 0.0, %v3744
    %v3746 = vpop.f32.mrb[0].mxu0
    %3747 = vdwg.mxu0
    %3756 = vrot.lane.b32.xlu0 %v3710, 32
    %v3757 = vpop.permute.xlu0 %3756
    %3758 = vrot.lane.b32.xlu0 %v3715, 32
    %v3759 = vpop.permute.xlu0 %3758
    %3760 = vrot.lane.b32.xlu0 %v3720, 32
    %v3761 = vpop.permute.xlu0 %3760
    %3762 = vrot.lane.b32.xlu0 %v3725, 32
    %v3763 = vpop.permute.xlu0 %3762
    %3764 = vrot.lane.b32.xlu0 %v3730, 32
    %v3765 = vpop.permute.xlu0 %3764
    %3766 = vrot.lane.b32.xlu0 %v3735, 32
    %v3767 = vpop.permute.xlu0 %3766
    %3768 = vrot.lane.b32.xlu0 %v3740, 32
    %v3769 = vpop.permute.xlu0 %3768
    %3770 = vrot.lane.b32.xlu0 %v3745, 32
    %v3771 = vpop.permute.xlu0 %3770
    %3780 = vst.msk [vmem:[#allocation2 + $0x8] sm:$0xff] %vm2097, %v3757
    %3781 = vst.msk [vmem:[#allocation2 + $0x18] sm:$0xff] %vm2097, %v3759
    %3782 = vst.msk [vmem:[#allocation2 + $0x28] sm:$0xff] %vm2097, %v3761
    %3783 = vst.msk [vmem:[#allocation2 + $0x38] sm:$0xff] %vm2097, %v3763
    %3784 = vst.msk [vmem:[#allocation2 + $0x48] sm:$0xff] %vm2097, %v3765
    %3785 = vst.msk [vmem:[#allocation2 + $0x58] sm:$0xff] %vm2097, %v3767
    %3786 = vst.msk [vmem:[#allocation2 + $0x68] sm:$0xff] %vm2097, %v3769
    %3787 = vst.msk [vmem:[#allocation2 + $0x78] sm:$0xff] %vm2097, %v3771
    %3788 = vrot.lane.b32.xlu0 %v294, 64
    %v3789 = vpop.permute.xlu0 %3788
    %3790 = vrot.lane.b32.xlu0 %v300, 64
    %v3791 = vpop.permute.xlu0 %3790
    %3792 = vrot.lane.b32.xlu0 %v306, 64
    %v3793 = vpop.permute.xlu0 %3792
    %3794 = vrot.lane.b32.xlu0 %v312, 64
    %v3795 = vpop.permute.xlu0 %3794
    %3796 = vrot.lane.b32.xlu0 %v318, 64
    %v3797 = vpop.permute.xlu0 %3796
    %3798 = vrot.lane.b32.xlu0 %v324, 64
    %v3799 = vpop.permute.xlu0 %3798
    %3800 = vrot.lane.b32.xlu0 %v330, 64
    %v3801 = vpop.permute.xlu0 %3800
    %3802 = vrot.lane.b32.xlu0 %v336, 64
    %v3803 = vpop.permute.xlu0 %3802
    %v3804 = vsel %vm1283, %v3789, 0
    %v3806 = vsel %vm1283, %v3791, 0
    %v3808 = vsel %vm1283, %v3793, 0
    %v3810 = vsel %vm1283, %v3795, 0
    %v3812 = vsel %vm1283, %v3797, 0
    %v3814 = vsel %vm1283, %v3799, 0
    %v3816 = vsel %vm1283, %v3801, 0
    %v3818 = vsel %vm1283, %v3803, 0
    %3820 = vmatprep.subr.mxu0 0.0
    %3821 = vmatpush1.msra.mxu0 %v1085
    %3822 = vmatprep.subr.mxu0 0.0
    %3823 = vmatpush1.msra.mxu0 %v1090
    %3824 = vmatprep.subr.mxu0 0.0
    %3825 = vmatpush1.msra.mxu0 %v1095
    %3826 = vmatprep.subr.mxu0 0.0
    %3827 = vmatpush1.msra.mxu0 %v1100
    %3828 = vmatprep.subr.mxu0 0.0
    %3829 = vmatpush1.msra.mxu0 0.0
    %3830 = vmatprep.subr.mxu0 0.0
    %3831 = vmatpush1.msra.mxu0 0.0
    %3832 = vmatprep.subr.mxu0 0.0
    %3833 = vmatpush1.msra.mxu0 0.0
    %3834 = vmatprep.subr.mxu0 0.0
    %3835 = vmatpush1.msra.mxu0 0.0
    %3836 = vmatprep.subr.mxu0 0.0
    %3837 = vmatpush1.msra.mxu0 0.0
    %3838 = vmatprep.subr.mxu0 0.0
    %3839 = vmatpush1.msra.mxu0 0.0
    %3840 = vmatprep.subr.mxu0 0.0
    %3841 = vmatpush1.msra.mxu0 0.0
    %3842 = vmatprep.subr.mxu0 0.0
    %3843 = vmatpush1.msra.mxu0 0.0
    %3844 = vmatprep.subr.mxu0 0.0
    %3845 = vmatpush1.msra.mxu0 0.0
    %3846 = vmatprep.subr.mxu0 0.0
    %3847 = vmatpush1.msra.mxu0 0.0
    %3848 = vmatprep.subr.mxu0 0.0
    %3849 = vmatpush1.msra.mxu0 0.0
    %3850 = vmatprep.subr.mxu0 0.0
    %3851 = vmatpush1.msra.mxu0 0.0
    %3852 = vmatprep.subr.mxu0 0.0
    %3853 = vmatpush1.msra.mxu0 0.0
    %3854 = vmatprep.subr.mxu0 0.0
    %3855 = vmatpush1.msra.mxu0 0.0
    %3856 = vmatprep.subr.mxu0 0.0
    %3857 = vmatpush1.msra.mxu0 0.0
    %3858 = vmatprep.subr.mxu0 0.0
    %3859 = vmatpush1.msra.mxu0 0.0
    %3860 = vmatprep.subr.mxu0 0.0
    %3861 = vmatpush1.msra.mxu0 0.0
    %3862 = vmatprep.subr.mxu0 0.0
    %3863 = vmatpush1.msra.mxu0 0.0
    %3864 = vmatprep.subr.mxu0 0.0
    %3865 = vmatpush1.msra.mxu0 0.0
    %3866 = vmatprep.subr.mxu0 0.0
    %3867 = vmatpush1.msra.mxu0 0.0
    %3868 = vmatprep.subr.mxu0 0.0
    %3869 = vmatpush1.msra.mxu0 0.0
    %3870 = vmatprep.subr.mxu0 0.0
    %3871 = vmatpush1.msra.mxu0 0.0
    %3872 = vmatprep.subr.mxu0 0.0
    %3873 = vmatpush1.msra.mxu0 0.0
    %3874 = vmatprep.subr.mxu0 0.0
    %3875 = vmatpush1.msra.mxu0 0.0
    %3876 = vmatprep.subr.mxu0 0.0
    %3877 = vmatpush1.msra.mxu0 0.0
    %3878 = vmatprep.subr.mxu0 0.0
    %3879 = vmatpush1.msra.mxu0 0.0
    %3880 = vmatprep.subr.mxu0 0.0
    %3881 = vmatpush1.msra.mxu0 0.0
    %3882 = vmatprep.subr.mxu0 0.0
    %3883 = vmatpush1.msra.mxu0 0.0
    %3884 = vmatprep.mubr.f32.mxu0 0.0
    %3885 = vmatmul.mubr.f32.gmra.mrb[0].mxu0 %v3804
    %v3886 = vpop.f32.mrb[0].mxu0
    %v3887 = vadd.f32 0.0, %v3886
    %v3888 = vpop.f32.mrb[0].mxu0
    %3889 = vmatprep.mubr.f32.mxu0 0.0
    %3890 = vmatmul.mubr.f32.gmra.mrb[0].mxu0 %v3806
    %v3891 = vpop.f32.mrb[0].mxu0
    %v3892 = vadd.f32 0.0, %v3891
    %v3893 = vpop.f32.mrb[0].mxu0
    %3894 = vmatprep.mubr.f32.mxu0 0.0
    %3895 = vmatmul.mubr.f32.gmra.mrb[0].mxu0 %v3808
    %v3896 = vpop.f32.mrb[0].mxu0
    %v3897 = vadd.f32 0.0, %v3896
    %v3898 = vpop.f32.mrb[0].mxu0
    %3899 = vmatprep.mubr.f32.mxu0 0.0
    %3900 = vmatmul.mubr.f32.gmra.mrb[0].mxu0 %v3810
    %v3901 = vpop.f32.mrb[0].mxu0
    %v3902 = vadd.f32 0.0, %v3901
    %v3903 = vpop.f32.mrb[0].mxu0
    %3904 = vmatprep.mubr.f32.mxu0 0.0
    %3905 = vmatmul.mubr.f32.gmra.mrb[0].mxu0 %v3812
    %v3906 = vpop.f32.mrb[0].mxu0
    %v3907 = vadd.f32 0.0, %v3906
    %v3908 = vpop.f32.mrb[0].mxu0
    %3909 = vmatprep.mubr.f32.mxu0 0.0
    %3910 = vmatmul.mubr.f32.gmra.mrb[0].mxu0 %v3814
    %v3911 = vpop.f32.mrb[0].mxu0
    %v3912 = vadd.f32 0.0, %v3911
    %v3913 = vpop.f32.mrb[0].mxu0
    %3914 = vmatprep.mubr.f32.mxu0 0.0
    %3915 = vmatmul.mubr.f32.gmra.mrb[0].mxu0 %v3816
    %v3916 = vpop.f32.mrb[0].mxu0
    %v3917 = vadd.f32 0.0, %v3916
    %v3918 = vpop.f32.mrb[0].mxu0
    %3919 = vmatprep.mubr.f32.mxu0 0.0
    %3920 = vmatmul.mubr.f32.gmra.mrb[0].mxu0 %v3818
    %v3921 = vpop.f32.mrb[0].mxu0
    %v3922 = vadd.f32 0.0, %v3921
    %v3923 = vpop.f32.mrb[0].mxu0
    %3924 = vdwg.mxu0
    %v3925 = vsel %vm1413, %v3887, -inf
    %3926 = vmax.xlane.f32.xlu0 %v3925
    %v3927 = vpop.xlane.xlu0 %3926
    %v3928 = vsel %vm1413, %v3892, -inf
    %3929 = vmax.xlane.f32.xlu0 %v3928
    %v3930 = vpop.xlane.xlu0 %3929
    %v3931 = vsel %vm1413, %v3897, -inf
    %3932 = vmax.xlane.f32.xlu0 %v3931
    %v3933 = vpop.xlane.xlu0 %3932
    %v3934 = vsel %vm1413, %v3902, -inf
    %3935 = vmax.xlane.f32.xlu0 %v3934
    %v3936 = vpop.xlane.xlu0 %3935
    %v3937 = vsel %vm1413, %v3907, -inf
    %3938 = vmax.xlane.f32.xlu0 %v3937
    %v3939 = vpop.xlane.xlu0 %3938
    %v3940 = vsel %vm1413, %v3912, -inf
    %3941 = vmax.xlane.f32.xlu0 %v3940
    %v3942 = vpop.xlane.xlu0 %3941
    %v3943 = vsel %vm1413, %v3917, -inf
    %3944 = vmax.xlane.f32.xlu0 %v3943
    %v3945 = vpop.xlane.xlu0 %3944
    %v3946 = vsel %vm1413, %v3922, -inf
    %3947 = vmax.xlane.f32.xlu0 %v3946
    %v3948 = vpop.xlane.xlu0 %3947
    %v3949 = vsub.f32 %v3887, %v3927
    %v3950 = vsub.f32 %v3892, %v3930
    %v3951 = vsub.f32 %v3897, %v3933
    %v3952 = vsub.f32 %v3902, %v3936
    %v3953 = vsub.f32 %v3907, %v3939
    %v3954 = vsub.f32 %v3912, %v3942
    %v3955 = vsub.f32 %v3917, %v3945
    %v3956 = vsub.f32 %v3922, %v3948
    %v3957 = vmul.f32 %v3949, 1.442695
    %v3958 = vpow.pop %v3957
    %v3959 = vmul.f32 %v3950, 1.442695
    %v3960 = vpow.pop %v3959
    %v3961 = vmul.f32 %v3951, 1.442695
    %v3962 = vpow.pop %v3961
    %v3963 = vmul.f32 %v3952, 1.442695
    %v3964 = vpow.pop %v3963
    %v3965 = vmul.f32 %v3953, 1.442695
    %v3966 = vpow.pop %v3965
    %v3967 = vmul.f32 %v3954, 1.442695
    %v3968 = vpow.pop %v3967
    %v3969 = vmul.f32 %v3955, 1.442695
    %v3970 = vpow.pop %v3969
    %v3971 = vmul.f32 %v3956, 1.442695
    %v3972 = vpow.pop %v3971
    %v3973 = vsel %vm1413, %v3958, 0.0
    %3974 = vadd.xlane.f32.xlu0 %v3973
    %v3975 = vpop.xlane.xlu0 %3974
    %v3976 = vsel %vm1413, %v3960, 0.0
    %3977 = vadd.xlane.f32.xlu0 %v3976
    %v3978 = vpop.xlane.xlu0 %3977
    %v3979 = vsel %vm1413, %v3962, 0.0
    %3980 = vadd.xlane.f32.xlu0 %v3979
    %v3981 = vpop.xlane.xlu0 %3980
    %v3982 = vsel %vm1413, %v3964, 0.0
    %3983 = vadd.xlane.f32.xlu0 %v3982
    %v3984 = vpop.xlane.xlu0 %3983
    %v3985 = vsel %vm1413, %v3966, 0.0
    %3986 = vadd.xlane.f32.xlu0 %v3985
    %v3987 = vpop.xlane.xlu0 %3986
    %v3988 = vsel %vm1413, %v3968, 0.0
    %3989 = vadd.xlane.f32.xlu0 %v3988
    %v3990 = vpop.xlane.xlu0 %3989
    %v3991 = vsel %vm1413, %v3970, 0.0
    %3992 = vadd.xlane.f32.xlu0 %v3991
    %v3993 = vpop.xlane.xlu0 %3992
    %v3994 = vsel %vm1413, %v3972, 0.0
    %3995 = vadd.xlane.f32.xlu0 %v3994
    %v3996 = vpop.xlane.xlu0 %3995
    %v3997 = vrcp.pop %v3975
    %v3998 = vrcp.pop %v3978
    %v3999 = vrcp.pop %v3981
    %v4000 = vrcp.pop %v3984
    %v4001 = vrcp.pop %v3987
    %v4002 = vrcp.pop %v3990
    %v4003 = vrcp.pop %v3993
    %v4004 = vrcp.pop %v3996
    %v4005 = vmul.f32 %v3975, %v3997
    %v4006 = vmul.f32 %v3978, %v3998
    %v4007 = vmul.f32 %v3981, %v3999
    %v4008 = vmul.f32 %v3984, %v4000
    %v4009 = vmul.f32 %v3987, %v4001
    %v4010 = vmul.f32 %v3990, %v4002
    %v4011 = vmul.f32 %v3993, %v4003
    %v4012 = vmul.f32 %v3996, %v4004
    %v4013 = vsub.f32 2.0, %v4005
    %v4014 = vsub.f32 2.0, %v4006
    %v4015 = vsub.f32 2.0, %v4007
    %v4016 = vsub.f32 2.0, %v4008
    %v4017 = vsub.f32 2.0, %v4009
    %v4018 = vsub.f32 2.0, %v4010
    %v4019 = vsub.f32 2.0, %v4011
    %v4020 = vsub.f32 2.0, %v4012
    %v4021 = vmul.f32 %v3997, %v4013
    %v4022 = vmul.f32 %v3998, %v4014
    %v4023 = vmul.f32 %v3999, %v4015
    %v4024 = vmul.f32 %v4000, %v4016
    %v4025 = vmul.f32 %v4001, %v4017
    %v4026 = vmul.f32 %v4002, %v4018
    %v4027 = vmul.f32 %v4003, %v4019
    %v4028 = vmul.f32 %v4004, %v4020
    %v4029 = vmul.f32 %v3958, %v4021
    %v4030 = vmul.f32 %v3960, %v4022
    %v4031 = vmul.f32 %v3962, %v4023
    %v4032 = vmul.f32 %v3964, %v4024
    %v4033 = vmul.f32 %v3966, %v4025
    %v4034 = vmul.f32 %v3968, %v4026
    %v4035 = vmul.f32 %v3970, %v4027
    %v4036 = vmul.f32 %v3972, %v4028
    %v4038 = vsel %vm1413, %v4029, 0
    %v4041 = vsel %vm1413, %v4030, 0
    %v4044 = vsel %vm1413, %v4031, 0
    %v4047 = vsel %vm1413, %v4032, 0
    %v4050 = vsel %vm1413, %v4033, 0
    %v4053 = vsel %vm1413, %v4034, 0
    %v4056 = vsel %vm1413, %v4035, 0
    %v4059 = vsel %vm1413, %v4036, 0
    %v4062 = vsel %vm1413, %v1245, 0
    %v4065 = vsel %vm1413, %v1250, 0
    %v4068 = vsel %vm1413, %v1255, 0
    %v4071 = vsel %vm1413, %v1260, 0
    %4073 = vmatprep.subr.mxu0 0.0
    %4074 = vmatpush1.xpose.msra.mxu0 %v4062
    %4075 = vmatprep.subr.mxu0 0.0
    %4076 = vmatpush1.xpose.msra.mxu0 %v4065
    %4077 = vmatprep.subr.mxu0 0.0
    %4078 = vmatpush1.xpose.msra.mxu0 %v4068
    %4079 = vmatprep.subr.mxu0 0.0
    %4080 = vmatpush1.xpose.msra.mxu0 %v4071
    %4081 = vmatprep.subr.mxu0 0.0
    %4082 = vmatpush1.xpose.msra.mxu0 0.0
    %4083 = vmatprep.subr.mxu0 0.0
    %4084 = vmatpush1.xpose.msra.mxu0 0.0
    %4085 = vmatprep.subr.mxu0 0.0
    %4086 = vmatpush1.xpose.msra.mxu0 0.0
    %4087 = vmatprep.subr.mxu0 0.0
    %4088 = vmatpush1.xpose.msra.mxu0 0.0
    %4089 = vmatprep.subr.mxu0 0.0
    %4090 = vmatpush1.xpose.msra.mxu0 0.0
    %4091 = vmatprep.subr.mxu0 0.0
    %4092 = vmatpush1.xpose.msra.mxu0 0.0
    %4093 = vmatprep.subr.mxu0 0.0
    %4094 = vmatpush1.xpose.msra.mxu0 0.0
    %4095 = vmatprep.subr.mxu0 0.0
    %4096 = vmatpush1.xpose.msra.mxu0 0.0
    %4097 = vmatprep.subr.mxu0 0.0
    %4098 = vmatpush1.xpose.msra.mxu0 0.0
    %4099 = vmatprep.subr.mxu0 0.0
    %4100 = vmatpush1.xpose.msra.mxu0 0.0
    %4101 = vmatprep.subr.mxu0 0.0
    %4102 = vmatpush1.xpose.msra.mxu0 0.0
    %4103 = vmatprep.subr.mxu0 0.0
    %4104 = vmatpush1.xpose.msra.mxu0 0.0
    %4105 = vmatprep.subr.mxu0 0.0
    %4106 = vmatpush1.xpose.msra.mxu0 0.0
    %4107 = vmatprep.subr.mxu0 0.0
    %4108 = vmatpush1.xpose.msra.mxu0 0.0
    %4109 = vmatprep.subr.mxu0 0.0
    %4110 = vmatpush1.xpose.msra.mxu0 0.0
    %4111 = vmatprep.subr.mxu0 0.0
    %4112 = vmatpush1.xpose.msra.mxu0 0.0
    %4113 = vmatprep.subr.mxu0 0.0
    %4114 = vmatpush1.xpose.msra.mxu0 0.0
    %4115 = vmatprep.subr.mxu0 0.0
    %4116 = vmatpush1.xpose.msra.mxu0 0.0
    %4117 = vmatprep.subr.mxu0 0.0
    %4118 = vmatpush1.xpose.msra.mxu0 0.0
    %4119 = vmatprep.subr.mxu0 0.0
    %4120 = vmatpush1.xpose.msra.mxu0 0.0
    %4121 = vmatprep.subr.mxu0 0.0
    %4122 = vmatpush1.xpose.msra.mxu0 0.0
    %4123 = vmatprep.subr.mxu0 0.0
    %4124 = vmatpush1.xpose.msra.mxu0 0.0
    %4125 = vmatprep.subr.mxu0 0.0
    %4126 = vmatpush1.xpose.msra.mxu0 0.0
    %4127 = vmatprep.subr.mxu0 0.0
    %4128 = vmatpush1.xpose.msra.mxu0 0.0
    %4129 = vmatprep.subr.mxu0 0.0
    %4130 = vmatpush1.xpose.msra.mxu0 0.0
    %4131 = vmatprep.subr.mxu0 0.0
    %4132 = vmatpush1.xpose.msra.mxu0 0.0
    %4133 = vmatprep.subr.mxu0 0.0
    %4134 = vmatpush1.xpose.msra.mxu0 0.0
    %4135 = vmatprep.subr.mxu0 0.0
    %4136 = vmatpush1.xpose.msra.mxu0 0.0
    %4137 = vmatprep.mubr.f32.mxu0 0.0
    %4138 = vmatmul.mubr.f32.gmra.mrb[0].mxu0 %v4038
    %v4139 = vpop.f32.mrb[0].mxu0
    %v4140 = vadd.f32 0.0, %v4139
    %v4141 = vpop.f32.mrb[0].mxu0
    %4142 = vmatprep.mubr.f32.mxu0 0.0
    %4143 = vmatmul.mubr.f32.gmra.mrb[0].mxu0 %v4041
    %v4144 = vpop.f32.mrb[0].mxu0
    %v4145 = vadd.f32 0.0, %v4144
    %v4146 = vpop.f32.mrb[0].mxu0
    %4147 = vmatprep.mubr.f32.mxu0 0.0
    %4148 = vmatmul.mubr.f32.gmra.mrb[0].mxu0 %v4044
    %v4149 = vpop.f32.mrb[0].mxu0
    %v4150 = vadd.f32 0.0, %v4149
    %v4151 = vpop.f32.mrb[0].mxu0
    %4152 = vmatprep.mubr.f32.mxu0 0.0
    %4153 = vmatmul.mubr.f32.gmra.mrb[0].mxu0 %v4047
    %v4154 = vpop.f32.mrb[0].mxu0
    %v4155 = vadd.f32 0.0, %v4154
    %v4156 = vpop.f32.mrb[0].mxu0
    %4157 = vmatprep.mubr.f32.mxu0 0.0
    %4158 = vmatmul.mubr.f32.gmra.mrb[0].mxu0 %v4050
    %v4159 = vpop.f32.mrb[0].mxu0
    %v4160 = vadd.f32 0.0, %v4159
    %v4161 = vpop.f32.mrb[0].mxu0
    %4162 = vmatprep.mubr.f32.mxu0 0.0
    %4163 = vmatmul.mubr.f32.gmra.mrb[0].mxu0 %v4053
    %v4164 = vpop.f32.mrb[0].mxu0
    %v4165 = vadd.f32 0.0, %v4164
    %v4166 = vpop.f32.mrb[0].mxu0
    %4167 = vmatprep.mubr.f32.mxu0 0.0
    %4168 = vmatmul.mubr.f32.gmra.mrb[0].mxu0 %v4056
    %v4169 = vpop.f32.mrb[0].mxu0
    %v4170 = vadd.f32 0.0, %v4169
    %v4171 = vpop.f32.mrb[0].mxu0
    %4172 = vmatprep.mubr.f32.mxu0 0.0
    %4173 = vmatmul.mubr.f32.gmra.mrb[0].mxu0 %v4059
    %v4174 = vpop.f32.mrb[0].mxu0
    %v4175 = vadd.f32 0.0, %v4174
    %v4176 = vpop.f32.mrb[0].mxu0
    %4177 = vdwg.mxu0
    %4186 = vrot.lane.b32.xlu0 %v4140, 64
    %v4187 = vpop.permute.xlu0 %4186
    %4188 = vrot.lane.b32.xlu0 %v4145, 64
    %v4189 = vpop.permute.xlu0 %4188
    %4190 = vrot.lane.b32.xlu0 %v4150, 64
    %v4191 = vpop.permute.xlu0 %4190
    %4192 = vrot.lane.b32.xlu0 %v4155, 64
    %v4193 = vpop.permute.xlu0 %4192
    %4194 = vrot.lane.b32.xlu0 %v4160, 64
    %v4195 = vpop.permute.xlu0 %4194
    %4196 = vrot.lane.b32.xlu0 %v4165, 64
    %v4197 = vpop.permute.xlu0 %4196
    %4198 = vrot.lane.b32.xlu0 %v4170, 64
    %v4199 = vpop.permute.xlu0 %4198
    %4200 = vrot.lane.b32.xlu0 %v4175, 64
    %v4201 = vpop.permute.xlu0 %4200
    %4210 = vst.msk [vmem:[#allocation2 + $0x8] sm:$0xff] %vm2528, %v4187
    %4211 = vst.msk [vmem:[#allocation2 + $0x18] sm:$0xff] %vm2528, %v4189
    %4212 = vst.msk [vmem:[#allocation2 + $0x28] sm:$0xff] %vm2528, %v4191
    %4213 = vst.msk [vmem:[#allocation2 + $0x38] sm:$0xff] %vm2528, %v4193
    %4214 = vst.msk [vmem:[#allocation2 + $0x48] sm:$0xff] %vm2528, %v4195
    %4215 = vst.msk [vmem:[#allocation2 + $0x58] sm:$0xff] %vm2528, %v4197
    %4216 = vst.msk [vmem:[#allocation2 + $0x68] sm:$0xff] %vm2528, %v4199
    %4217 = vst.msk [vmem:[#allocation2 + $0x78] sm:$0xff] %vm2528, %v4201
    %4218 = vrot.lane.b32.xlu0 %v294, 32
    %v4219 = vpop.permute.xlu0 %4218
    %4220 = vrot.lane.b32.xlu0 %v300, 32
    %v4221 = vpop.permute.xlu0 %4220
    %4222 = vrot.lane.b32.xlu0 %v306, 32
    %v4223 = vpop.permute.xlu0 %4222
    %4224 = vrot.lane.b32.xlu0 %v312, 32
    %v4225 = vpop.permute.xlu0 %4224
    %4226 = vrot.lane.b32.xlu0 %v318, 32
    %v4227 = vpop.permute.xlu0 %4226
    %4228 = vrot.lane.b32.xlu0 %v324, 32
    %v4229 = vpop.permute.xlu0 %4228
    %4230 = vrot.lane.b32.xlu0 %v330, 32
    %v4231 = vpop.permute.xlu0 %4230
    %4232 = vrot.lane.b32.xlu0 %v336, 32
    %v4233 = vpop.permute.xlu0 %4232
    %v4234 = vsel %vm1283, %v4219, 0
    %v4236 = vsel %vm1283, %v4221, 0
    %v4238 = vsel %vm1283, %v4223, 0
    %v4240 = vsel %vm1283, %v4225, 0
    %v4242 = vsel %vm1283, %v4227, 0
    %v4244 = vsel %vm1283, %v4229, 0
    %v4246 = vsel %vm1283, %v4231, 0
    %v4248 = vsel %vm1283, %v4233, 0
    %4250 = vmatprep.subr.mxu0 0.0
    %4251 = vmatpush1.msra.mxu0 %v1105
    %4252 = vmatprep.subr.mxu0 0.0
    %4253 = vmatpush1.msra.mxu0 %v1110
    %4254 = vmatprep.subr.mxu0 0.0
    %4255 = vmatpush1.msra.mxu0 %v1115
    %4256 = vmatprep.subr.mxu0 0.0
    %4257 = vmatpush1.msra.mxu0 %v1120
    %4258 = vmatprep.subr.mxu0 0.0
    %4259 = vmatpush1.msra.mxu0 0.0
    %4260 = vmatprep.subr.mxu0 0.0
    %4261 = vmatpush1.msra.mxu0 0.0
    %4262 = vmatprep.subr.mxu0 0.0
    %4263 = vmatpush1.msra.mxu0 0.0
    %4264 = vmatprep.subr.mxu0 0.0
    %4265 = vmatpush1.msra.mxu0 0.0
    %4266 = vmatprep.subr.mxu0 0.0
    %4267 = vmatpush1.msra.mxu0 0.0
    %4268 = vmatprep.subr.mxu0 0.0
    %4269 = vmatpush1.msra.mxu0 0.0
    %4270 = vmatprep.subr.mxu0 0.0
    %4271 = vmatpush1.msra.mxu0 0.0
    %4272 = vmatprep.subr.mxu0 0.0
    %4273 = vmatpush1.msra.mxu0 0.0
    %4274 = vmatprep.subr.mxu0 0.0
    %4275 = vmatpush1.msra.mxu0 0.0
    %4276 = vmatprep.subr.mxu0 0.0
    %4277 = vmatpush1.msra.mxu0 0.0
    %4278 = vmatprep.subr.mxu0 0.0
    %4279 = vmatpush1.msra.mxu0 0.0
    %4280 = vmatprep.subr.mxu0 0.0
    %4281 = vmatpush1.msra.mxu0 0.0
    %4282 = vmatprep.subr.mxu0 0.0
    %4283 = vmatpush1.msra.mxu0 0.0
    %4284 = vmatprep.subr.mxu0 0.0
    %4285 = vmatpush1.msra.mxu0 0.0
    %4286 = vmatprep.subr.mxu0 0.0
    %4287 = vmatpush1.msra.mxu0 0.0
    %4288 = vmatprep.subr.mxu0 0.0
    %4289 = vmatpush1.msra.mxu0 0.0
    %4290 = vmatprep.subr.mxu0 0.0
    %4291 = vmatpush1.msra.mxu0 0.0
    %4292 = vmatprep.subr.mxu0 0.0
    %4293 = vmatpush1.msra.mxu0 0.0
    %4294 = vmatprep.subr.mxu0 0.0
    %4295 = vmatpush1.msra.mxu0 0.0
    %4296 = vmatprep.subr.mxu0 0.0
    %4297 = vmatpush1.msra.mxu0 0.0
    %4298 = vmatprep.subr.mxu0 0.0
    %4299 = vmatpush1.msra.mxu0 0.0
    %4300 = vmatprep.subr.mxu0 0.0
    %4301 = vmatpush1.msra.mxu0 0.0
    %4302 = vmatprep.subr.mxu0 0.0
    %4303 = vmatpush1.msra.mxu0 0.0
    %4304 = vmatprep.subr.mxu0 0.0
    %4305 = vmatpush1.msra.mxu0 0.0
    %4306 = vmatprep.subr.mxu0 0.0
    %4307 = vmatpush1.msra.mxu0 0.0
    %4308 = vmatprep.subr.mxu0 0.0
    %4309 = vmatpush1.msra.mxu0 0.0
    %4310 = vmatprep.subr.mxu0 0.0
    %4311 = vmatpush1.msra.mxu0 0.0
    %4312 = vmatprep.subr.mxu0 0.0
    %4313 = vmatpush1.msra.mxu0 0.0
    %4314 = vmatprep.mubr.f32.mxu0 0.0
    %4315 = vmatmul.mubr.f32.gmra.mrb[0].mxu0 %v4234
    %v4316 = vpop.f32.mrb[0].mxu0
    %v4317 = vadd.f32 0.0, %v4316
    %v4318 = vpop.f32.mrb[0].mxu0
    %4319 = vmatprep.mubr.f32.mxu0 0.0
    %4320 = vmatmul.mubr.f32.gmra.mrb[0].mxu0 %v4236
    %v4321 = vpop.f32.mrb[0].mxu0
    %v4322 = vadd.f32 0.0, %v4321
    %v4323 = vpop.f32.mrb[0].mxu0
    %4324 = vmatprep.mubr.f32.mxu0 0.0
    %4325 = vmatmul.mubr.f32.gmra.mrb[0].mxu0 %v4238
    %v4326 = vpop.f32.mrb[0].mxu0
    %v4327 = vadd.f32 0.0, %v4326
    %v4328 = vpop.f32.mrb[0].mxu0
    %4329 = vmatprep.mubr.f32.mxu0 0.0
    %4330 = vmatmul.mubr.f32.gmra.mrb[0].mxu0 %v4240
    %v4331 = vpop.f32.mrb[0].mxu0
    %v4332 = vadd.f32 0.0, %v4331
    %v4333 = vpop.f32.mrb[0].mxu0
    %4334 = vmatprep.mubr.f32.mxu0 0.0
    %4335 = vmatmul.mubr.f32.gmra.mrb[0].mxu0 %v4242
    %v4336 = vpop.f32.mrb[0].mxu0
    %v4337 = vadd.f32 0.0, %v4336
    %v4338 = vpop.f32.mrb[0].mxu0
    %4339 = vmatprep.mubr.f32.mxu0 0.0
    %4340 = vmatmul.mubr.f32.gmra.mrb[0].mxu0 %v4244
    %v4341 = vpop.f32.mrb[0].mxu0
    %v4342 = vadd.f32 0.0, %v4341
    %v4343 = vpop.f32.mrb[0].mxu0
    %4344 = vmatprep.mubr.f32.mxu0 0.0
    %4345 = vmatmul.mubr.f32.gmra.mrb[0].mxu0 %v4246
    %v4346 = vpop.f32.mrb[0].mxu0
    %v4347 = vadd.f32 0.0, %v4346
    %v4348 = vpop.f32.mrb[0].mxu0
    %4349 = vmatprep.mubr.f32.mxu0 0.0
    %4350 = vmatmul.mubr.f32.gmra.mrb[0].mxu0 %v4248
    %v4351 = vpop.f32.mrb[0].mxu0
    %v4352 = vadd.f32 0.0, %v4351
    %v4353 = vpop.f32.mrb[0].mxu0
    %4354 = vdwg.mxu0
    %v4355 = vsel %vm1413, %v4317, -inf
    %4356 = vmax.xlane.f32.xlu0 %v4355
    %v4357 = vpop.xlane.xlu0 %4356
    %v4358 = vsel %vm1413, %v4322, -inf
    %4359 = vmax.xlane.f32.xlu0 %v4358
    %v4360 = vpop.xlane.xlu0 %4359
    %v4361 = vsel %vm1413, %v4327, -inf
    %4362 = vmax.xlane.f32.xlu0 %v4361
    %v4363 = vpop.xlane.xlu0 %4362
    %v4364 = vsel %vm1413, %v4332, -inf
    %4365 = vmax.xlane.f32.xlu0 %v4364
    %v4366 = vpop.xlane.xlu0 %4365
    %v4367 = vsel %vm1413, %v4337, -inf
    %4368 = vmax.xlane.f32.xlu0 %v4367
    %v4369 = vpop.xlane.xlu0 %4368
    %v4370 = vsel %vm1413, %v4342, -inf
    %4371 = vmax.xlane.f32.xlu0 %v4370
    %v4372 = vpop.xlane.xlu0 %4371
    %v4373 = vsel %vm1413, %v4347, -inf
    %4374 = vmax.xlane.f32.xlu0 %v4373
    %v4375 = vpop.xlane.xlu0 %4374
    %v4376 = vsel %vm1413, %v4352, -inf
    %4377 = vmax.xlane.f32.xlu0 %v4376
    %v4378 = vpop.xlane.xlu0 %4377
    %v4379 = vsub.f32 %v4317, %v4357
    %v4380 = vsub.f32 %v4322, %v4360
    %v4381 = vsub.f32 %v4327, %v4363
    %v4382 = vsub.f32 %v4332, %v4366
    %v4383 = vsub.f32 %v4337, %v4369
    %v4384 = vsub.f32 %v4342, %v4372
    %v4385 = vsub.f32 %v4347, %v4375
    %v4386 = vsub.f32 %v4352, %v4378
    %v4387 = vmul.f32 %v4379, 1.442695
    %v4388 = vpow.pop %v4387
    %v4389 = vmul.f32 %v4380, 1.442695
    %v4390 = vpow.pop %v4389
    %v4391 = vmul.f32 %v4381, 1.442695
    %v4392 = vpow.pop %v4391
    %v4393 = vmul.f32 %v4382, 1.442695
    %v4394 = vpow.pop %v4393
    %v4395 = vmul.f32 %v4383, 1.442695
    %v4396 = vpow.pop %v4395
    %v4397 = vmul.f32 %v4384, 1.442695
    %v4398 = vpow.pop %v4397
    %v4399 = vmul.f32 %v4385, 1.442695
    %v4400 = vpow.pop %v4399
    %v4401 = vmul.f32 %v4386, 1.442695
    %v4402 = vpow.pop %v4401
    %v4403 = vsel %vm1413, %v4388, 0.0
    %4404 = vadd.xlane.f32.xlu0 %v4403
    %v4405 = vpop.xlane.xlu0 %4404
    %v4406 = vsel %vm1413, %v4390, 0.0
    %4407 = vadd.xlane.f32.xlu0 %v4406
    %v4408 = vpop.xlane.xlu0 %4407
    %v4409 = vsel %vm1413, %v4392, 0.0
    %4410 = vadd.xlane.f32.xlu0 %v4409
    %v4411 = vpop.xlane.xlu0 %4410
    %v4412 = vsel %vm1413, %v4394, 0.0
    %4413 = vadd.xlane.f32.xlu0 %v4412
    %v4414 = vpop.xlane.xlu0 %4413
    %v4415 = vsel %vm1413, %v4396, 0.0
    %4416 = vadd.xlane.f32.xlu0 %v4415
    %v4417 = vpop.xlane.xlu0 %4416
    %v4418 = vsel %vm1413, %v4398, 0.0
    %4419 = vadd.xlane.f32.xlu0 %v4418
    %v4420 = vpop.xlane.xlu0 %4419
    %v4421 = vsel %vm1413, %v4400, 0.0
    %4422 = vadd.xlane.f32.xlu0 %v4421
    %v4423 = vpop.xlane.xlu0 %4422
    %v4424 = vsel %vm1413, %v4402, 0.0
    %4425 = vadd.xlane.f32.xlu0 %v4424
    %v4426 = vpop.xlane.xlu0 %4425
    %v4427 = vrcp.pop %v4405
    %v4428 = vrcp.pop %v4408
    %v4429 = vrcp.pop %v4411
    %v4430 = vrcp.pop %v4414
    %v4431 = vrcp.pop %v4417
    %v4432 = vrcp.pop %v4420
    %v4433 = vrcp.pop %v4423
    %v4434 = vrcp.pop %v4426
    %v4435 = vmul.f32 %v4405, %v4427
    %v4436 = vmul.f32 %v4408, %v4428
    %v4437 = vmul.f32 %v4411, %v4429
    %v4438 = vmul.f32 %v4414, %v4430
    %v4439 = vmul.f32 %v4417, %v4431
    %v4440 = vmul.f32 %v4420, %v4432
    %v4441 = vmul.f32 %v4423, %v4433
    %v4442 = vmul.f32 %v4426, %v4434
    %v4443 = vsub.f32 2.0, %v4435
    %v4444 = vsub.f32 2.0, %v4436
    %v4445 = vsub.f32 2.0, %v4437
    %v4446 = vsub.f32 2.0, %v4438
    %v4447 = vsub.f32 2.0, %v4439
    %v4448 = vsub.f32 2.0, %v4440
    %v4449 = vsub.f32 2.0, %v4441
    %v4450 = vsub.f32 2.0, %v4442
    %v4451 = vmul.f32 %v4427, %v4443
    %v4452 = vmul.f32 %v4428, %v4444
    %v4453 = vmul.f32 %v4429, %v4445
    %v4454 = vmul.f32 %v4430, %v4446
    %v4455 = vmul.f32 %v4431, %v4447
    %v4456 = vmul.f32 %v4432, %v4448
    %v4457 = vmul.f32 %v4433, %v4449
    %v4458 = vmul.f32 %v4434, %v4450
    %v4459 = vmul.f32 %v4388, %v4451
    %v4460 = vmul.f32 %v4390, %v4452
    %v4461 = vmul.f32 %v4392, %v4453
    %v4462 = vmul.f32 %v4394, %v4454
    %v4463 = vmul.f32 %v4396, %v4455
    %v4464 = vmul.f32 %v4398, %v4456
    %v4465 = vmul.f32 %v4400, %v4457
    %v4466 = vmul.f32 %v4402, %v4458
    %v4468 = vsel %vm1413, %v4459, 0
    %v4471 = vsel %vm1413, %v4460, 0
    %v4474 = vsel %vm1413, %v4461, 0
    %v4477 = vsel %vm1413, %v4462, 0
    %v4480 = vsel %vm1413, %v4463, 0
    %v4483 = vsel %vm1413, %v4464, 0
    %v4486 = vsel %vm1413, %v4465, 0
    %v4489 = vsel %vm1413, %v4466, 0
    %v4492 = vsel %vm1413, %v1265, 0
    %v4495 = vsel %vm1413, %v1270, 0
    %v4498 = vsel %vm1413, %v1275, 0
    %v4501 = vsel %vm1413, %v1280, 0
    %4503 = vmatprep.subr.mxu0 0.0
    %4504 = vmatpush1.xpose.msra.mxu0 %v4492
    %4505 = vmatprep.subr.mxu0 0.0
    %4506 = vmatpush1.xpose.msra.mxu0 %v4495
    %4507 = vmatprep.subr.mxu0 0.0
    %4508 = vmatpush1.xpose.msra.mxu0 %v4498
    %4509 = vmatprep.subr.mxu0 0.0
    %4510 = vmatpush1.xpose.msra.mxu0 %v4501
    %4511 = vmatprep.subr.mxu0 0.0
    %4512 = vmatpush1.xpose.msra.mxu0 0.0
    %4513 = vmatprep.subr.mxu0 0.0
    %4514 = vmatpush1.xpose.msra.mxu0 0.0
    %4515 = vmatprep.subr.mxu0 0.0
    %4516 = vmatpush1.xpose.msra.mxu0 0.0
    %4517 = vmatprep.subr.mxu0 0.0
    %4518 = vmatpush1.xpose.msra.mxu0 0.0
    %4519 = vmatprep.subr.mxu0 0.0
    %4520 = vmatpush1.xpose.msra.mxu0 0.0
    %4521 = vmatprep.subr.mxu0 0.0
    %4522 = vmatpush1.xpose.msra.mxu0 0.0
    %4523 = vmatprep.subr.mxu0 0.0
    %4524 = vmatpush1.xpose.msra.mxu0 0.0
    %4525 = vmatprep.subr.mxu0 0.0
    %4526 = vmatpush1.xpose.msra.mxu0 0.0
    %4527 = vmatprep.subr.mxu0 0.0
    %4528 = vmatpush1.xpose.msra.mxu0 0.0
    %4529 = vmatprep.subr.mxu0 0.0
    %4530 = vmatpush1.xpose.msra.mxu0 0.0
    %4531 = vmatprep.subr.mxu0 0.0
    %4532 = vmatpush1.xpose.msra.mxu0 0.0
    %4533 = vmatprep.subr.mxu0 0.0
    %4534 = vmatpush1.xpose.msra.mxu0 0.0
    %4535 = vmatprep.subr.mxu0 0.0
    %4536 = vmatpush1.xpose.msra.mxu0 0.0
    %4537 = vmatprep.subr.mxu0 0.0
    %4538 = vmatpush1.xpose.msra.mxu0 0.0
    %4539 = vmatprep.subr.mxu0 0.0
    %4540 = vmatpush1.xpose.msra.mxu0 0.0
    %4541 = vmatprep.subr.mxu0 0.0
    %4542 = vmatpush1.xpose.msra.mxu0 0.0
    %4543 = vmatprep.subr.mxu0 0.0
    %4544 = vmatpush1.xpose.msra.mxu0 0.0
    %4545 = vmatprep.subr.mxu0 0.0
    %4546 = vmatpush1.xpose.msra.mxu0 0.0
    %4547 = vmatprep.subr.mxu0 0.0
    %4548 = vmatpush1.xpose.msra.mxu0 0.0
    %4549 = vmatprep.subr.mxu0 0.0
    %4550 = vmatpush1.xpose.msra.mxu0 0.0
    %4551 = vmatprep.subr.mxu0 0.0
    %4552 = vmatpush1.xpose.msra.mxu0 0.0
    %4553 = vmatprep.subr.mxu0 0.0
    %4554 = vmatpush1.xpose.msra.mxu0 0.0
    %4555 = vmatprep.subr.mxu0 0.0
    %4556 = vmatpush1.xpose.msra.mxu0 0.0
    %4557 = vmatprep.subr.mxu0 0.0
    %4558 = vmatpush1.xpose.msra.mxu0 0.0
    %4559 = vmatprep.subr.mxu0 0.0
    %4560 = vmatpush1.xpose.msra.mxu0 0.0
    %4561 = vmatprep.subr.mxu0 0.0
    %4562 = vmatpush1.xpose.msra.mxu0 0.0
    %4563 = vmatprep.subr.mxu0 0.0
    %4564 = vmatpush1.xpose.msra.mxu0 0.0
    %4565 = vmatprep.subr.mxu0 0.0
    %4566 = vmatpush1.xpose.msra.mxu0 0.0
    %4567 = vmatprep.mubr.f32.mxu0 0.0
    %4568 = vmatmul.mubr.f32.gmra.mrb[0].mxu0 %v4468
    %v4569 = vpop.f32.mrb[0].mxu0
    %v4570 = vadd.f32 0.0, %v4569
    %v4571 = vpop.f32.mrb[0].mxu0
    %4572 = vmatprep.mubr.f32.mxu0 0.0
    %4573 = vmatmul.mubr.f32.gmra.mrb[0].mxu0 %v4471
    %v4574 = vpop.f32.mrb[0].mxu0
    %v4575 = vadd.f32 0.0, %v4574
    %v4576 = vpop.f32.mrb[0].mxu0
    %4577 = vmatprep.mubr.f32.mxu0 0.0
    %4578 = vmatmul.mubr.f32.gmra.mrb[0].mxu0 %v4474
    %v4579 = vpop.f32.mrb[0].mxu0
    %v4580 = vadd.f32 0.0, %v4579
    %v4581 = vpop.f32.mrb[0].mxu0
    %4582 = vmatprep.mubr.f32.mxu0 0.0
    %4583 = vmatmul.mubr.f32.gmra.mrb[0].mxu0 %v4477
    %v4584 = vpop.f32.mrb[0].mxu0
    %v4585 = vadd.f32 0.0, %v4584
    %v4586 = vpop.f32.mrb[0].mxu0
    %4587 = vmatprep.mubr.f32.mxu0 0.0
    %4588 = vmatmul.mubr.f32.gmra.mrb[0].mxu0 %v4480
    %v4589 = vpop.f32.mrb[0].mxu0
    %v4590 = vadd.f32 0.0, %v4589
    %v4591 = vpop.f32.mrb[0].mxu0
    %4592 = vmatprep.mubr.f32.mxu0 0.0
    %4593 = vmatmul.mubr.f32.gmra.mrb[0].mxu0 %v4483
    %v4594 = vpop.f32.mrb[0].mxu0
    %v4595 = vadd.f32 0.0, %v4594
    %v4596 = vpop.f32.mrb[0].mxu0
    %4597 = vmatprep.mubr.f32.mxu0 0.0
    %4598 = vmatmul.mubr.f32.gmra.mrb[0].mxu0 %v4486
    %v4599 = vpop.f32.mrb[0].mxu0
    %v4600 = vadd.f32 0.0, %v4599
    %v4601 = vpop.f32.mrb[0].mxu0
    %4602 = vmatprep.mubr.f32.mxu0 0.0
    %4603 = vmatmul.mubr.f32.gmra.mrb[0].mxu0 %v4489
    %v4604 = vpop.f32.mrb[0].mxu0
    %v4605 = vadd.f32 0.0, %v4604
    %v4606 = vpop.f32.mrb[0].mxu0
    %4607 = vdwg.mxu0
    %4616 = vrot.lane.b32.xlu0 %v4570, 96
    %v4617 = vpop.permute.xlu0 %4616
    %4618 = vrot.lane.b32.xlu0 %v4575, 96
    %v4619 = vpop.permute.xlu0 %4618
    %4620 = vrot.lane.b32.xlu0 %v4580, 96
    %v4621 = vpop.permute.xlu0 %4620
    %4622 = vrot.lane.b32.xlu0 %v4585, 96
    %v4623 = vpop.permute.xlu0 %4622
    %4624 = vrot.lane.b32.xlu0 %v4590, 96
    %v4625 = vpop.permute.xlu0 %4624
    %4626 = vrot.lane.b32.xlu0 %v4595, 96
    %v4627 = vpop.permute.xlu0 %4626
    %4628 = vrot.lane.b32.xlu0 %v4600, 96
    %v4629 = vpop.permute.xlu0 %4628
    %4630 = vrot.lane.b32.xlu0 %v4605, 96
    %v4631 = vpop.permute.xlu0 %4630
    %4640 = vst.msk [vmem:[#allocation2 + $0x8] sm:$0xff] %vm2959, %v4617
    %4641 = vst.msk [vmem:[#allocation2 + $0x18] sm:$0xff] %vm2959, %v4619
    %4642 = vst.msk [vmem:[#allocation2 + $0x28] sm:$0xff] %vm2959, %v4621
    %4643 = vst.msk [vmem:[#allocation2 + $0x38] sm:$0xff] %vm2959, %v4623
    %4644 = vst.msk [vmem:[#allocation2 + $0x48] sm:$0xff] %vm2959, %v4625
    %4645 = vst.msk [vmem:[#allocation2 + $0x58] sm:$0xff] %vm2959, %v4627
    %4646 = vst.msk [vmem:[#allocation2 + $0x68] sm:$0xff] %vm2959, %v4629
    %4647 = vst.msk [vmem:[#allocation2 + $0x78] sm:$0xff] %vm2959, %v4631
    %4652 = vrot.lane.b32.xlu0 %v965, 64
    %v4653 = vpop.permute.xlu0 %4652
    %4654 = vrot.lane.b32.xlu0 %v970, 64
    %v4655 = vpop.permute.xlu0 %4654
    %4656 = vrot.lane.b32.xlu0 %v975, 64
    %v4657 = vpop.permute.xlu0 %4656
    %4658 = vrot.lane.b32.xlu0 %v980, 64
    %v4659 = vpop.permute.xlu0 %4658
    %v4665 = vsel %vm1283, %v340, 0
    %v4668 = vsel %vm1283, %v346, 0
    %v4671 = vsel %vm1283, %v352, 0
    %v4674 = vsel %vm1283, %v358, 0
    %v4677 = vsel %vm1283, %v364, 0
    %v4680 = vsel %vm1283, %v370, 0
    %v4683 = vsel %vm1283, %v376, 0
    %v4686 = vsel %vm1283, %v382, 0
    %4688 = vmatprep.subr.mxu0 0.0
    %4689 = vmatpush1.msra.mxu0 %v4653
    %4690 = vmatprep.subr.mxu0 0.0
    %4691 = vmatpush1.msra.mxu0 %v4655
    %4692 = vmatprep.subr.mxu0 0.0
    %4693 = vmatpush1.msra.mxu0 %v4657
    %4694 = vmatprep.subr.mxu0 0.0
    %4695 = vmatpush1.msra.mxu0 %v4659
    %4696 = vmatprep.subr.mxu0 0.0
    %4697 = vmatpush1.msra.mxu0 0.0
    %4698 = vmatprep.subr.mxu0 0.0
    %4699 = vmatpush1.msra.mxu0 0.0
    %4700 = vmatprep.subr.mxu0 0.0
    %4701 = vmatpush1.msra.mxu0 0.0
    %4702 = vmatprep.subr.mxu0 0.0
    %4703 = vmatpush1.msra.mxu0 0.0
    %4704 = vmatprep.subr.mxu0 0.0
    %4705 = vmatpush1.msra.mxu0 0.0
    %4706 = vmatprep.subr.mxu0 0.0
    %4707 = vmatpush1.msra.mxu0 0.0
    %4708 = vmatprep.subr.mxu0 0.0
    %4709 = vmatpush1.msra.mxu0 0.0
    %4710 = vmatprep.subr.mxu0 0.0
    %4711 = vmatpush1.msra.mxu0 0.0
    %4712 = vmatprep.subr.mxu0 0.0
    %4713 = vmatpush1.msra.mxu0 0.0
    %4714 = vmatprep.subr.mxu0 0.0
    %4715 = vmatpush1.msra.mxu0 0.0
    %4716 = vmatprep.subr.mxu0 0.0
    %4717 = vmatpush1.msra.mxu0 0.0
    %4718 = vmatprep.subr.mxu0 0.0
    %4719 = vmatpush1.msra.mxu0 0.0
    %4720 = vmatprep.subr.mxu0 0.0
    %4721 = vmatpush1.msra.mxu0 0.0
    %4722 = vmatprep.subr.mxu0 0.0
    %4723 = vmatpush1.msra.mxu0 0.0
    %4724 = vmatprep.subr.mxu0 0.0
    %4725 = vmatpush1.msra.mxu0 0.0
    %4726 = vmatprep.subr.mxu0 0.0
    %4727 = vmatpush1.msra.mxu0 0.0
    %4728 = vmatprep.subr.mxu0 0.0
    %4729 = vmatpush1.msra.mxu0 0.0
    %4730 = vmatprep.subr.mxu0 0.0
    %4731 = vmatpush1.msra.mxu0 0.0
    %4732 = vmatprep.subr.mxu0 0.0
    %4733 = vmatpush1.msra.mxu0 0.0
    %4734 = vmatprep.subr.mxu0 0.0
    %4735 = vmatpush1.msra.mxu0 0.0
    %4736 = vmatprep.subr.mxu0 0.0
    %4737 = vmatpush1.msra.mxu0 0.0
    %4738 = vmatprep.subr.mxu0 0.0
    %4739 = vmatpush1.msra.mxu0 0.0
    %4740 = vmatprep.subr.mxu0 0.0
    %4741 = vmatpush1.msra.mxu0 0.0
    %4742 = vmatprep.subr.mxu0 0.0
    %4743 = vmatpush1.msra.mxu0 0.0
    %4744 = vmatprep.subr.mxu0 0.0
    %4745 = vmatpush1.msra.mxu0 0.0
    %4746 = vmatprep.subr.mxu0 0.0
    %4747 = vmatpush1.msra.mxu0 0.0
    %4748 = vmatprep.subr.mxu0 0.0
    %4749 = vmatpush1.msra.mxu0 0.0
    %4750 = vmatprep.subr.mxu0 0.0
    %4751 = vmatpush1.msra.mxu0 0.0
    %4752 = vmatprep.mubr.f32.mxu0 0.0
    %4753 = vmatmul.mubr.f32.gmra.mrb[0].mxu0 %v4665
    %v4754 = vpop.f32.mrb[0].mxu0
    %v4755 = vadd.f32 0.0, %v4754
    %v4756 = vpop.f32.mrb[0].mxu0
    %4757 = vmatprep.mubr.f32.mxu0 0.0
    %4758 = vmatmul.mubr.f32.gmra.mrb[0].mxu0 %v4668
    %v4759 = vpop.f32.mrb[0].mxu0
    %v4760 = vadd.f32 0.0, %v4759
    %v4761 = vpop.f32.mrb[0].mxu0
    %4762 = vmatprep.mubr.f32.mxu0 0.0
    %4763 = vmatmul.mubr.f32.gmra.mrb[0].mxu0 %v4671
    %v4764 = vpop.f32.mrb[0].mxu0
    %v4765 = vadd.f32 0.0, %v4764
    %v4766 = vpop.f32.mrb[0].mxu0
    %4767 = vmatprep.mubr.f32.mxu0 0.0
    %4768 = vmatmul.mubr.f32.gmra.mrb[0].mxu0 %v4674
    %v4769 = vpop.f32.mrb[0].mxu0
    %v4770 = vadd.f32 0.0, %v4769
    %v4771 = vpop.f32.mrb[0].mxu0
    %4772 = vmatprep.mubr.f32.mxu0 0.0
    %4773 = vmatmul.mubr.f32.gmra.mrb[0].mxu0 %v4677
    %v4774 = vpop.f32.mrb[0].mxu0
    %v4775 = vadd.f32 0.0, %v4774
    %v4776 = vpop.f32.mrb[0].mxu0
    %4777 = vmatprep.mubr.f32.mxu0 0.0
    %4778 = vmatmul.mubr.f32.gmra.mrb[0].mxu0 %v4680
    %v4779 = vpop.f32.mrb[0].mxu0
    %v4780 = vadd.f32 0.0, %v4779
    %v4781 = vpop.f32.mrb[0].mxu0
    %4782 = vmatprep.mubr.f32.mxu0 0.0
    %4783 = vmatmul.mubr.f32.gmra.mrb[0].mxu0 %v4683
    %v4784 = vpop.f32.mrb[0].mxu0
    %v4785 = vadd.f32 0.0, %v4784
    %v4786 = vpop.f32.mrb[0].mxu0
    %4787 = vmatprep.mubr.f32.mxu0 0.0
    %4788 = vmatmul.mubr.f32.gmra.mrb[0].mxu0 %v4686
    %v4789 = vpop.f32.mrb[0].mxu0
    %v4790 = vadd.f32 0.0, %v4789
    %v4791 = vpop.f32.mrb[0].mxu0
    %4792 = vdwg.mxu0
    %v4793 = vsel %vm1413, %v4755, -inf
    %4794 = vmax.xlane.f32.xlu0 %v4793
    %v4795 = vpop.xlane.xlu0 %4794
    %v4796 = vsel %vm1413, %v4760, -inf
    %4797 = vmax.xlane.f32.xlu0 %v4796
    %v4798 = vpop.xlane.xlu0 %4797
    %v4799 = vsel %vm1413, %v4765, -inf
    %4800 = vmax.xlane.f32.xlu0 %v4799
    %v4801 = vpop.xlane.xlu0 %4800
    %v4802 = vsel %vm1413, %v4770, -inf
    %4803 = vmax.xlane.f32.xlu0 %v4802
    %v4804 = vpop.xlane.xlu0 %4803
    %v4805 = vsel %vm1413, %v4775, -inf
    %4806 = vmax.xlane.f32.xlu0 %v4805
    %v4807 = vpop.xlane.xlu0 %4806
    %v4808 = vsel %vm1413, %v4780, -inf
    %4809 = vmax.xlane.f32.xlu0 %v4808
    %v4810 = vpop.xlane.xlu0 %4809
    %v4811 = vsel %vm1413, %v4785, -inf
    %4812 = vmax.xlane.f32.xlu0 %v4811
    %v4813 = vpop.xlane.xlu0 %4812
    %v4814 = vsel %vm1413, %v4790, -inf
    %4815 = vmax.xlane.f32.xlu0 %v4814
    %v4816 = vpop.xlane.xlu0 %4815
    %v4817 = vsub.f32 %v4755, %v4795
    %v4818 = vsub.f32 %v4760, %v4798
    %v4819 = vsub.f32 %v4765, %v4801
    %v4820 = vsub.f32 %v4770, %v4804
    %v4821 = vsub.f32 %v4775, %v4807
    %v4822 = vsub.f32 %v4780, %v4810
    %v4823 = vsub.f32 %v4785, %v4813
    %v4824 = vsub.f32 %v4790, %v4816
    %v4825 = vmul.f32 %v4817, 1.442695
    %v4826 = vpow.pop %v4825
    %v4827 = vmul.f32 %v4818, 1.442695
    %v4828 = vpow.pop %v4827
    %v4829 = vmul.f32 %v4819, 1.442695
    %v4830 = vpow.pop %v4829
    %v4831 = vmul.f32 %v4820, 1.442695
    %v4832 = vpow.pop %v4831
    %v4833 = vmul.f32 %v4821, 1.442695
    %v4834 = vpow.pop %v4833
    %v4835 = vmul.f32 %v4822, 1.442695
    %v4836 = vpow.pop %v4835
    %v4837 = vmul.f32 %v4823, 1.442695
    %v4838 = vpow.pop %v4837
    %v4839 = vmul.f32 %v4824, 1.442695
    %v4840 = vpow.pop %v4839
    %v4841 = vsel %vm1413, %v4826, 0.0
    %4842 = vadd.xlane.f32.xlu0 %v4841
    %v4843 = vpop.xlane.xlu0 %4842
    %v4844 = vsel %vm1413, %v4828, 0.0
    %4845 = vadd.xlane.f32.xlu0 %v4844
    %v4846 = vpop.xlane.xlu0 %4845
    %v4847 = vsel %vm1413, %v4830, 0.0
    %4848 = vadd.xlane.f32.xlu0 %v4847
    %v4849 = vpop.xlane.xlu0 %4848
    %v4850 = vsel %vm1413, %v4832, 0.0
    %4851 = vadd.xlane.f32.xlu0 %v4850
    %v4852 = vpop.xlane.xlu0 %4851
    %v4853 = vsel %vm1413, %v4834, 0.0
    %4854 = vadd.xlane.f32.xlu0 %v4853
    %v4855 = vpop.xlane.xlu0 %4854
    %v4856 = vsel %vm1413, %v4836, 0.0
    %4857 = vadd.xlane.f32.xlu0 %v4856
    %v4858 = vpop.xlane.xlu0 %4857
    %v4859 = vsel %vm1413, %v4838, 0.0
    %4860 = vadd.xlane.f32.xlu0 %v4859
    %v4861 = vpop.xlane.xlu0 %4860
    %v4862 = vsel %vm1413, %v4840, 0.0
    %4863 = vadd.xlane.f32.xlu0 %v4862
    %v4864 = vpop.xlane.xlu0 %4863
    %v4865 = vrcp.pop %v4843
    %v4866 = vrcp.pop %v4846
    %v4867 = vrcp.pop %v4849
    %v4868 = vrcp.pop %v4852
    %v4869 = vrcp.pop %v4855
    %v4870 = vrcp.pop %v4858
    %v4871 = vrcp.pop %v4861
    %v4872 = vrcp.pop %v4864
    %v4873 = vmul.f32 %v4843, %v4865
    %v4874 = vmul.f32 %v4846, %v4866
    %v4875 = vmul.f32 %v4849, %v4867
    %v4876 = vmul.f32 %v4852, %v4868
    %v4877 = vmul.f32 %v4855, %v4869
    %v4878 = vmul.f32 %v4858, %v4870
    %v4879 = vmul.f32 %v4861, %v4871
    %v4880 = vmul.f32 %v4864, %v4872
    %v4881 = vsub.f32 2.0, %v4873
    %v4882 = vsub.f32 2.0, %v4874
    %v4883 = vsub.f32 2.0, %v4875
    %v4884 = vsub.f32 2.0, %v4876
    %v4885 = vsub.f32 2.0, %v4877
    %v4886 = vsub.f32 2.0, %v4878
    %v4887 = vsub.f32 2.0, %v4879
    %v4888 = vsub.f32 2.0, %v4880
    %v4889 = vmul.f32 %v4865, %v4881
    %v4890 = vmul.f32 %v4866, %v4882
    %v4891 = vmul.f32 %v4867, %v4883
    %v4892 = vmul.f32 %v4868, %v4884
    %v4893 = vmul.f32 %v4869, %v4885
    %v4894 = vmul.f32 %v4870, %v4886
    %v4895 = vmul.f32 %v4871, %v4887
    %v4896 = vmul.f32 %v4872, %v4888
    %v4897 = vmul.f32 %v4826, %v4889
    %v4898 = vmul.f32 %v4828, %v4890
    %v4899 = vmul.f32 %v4830, %v4891
    %v4900 = vmul.f32 %v4832, %v4892
    %v4901 = vmul.f32 %v4834, %v4893
    %v4902 = vmul.f32 %v4836, %v4894
    %v4903 = vmul.f32 %v4838, %v4895
    %v4904 = vmul.f32 %v4840, %v4896
    %4905 = vrot.lane.b32.xlu0 %v1125, 64
    %v4906 = vpop.permute.xlu0 %4905
    %4907 = vrot.lane.b32.xlu0 %v1130, 64
    %v4908 = vpop.permute.xlu0 %4907
    %4909 = vrot.lane.b32.xlu0 %v1135, 64
    %v4910 = vpop.permute.xlu0 %4909
    %4911 = vrot.lane.b32.xlu0 %v1140, 64
    %v4912 = vpop.permute.xlu0 %4911
    %v4914 = vsel %vm1413, %v4897, 0
    %v4917 = vsel %vm1413, %v4898, 0
    %v4920 = vsel %vm1413, %v4899, 0
    %v4923 = vsel %vm1413, %v4900, 0
    %v4926 = vsel %vm1413, %v4901, 0
    %v4929 = vsel %vm1413, %v4902, 0
    %v4932 = vsel %vm1413, %v4903, 0
    %v4935 = vsel %vm1413, %v4904, 0
    %v4937 = vsel %vm1413, %v4906, 0
    %v4939 = vsel %vm1413, %v4908, 0
    %v4941 = vsel %vm1413, %v4910, 0
    %v4943 = vsel %vm1413, %v4912, 0
    %4945 = vmatprep.subr.mxu0 0.0
    %4946 = vmatpush1.xpose.msra.mxu0 %v4937
    %4947 = vmatprep.subr.mxu0 0.0
    %4948 = vmatpush1.xpose.msra.mxu0 %v4939
    %4949 = vmatprep.subr.mxu0 0.0
    %4950 = vmatpush1.xpose.msra.mxu0 %v4941
    %4951 = vmatprep.subr.mxu0 0.0
    %4952 = vmatpush1.xpose.msra.mxu0 %v4943
    %4953 = vmatprep.subr.mxu0 0.0
    %4954 = vmatpush1.xpose.msra.mxu0 0.0
    %4955 = vmatprep.subr.mxu0 0.0
    %4956 = vmatpush1.xpose.msra.mxu0 0.0
    %4957 = vmatprep.subr.mxu0 0.0
    %4958 = vmatpush1.xpose.msra.mxu0 0.0
    %4959 = vmatprep.subr.mxu0 0.0
    %4960 = vmatpush1.xpose.msra.mxu0 0.0
    %4961 = vmatprep.subr.mxu0 0.0
    %4962 = vmatpush1.xpose.msra.mxu0 0.0
    %4963 = vmatprep.subr.mxu0 0.0
    %4964 = vmatpush1.xpose.msra.mxu0 0.0
    %4965 = vmatprep.subr.mxu0 0.0
    %4966 = vmatpush1.xpose.msra.mxu0 0.0
    %4967 = vmatprep.subr.mxu0 0.0
    %4968 = vmatpush1.xpose.msra.mxu0 0.0
    %4969 = vmatprep.subr.mxu0 0.0
    %4970 = vmatpush1.xpose.msra.mxu0 0.0
    %4971 = vmatprep.subr.mxu0 0.0
    %4972 = vmatpush1.xpose.msra.mxu0 0.0
    %4973 = vmatprep.subr.mxu0 0.0
    %4974 = vmatpush1.xpose.msra.mxu0 0.0
    %4975 = vmatprep.subr.mxu0 0.0
    %4976 = vmatpush1.xpose.msra.mxu0 0.0
    %4977 = vmatprep.subr.mxu0 0.0
    %4978 = vmatpush1.xpose.msra.mxu0 0.0
    %4979 = vmatprep.subr.mxu0 0.0
    %4980 = vmatpush1.xpose.msra.mxu0 0.0
    %4981 = vmatprep.subr.mxu0 0.0
    %4982 = vmatpush1.xpose.msra.mxu0 0.0
    %4983 = vmatprep.subr.mxu0 0.0
    %4984 = vmatpush1.xpose.msra.mxu0 0.0
    %4985 = vmatprep.subr.mxu0 0.0
    %4986 = vmatpush1.xpose.msra.mxu0 0.0
    %4987 = vmatprep.subr.mxu0 0.0
    %4988 = vmatpush1.xpose.msra.mxu0 0.0
    %4989 = vmatprep.subr.mxu0 0.0
    %4990 = vmatpush1.xpose.msra.mxu0 0.0
    %4991 = vmatprep.subr.mxu0 0.0
    %4992 = vmatpush1.xpose.msra.mxu0 0.0
    %4993 = vmatprep.subr.mxu0 0.0
    %4994 = vmatpush1.xpose.msra.mxu0 0.0
    %4995 = vmatprep.subr.mxu0 0.0
    %4996 = vmatpush1.xpose.msra.mxu0 0.0
    %4997 = vmatprep.subr.mxu0 0.0
    %4998 = vmatpush1.xpose.msra.mxu0 0.0
    %4999 = vmatprep.subr.mxu0 0.0
    %5000 = vmatpush1.xpose.msra.mxu0 0.0
    %5001 = vmatprep.subr.mxu0 0.0
    %5002 = vmatpush1.xpose.msra.mxu0 0.0
    %5003 = vmatprep.subr.mxu0 0.0
    %5004 = vmatpush1.xpose.msra.mxu0 0.0
    %5005 = vmatprep.subr.mxu0 0.0
    %5006 = vmatpush1.xpose.msra.mxu0 0.0
    %5007 = vmatprep.subr.mxu0 0.0
    %5008 = vmatpush1.xpose.msra.mxu0 0.0
    %5009 = vmatprep.mubr.f32.mxu0 0.0
    %5010 = vmatmul.mubr.f32.gmra.mrb[0].mxu0 %v4914
    %v5011 = vpop.f32.mrb[0].mxu0
    %v5012 = vadd.f32 0.0, %v5011
    %v5013 = vpop.f32.mrb[0].mxu0
    %5014 = vmatprep.mubr.f32.mxu0 0.0
    %5015 = vmatmul.mubr.f32.gmra.mrb[0].mxu0 %v4917
    %v5016 = vpop.f32.mrb[0].mxu0
    %v5017 = vadd.f32 0.0, %v5016
    %v5018 = vpop.f32.mrb[0].mxu0
    %5019 = vmatprep.mubr.f32.mxu0 0.0
    %5020 = vmatmul.mubr.f32.gmra.mrb[0].mxu0 %v4920
    %v5021 = vpop.f32.mrb[0].mxu0
    %v5022 = vadd.f32 0.0, %v5021
    %v5023 = vpop.f32.mrb[0].mxu0
    %5024 = vmatprep.mubr.f32.mxu0 0.0
    %5025 = vmatmul.mubr.f32.gmra.mrb[0].mxu0 %v4923
    %v5026 = vpop.f32.mrb[0].mxu0
    %v5027 = vadd.f32 0.0, %v5026
    %v5028 = vpop.f32.mrb[0].mxu0
    %5029 = vmatprep.mubr.f32.mxu0 0.0
    %5030 = vmatmul.mubr.f32.gmra.mrb[0].mxu0 %v4926
    %v5031 = vpop.f32.mrb[0].mxu0
    %v5032 = vadd.f32 0.0, %v5031
    %v5033 = vpop.f32.mrb[0].mxu0
    %5034 = vmatprep.mubr.f32.mxu0 0.0
    %5035 = vmatmul.mubr.f32.gmra.mrb[0].mxu0 %v4929
    %v5036 = vpop.f32.mrb[0].mxu0
    %v5037 = vadd.f32 0.0, %v5036
    %v5038 = vpop.f32.mrb[0].mxu0
    %5039 = vmatprep.mubr.f32.mxu0 0.0
    %5040 = vmatmul.mubr.f32.gmra.mrb[0].mxu0 %v4932
    %v5041 = vpop.f32.mrb[0].mxu0
    %v5042 = vadd.f32 0.0, %v5041
    %v5043 = vpop.f32.mrb[0].mxu0
    %5044 = vmatprep.mubr.f32.mxu0 0.0
    %5045 = vmatmul.mubr.f32.gmra.mrb[0].mxu0 %v4935
    %v5046 = vpop.f32.mrb[0].mxu0
    %v5047 = vadd.f32 0.0, %v5046
    %v5048 = vpop.f32.mrb[0].mxu0
    %5049 = vdwg.mxu0
    %5050 = vst.msk [vmem:[#allocation2 + $0x80] sm:$0xff] %vm1283, %v5012
    %5051 = vst.msk [vmem:[#allocation2 + $0x90] sm:$0xff] %vm1283, %v5017
    %5052 = vst.msk [vmem:[#allocation2 + $0xa0] sm:$0xff] %vm1283, %v5022
    %5053 = vst.msk [vmem:[#allocation2 + $0xb0] sm:$0xff] %vm1283, %v5027
    %5054 = vst.msk [vmem:[#allocation2 + $0xc0] sm:$0xff] %vm1283, %v5032
    %5055 = vst.msk [vmem:[#allocation2 + $0xd0] sm:$0xff] %vm1283, %v5037
    %5056 = vst.msk [vmem:[#allocation2 + $0xe0] sm:$0xff] %vm1283, %v5042
    %5057 = vst.msk [vmem:[#allocation2 + $0xf0] sm:$0xff] %vm1283, %v5047
    %5058 = vrot.lane.b32.xlu0 %v340, 96
    %v5059 = vpop.permute.xlu0 %5058
    %5060 = vrot.lane.b32.xlu0 %v346, 96
    %v5061 = vpop.permute.xlu0 %5060
    %5062 = vrot.lane.b32.xlu0 %v352, 96
    %v5063 = vpop.permute.xlu0 %5062
    %5064 = vrot.lane.b32.xlu0 %v358, 96
    %v5065 = vpop.permute.xlu0 %5064
    %5066 = vrot.lane.b32.xlu0 %v364, 96
    %v5067 = vpop.permute.xlu0 %5066
    %5068 = vrot.lane.b32.xlu0 %v370, 96
    %v5069 = vpop.permute.xlu0 %5068
    %5070 = vrot.lane.b32.xlu0 %v376, 96
    %v5071 = vpop.permute.xlu0 %5070
    %5072 = vrot.lane.b32.xlu0 %v382, 96
    %v5073 = vpop.permute.xlu0 %5072
    %5078 = vrot.lane.b32.xlu0 %v985, 64
    %v5079 = vpop.permute.xlu0 %5078
    %5080 = vrot.lane.b32.xlu0 %v990, 64
    %v5081 = vpop.permute.xlu0 %5080
    %5082 = vrot.lane.b32.xlu0 %v995, 64
    %v5083 = vpop.permute.xlu0 %5082
    %5084 = vrot.lane.b32.xlu0 %v1000, 64
    %v5085 = vpop.permute.xlu0 %5084
    %v5090 = vsel %vm1283, %v5059, 0
    %v5092 = vsel %vm1283, %v5061, 0
    %v5094 = vsel %vm1283, %v5063, 0
    %v5096 = vsel %vm1283, %v5065, 0
    %v5098 = vsel %vm1283, %v5067, 0
    %v5100 = vsel %vm1283, %v5069, 0
    %v5102 = vsel %vm1283, %v5071, 0
    %v5104 = vsel %vm1283, %v5073, 0
    %5106 = vmatprep.subr.mxu0 0.0
    %5107 = vmatpush1.msra.mxu0 %v5079
    %5108 = vmatprep.subr.mxu0 0.0
    %5109 = vmatpush1.msra.mxu0 %v5081
    %5110 = vmatprep.subr.mxu0 0.0
    %5111 = vmatpush1.msra.mxu0 %v5083
    %5112 = vmatprep.subr.mxu0 0.0
    %5113 = vmatpush1.msra.mxu0 %v5085
    %5114 = vmatprep.subr.mxu0 0.0
    %5115 = vmatpush1.msra.mxu0 0.0
    %5116 = vmatprep.subr.mxu0 0.0
    %5117 = vmatpush1.msra.mxu0 0.0
    %5118 = vmatprep.subr.mxu0 0.0
    %5119 = vmatpush1.msra.mxu0 0.0
    %5120 = vmatprep.subr.mxu0 0.0
    %5121 = vmatpush1.msra.mxu0 0.0
    %5122 = vmatprep.subr.mxu0 0.0
    %5123 = vmatpush1.msra.mxu0 0.0
    %5124 = vmatprep.subr.mxu0 0.0
    %5125 = vmatpush1.msra.mxu0 0.0
    %5126 = vmatprep.subr.mxu0 0.0
    %5127 = vmatpush1.msra.mxu0 0.0
    %5128 = vmatprep.subr.mxu0 0.0
    %5129 = vmatpush1.msra.mxu0 0.0
    %5130 = vmatprep.subr.mxu0 0.0
    %5131 = vmatpush1.msra.mxu0 0.0
    %5132 = vmatprep.subr.mxu0 0.0
    %5133 = vmatpush1.msra.mxu0 0.0
    %5134 = vmatprep.subr.mxu0 0.0
    %5135 = vmatpush1.msra.mxu0 0.0
    %5136 = vmatprep.subr.mxu0 0.0
    %5137 = vmatpush1.msra.mxu0 0.0
    %5138 = vmatprep.subr.mxu0 0.0
    %5139 = vmatpush1.msra.mxu0 0.0
    %5140 = vmatprep.subr.mxu0 0.0
    %5141 = vmatpush1.msra.mxu0 0.0
    %5142 = vmatprep.subr.mxu0 0.0
    %5143 = vmatpush1.msra.mxu0 0.0
    %5144 = vmatprep.subr.mxu0 0.0
    %5145 = vmatpush1.msra.mxu0 0.0
    %5146 = vmatprep.subr.mxu0 0.0
    %5147 = vmatpush1.msra.mxu0 0.0
    %5148 = vmatprep.subr.mxu0 0.0
    %5149 = vmatpush1.msra.mxu0 0.0
    %5150 = vmatprep.subr.mxu0 0.0
    %5151 = vmatpush1.msra.mxu0 0.0
    %5152 = vmatprep.subr.mxu0 0.0
    %5153 = vmatpush1.msra.mxu0 0.0
    %5154 = vmatprep.subr.mxu0 0.0
    %5155 = vmatpush1.msra.mxu0 0.0
    %5156 = vmatprep.subr.mxu0 0.0
    %5157 = vmatpush1.msra.mxu0 0.0
    %5158 = vmatprep.subr.mxu0 0.0
    %5159 = vmatpush1.msra.mxu0 0.0
    %5160 = vmatprep.subr.mxu0 0.0
    %5161 = vmatpush1.msra.mxu0 0.0
    %5162 = vmatprep.subr.mxu0 0.0
    %5163 = vmatpush1.msra.mxu0 0.0
    %5164 = vmatprep.subr.mxu0 0.0
    %5165 = vmatpush1.msra.mxu0 0.0
    %5166 = vmatprep.subr.mxu0 0.0
    %5167 = vmatpush1.msra.mxu0 0.0
    %5168 = vmatprep.subr.mxu0 0.0
    %5169 = vmatpush1.msra.mxu0 0.0
    %5170 = vmatprep.mubr.f32.mxu0 0.0
    %5171 = vmatmul.mubr.f32.gmra.mrb[0].mxu0 %v5090
    %v5172 = vpop.f32.mrb[0].mxu0
    %v5173 = vadd.f32 0.0, %v5172
    %v5174 = vpop.f32.mrb[0].mxu0
    %5175 = vmatprep.mubr.f32.mxu0 0.0
    %5176 = vmatmul.mubr.f32.gmra.mrb[0].mxu0 %v5092
    %v5177 = vpop.f32.mrb[0].mxu0
    %v5178 = vadd.f32 0.0, %v5177
    %v5179 = vpop.f32.mrb[0].mxu0
    %5180 = vmatprep.mubr.f32.mxu0 0.0
    %5181 = vmatmul.mubr.f32.gmra.mrb[0].mxu0 %v5094
    %v5182 = vpop.f32.mrb[0].mxu0
    %v5183 = vadd.f32 0.0, %v5182
    %v5184 = vpop.f32.mrb[0].mxu0
    %5185 = vmatprep.mubr.f32.mxu0 0.0
    %5186 = vmatmul.mubr.f32.gmra.mrb[0].mxu0 %v5096
    %v5187 = vpop.f32.mrb[0].mxu0
    %v5188 = vadd.f32 0.0, %v5187
    %v5189 = vpop.f32.mrb[0].mxu0
    %5190 = vmatprep.mubr.f32.mxu0 0.0
    %5191 = vmatmul.mubr.f32.gmra.mrb[0].mxu0 %v5098
    %v5192 = vpop.f32.mrb[0].mxu0
    %v5193 = vadd.f32 0.0, %v5192
    %v5194 = vpop.f32.mrb[0].mxu0
    %5195 = vmatprep.mubr.f32.mxu0 0.0
    %5196 = vmatmul.mubr.f32.gmra.mrb[0].mxu0 %v5100
    %v5197 = vpop.f32.mrb[0].mxu0
    %v5198 = vadd.f32 0.0, %v5197
    %v5199 = vpop.f32.mrb[0].mxu0
    %5200 = vmatprep.mubr.f32.mxu0 0.0
    %5201 = vmatmul.mubr.f32.gmra.mrb[0].mxu0 %v5102
    %v5202 = vpop.f32.mrb[0].mxu0
    %v5203 = vadd.f32 0.0, %v5202
    %v5204 = vpop.f32.mrb[0].mxu0
    %5205 = vmatprep.mubr.f32.mxu0 0.0
    %5206 = vmatmul.mubr.f32.gmra.mrb[0].mxu0 %v5104
    %v5207 = vpop.f32.mrb[0].mxu0
    %v5208 = vadd.f32 0.0, %v5207
    %v5209 = vpop.f32.mrb[0].mxu0
    %5210 = vdwg.mxu0
    %v5211 = vsel %vm1413, %v5173, -inf
    %5212 = vmax.xlane.f32.xlu0 %v5211
    %v5213 = vpop.xlane.xlu0 %5212
    %v5214 = vsel %vm1413, %v5178, -inf
    %5215 = vmax.xlane.f32.xlu0 %v5214
    %v5216 = vpop.xlane.xlu0 %5215
    %v5217 = vsel %vm1413, %v5183, -inf
    %5218 = vmax.xlane.f32.xlu0 %v5217
    %v5219 = vpop.xlane.xlu0 %5218
    %v5220 = vsel %vm1413, %v5188, -inf
    %5221 = vmax.xlane.f32.xlu0 %v5220
    %v5222 = vpop.xlane.xlu0 %5221
    %v5223 = vsel %vm1413, %v5193, -inf
    %5224 = vmax.xlane.f32.xlu0 %v5223
    %v5225 = vpop.xlane.xlu0 %5224
    %v5226 = vsel %vm1413, %v5198, -inf
    %5227 = vmax.xlane.f32.xlu0 %v5226
    %v5228 = vpop.xlane.xlu0 %5227
    %v5229 = vsel %vm1413, %v5203, -inf
    %5230 = vmax.xlane.f32.xlu0 %v5229
    %v5231 = vpop.xlane.xlu0 %5230
    %v5232 = vsel %vm1413, %v5208, -inf
    %5233 = vmax.xlane.f32.xlu0 %v5232
    %v5234 = vpop.xlane.xlu0 %5233
    %v5235 = vsub.f32 %v5173, %v5213
    %v5236 = vsub.f32 %v5178, %v5216
    %v5237 = vsub.f32 %v5183, %v5219
    %v5238 = vsub.f32 %v5188, %v5222
    %v5239 = vsub.f32 %v5193, %v5225
    %v5240 = vsub.f32 %v5198, %v5228
    %v5241 = vsub.f32 %v5203, %v5231
    %v5242 = vsub.f32 %v5208, %v5234
    %v5243 = vmul.f32 %v5235, 1.442695
    %v5244 = vpow.pop %v5243
    %v5245 = vmul.f32 %v5236, 1.442695
    %v5246 = vpow.pop %v5245
    %v5247 = vmul.f32 %v5237, 1.442695
    %v5248 = vpow.pop %v5247
    %v5249 = vmul.f32 %v5238, 1.442695
    %v5250 = vpow.pop %v5249
    %v5251 = vmul.f32 %v5239, 1.442695
    %v5252 = vpow.pop %v5251
    %v5253 = vmul.f32 %v5240, 1.442695
    %v5254 = vpow.pop %v5253
    %v5255 = vmul.f32 %v5241, 1.442695
    %v5256 = vpow.pop %v5255
    %v5257 = vmul.f32 %v5242, 1.442695
    %v5258 = vpow.pop %v5257
    %v5259 = vsel %vm1413, %v5244, 0.0
    %5260 = vadd.xlane.f32.xlu0 %v5259
    %v5261 = vpop.xlane.xlu0 %5260
    %v5262 = vsel %vm1413, %v5246, 0.0
    %5263 = vadd.xlane.f32.xlu0 %v5262
    %v5264 = vpop.xlane.xlu0 %5263
    %v5265 = vsel %vm1413, %v5248, 0.0
    %5266 = vadd.xlane.f32.xlu0 %v5265
    %v5267 = vpop.xlane.xlu0 %5266
    %v5268 = vsel %vm1413, %v5250, 0.0
    %5269 = vadd.xlane.f32.xlu0 %v5268
    %v5270 = vpop.xlane.xlu0 %5269
    %v5271 = vsel %vm1413, %v5252, 0.0
    %5272 = vadd.xlane.f32.xlu0 %v5271
    %v5273 = vpop.xlane.xlu0 %5272
    %v5274 = vsel %vm1413, %v5254, 0.0
    %5275 = vadd.xlane.f32.xlu0 %v5274
    %v5276 = vpop.xlane.xlu0 %5275
    %v5277 = vsel %vm1413, %v5256, 0.0
    %5278 = vadd.xlane.f32.xlu0 %v5277
    %v5279 = vpop.xlane.xlu0 %5278
    %v5280 = vsel %vm1413, %v5258, 0.0
    %5281 = vadd.xlane.f32.xlu0 %v5280
    %v5282 = vpop.xlane.xlu0 %5281
    %v5283 = vrcp.pop %v5261
    %v5284 = vrcp.pop %v5264
    %v5285 = vrcp.pop %v5267
    %v5286 = vrcp.pop %v5270
    %v5287 = vrcp.pop %v5273
    %v5288 = vrcp.pop %v5276
    %v5289 = vrcp.pop %v5279
    %v5290 = vrcp.pop %v5282
    %v5291 = vmul.f32 %v5261, %v5283
    %v5292 = vmul.f32 %v5264, %v5284
    %v5293 = vmul.f32 %v5267, %v5285
    %v5294 = vmul.f32 %v5270, %v5286
    %v5295 = vmul.f32 %v5273, %v5287
    %v5296 = vmul.f32 %v5276, %v5288
    %v5297 = vmul.f32 %v5279, %v5289
    %v5298 = vmul.f32 %v5282, %v5290
    %v5299 = vsub.f32 2.0, %v5291
    %v5300 = vsub.f32 2.0, %v5292
    %v5301 = vsub.f32 2.0, %v5293
    %v5302 = vsub.f32 2.0, %v5294
    %v5303 = vsub.f32 2.0, %v5295
    %v5304 = vsub.f32 2.0, %v5296
    %v5305 = vsub.f32 2.0, %v5297
    %v5306 = vsub.f32 2.0, %v5298
    %v5307 = vmul.f32 %v5283, %v5299
    %v5308 = vmul.f32 %v5284, %v5300
    %v5309 = vmul.f32 %v5285, %v5301
    %v5310 = vmul.f32 %v5286, %v5302
    %v5311 = vmul.f32 %v5287, %v5303
    %v5312 = vmul.f32 %v5288, %v5304
    %v5313 = vmul.f32 %v5289, %v5305
    %v5314 = vmul.f32 %v5290, %v5306
    %v5315 = vmul.f32 %v5244, %v5307
    %v5316 = vmul.f32 %v5246, %v5308
    %v5317 = vmul.f32 %v5248, %v5309
    %v5318 = vmul.f32 %v5250, %v5310
    %v5319 = vmul.f32 %v5252, %v5311
    %v5320 = vmul.f32 %v5254, %v5312
    %v5321 = vmul.f32 %v5256, %v5313
    %v5322 = vmul.f32 %v5258, %v5314
    %5323 = vrot.lane.b32.xlu0 %v1145, 64
    %v5324 = vpop.permute.xlu0 %5323
    %5325 = vrot.lane.b32.xlu0 %v1150, 64
    %v5326 = vpop.permute.xlu0 %5325
    %5327 = vrot.lane.b32.xlu0 %v1155, 64
    %v5328 = vpop.permute.xlu0 %5327
    %5329 = vrot.lane.b32.xlu0 %v1160, 64
    %v5330 = vpop.permute.xlu0 %5329
    %v5332 = vsel %vm1413, %v5315, 0
    %v5335 = vsel %vm1413, %v5316, 0
    %v5338 = vsel %vm1413, %v5317, 0
    %v5341 = vsel %vm1413, %v5318, 0
    %v5344 = vsel %vm1413, %v5319, 0
    %v5347 = vsel %vm1413, %v5320, 0
    %v5350 = vsel %vm1413, %v5321, 0
    %v5353 = vsel %vm1413, %v5322, 0
    %v5355 = vsel %vm1413, %v5324, 0
    %v5357 = vsel %vm1413, %v5326, 0
    %v5359 = vsel %vm1413, %v5328, 0
    %v5361 = vsel %vm1413, %v5330, 0
    %5363 = vmatprep.subr.mxu0 0.0
    %5364 = vmatpush1.xpose.msra.mxu0 %v5355
    %5365 = vmatprep.subr.mxu0 0.0
    %5366 = vmatpush1.xpose.msra.mxu0 %v5357
    %5367 = vmatprep.subr.mxu0 0.0
    %5368 = vmatpush1.xpose.msra.mxu0 %v5359
    %5369 = vmatprep.subr.mxu0 0.0
    %5370 = vmatpush1.xpose.msra.mxu0 %v5361
    %5371 = vmatprep.subr.mxu0 0.0
    %5372 = vmatpush1.xpose.msra.mxu0 0.0
    %5373 = vmatprep.subr.mxu0 0.0
    %5374 = vmatpush1.xpose.msra.mxu0 0.0
    %5375 = vmatprep.subr.mxu0 0.0
    %5376 = vmatpush1.xpose.msra.mxu0 0.0
    %5377 = vmatprep.subr.mxu0 0.0
    %5378 = vmatpush1.xpose.msra.mxu0 0.0
    %5379 = vmatprep.subr.mxu0 0.0
    %5380 = vmatpush1.xpose.msra.mxu0 0.0
    %5381 = vmatprep.subr.mxu0 0.0
    %5382 = vmatpush1.xpose.msra.mxu0 0.0
    %5383 = vmatprep.subr.mxu0 0.0
    %5384 = vmatpush1.xpose.msra.mxu0 0.0
    %5385 = vmatprep.subr.mxu0 0.0
    %5386 = vmatpush1.xpose.msra.mxu0 0.0
    %5387 = vmatprep.subr.mxu0 0.0
    %5388 = vmatpush1.xpose.msra.mxu0 0.0
    %5389 = vmatprep.subr.mxu0 0.0
    %5390 = vmatpush1.xpose.msra.mxu0 0.0
    %5391 = vmatprep.subr.mxu0 0.0
    %5392 = vmatpush1.xpose.msra.mxu0 0.0
    %5393 = vmatprep.subr.mxu0 0.0
    %5394 = vmatpush1.xpose.msra.mxu0 0.0
    %5395 = vmatprep.subr.mxu0 0.0
    %5396 = vmatpush1.xpose.msra.mxu0 0.0
    %5397 = vmatprep.subr.mxu0 0.0
    %5398 = vmatpush1.xpose.msra.mxu0 0.0
    %5399 = vmatprep.subr.mxu0 0.0
    %5400 = vmatpush1.xpose.msra.mxu0 0.0
    %5401 = vmatprep.subr.mxu0 0.0
    %5402 = vmatpush1.xpose.msra.mxu0 0.0
    %5403 = vmatprep.subr.mxu0 0.0
    %5404 = vmatpush1.xpose.msra.mxu0 0.0
    %5405 = vmatprep.subr.mxu0 0.0
    %5406 = vmatpush1.xpose.msra.mxu0 0.0
    %5407 = vmatprep.subr.mxu0 0.0
    %5408 = vmatpush1.xpose.msra.mxu0 0.0
    %5409 = vmatprep.subr.mxu0 0.0
    %5410 = vmatpush1.xpose.msra.mxu0 0.0
    %5411 = vmatprep.subr.mxu0 0.0
    %5412 = vmatpush1.xpose.msra.mxu0 0.0
    %5413 = vmatprep.subr.mxu0 0.0
    %5414 = vmatpush1.xpose.msra.mxu0 0.0
    %5415 = vmatprep.subr.mxu0 0.0
    %5416 = vmatpush1.xpose.msra.mxu0 0.0
    %5417 = vmatprep.subr.mxu0 0.0
    %5418 = vmatpush1.xpose.msra.mxu0 0.0
    %5419 = vmatprep.subr.mxu0 0.0
    %5420 = vmatpush1.xpose.msra.mxu0 0.0
    %5421 = vmatprep.subr.mxu0 0.0
    %5422 = vmatpush1.xpose.msra.mxu0 0.0
    %5423 = vmatprep.subr.mxu0 0.0
    %5424 = vmatpush1.xpose.msra.mxu0 0.0
    %5425 = vmatprep.subr.mxu0 0.0
    %5426 = vmatpush1.xpose.msra.mxu0 0.0
    %5427 = vmatprep.mubr.f32.mxu0 0.0
    %5428 = vmatmul.mubr.f32.gmra.mrb[0].mxu0 %v5332
    %v5429 = vpop.f32.mrb[0].mxu0
    %v5430 = vadd.f32 0.0, %v5429
    %v5431 = vpop.f32.mrb[0].mxu0
    %5432 = vmatprep.mubr.f32.mxu0 0.0
    %5433 = vmatmul.mubr.f32.gmra.mrb[0].mxu0 %v5335
    %v5434 = vpop.f32.mrb[0].mxu0
    %v5435 = vadd.f32 0.0, %v5434
    %v5436 = vpop.f32.mrb[0].mxu0
    %5437 = vmatprep.mubr.f32.mxu0 0.0
    %5438 = vmatmul.mubr.f32.gmra.mrb[0].mxu0 %v5338
    %v5439 = vpop.f32.mrb[0].mxu0
    %v5440 = vadd.f32 0.0, %v5439
    %v5441 = vpop.f32.mrb[0].mxu0
    %5442 = vmatprep.mubr.f32.mxu0 0.0
    %5443 = vmatmul.mubr.f32.gmra.mrb[0].mxu0 %v5341
    %v5444 = vpop.f32.mrb[0].mxu0
    %v5445 = vadd.f32 0.0, %v5444
    %v5446 = vpop.f32.mrb[0].mxu0
    %5447 = vmatprep.mubr.f32.mxu0 0.0
    %5448 = vmatmul.mubr.f32.gmra.mrb[0].mxu0 %v5344
    %v5449 = vpop.f32.mrb[0].mxu0
    %v5450 = vadd.f32 0.0, %v5449
    %v5451 = vpop.f32.mrb[0].mxu0
    %5452 = vmatprep.mubr.f32.mxu0 0.0
    %5453 = vmatmul.mubr.f32.gmra.mrb[0].mxu0 %v5347
    %v5454 = vpop.f32.mrb[0].mxu0
    %v5455 = vadd.f32 0.0, %v5454
    %v5456 = vpop.f32.mrb[0].mxu0
    %5457 = vmatprep.mubr.f32.mxu0 0.0
    %5458 = vmatmul.mubr.f32.gmra.mrb[0].mxu0 %v5350
    %v5459 = vpop.f32.mrb[0].mxu0
    %v5460 = vadd.f32 0.0, %v5459
    %v5461 = vpop.f32.mrb[0].mxu0
    %5462 = vmatprep.mubr.f32.mxu0 0.0
    %5463 = vmatmul.mubr.f32.gmra.mrb[0].mxu0 %v5353
    %v5464 = vpop.f32.mrb[0].mxu0
    %v5465 = vadd.f32 0.0, %v5464
    %v5466 = vpop.f32.mrb[0].mxu0
    %5467 = vdwg.mxu0
    %5476 = vrot.lane.b32.xlu0 %v5430, 32
    %v5477 = vpop.permute.xlu0 %5476
    %5478 = vrot.lane.b32.xlu0 %v5435, 32
    %v5479 = vpop.permute.xlu0 %5478
    %5480 = vrot.lane.b32.xlu0 %v5440, 32
    %v5481 = vpop.permute.xlu0 %5480
    %5482 = vrot.lane.b32.xlu0 %v5445, 32
    %v5483 = vpop.permute.xlu0 %5482
    %5484 = vrot.lane.b32.xlu0 %v5450, 32
    %v5485 = vpop.permute.xlu0 %5484
    %5486 = vrot.lane.b32.xlu0 %v5455, 32
    %v5487 = vpop.permute.xlu0 %5486
    %5488 = vrot.lane.b32.xlu0 %v5460, 32
    %v5489 = vpop.permute.xlu0 %5488
    %5490 = vrot.lane.b32.xlu0 %v5465, 32
    %v5491 = vpop.permute.xlu0 %5490
    %5500 = vst.msk [vmem:[#allocation2 + $0x80] sm:$0xff] %vm2097, %v5477
    %5501 = vst.msk [vmem:[#allocation2 + $0x90] sm:$0xff] %vm2097, %v5479
    %5502 = vst.msk [vmem:[#allocation2 + $0xa0] sm:$0xff] %vm2097, %v5481
    %5503 = vst.msk [vmem:[#allocation2 + $0xb0] sm:$0xff] %vm2097, %v5483
    %5504 = vst.msk [vmem:[#allocation2 + $0xc0] sm:$0xff] %vm2097, %v5485
    %5505 = vst.msk [vmem:[#allocation2 + $0xd0] sm:$0xff] %vm2097, %v5487
    %5506 = vst.msk [vmem:[#allocation2 + $0xe0] sm:$0xff] %vm2097, %v5489
    %5507 = vst.msk [vmem:[#allocation2 + $0xf0] sm:$0xff] %vm2097, %v5491
    %5508 = vrot.lane.b32.xlu0 %v340, 64
    %v5509 = vpop.permute.xlu0 %5508
    %5510 = vrot.lane.b32.xlu0 %v346, 64
    %v5511 = vpop.permute.xlu0 %5510
    %5512 = vrot.lane.b32.xlu0 %v352, 64
    %v5513 = vpop.permute.xlu0 %5512
    %5514 = vrot.lane.b32.xlu0 %v358, 64
    %v5515 = vpop.permute.xlu0 %5514
    %5516 = vrot.lane.b32.xlu0 %v364, 64
    %v5517 = vpop.permute.xlu0 %5516
    %5518 = vrot.lane.b32.xlu0 %v370, 64
    %v5519 = vpop.permute.xlu0 %5518
    %5520 = vrot.lane.b32.xlu0 %v376, 64
    %v5521 = vpop.permute.xlu0 %5520
    %5522 = vrot.lane.b32.xlu0 %v382, 64
    %v5523 = vpop.permute.xlu0 %5522
    %5528 = vrot.lane.b32.xlu0 %v1005, 64
    %v5529 = vpop.permute.xlu0 %5528
    %5530 = vrot.lane.b32.xlu0 %v1010, 64
    %v5531 = vpop.permute.xlu0 %5530
    %5532 = vrot.lane.b32.xlu0 %v1015, 64
    %v5533 = vpop.permute.xlu0 %5532
    %5534 = vrot.lane.b32.xlu0 %v1020, 64
    %v5535 = vpop.permute.xlu0 %5534
    %v5540 = vsel %vm1283, %v5509, 0
    %v5542 = vsel %vm1283, %v5511, 0
    %v5544 = vsel %vm1283, %v5513, 0
    %v5546 = vsel %vm1283, %v5515, 0
    %v5548 = vsel %vm1283, %v5517, 0
    %v5550 = vsel %vm1283, %v5519, 0
    %v5552 = vsel %vm1283, %v5521, 0
    %v5554 = vsel %vm1283, %v5523, 0
    %5556 = vmatprep.subr.mxu0 0.0
    %5557 = vmatpush1.msra.mxu0 %v5529
    %5558 = vmatprep.subr.mxu0 0.0
    %5559 = vmatpush1.msra.mxu0 %v5531
    %5560 = vmatprep.subr.mxu0 0.0
    %5561 = vmatpush1.msra.mxu0 %v5533
    %5562 = vmatprep.subr.mxu0 0.0
    %5563 = vmatpush1.msra.mxu0 %v5535
    %5564 = vmatprep.subr.mxu0 0.0
    %5565 = vmatpush1.msra.mxu0 0.0
    %5566 = vmatprep.subr.mxu0 0.0
    %5567 = vmatpush1.msra.mxu0 0.0
    %5568 = vmatprep.subr.mxu0 0.0
    %5569 = vmatpush1.msra.mxu0 0.0
    %5570 = vmatprep.subr.mxu0 0.0
    %5571 = vmatpush1.msra.mxu0 0.0
    %5572 = vmatprep.subr.mxu0 0.0
    %5573 = vmatpush1.msra.mxu0 0.0
    %5574 = vmatprep.subr.mxu0 0.0
    %5575 = vmatpush1.msra.mxu0 0.0
    %5576 = vmatprep.subr.mxu0 0.0
    %5577 = vmatpush1.msra.mxu0 0.0
    %5578 = vmatprep.subr.mxu0 0.0
    %5579 = vmatpush1.msra.mxu0 0.0
    %5580 = vmatprep.subr.mxu0 0.0
    %5581 = vmatpush1.msra.mxu0 0.0
    %5582 = vmatprep.subr.mxu0 0.0
    %5583 = vmatpush1.msra.mxu0 0.0
    %5584 = vmatprep.subr.mxu0 0.0
    %5585 = vmatpush1.msra.mxu0 0.0
    %5586 = vmatprep.subr.mxu0 0.0
    %5587 = vmatpush1.msra.mxu0 0.0
    %5588 = vmatprep.subr.mxu0 0.0
    %5589 = vmatpush1.msra.mxu0 0.0
    %5590 = vmatprep.subr.mxu0 0.0
    %5591 = vmatpush1.msra.mxu0 0.0
    %5592 = vmatprep.subr.mxu0 0.0
    %5593 = vmatpush1.msra.mxu0 0.0
    %5594 = vmatprep.subr.mxu0 0.0
    %5595 = vmatpush1.msra.mxu0 0.0
    %5596 = vmatprep.subr.mxu0 0.0
    %5597 = vmatpush1.msra.mxu0 0.0
    %5598 = vmatprep.subr.mxu0 0.0
    %5599 = vmatpush1.msra.mxu0 0.0
    %5600 = vmatprep.subr.mxu0 0.0
    %5601 = vmatpush1.msra.mxu0 0.0
    %5602 = vmatprep.subr.mxu0 0.0
    %5603 = vmatpush1.msra.mxu0 0.0
    %5604 = vmatprep.subr.mxu0 0.0
    %5605 = vmatpush1.msra.mxu0 0.0
    %5606 = vmatprep.subr.mxu0 0.0
    %5607 = vmatpush1.msra.mxu0 0.0
    %5608 = vmatprep.subr.mxu0 0.0
    %5609 = vmatpush1.msra.mxu0 0.0
    %5610 = vmatprep.subr.mxu0 0.0
    %5611 = vmatpush1.msra.mxu0 0.0
    %5612 = vmatprep.subr.mxu0 0.0
    %5613 = vmatpush1.msra.mxu0 0.0
    %5614 = vmatprep.subr.mxu0 0.0
    %5615 = vmatpush1.msra.mxu0 0.0
    %5616 = vmatprep.subr.mxu0 0.0
    %5617 = vmatpush1.msra.mxu0 0.0
    %5618 = vmatprep.subr.mxu0 0.0
    %5619 = vmatpush1.msra.mxu0 0.0
    %5620 = vmatprep.mubr.f32.mxu0 0.0
    %5621 = vmatmul.mubr.f32.gmra.mrb[0].mxu0 %v5540
    %v5622 = vpop.f32.mrb[0].mxu0
    %v5623 = vadd.f32 0.0, %v5622
    %v5624 = vpop.f32.mrb[0].mxu0
    %5625 = vmatprep.mubr.f32.mxu0 0.0
    %5626 = vmatmul.mubr.f32.gmra.mrb[0].mxu0 %v5542
    %v5627 = vpop.f32.mrb[0].mxu0
    %v5628 = vadd.f32 0.0, %v5627
    %v5629 = vpop.f32.mrb[0].mxu0
    %5630 = vmatprep.mubr.f32.mxu0 0.0
    %5631 = vmatmul.mubr.f32.gmra.mrb[0].mxu0 %v5544
    %v5632 = vpop.f32.mrb[0].mxu0
    %v5633 = vadd.f32 0.0, %v5632
    %v5634 = vpop.f32.mrb[0].mxu0
    %5635 = vmatprep.mubr.f32.mxu0 0.0
    %5636 = vmatmul.mubr.f32.gmra.mrb[0].mxu0 %v5546
    %v5637 = vpop.f32.mrb[0].mxu0
    %v5638 = vadd.f32 0.0, %v5637
    %v5639 = vpop.f32.mrb[0].mxu0
    %5640 = vmatprep.mubr.f32.mxu0 0.0
    %5641 = vmatmul.mubr.f32.gmra.mrb[0].mxu0 %v5548
    %v5642 = vpop.f32.mrb[0].mxu0
    %v5643 = vadd.f32 0.0, %v5642
    %v5644 = vpop.f32.mrb[0].mxu0
    %5645 = vmatprep.mubr.f32.mxu0 0.0
    %5646 = vmatmul.mubr.f32.gmra.mrb[0].mxu0 %v5550
    %v5647 = vpop.f32.mrb[0].mxu0
    %v5648 = vadd.f32 0.0, %v5647
    %v5649 = vpop.f32.mrb[0].mxu0
    %5650 = vmatprep.mubr.f32.mxu0 0.0
    %5651 = vmatmul.mubr.f32.gmra.mrb[0].mxu0 %v5552
    %v5652 = vpop.f32.mrb[0].mxu0
    %v5653 = vadd.f32 0.0, %v5652
    %v5654 = vpop.f32.mrb[0].mxu0
    %5655 = vmatprep.mubr.f32.mxu0 0.0
    %5656 = vmatmul.mubr.f32.gmra.mrb[0].mxu0 %v5554
    %v5657 = vpop.f32.mrb[0].mxu0
    %v5658 = vadd.f32 0.0, %v5657
    %v5659 = vpop.f32.mrb[0].mxu0
    %5660 = vdwg.mxu0
    %v5661 = vsel %vm1413, %v5623, -inf
    %5662 = vmax.xlane.f32.xlu0 %v5661
    %v5663 = vpop.xlane.xlu0 %5662
    %v5664 = vsel %vm1413, %v5628, -inf
    %5665 = vmax.xlane.f32.xlu0 %v5664
    %v5666 = vpop.xlane.xlu0 %5665
    %v5667 = vsel %vm1413, %v5633, -inf
    %5668 = vmax.xlane.f32.xlu0 %v5667
    %v5669 = vpop.xlane.xlu0 %5668
    %v5670 = vsel %vm1413, %v5638, -inf
    %5671 = vmax.xlane.f32.xlu0 %v5670
    %v5672 = vpop.xlane.xlu0 %5671
    %v5673 = vsel %vm1413, %v5643, -inf
    %5674 = vmax.xlane.f32.xlu0 %v5673
    %v5675 = vpop.xlane.xlu0 %5674
    %v5676 = vsel %vm1413, %v5648, -inf
    %5677 = vmax.xlane.f32.xlu0 %v5676
    %v5678 = vpop.xlane.xlu0 %5677
    %v5679 = vsel %vm1413, %v5653, -inf
    %5680 = vmax.xlane.f32.xlu0 %v5679
    %v5681 = vpop.xlane.xlu0 %5680
    %v5682 = vsel %vm1413, %v5658, -inf
    %5683 = vmax.xlane.f32.xlu0 %v5682
    %v5684 = vpop.xlane.xlu0 %5683
    %v5685 = vsub.f32 %v5623, %v5663
    %v5686 = vsub.f32 %v5628, %v5666
    %v5687 = vsub.f32 %v5633, %v5669
    %v5688 = vsub.f32 %v5638, %v5672
    %v5689 = vsub.f32 %v5643, %v5675
    %v5690 = vsub.f32 %v5648, %v5678
    %v5691 = vsub.f32 %v5653, %v5681
    %v5692 = vsub.f32 %v5658, %v5684
    %v5693 = vmul.f32 %v5685, 1.442695
    %v5694 = vpow.pop %v5693
    %v5695 = vmul.f32 %v5686, 1.442695
    %v5696 = vpow.pop %v5695
    %v5697 = vmul.f32 %v5687, 1.442695
    %v5698 = vpow.pop %v5697
    %v5699 = vmul.f32 %v5688, 1.442695
    %v5700 = vpow.pop %v5699
    %v5701 = vmul.f32 %v5689, 1.442695
    %v5702 = vpow.pop %v5701
    %v5703 = vmul.f32 %v5690, 1.442695
    %v5704 = vpow.pop %v5703
    %v5705 = vmul.f32 %v5691, 1.442695
    %v5706 = vpow.pop %v5705
    %v5707 = vmul.f32 %v5692, 1.442695
    %v5708 = vpow.pop %v5707
    %v5709 = vsel %vm1413, %v5694, 0.0
    %5710 = vadd.xlane.f32.xlu0 %v5709
    %v5711 = vpop.xlane.xlu0 %5710
    %v5712 = vsel %vm1413, %v5696, 0.0
    %5713 = vadd.xlane.f32.xlu0 %v5712
    %v5714 = vpop.xlane.xlu0 %5713
    %v5715 = vsel %vm1413, %v5698, 0.0
    %5716 = vadd.xlane.f32.xlu0 %v5715
    %v5717 = vpop.xlane.xlu0 %5716
    %v5718 = vsel %vm1413, %v5700, 0.0
    %5719 = vadd.xlane.f32.xlu0 %v5718
    %v5720 = vpop.xlane.xlu0 %5719
    %v5721 = vsel %vm1413, %v5702, 0.0
    %5722 = vadd.xlane.f32.xlu0 %v5721
    %v5723 = vpop.xlane.xlu0 %5722
    %v5724 = vsel %vm1413, %v5704, 0.0
    %5725 = vadd.xlane.f32.xlu0 %v5724
    %v5726 = vpop.xlane.xlu0 %5725
    %v5727 = vsel %vm1413, %v5706, 0.0
    %5728 = vadd.xlane.f32.xlu0 %v5727
    %v5729 = vpop.xlane.xlu0 %5728
    %v5730 = vsel %vm1413, %v5708, 0.0
    %5731 = vadd.xlane.f32.xlu0 %v5730
    %v5732 = vpop.xlane.xlu0 %5731
    %v5733 = vrcp.pop %v5711
    %v5734 = vrcp.pop %v5714
    %v5735 = vrcp.pop %v5717
    %v5736 = vrcp.pop %v5720
    %v5737 = vrcp.pop %v5723
    %v5738 = vrcp.pop %v5726
    %v5739 = vrcp.pop %v5729
    %v5740 = vrcp.pop %v5732
    %v5741 = vmul.f32 %v5711, %v5733
    %v5742 = vmul.f32 %v5714, %v5734
    %v5743 = vmul.f32 %v5717, %v5735
    %v5744 = vmul.f32 %v5720, %v5736
    %v5745 = vmul.f32 %v5723, %v5737
    %v5746 = vmul.f32 %v5726, %v5738
    %v5747 = vmul.f32 %v5729, %v5739
    %v5748 = vmul.f32 %v5732, %v5740
    %v5749 = vsub.f32 2.0, %v5741
    %v5750 = vsub.f32 2.0, %v5742
    %v5751 = vsub.f32 2.0, %v5743
    %v5752 = vsub.f32 2.0, %v5744
    %v5753 = vsub.f32 2.0, %v5745
    %v5754 = vsub.f32 2.0, %v5746
    %v5755 = vsub.f32 2.0, %v5747
    %v5756 = vsub.f32 2.0, %v5748
    %v5757 = vmul.f32 %v5733, %v5749
    %v5758 = vmul.f32 %v5734, %v5750
    %v5759 = vmul.f32 %v5735, %v5751
    %v5760 = vmul.f32 %v5736, %v5752
    %v5761 = vmul.f32 %v5737, %v5753
    %v5762 = vmul.f32 %v5738, %v5754
    %v5763 = vmul.f32 %v5739, %v5755
    %v5764 = vmul.f32 %v5740, %v5756
    %v5765 = vmul.f32 %v5694, %v5757
    %v5766 = vmul.f32 %v5696, %v5758
    %v5767 = vmul.f32 %v5698, %v5759
    %v5768 = vmul.f32 %v5700, %v5760
    %v5769 = vmul.f32 %v5702, %v5761
    %v5770 = vmul.f32 %v5704, %v5762
    %v5771 = vmul.f32 %v5706, %v5763
    %v5772 = vmul.f32 %v5708, %v5764
    %5773 = vrot.lane.b32.xlu0 %v1165, 64
    %v5774 = vpop.permute.xlu0 %5773
    %5775 = vrot.lane.b32.xlu0 %v1170, 64
    %v5776 = vpop.permute.xlu0 %5775
    %5777 = vrot.lane.b32.xlu0 %v1175, 64
    %v5778 = vpop.permute.xlu0 %5777
    %5779 = vrot.lane.b32.xlu0 %v1180, 64
    %v5780 = vpop.permute.xlu0 %5779
    %v5782 = vsel %vm1413, %v5765, 0
    %v5785 = vsel %vm1413, %v5766, 0
    %v5788 = vsel %vm1413, %v5767, 0
    %v5791 = vsel %vm1413, %v5768, 0
    %v5794 = vsel %vm1413, %v5769, 0
    %v5797 = vsel %vm1413, %v5770, 0
    %v5800 = vsel %vm1413, %v5771, 0
    %v5803 = vsel %vm1413, %v5772, 0
    %v5805 = vsel %vm1413, %v5774, 0
    %v5807 = vsel %vm1413, %v5776, 0
    %v5809 = vsel %vm1413, %v5778, 0
    %v5811 = vsel %vm1413, %v5780, 0
    %5813 = vmatprep.subr.mxu0 0.0
    %5814 = vmatpush1.xpose.msra.mxu0 %v5805
    %5815 = vmatprep.subr.mxu0 0.0
    %5816 = vmatpush1.xpose.msra.mxu0 %v5807
    %5817 = vmatprep.subr.mxu0 0.0
    %5818 = vmatpush1.xpose.msra.mxu0 %v5809
    %5819 = vmatprep.subr.mxu0 0.0
    %5820 = vmatpush1.xpose.msra.mxu0 %v5811
    %5821 = vmatprep.subr.mxu0 0.0
    %5822 = vmatpush1.xpose.msra.mxu0 0.0
    %5823 = vmatprep.subr.mxu0 0.0
    %5824 = vmatpush1.xpose.msra.mxu0 0.0
    %5825 = vmatprep.subr.mxu0 0.0
    %5826 = vmatpush1.xpose.msra.mxu0 0.0
    %5827 = vmatprep.subr.mxu0 0.0
    %5828 = vmatpush1.xpose.msra.mxu0 0.0
    %5829 = vmatprep.subr.mxu0 0.0
    %5830 = vmatpush1.xpose.msra.mxu0 0.0
    %5831 = vmatprep.subr.mxu0 0.0
    %5832 = vmatpush1.xpose.msra.mxu0 0.0
    %5833 = vmatprep.subr.mxu0 0.0
    %5834 = vmatpush1.xpose.msra.mxu0 0.0
    %5835 = vmatprep.subr.mxu0 0.0
    %5836 = vmatpush1.xpose.msra.mxu0 0.0
    %5837 = vmatprep.subr.mxu0 0.0
    %5838 = vmatpush1.xpose.msra.mxu0 0.0
    %5839 = vmatprep.subr.mxu0 0.0
    %5840 = vmatpush1.xpose.msra.mxu0 0.0
    %5841 = vmatprep.subr.mxu0 0.0
    %5842 = vmatpush1.xpose.msra.mxu0 0.0
    %5843 = vmatprep.subr.mxu0 0.0
    %5844 = vmatpush1.xpose.msra.mxu0 0.0
    %5845 = vmatprep.subr.mxu0 0.0
    %5846 = vmatpush1.xpose.msra.mxu0 0.0
    %5847 = vmatprep.subr.mxu0 0.0
    %5848 = vmatpush1.xpose.msra.mxu0 0.0
    %5849 = vmatprep.subr.mxu0 0.0
    %5850 = vmatpush1.xpose.msra.mxu0 0.0
    %5851 = vmatprep.subr.mxu0 0.0
    %5852 = vmatpush1.xpose.msra.mxu0 0.0
    %5853 = vmatprep.subr.mxu0 0.0
    %5854 = vmatpush1.xpose.msra.mxu0 0.0
    %5855 = vmatprep.subr.mxu0 0.0
    %5856 = vmatpush1.xpose.msra.mxu0 0.0
    %5857 = vmatprep.subr.mxu0 0.0
    %5858 = vmatpush1.xpose.msra.mxu0 0.0
    %5859 = vmatprep.subr.mxu0 0.0
    %5860 = vmatpush1.xpose.msra.mxu0 0.0
    %5861 = vmatprep.subr.mxu0 0.0
    %5862 = vmatpush1.xpose.msra.mxu0 0.0
    %5863 = vmatprep.subr.mxu0 0.0
    %5864 = vmatpush1.xpose.msra.mxu0 0.0
    %5865 = vmatprep.subr.mxu0 0.0
    %5866 = vmatpush1.xpose.msra.mxu0 0.0
    %5867 = vmatprep.subr.mxu0 0.0
    %5868 = vmatpush1.xpose.msra.mxu0 0.0
    %5869 = vmatprep.subr.mxu0 0.0
    %5870 = vmatpush1.xpose.msra.mxu0 0.0
    %5871 = vmatprep.subr.mxu0 0.0
    %5872 = vmatpush1.xpose.msra.mxu0 0.0
    %5873 = vmatprep.subr.mxu0 0.0
    %5874 = vmatpush1.xpose.msra.mxu0 0.0
    %5875 = vmatprep.subr.mxu0 0.0
    %5876 = vmatpush1.xpose.msra.mxu0 0.0
    %5877 = vmatprep.mubr.f32.mxu0 0.0
    %5878 = vmatmul.mubr.f32.gmra.mrb[0].mxu0 %v5782
    %v5879 = vpop.f32.mrb[0].mxu0
    %v5880 = vadd.f32 0.0, %v5879
    %v5881 = vpop.f32.mrb[0].mxu0
    %5882 = vmatprep.mubr.f32.mxu0 0.0
    %5883 = vmatmul.mubr.f32.gmra.mrb[0].mxu0 %v5785
    %v5884 = vpop.f32.mrb[0].mxu0
    %v5885 = vadd.f32 0.0, %v5884
    %v5886 = vpop.f32.mrb[0].mxu0
    %5887 = vmatprep.mubr.f32.mxu0 0.0
    %5888 = vmatmul.mubr.f32.gmra.mrb[0].mxu0 %v5788
    %v5889 = vpop.f32.mrb[0].mxu0
    %v5890 = vadd.f32 0.0, %v5889
    %v5891 = vpop.f32.mrb[0].mxu0
    %5892 = vmatprep.mubr.f32.mxu0 0.0
    %5893 = vmatmul.mubr.f32.gmra.mrb[0].mxu0 %v5791
    %v5894 = vpop.f32.mrb[0].mxu0
    %v5895 = vadd.f32 0.0, %v5894
    %v5896 = vpop.f32.mrb[0].mxu0
    %5897 = vmatprep.mubr.f32.mxu0 0.0
    %5898 = vmatmul.mubr.f32.gmra.mrb[0].mxu0 %v5794
    %v5899 = vpop.f32.mrb[0].mxu0
    %v5900 = vadd.f32 0.0, %v5899
    %v5901 = vpop.f32.mrb[0].mxu0
    %5902 = vmatprep.mubr.f32.mxu0 0.0
    %5903 = vmatmul.mubr.f32.gmra.mrb[0].mxu0 %v5797
    %v5904 = vpop.f32.mrb[0].mxu0
    %v5905 = vadd.f32 0.0, %v5904
    %v5906 = vpop.f32.mrb[0].mxu0
    %5907 = vmatprep.mubr.f32.mxu0 0.0
    %5908 = vmatmul.mubr.f32.gmra.mrb[0].mxu0 %v5800
    %v5909 = vpop.f32.mrb[0].mxu0
    %v5910 = vadd.f32 0.0, %v5909
    %v5911 = vpop.f32.mrb[0].mxu0
    %5912 = vmatprep.mubr.f32.mxu0 0.0
    %5913 = vmatmul.mubr.f32.gmra.mrb[0].mxu0 %v5803
    %v5914 = vpop.f32.mrb[0].mxu0
    %v5915 = vadd.f32 0.0, %v5914
    %v5916 = vpop.f32.mrb[0].mxu0
    %5917 = vdwg.mxu0
    %5926 = vrot.lane.b32.xlu0 %v5880, 64
    %v5927 = vpop.permute.xlu0 %5926
    %5928 = vrot.lane.b32.xlu0 %v5885, 64
    %v5929 = vpop.permute.xlu0 %5928
    %5930 = vrot.lane.b32.xlu0 %v5890, 64
    %v5931 = vpop.permute.xlu0 %5930
    %5932 = vrot.lane.b32.xlu0 %v5895, 64
    %v5933 = vpop.permute.xlu0 %5932
    %5934 = vrot.lane.b32.xlu0 %v5900, 64
    %v5935 = vpop.permute.xlu0 %5934
    %5936 = vrot.lane.b32.xlu0 %v5905, 64
    %v5937 = vpop.permute.xlu0 %5936
    %5938 = vrot.lane.b32.xlu0 %v5910, 64
    %v5939 = vpop.permute.xlu0 %5938
    %5940 = vrot.lane.b32.xlu0 %v5915, 64
    %v5941 = vpop.permute.xlu0 %5940
    %5950 = vst.msk [vmem:[#allocation2 + $0x80] sm:$0xff] %vm2528, %v5927
    %5951 = vst.msk [vmem:[#allocation2 + $0x90] sm:$0xff] %vm2528, %v5929
    %5952 = vst.msk [vmem:[#allocation2 + $0xa0] sm:$0xff] %vm2528, %v5931
    %5953 = vst.msk [vmem:[#allocation2 + $0xb0] sm:$0xff] %vm2528, %v5933
    %5954 = vst.msk [vmem:[#allocation2 + $0xc0] sm:$0xff] %vm2528, %v5935
    %5955 = vst.msk [vmem:[#allocation2 + $0xd0] sm:$0xff] %vm2528, %v5937
    %5956 = vst.msk [vmem:[#allocation2 + $0xe0] sm:$0xff] %vm2528, %v5939
    %5957 = vst.msk [vmem:[#allocation2 + $0xf0] sm:$0xff] %vm2528, %v5941
    %5958 = vrot.lane.b32.xlu0 %v340, 32
    %v5959 = vpop.permute.xlu0 %5958
    %5960 = vrot.lane.b32.xlu0 %v346, 32
    %v5961 = vpop.permute.xlu0 %5960
    %5962 = vrot.lane.b32.xlu0 %v352, 32
    %v5963 = vpop.permute.xlu0 %5962
    %5964 = vrot.lane.b32.xlu0 %v358, 32
    %v5965 = vpop.permute.xlu0 %5964
    %5966 = vrot.lane.b32.xlu0 %v364, 32
    %v5967 = vpop.permute.xlu0 %5966
    %5968 = vrot.lane.b32.xlu0 %v370, 32
    %v5969 = vpop.permute.xlu0 %5968
    %5970 = vrot.lane.b32.xlu0 %v376, 32
    %v5971 = vpop.permute.xlu0 %5970
    %5972 = vrot.lane.b32.xlu0 %v382, 32
    %v5973 = vpop.permute.xlu0 %5972
    %5978 = vrot.lane.b32.xlu0 %v1025, 64
    %v5979 = vpop.permute.xlu0 %5978
    %5980 = vrot.lane.b32.xlu0 %v1030, 64
    %v5981 = vpop.permute.xlu0 %5980
    %5982 = vrot.lane.b32.xlu0 %v1035, 64
    %v5983 = vpop.permute.xlu0 %5982
    %5984 = vrot.lane.b32.xlu0 %v1040, 64
    %v5985 = vpop.permute.xlu0 %5984
    %v5990 = vsel %vm1283, %v5959, 0
    %v5992 = vsel %vm1283, %v5961, 0
    %v5994 = vsel %vm1283, %v5963, 0
    %v5996 = vsel %vm1283, %v5965, 0
    %v5998 = vsel %vm1283, %v5967, 0
    %v6000 = vsel %vm1283, %v5969, 0
    %v6002 = vsel %vm1283, %v5971, 0
    %v6004 = vsel %vm1283, %v5973, 0
    %6006 = vmatprep.subr.mxu0 0.0
    %6007 = vmatpush1.msra.mxu0 %v5979
    %6008 = vmatprep.subr.mxu0 0.0
    %6009 = vmatpush1.msra.mxu0 %v5981
    %6010 = vmatprep.subr.mxu0 0.0
    %6011 = vmatpush1.msra.mxu0 %v5983
    %6012 = vmatprep.subr.mxu0 0.0
    %6013 = vmatpush1.msra.mxu0 %v5985
    %6014 = vmatprep.subr.mxu0 0.0
    %6015 = vmatpush1.msra.mxu0 0.0
    %6016 = vmatprep.subr.mxu0 0.0
    %6017 = vmatpush1.msra.mxu0 0.0
    %6018 = vmatprep.subr.mxu0 0.0
    %6019 = vmatpush1.msra.mxu0 0.0
    %6020 = vmatprep.subr.mxu0 0.0
    %6021 = vmatpush1.msra.mxu0 0.0
    %6022 = vmatprep.subr.mxu0 0.0
    %6023 = vmatpush1.msra.mxu0 0.0
    %6024 = vmatprep.subr.mxu0 0.0
    %6025 = vmatpush1.msra.mxu0 0.0
    %6026 = vmatprep.subr.mxu0 0.0
    %6027 = vmatpush1.msra.mxu0 0.0
    %6028 = vmatprep.subr.mxu0 0.0
    %6029 = vmatpush1.msra.mxu0 0.0
    %6030 = vmatprep.subr.mxu0 0.0
    %6031 = vmatpush1.msra.mxu0 0.0
    %6032 = vmatprep.subr.mxu0 0.0
    %6033 = vmatpush1.msra.mxu0 0.0
    %6034 = vmatprep.subr.mxu0 0.0
    %6035 = vmatpush1.msra.mxu0 0.0
    %6036 = vmatprep.subr.mxu0 0.0
    %6037 = vmatpush1.msra.mxu0 0.0
    %6038 = vmatprep.subr.mxu0 0.0
    %6039 = vmatpush1.msra.mxu0 0.0
    %6040 = vmatprep.subr.mxu0 0.0
    %6041 = vmatpush1.msra.mxu0 0.0
    %6042 = vmatprep.subr.mxu0 0.0
    %6043 = vmatpush1.msra.mxu0 0.0
    %6044 = vmatprep.subr.mxu0 0.0
    %6045 = vmatpush1.msra.mxu0 0.0
    %6046 = vmatprep.subr.mxu0 0.0
    %6047 = vmatpush1.msra.mxu0 0.0
    %6048 = vmatprep.subr.mxu0 0.0
    %6049 = vmatpush1.msra.mxu0 0.0
    %6050 = vmatprep.subr.mxu0 0.0
    %6051 = vmatpush1.msra.mxu0 0.0
    %6052 = vmatprep.subr.mxu0 0.0
    %6053 = vmatpush1.msra.mxu0 0.0
    %6054 = vmatprep.subr.mxu0 0.0
    %6055 = vmatpush1.msra.mxu0 0.0
    %6056 = vmatprep.subr.mxu0 0.0
    %6057 = vmatpush1.msra.mxu0 0.0
    %6058 = vmatprep.subr.mxu0 0.0
    %6059 = vmatpush1.msra.mxu0 0.0
    %6060 = vmatprep.subr.mxu0 0.0
    %6061 = vmatpush1.msra.mxu0 0.0
    %6062 = vmatprep.subr.mxu0 0.0
    %6063 = vmatpush1.msra.mxu0 0.0
    %6064 = vmatprep.subr.mxu0 0.0
    %6065 = vmatpush1.msra.mxu0 0.0
    %6066 = vmatprep.subr.mxu0 0.0
    %6067 = vmatpush1.msra.mxu0 0.0
    %6068 = vmatprep.subr.mxu0 0.0
    %6069 = vmatpush1.msra.mxu0 0.0
    %6070 = vmatprep.mubr.f32.mxu0 0.0
    %6071 = vmatmul.mubr.f32.gmra.mrb[0].mxu0 %v5990
    %v6072 = vpop.f32.mrb[0].mxu0
    %v6073 = vadd.f32 0.0, %v6072
    %v6074 = vpop.f32.mrb[0].mxu0
    %6075 = vmatprep.mubr.f32.mxu0 0.0
    %6076 = vmatmul.mubr.f32.gmra.mrb[0].mxu0 %v5992
    %v6077 = vpop.f32.mrb[0].mxu0
    %v6078 = vadd.f32 0.0, %v6077
    %v6079 = vpop.f32.mrb[0].mxu0
    %6080 = vmatprep.mubr.f32.mxu0 0.0
    %6081 = vmatmul.mubr.f32.gmra.mrb[0].mxu0 %v5994
    %v6082 = vpop.f32.mrb[0].mxu0
    %v6083 = vadd.f32 0.0, %v6082
    %v6084 = vpop.f32.mrb[0].mxu0
    %6085 = vmatprep.mubr.f32.mxu0 0.0
    %6086 = vmatmul.mubr.f32.gmra.mrb[0].mxu0 %v5996
    %v6087 = vpop.f32.mrb[0].mxu0
    %v6088 = vadd.f32 0.0, %v6087
    %v6089 = vpop.f32.mrb[0].mxu0
    %6090 = vmatprep.mubr.f32.mxu0 0.0
    %6091 = vmatmul.mubr.f32.gmra.mrb[0].mxu0 %v5998
    %v6092 = vpop.f32.mrb[0].mxu0
    %v6093 = vadd.f32 0.0, %v6092
    %v6094 = vpop.f32.mrb[0].mxu0
    %6095 = vmatprep.mubr.f32.mxu0 0.0
    %6096 = vmatmul.mubr.f32.gmra.mrb[0].mxu0 %v6000
    %v6097 = vpop.f32.mrb[0].mxu0
    %v6098 = vadd.f32 0.0, %v6097
    %v6099 = vpop.f32.mrb[0].mxu0
    %6100 = vmatprep.mubr.f32.mxu0 0.0
    %6101 = vmatmul.mubr.f32.gmra.mrb[0].mxu0 %v6002
    %v6102 = vpop.f32.mrb[0].mxu0
    %v6103 = vadd.f32 0.0, %v6102
    %v6104 = vpop.f32.mrb[0].mxu0
    %6105 = vmatprep.mubr.f32.mxu0 0.0
    %6106 = vmatmul.mubr.f32.gmra.mrb[0].mxu0 %v6004
    %v6107 = vpop.f32.mrb[0].mxu0
    %v6108 = vadd.f32 0.0, %v6107
    %v6109 = vpop.f32.mrb[0].mxu0
    %6110 = vdwg.mxu0
    %v6111 = vsel %vm1413, %v6073, -inf
    %6112 = vmax.xlane.f32.xlu0 %v6111
    %v6113 = vpop.xlane.xlu0 %6112
    %v6114 = vsel %vm1413, %v6078, -inf
    %6115 = vmax.xlane.f32.xlu0 %v6114
    %v6116 = vpop.xlane.xlu0 %6115
    %v6117 = vsel %vm1413, %v6083, -inf
    %6118 = vmax.xlane.f32.xlu0 %v6117
    %v6119 = vpop.xlane.xlu0 %6118
    %v6120 = vsel %vm1413, %v6088, -inf
    %6121 = vmax.xlane.f32.xlu0 %v6120
    %v6122 = vpop.xlane.xlu0 %6121
    %v6123 = vsel %vm1413, %v6093, -inf
    %6124 = vmax.xlane.f32.xlu0 %v6123
    %v6125 = vpop.xlane.xlu0 %6124
    %v6126 = vsel %vm1413, %v6098, -inf
    %6127 = vmax.xlane.f32.xlu0 %v6126
    %v6128 = vpop.xlane.xlu0 %6127
    %v6129 = vsel %vm1413, %v6103, -inf
    %6130 = vmax.xlane.f32.xlu0 %v6129
    %v6131 = vpop.xlane.xlu0 %6130
    %v6132 = vsel %vm1413, %v6108, -inf
    %6133 = vmax.xlane.f32.xlu0 %v6132
    %v6134 = vpop.xlane.xlu0 %6133
    %v6135 = vsub.f32 %v6073, %v6113
    %v6136 = vsub.f32 %v6078, %v6116
    %v6137 = vsub.f32 %v6083, %v6119
    %v6138 = vsub.f32 %v6088, %v6122
    %v6139 = vsub.f32 %v6093, %v6125
    %v6140 = vsub.f32 %v6098, %v6128
    %v6141 = vsub.f32 %v6103, %v6131
    %v6142 = vsub.f32 %v6108, %v6134
    %v6143 = vmul.f32 %v6135, 1.442695
    %v6144 = vpow.pop %v6143
    %v6145 = vmul.f32 %v6136, 1.442695
    %v6146 = vpow.pop %v6145
    %v6147 = vmul.f32 %v6137, 1.442695
    %v6148 = vpow.pop %v6147
    %v6149 = vmul.f32 %v6138, 1.442695
    %v6150 = vpow.pop %v6149
    %v6151 = vmul.f32 %v6139, 1.442695
    %v6152 = vpow.pop %v6151
    %v6153 = vmul.f32 %v6140, 1.442695
    %v6154 = vpow.pop %v6153
    %v6155 = vmul.f32 %v6141, 1.442695
    %v6156 = vpow.pop %v6155
    %v6157 = vmul.f32 %v6142, 1.442695
    %v6158 = vpow.pop %v6157
    %v6159 = vsel %vm1413, %v6144, 0.0
    %6160 = vadd.xlane.f32.xlu0 %v6159
    %v6161 = vpop.xlane.xlu0 %6160
    %v6162 = vsel %vm1413, %v6146, 0.0
    %6163 = vadd.xlane.f32.xlu0 %v6162
    %v6164 = vpop.xlane.xlu0 %6163
    %v6165 = vsel %vm1413, %v6148, 0.0
    %6166 = vadd.xlane.f32.xlu0 %v6165
    %v6167 = vpop.xlane.xlu0 %6166
    %v6168 = vsel %vm1413, %v6150, 0.0
    %6169 = vadd.xlane.f32.xlu0 %v6168
    %v6170 = vpop.xlane.xlu0 %6169
    %v6171 = vsel %vm1413, %v6152, 0.0
    %6172 = vadd.xlane.f32.xlu0 %v6171
    %v6173 = vpop.xlane.xlu0 %6172
    %v6174 = vsel %vm1413, %v6154, 0.0
    %6175 = vadd.xlane.f32.xlu0 %v6174
    %v6176 = vpop.xlane.xlu0 %6175
    %v6177 = vsel %vm1413, %v6156, 0.0
    %6178 = vadd.xlane.f32.xlu0 %v6177
    %v6179 = vpop.xlane.xlu0 %6178
    %v6180 = vsel %vm1413, %v6158, 0.0
    %6181 = vadd.xlane.f32.xlu0 %v6180
    %v6182 = vpop.xlane.xlu0 %6181
    %v6183 = vrcp.pop %v6161
    %v6184 = vrcp.pop %v6164
    %v6185 = vrcp.pop %v6167
    %v6186 = vrcp.pop %v6170
    %v6187 = vrcp.pop %v6173
    %v6188 = vrcp.pop %v6176
    %v6189 = vrcp.pop %v6179
    %v6190 = vrcp.pop %v6182
    %v6191 = vmul.f32 %v6161, %v6183
    %v6192 = vmul.f32 %v6164, %v6184
    %v6193 = vmul.f32 %v6167, %v6185
    %v6194 = vmul.f32 %v6170, %v6186
    %v6195 = vmul.f32 %v6173, %v6187
    %v6196 = vmul.f32 %v6176, %v6188
    %v6197 = vmul.f32 %v6179, %v6189
    %v6198 = vmul.f32 %v6182, %v6190
    %v6199 = vsub.f32 2.0, %v6191
    %v6200 = vsub.f32 2.0, %v6192
    %v6201 = vsub.f32 2.0, %v6193
    %v6202 = vsub.f32 2.0, %v6194
    %v6203 = vsub.f32 2.0, %v6195
    %v6204 = vsub.f32 2.0, %v6196
    %v6205 = vsub.f32 2.0, %v6197
    %v6206 = vsub.f32 2.0, %v6198
    %v6207 = vmul.f32 %v6183, %v6199
    %v6208 = vmul.f32 %v6184, %v6200
    %v6209 = vmul.f32 %v6185, %v6201
    %v6210 = vmul.f32 %v6186, %v6202
    %v6211 = vmul.f32 %v6187, %v6203
    %v6212 = vmul.f32 %v6188, %v6204
    %v6213 = vmul.f32 %v6189, %v6205
    %v6214 = vmul.f32 %v6190, %v6206
    %v6215 = vmul.f32 %v6144, %v6207
    %v6216 = vmul.f32 %v6146, %v6208
    %v6217 = vmul.f32 %v6148, %v6209
    %v6218 = vmul.f32 %v6150, %v6210
    %v6219 = vmul.f32 %v6152, %v6211
    %v6220 = vmul.f32 %v6154, %v6212
    %v6221 = vmul.f32 %v6156, %v6213
    %v6222 = vmul.f32 %v6158, %v6214
    %6223 = vrot.lane.b32.xlu0 %v1185, 64
    %v6224 = vpop.permute.xlu0 %6223
    %6225 = vrot.lane.b32.xlu0 %v1190, 64
    %v6226 = vpop.permute.xlu0 %6225
    %6227 = vrot.lane.b32.xlu0 %v1195, 64
    %v6228 = vpop.permute.xlu0 %6227
    %6229 = vrot.lane.b32.xlu0 %v1200, 64
    %v6230 = vpop.permute.xlu0 %6229
    %v6232 = vsel %vm1413, %v6215, 0
    %v6235 = vsel %vm1413, %v6216, 0
    %v6238 = vsel %vm1413, %v6217, 0
    %v6241 = vsel %vm1413, %v6218, 0
    %v6244 = vsel %vm1413, %v6219, 0
    %v6247 = vsel %vm1413, %v6220, 0
    %v6250 = vsel %vm1413, %v6221, 0
    %v6253 = vsel %vm1413, %v6222, 0
    %v6255 = vsel %vm1413, %v6224, 0
    %v6257 = vsel %vm1413, %v6226, 0
    %v6259 = vsel %vm1413, %v6228, 0
    %v6261 = vsel %vm1413, %v6230, 0
    %6263 = vmatprep.subr.mxu0 0.0
    %6264 = vmatpush1.xpose.msra.mxu0 %v6255
    %6265 = vmatprep.subr.mxu0 0.0
    %6266 = vmatpush1.xpose.msra.mxu0 %v6257
    %6267 = vmatprep.subr.mxu0 0.0
    %6268 = vmatpush1.xpose.msra.mxu0 %v6259
    %6269 = vmatprep.subr.mxu0 0.0
    %6270 = vmatpush1.xpose.msra.mxu0 %v6261
    %6271 = vmatprep.subr.mxu0 0.0
    %6272 = vmatpush1.xpose.msra.mxu0 0.0
    %6273 = vmatprep.subr.mxu0 0.0
    %6274 = vmatpush1.xpose.msra.mxu0 0.0
    %6275 = vmatprep.subr.mxu0 0.0
    %6276 = vmatpush1.xpose.msra.mxu0 0.0
    %6277 = vmatprep.subr.mxu0 0.0
    %6278 = vmatpush1.xpose.msra.mxu0 0.0
    %6279 = vmatprep.subr.mxu0 0.0
    %6280 = vmatpush1.xpose.msra.mxu0 0.0
    %6281 = vmatprep.subr.mxu0 0.0
    %6282 = vmatpush1.xpose.msra.mxu0 0.0
    %6283 = vmatprep.subr.mxu0 0.0
    %6284 = vmatpush1.xpose.msra.mxu0 0.0
    %6285 = vmatprep.subr.mxu0 0.0
    %6286 = vmatpush1.xpose.msra.mxu0 0.0
    %6287 = vmatprep.subr.mxu0 0.0
    %6288 = vmatpush1.xpose.msra.mxu0 0.0
    %6289 = vmatprep.subr.mxu0 0.0
    %6290 = vmatpush1.xpose.msra.mxu0 0.0
    %6291 = vmatprep.subr.mxu0 0.0
    %6292 = vmatpush1.xpose.msra.mxu0 0.0
    %6293 = vmatprep.subr.mxu0 0.0
    %6294 = vmatpush1.xpose.msra.mxu0 0.0
    %6295 = vmatprep.subr.mxu0 0.0
    %6296 = vmatpush1.xpose.msra.mxu0 0.0
    %6297 = vmatprep.subr.mxu0 0.0
    %6298 = vmatpush1.xpose.msra.mxu0 0.0
    %6299 = vmatprep.subr.mxu0 0.0
    %6300 = vmatpush1.xpose.msra.mxu0 0.0
    %6301 = vmatprep.subr.mxu0 0.0
    %6302 = vmatpush1.xpose.msra.mxu0 0.0
    %6303 = vmatprep.subr.mxu0 0.0
    %6304 = vmatpush1.xpose.msra.mxu0 0.0
    %6305 = vmatprep.subr.mxu0 0.0
    %6306 = vmatpush1.xpose.msra.mxu0 0.0
    %6307 = vmatprep.subr.mxu0 0.0
    %6308 = vmatpush1.xpose.msra.mxu0 0.0
    %6309 = vmatprep.subr.mxu0 0.0
    %6310 = vmatpush1.xpose.msra.mxu0 0.0
    %6311 = vmatprep.subr.mxu0 0.0
    %6312 = vmatpush1.xpose.msra.mxu0 0.0
    %6313 = vmatprep.subr.mxu0 0.0
    %6314 = vmatpush1.xpose.msra.mxu0 0.0
    %6315 = vmatprep.subr.mxu0 0.0
    %6316 = vmatpush1.xpose.msra.mxu0 0.0
    %6317 = vmatprep.subr.mxu0 0.0
    %6318 = vmatpush1.xpose.msra.mxu0 0.0
    %6319 = vmatprep.subr.mxu0 0.0
    %6320 = vmatpush1.xpose.msra.mxu0 0.0
    %6321 = vmatprep.subr.mxu0 0.0
    %6322 = vmatpush1.xpose.msra.mxu0 0.0
    %6323 = vmatprep.subr.mxu0 0.0
    %6324 = vmatpush1.xpose.msra.mxu0 0.0
    %6325 = vmatprep.subr.mxu0 0.0
    %6326 = vmatpush1.xpose.msra.mxu0 0.0
    %6327 = vmatprep.mubr.f32.mxu0 0.0
    %6328 = vmatmul.mubr.f32.gmra.mrb[0].mxu0 %v6232
    %v6329 = vpop.f32.mrb[0].mxu0
    %v6330 = vadd.f32 0.0, %v6329
    %v6331 = vpop.f32.mrb[0].mxu0
    %6332 = vmatprep.mubr.f32.mxu0 0.0
    %6333 = vmatmul.mubr.f32.gmra.mrb[0].mxu0 %v6235
    %v6334 = vpop.f32.mrb[0].mxu0
    %v6335 = vadd.f32 0.0, %v6334
    %v6336 = vpop.f32.mrb[0].mxu0
    %6337 = vmatprep.mubr.f32.mxu0 0.0
    %6338 = vmatmul.mubr.f32.gmra.mrb[0].mxu0 %v6238
    %v6339 = vpop.f32.mrb[0].mxu0
    %v6340 = vadd.f32 0.0, %v6339
    %v6341 = vpop.f32.mrb[0].mxu0
    %6342 = vmatprep.mubr.f32.mxu0 0.0
    %6343 = vmatmul.mubr.f32.gmra.mrb[0].mxu0 %v6241
    %v6344 = vpop.f32.mrb[0].mxu0
    %v6345 = vadd.f32 0.0, %v6344
    %v6346 = vpop.f32.mrb[0].mxu0
    %6347 = vmatprep.mubr.f32.mxu0 0.0
    %6348 = vmatmul.mubr.f32.gmra.mrb[0].mxu0 %v6244
    %v6349 = vpop.f32.mrb[0].mxu0
    %v6350 = vadd.f32 0.0, %v6349
    %v6351 = vpop.f32.mrb[0].mxu0
    %6352 = vmatprep.mubr.f32.mxu0 0.0
    %6353 = vmatmul.mubr.f32.gmra.mrb[0].mxu0 %v6247
    %v6354 = vpop.f32.mrb[0].mxu0
    %v6355 = vadd.f32 0.0, %v6354
    %v6356 = vpop.f32.mrb[0].mxu0
    %6357 = vmatprep.mubr.f32.mxu0 0.0
    %6358 = vmatmul.mubr.f32.gmra.mrb[0].mxu0 %v6250
    %v6359 = vpop.f32.mrb[0].mxu0
    %v6360 = vadd.f32 0.0, %v6359
    %v6361 = vpop.f32.mrb[0].mxu0
    %6362 = vmatprep.mubr.f32.mxu0 0.0
    %6363 = vmatmul.mubr.f32.gmra.mrb[0].mxu0 %v6253
    %v6364 = vpop.f32.mrb[0].mxu0
    %v6365 = vadd.f32 0.0, %v6364
    %v6366 = vpop.f32.mrb[0].mxu0
    %6367 = vdwg.mxu0
    %6376 = vrot.lane.b32.xlu0 %v6330, 96
    %v6377 = vpop.permute.xlu0 %6376
    %6378 = vrot.lane.b32.xlu0 %v6335, 96
    %v6379 = vpop.permute.xlu0 %6378
    %6380 = vrot.lane.b32.xlu0 %v6340, 96
    %v6381 = vpop.permute.xlu0 %6380
    %6382 = vrot.lane.b32.xlu0 %v6345, 96
    %v6383 = vpop.permute.xlu0 %6382
    %6384 = vrot.lane.b32.xlu0 %v6350, 96
    %v6385 = vpop.permute.xlu0 %6384
    %6386 = vrot.lane.b32.xlu0 %v6355, 96
    %v6387 = vpop.permute.xlu0 %6386
    %6388 = vrot.lane.b32.xlu0 %v6360, 96
    %v6389 = vpop.permute.xlu0 %6388
    %6390 = vrot.lane.b32.xlu0 %v6365, 96
    %v6391 = vpop.permute.xlu0 %6390
    %6400 = vst.msk [vmem:[#allocation2 + $0x80] sm:$0xff] %vm2959, %v6377
    %6401 = vst.msk [vmem:[#allocation2 + $0x90] sm:$0xff] %vm2959, %v6379
    %6402 = vst.msk [vmem:[#allocation2 + $0xa0] sm:$0xff] %vm2959, %v6381
    %6403 = vst.msk [vmem:[#allocation2 + $0xb0] sm:$0xff] %vm2959, %v6383
    %6404 = vst.msk [vmem:[#allocation2 + $0xc0] sm:$0xff] %vm2959, %v6385
    %6405 = vst.msk [vmem:[#allocation2 + $0xd0] sm:$0xff] %vm2959, %v6387
    %6406 = vst.msk [vmem:[#allocation2 + $0xe0] sm:$0xff] %vm2959, %v6389
    %6407 = vst.msk [vmem:[#allocation2 + $0xf0] sm:$0xff] %vm2959, %v6391
    %6412 = vrot.lane.b32.xlu0 %v1045, 64
    %v6413 = vpop.permute.xlu0 %6412
    %6414 = vrot.lane.b32.xlu0 %v1050, 64
    %v6415 = vpop.permute.xlu0 %6414
    %6416 = vrot.lane.b32.xlu0 %v1055, 64
    %v6417 = vpop.permute.xlu0 %6416
    %6418 = vrot.lane.b32.xlu0 %v1060, 64
    %v6419 = vpop.permute.xlu0 %6418
    %v6425 = vsel %vm1283, %v342, 0
    %v6428 = vsel %vm1283, %v348, 0
    %v6431 = vsel %vm1283, %v354, 0
    %v6434 = vsel %vm1283, %v360, 0
    %v6437 = vsel %vm1283, %v366, 0
    %v6440 = vsel %vm1283, %v372, 0
    %v6443 = vsel %vm1283, %v378, 0
    %v6446 = vsel %vm1283, %v384, 0
    %6448 = vmatprep.subr.mxu0 0.0
    %6449 = vmatpush1.msra.mxu0 %v6413
    %6450 = vmatprep.subr.mxu0 0.0
    %6451 = vmatpush1.msra.mxu0 %v6415
    %6452 = vmatprep.subr.mxu0 0.0
    %6453 = vmatpush1.msra.mxu0 %v6417
    %6454 = vmatprep.subr.mxu0 0.0
    %6455 = vmatpush1.msra.mxu0 %v6419
    %6456 = vmatprep.subr.mxu0 0.0
    %6457 = vmatpush1.msra.mxu0 0.0
    %6458 = vmatprep.subr.mxu0 0.0
    %6459 = vmatpush1.msra.mxu0 0.0
    %6460 = vmatprep.subr.mxu0 0.0
    %6461 = vmatpush1.msra.mxu0 0.0
    %6462 = vmatprep.subr.mxu0 0.0
    %6463 = vmatpush1.msra.mxu0 0.0
    %6464 = vmatprep.subr.mxu0 0.0
    %6465 = vmatpush1.msra.mxu0 0.0
    %6466 = vmatprep.subr.mxu0 0.0
    %6467 = vmatpush1.msra.mxu0 0.0
    %6468 = vmatprep.subr.mxu0 0.0
    %6469 = vmatpush1.msra.mxu0 0.0
    %6470 = vmatprep.subr.mxu0 0.0
    %6471 = vmatpush1.msra.mxu0 0.0
    %6472 = vmatprep.subr.mxu0 0.0
    %6473 = vmatpush1.msra.mxu0 0.0
    %6474 = vmatprep.subr.mxu0 0.0
    %6475 = vmatpush1.msra.mxu0 0.0
    %6476 = vmatprep.subr.mxu0 0.0
    %6477 = vmatpush1.msra.mxu0 0.0
    %6478 = vmatprep.subr.mxu0 0.0
    %6479 = vmatpush1.msra.mxu0 0.0
    %6480 = vmatprep.subr.mxu0 0.0
    %6481 = vmatpush1.msra.mxu0 0.0
    %6482 = vmatprep.subr.mxu0 0.0
    %6483 = vmatpush1.msra.mxu0 0.0
    %6484 = vmatprep.subr.mxu0 0.0
    %6485 = vmatpush1.msra.mxu0 0.0
    %6486 = vmatprep.subr.mxu0 0.0
    %6487 = vmatpush1.msra.mxu0 0.0
    %6488 = vmatprep.subr.mxu0 0.0
    %6489 = vmatpush1.msra.mxu0 0.0
    %6490 = vmatprep.subr.mxu0 0.0
    %6491 = vmatpush1.msra.mxu0 0.0
    %6492 = vmatprep.subr.mxu0 0.0
    %6493 = vmatpush1.msra.mxu0 0.0
    %6494 = vmatprep.subr.mxu0 0.0
    %6495 = vmatpush1.msra.mxu0 0.0
    %6496 = vmatprep.subr.mxu0 0.0
    %6497 = vmatpush1.msra.mxu0 0.0
    %6498 = vmatprep.subr.mxu0 0.0
    %6499 = vmatpush1.msra.mxu0 0.0
    %6500 = vmatprep.subr.mxu0 0.0
    %6501 = vmatpush1.msra.mxu0 0.0
    %6502 = vmatprep.subr.mxu0 0.0
    %6503 = vmatpush1.msra.mxu0 0.0
    %6504 = vmatprep.subr.mxu0 0.0
    %6505 = vmatpush1.msra.mxu0 0.0
    %6506 = vmatprep.subr.mxu0 0.0
    %6507 = vmatpush1.msra.mxu0 0.0
    %6508 = vmatprep.subr.mxu0 0.0
    %6509 = vmatpush1.msra.mxu0 0.0
    %6510 = vmatprep.subr.mxu0 0.0
    %6511 = vmatpush1.msra.mxu0 0.0
    %6512 = vmatprep.mubr.f32.mxu0 0.0
    %6513 = vmatmul.mubr.f32.gmra.mrb[0].mxu0 %v6425
    %v6514 = vpop.f32.mrb[0].mxu0
    %v6515 = vadd.f32 0.0, %v6514
    %v6516 = vpop.f32.mrb[0].mxu0
    %6517 = vmatprep.mubr.f32.mxu0 0.0
    %6518 = vmatmul.mubr.f32.gmra.mrb[0].mxu0 %v6428
    %v6519 = vpop.f32.mrb[0].mxu0
    %v6520 = vadd.f32 0.0, %v6519
    %v6521 = vpop.f32.mrb[0].mxu0
    %6522 = vmatprep.mubr.f32.mxu0 0.0
    %6523 = vmatmul.mubr.f32.gmra.mrb[0].mxu0 %v6431
    %v6524 = vpop.f32.mrb[0].mxu0
    %v6525 = vadd.f32 0.0, %v6524
    %v6526 = vpop.f32.mrb[0].mxu0
    %6527 = vmatprep.mubr.f32.mxu0 0.0
    %6528 = vmatmul.mubr.f32.gmra.mrb[0].mxu0 %v6434
    %v6529 = vpop.f32.mrb[0].mxu0
    %v6530 = vadd.f32 0.0, %v6529
    %v6531 = vpop.f32.mrb[0].mxu0
    %6532 = vmatprep.mubr.f32.mxu0 0.0
    %6533 = vmatmul.mubr.f32.gmra.mrb[0].mxu0 %v6437
    %v6534 = vpop.f32.mrb[0].mxu0
    %v6535 = vadd.f32 0.0, %v6534
    %v6536 = vpop.f32.mrb[0].mxu0
    %6537 = vmatprep.mubr.f32.mxu0 0.0
    %6538 = vmatmul.mubr.f32.gmra.mrb[0].mxu0 %v6440
    %v6539 = vpop.f32.mrb[0].mxu0
    %v6540 = vadd.f32 0.0, %v6539
    %v6541 = vpop.f32.mrb[0].mxu0
    %6542 = vmatprep.mubr.f32.mxu0 0.0
    %6543 = vmatmul.mubr.f32.gmra.mrb[0].mxu0 %v6443
    %v6544 = vpop.f32.mrb[0].mxu0
    %v6545 = vadd.f32 0.0, %v6544
    %v6546 = vpop.f32.mrb[0].mxu0
    %6547 = vmatprep.mubr.f32.mxu0 0.0
    %6548 = vmatmul.mubr.f32.gmra.mrb[0].mxu0 %v6446
    %v6549 = vpop.f32.mrb[0].mxu0
    %v6550 = vadd.f32 0.0, %v6549
    %v6551 = vpop.f32.mrb[0].mxu0
    %6552 = vdwg.mxu0
    %v6553 = vsel %vm1413, %v6515, -inf
    %6554 = vmax.xlane.f32.xlu0 %v6553
    %v6555 = vpop.xlane.xlu0 %6554
    %v6556 = vsel %vm1413, %v6520, -inf
    %6557 = vmax.xlane.f32.xlu0 %v6556
    %v6558 = vpop.xlane.xlu0 %6557
    %v6559 = vsel %vm1413, %v6525, -inf
    %6560 = vmax.xlane.f32.xlu0 %v6559
    %v6561 = vpop.xlane.xlu0 %6560
    %v6562 = vsel %vm1413, %v6530, -inf
    %6563 = vmax.xlane.f32.xlu0 %v6562
    %v6564 = vpop.xlane.xlu0 %6563
    %v6565 = vsel %vm1413, %v6535, -inf
    %6566 = vmax.xlane.f32.xlu0 %v6565
    %v6567 = vpop.xlane.xlu0 %6566
    %v6568 = vsel %vm1413, %v6540, -inf
    %6569 = vmax.xlane.f32.xlu0 %v6568
    %v6570 = vpop.xlane.xlu0 %6569
    %v6571 = vsel %vm1413, %v6545, -inf
    %6572 = vmax.xlane.f32.xlu0 %v6571
    %v6573 = vpop.xlane.xlu0 %6572
    %v6574 = vsel %vm1413, %v6550, -inf
    %6575 = vmax.xlane.f32.xlu0 %v6574
    %v6576 = vpop.xlane.xlu0 %6575
    %v6577 = vsub.f32 %v6515, %v6555
    %v6578 = vsub.f32 %v6520, %v6558
    %v6579 = vsub.f32 %v6525, %v6561
    %v6580 = vsub.f32 %v6530, %v6564
    %v6581 = vsub.f32 %v6535, %v6567
    %v6582 = vsub.f32 %v6540, %v6570
    %v6583 = vsub.f32 %v6545, %v6573
    %v6584 = vsub.f32 %v6550, %v6576
    %v6585 = vmul.f32 %v6577, 1.442695
    %v6586 = vpow.pop %v6585
    %v6587 = vmul.f32 %v6578, 1.442695
    %v6588 = vpow.pop %v6587
    %v6589 = vmul.f32 %v6579, 1.442695
    %v6590 = vpow.pop %v6589
    %v6591 = vmul.f32 %v6580, 1.442695
    %v6592 = vpow.pop %v6591
    %v6593 = vmul.f32 %v6581, 1.442695
    %v6594 = vpow.pop %v6593
    %v6595 = vmul.f32 %v6582, 1.442695
    %v6596 = vpow.pop %v6595
    %v6597 = vmul.f32 %v6583, 1.442695
    %v6598 = vpow.pop %v6597
    %v6599 = vmul.f32 %v6584, 1.442695
    %v6600 = vpow.pop %v6599
    %v6601 = vsel %vm1413, %v6586, 0.0
    %6602 = vadd.xlane.f32.xlu0 %v6601
    %v6603 = vpop.xlane.xlu0 %6602
    %v6604 = vsel %vm1413, %v6588, 0.0
    %6605 = vadd.xlane.f32.xlu0 %v6604
    %v6606 = vpop.xlane.xlu0 %6605
    %v6607 = vsel %vm1413, %v6590, 0.0
    %6608 = vadd.xlane.f32.xlu0 %v6607
    %v6609 = vpop.xlane.xlu0 %6608
    %v6610 = vsel %vm1413, %v6592, 0.0
    %6611 = vadd.xlane.f32.xlu0 %v6610
    %v6612 = vpop.xlane.xlu0 %6611
    %v6613 = vsel %vm1413, %v6594, 0.0
    %6614 = vadd.xlane.f32.xlu0 %v6613
    %v6615 = vpop.xlane.xlu0 %6614
    %v6616 = vsel %vm1413, %v6596, 0.0
    %6617 = vadd.xlane.f32.xlu0 %v6616
    %v6618 = vpop.xlane.xlu0 %6617
    %v6619 = vsel %vm1413, %v6598, 0.0
    %6620 = vadd.xlane.f32.xlu0 %v6619
    %v6621 = vpop.xlane.xlu0 %6620
    %v6622 = vsel %vm1413, %v6600, 0.0
    %6623 = vadd.xlane.f32.xlu0 %v6622
    %v6624 = vpop.xlane.xlu0 %6623
    %v6625 = vrcp.pop %v6603
    %v6626 = vrcp.pop %v6606
    %v6627 = vrcp.pop %v6609
    %v6628 = vrcp.pop %v6612
    %v6629 = vrcp.pop %v6615
    %v6630 = vrcp.pop %v6618
    %v6631 = vrcp.pop %v6621
    %v6632 = vrcp.pop %v6624
    %v6633 = vmul.f32 %v6603, %v6625
    %v6634 = vmul.f32 %v6606, %v6626
    %v6635 = vmul.f32 %v6609, %v6627
    %v6636 = vmul.f32 %v6612, %v6628
    %v6637 = vmul.f32 %v6615, %v6629
    %v6638 = vmul.f32 %v6618, %v6630
    %v6639 = vmul.f32 %v6621, %v6631
    %v6640 = vmul.f32 %v6624, %v6632
    %v6641 = vsub.f32 2.0, %v6633
    %v6642 = vsub.f32 2.0, %v6634
    %v6643 = vsub.f32 2.0, %v6635
    %v6644 = vsub.f32 2.0, %v6636
    %v6645 = vsub.f32 2.0, %v6637
    %v6646 = vsub.f32 2.0, %v6638
    %v6647 = vsub.f32 2.0, %v6639
    %v6648 = vsub.f32 2.0, %v6640
    %v6649 = vmul.f32 %v6625, %v6641
    %v6650 = vmul.f32 %v6626, %v6642
    %v6651 = vmul.f32 %v6627, %v6643
    %v6652 = vmul.f32 %v6628, %v6644
    %v6653 = vmul.f32 %v6629, %v6645
    %v6654 = vmul.f32 %v6630, %v6646
    %v6655 = vmul.f32 %v6631, %v6647
    %v6656 = vmul.f32 %v6632, %v6648
    %v6657 = vmul.f32 %v6586, %v6649
    %v6658 = vmul.f32 %v6588, %v6650
    %v6659 = vmul.f32 %v6590, %v6651
    %v6660 = vmul.f32 %v6592, %v6652
    %v6661 = vmul.f32 %v6594, %v6653
    %v6662 = vmul.f32 %v6596, %v6654
    %v6663 = vmul.f32 %v6598, %v6655
    %v6664 = vmul.f32 %v6600, %v6656
    %6665 = vrot.lane.b32.xlu0 %v1205, 64
    %v6666 = vpop.permute.xlu0 %6665
    %6667 = vrot.lane.b32.xlu0 %v1210, 64
    %v6668 = vpop.permute.xlu0 %6667
    %6669 = vrot.lane.b32.xlu0 %v1215, 64
    %v6670 = vpop.permute.xlu0 %6669
    %6671 = vrot.lane.b32.xlu0 %v1220, 64
    %v6672 = vpop.permute.xlu0 %6671
    %v6674 = vsel %vm1413, %v6657, 0
    %v6677 = vsel %vm1413, %v6658, 0
    %v6680 = vsel %vm1413, %v6659, 0
    %v6683 = vsel %vm1413, %v6660, 0
    %v6686 = vsel %vm1413, %v6661, 0
    %v6689 = vsel %vm1413, %v6662, 0
    %v6692 = vsel %vm1413, %v6663, 0
    %v6695 = vsel %vm1413, %v6664, 0
    %v6697 = vsel %vm1413, %v6666, 0
    %v6699 = vsel %vm1413, %v6668, 0
    %v6701 = vsel %vm1413, %v6670, 0
    %v6703 = vsel %vm1413, %v6672, 0
    %6705 = vmatprep.subr.mxu0 0.0
    %6706 = vmatpush1.xpose.msra.mxu0 %v6697
    %6707 = vmatprep.subr.mxu0 0.0
    %6708 = vmatpush1.xpose.msra.mxu0 %v6699
    %6709 = vmatprep.subr.mxu0 0.0
    %6710 = vmatpush1.xpose.msra.mxu0 %v6701
    %6711 = vmatprep.subr.mxu0 0.0
    %6712 = vmatpush1.xpose.msra.mxu0 %v6703
    %6713 = vmatprep.subr.mxu0 0.0
    %6714 = vmatpush1.xpose.msra.mxu0 0.0
    %6715 = vmatprep.subr.mxu0 0.0
    %6716 = vmatpush1.xpose.msra.mxu0 0.0
    %6717 = vmatprep.subr.mxu0 0.0
    %6718 = vmatpush1.xpose.msra.mxu0 0.0
    %6719 = vmatprep.subr.mxu0 0.0
    %6720 = vmatpush1.xpose.msra.mxu0 0.0
    %6721 = vmatprep.subr.mxu0 0.0
    %6722 = vmatpush1.xpose.msra.mxu0 0.0
    %6723 = vmatprep.subr.mxu0 0.0
    %6724 = vmatpush1.xpose.msra.mxu0 0.0
    %6725 = vmatprep.subr.mxu0 0.0
    %6726 = vmatpush1.xpose.msra.mxu0 0.0
    %6727 = vmatprep.subr.mxu0 0.0
    %6728 = vmatpush1.xpose.msra.mxu0 0.0
    %6729 = vmatprep.subr.mxu0 0.0
    %6730 = vmatpush1.xpose.msra.mxu0 0.0
    %6731 = vmatprep.subr.mxu0 0.0
    %6732 = vmatpush1.xpose.msra.mxu0 0.0
    %6733 = vmatprep.subr.mxu0 0.0
    %6734 = vmatpush1.xpose.msra.mxu0 0.0
    %6735 = vmatprep.subr.mxu0 0.0
    %6736 = vmatpush1.xpose.msra.mxu0 0.0
    %6737 = vmatprep.subr.mxu0 0.0
    %6738 = vmatpush1.xpose.msra.mxu0 0.0
    %6739 = vmatprep.subr.mxu0 0.0
    %6740 = vmatpush1.xpose.msra.mxu0 0.0
    %6741 = vmatprep.subr.mxu0 0.0
    %6742 = vmatpush1.xpose.msra.mxu0 0.0
    %6743 = vmatprep.subr.mxu0 0.0
    %6744 = vmatpush1.xpose.msra.mxu0 0.0
    %6745 = vmatprep.subr.mxu0 0.0
    %6746 = vmatpush1.xpose.msra.mxu0 0.0
    %6747 = vmatprep.subr.mxu0 0.0
    %6748 = vmatpush1.xpose.msra.mxu0 0.0
    %6749 = vmatprep.subr.mxu0 0.0
    %6750 = vmatpush1.xpose.msra.mxu0 0.0
    %6751 = vmatprep.subr.mxu0 0.0
    %6752 = vmatpush1.xpose.msra.mxu0 0.0
    %6753 = vmatprep.subr.mxu0 0.0
    %6754 = vmatpush1.xpose.msra.mxu0 0.0
    %6755 = vmatprep.subr.mxu0 0.0
    %6756 = vmatpush1.xpose.msra.mxu0 0.0
    %6757 = vmatprep.subr.mxu0 0.0
    %6758 = vmatpush1.xpose.msra.mxu0 0.0
    %6759 = vmatprep.subr.mxu0 0.0
    %6760 = vmatpush1.xpose.msra.mxu0 0.0
    %6761 = vmatprep.subr.mxu0 0.0
    %6762 = vmatpush1.xpose.msra.mxu0 0.0
    %6763 = vmatprep.subr.mxu0 0.0
    %6764 = vmatpush1.xpose.msra.mxu0 0.0
    %6765 = vmatprep.subr.mxu0 0.0
    %6766 = vmatpush1.xpose.msra.mxu0 0.0
    %6767 = vmatprep.subr.mxu0 0.0
    %6768 = vmatpush1.xpose.msra.mxu0 0.0
    %6769 = vmatprep.mubr.f32.mxu0 0.0
    %6770 = vmatmul.mubr.f32.gmra.mrb[0].mxu0 %v6674
    %v6771 = vpop.f32.mrb[0].mxu0
    %v6772 = vadd.f32 0.0, %v6771
    %v6773 = vpop.f32.mrb[0].mxu0
    %6774 = vmatprep.mubr.f32.mxu0 0.0
    %6775 = vmatmul.mubr.f32.gmra.mrb[0].mxu0 %v6677
    %v6776 = vpop.f32.mrb[0].mxu0
    %v6777 = vadd.f32 0.0, %v6776
    %v6778 = vpop.f32.mrb[0].mxu0
    %6779 = vmatprep.mubr.f32.mxu0 0.0
    %6780 = vmatmul.mubr.f32.gmra.mrb[0].mxu0 %v6680
    %v6781 = vpop.f32.mrb[0].mxu0
    %v6782 = vadd.f32 0.0, %v6781
    %v6783 = vpop.f32.mrb[0].mxu0
    %6784 = vmatprep.mubr.f32.mxu0 0.0
    %6785 = vmatmul.mubr.f32.gmra.mrb[0].mxu0 %v6683
    %v6786 = vpop.f32.mrb[0].mxu0
    %v6787 = vadd.f32 0.0, %v6786
    %v6788 = vpop.f32.mrb[0].mxu0
    %6789 = vmatprep.mubr.f32.mxu0 0.0
    %6790 = vmatmul.mubr.f32.gmra.mrb[0].mxu0 %v6686
    %v6791 = vpop.f32.mrb[0].mxu0
    %v6792 = vadd.f32 0.0, %v6791
    %v6793 = vpop.f32.mrb[0].mxu0
    %6794 = vmatprep.mubr.f32.mxu0 0.0
    %6795 = vmatmul.mubr.f32.gmra.mrb[0].mxu0 %v6689
    %v6796 = vpop.f32.mrb[0].mxu0
    %v6797 = vadd.f32 0.0, %v6796
    %v6798 = vpop.f32.mrb[0].mxu0
    %6799 = vmatprep.mubr.f32.mxu0 0.0
    %6800 = vmatmul.mubr.f32.gmra.mrb[0].mxu0 %v6692
    %v6801 = vpop.f32.mrb[0].mxu0
    %v6802 = vadd.f32 0.0, %v6801
    %v6803 = vpop.f32.mrb[0].mxu0
    %6804 = vmatprep.mubr.f32.mxu0 0.0
    %6805 = vmatmul.mubr.f32.gmra.mrb[0].mxu0 %v6695
    %v6806 = vpop.f32.mrb[0].mxu0
    %v6807 = vadd.f32 0.0, %v6806
    %v6808 = vpop.f32.mrb[0].mxu0
    %6809 = vdwg.mxu0
    %6810 = vst.msk [vmem:[#allocation2 + $0x88] sm:$0xff] %vm1283, %v6772
    %6811 = vst.msk [vmem:[#allocation2 + $0x98] sm:$0xff] %vm1283, %v6777
    %6812 = vst.msk [vmem:[#allocation2 + $0xa8] sm:$0xff] %vm1283, %v6782
    %6813 = vst.msk [vmem:[#allocation2 + $0xb8] sm:$0xff] %vm1283, %v6787
    %6814 = vst.msk [vmem:[#allocation2 + $0xc8] sm:$0xff] %vm1283, %v6792
    %6815 = vst.msk [vmem:[#allocation2 + $0xd8] sm:$0xff] %vm1283, %v6797
    %6816 = vst.msk [vmem:[#allocation2 + $0xe8] sm:$0xff] %vm1283, %v6802
    %6817 = vst.msk [vmem:[#allocation2 + $0xf8] sm:$0xff] %vm1283, %v6807
    %6818 = vrot.lane.b32.xlu0 %v342, 96
    %v6819 = vpop.permute.xlu0 %6818
    %6820 = vrot.lane.b32.xlu0 %v348, 96
    %v6821 = vpop.permute.xlu0 %6820
    %6822 = vrot.lane.b32.xlu0 %v354, 96
    %v6823 = vpop.permute.xlu0 %6822
    %6824 = vrot.lane.b32.xlu0 %v360, 96
    %v6825 = vpop.permute.xlu0 %6824
    %6826 = vrot.lane.b32.xlu0 %v366, 96
    %v6827 = vpop.permute.xlu0 %6826
    %6828 = vrot.lane.b32.xlu0 %v372, 96
    %v6829 = vpop.permute.xlu0 %6828
    %6830 = vrot.lane.b32.xlu0 %v378, 96
    %v6831 = vpop.permute.xlu0 %6830
    %6832 = vrot.lane.b32.xlu0 %v384, 96
    %v6833 = vpop.permute.xlu0 %6832
    %6838 = vrot.lane.b32.xlu0 %v1065, 64
    %v6839 = vpop.permute.xlu0 %6838
    %6840 = vrot.lane.b32.xlu0 %v1070, 64
    %v6841 = vpop.permute.xlu0 %6840
    %6842 = vrot.lane.b32.xlu0 %v1075, 64
    %v6843 = vpop.permute.xlu0 %6842
    %6844 = vrot.lane.b32.xlu0 %v1080, 64
    %v6845 = vpop.permute.xlu0 %6844
    %v6850 = vsel %vm1283, %v6819, 0
    %v6852 = vsel %vm1283, %v6821, 0
    %v6854 = vsel %vm1283, %v6823, 0
    %v6856 = vsel %vm1283, %v6825, 0
    %v6858 = vsel %vm1283, %v6827, 0
    %v6860 = vsel %vm1283, %v6829, 0
    %v6862 = vsel %vm1283, %v6831, 0
    %v6864 = vsel %vm1283, %v6833, 0
    %6866 = vmatprep.subr.mxu0 0.0
    %6867 = vmatpush1.msra.mxu0 %v6839
    %6868 = vmatprep.subr.mxu0 0.0
    %6869 = vmatpush1.msra.mxu0 %v6841
    %6870 = vmatprep.subr.mxu0 0.0
    %6871 = vmatpush1.msra.mxu0 %v6843
    %6872 = vmatprep.subr.mxu0 0.0
    %6873 = vmatpush1.msra.mxu0 %v6845
    %6874 = vmatprep.subr.mxu0 0.0
    %6875 = vmatpush1.msra.mxu0 0.0
    %6876 = vmatprep.subr.mxu0 0.0
    %6877 = vmatpush1.msra.mxu0 0.0
    %6878 = vmatprep.subr.mxu0 0.0
    %6879 = vmatpush1.msra.mxu0 0.0
    %6880 = vmatprep.subr.mxu0 0.0
    %6881 = vmatpush1.msra.mxu0 0.0
    %6882 = vmatprep.subr.mxu0 0.0
    %6883 = vmatpush1.msra.mxu0 0.0
    %6884 = vmatprep.subr.mxu0 0.0
    %6885 = vmatpush1.msra.mxu0 0.0
    %6886 = vmatprep.subr.mxu0 0.0
    %6887 = vmatpush1.msra.mxu0 0.0
    %6888 = vmatprep.subr.mxu0 0.0
    %6889 = vmatpush1.msra.mxu0 0.0
    %6890 = vmatprep.subr.mxu0 0.0
    %6891 = vmatpush1.msra.mxu0 0.0
    %6892 = vmatprep.subr.mxu0 0.0
    %6893 = vmatpush1.msra.mxu0 0.0
    %6894 = vmatprep.subr.mxu0 0.0
    %6895 = vmatpush1.msra.mxu0 0.0
    %6896 = vmatprep.subr.mxu0 0.0
    %6897 = vmatpush1.msra.mxu0 0.0
    %6898 = vmatprep.subr.mxu0 0.0
    %6899 = vmatpush1.msra.mxu0 0.0
    %6900 = vmatprep.subr.mxu0 0.0
    %6901 = vmatpush1.msra.mxu0 0.0
    %6902 = vmatprep.subr.mxu0 0.0
    %6903 = vmatpush1.msra.mxu0 0.0
    %6904 = vmatprep.subr.mxu0 0.0
    %6905 = vmatpush1.msra.mxu0 0.0
    %6906 = vmatprep.subr.mxu0 0.0
    %6907 = vmatpush1.msra.mxu0 0.0
    %6908 = vmatprep.subr.mxu0 0.0
    %6909 = vmatpush1.msra.mxu0 0.0
    %6910 = vmatprep.subr.mxu0 0.0
    %6911 = vmatpush1.msra.mxu0 0.0
    %6912 = vmatprep.subr.mxu0 0.0
    %6913 = vmatpush1.msra.mxu0 0.0
    %6914 = vmatprep.subr.mxu0 0.0
    %6915 = vmatpush1.msra.mxu0 0.0
    %6916 = vmatprep.subr.mxu0 0.0
    %6917 = vmatpush1.msra.mxu0 0.0
    %6918 = vmatprep.subr.mxu0 0.0
    %6919 = vmatpush1.msra.mxu0 0.0
    %6920 = vmatprep.subr.mxu0 0.0
    %6921 = vmatpush1.msra.mxu0 0.0
    %6922 = vmatprep.subr.mxu0 0.0
    %6923 = vmatpush1.msra.mxu0 0.0
    %6924 = vmatprep.subr.mxu0 0.0
    %6925 = vmatpush1.msra.mxu0 0.0
    %6926 = vmatprep.subr.mxu0 0.0
    %6927 = vmatpush1.msra.mxu0 0.0
    %6928 = vmatprep.subr.mxu0 0.0
    %6929 = vmatpush1.msra.mxu0 0.0
    %6930 = vmatprep.mubr.f32.mxu0 0.0
    %6931 = vmatmul.mubr.f32.gmra.mrb[0].mxu0 %v6850
    %v6932 = vpop.f32.mrb[0].mxu0
    %v6933 = vadd.f32 0.0, %v6932
    %v6934 = vpop.f32.mrb[0].mxu0
    %6935 = vmatprep.mubr.f32.mxu0 0.0
    %6936 = vmatmul.mubr.f32.gmra.mrb[0].mxu0 %v6852
    %v6937 = vpop.f32.mrb[0].mxu0
    %v6938 = vadd.f32 0.0, %v6937
    %v6939 = vpop.f32.mrb[0].mxu0
    %6940 = vmatprep.mubr.f32.mxu0 0.0
    %6941 = vmatmul.mubr.f32.gmra.mrb[0].mxu0 %v6854
    %v6942 = vpop.f32.mrb[0].mxu0
    %v6943 = vadd.f32 0.0, %v6942
    %v6944 = vpop.f32.mrb[0].mxu0
    %6945 = vmatprep.mubr.f32.mxu0 0.0
    %6946 = vmatmul.mubr.f32.gmra.mrb[0].mxu0 %v6856
    %v6947 = vpop.f32.mrb[0].mxu0
    %v6948 = vadd.f32 0.0, %v6947
    %v6949 = vpop.f32.mrb[0].mxu0
    %6950 = vmatprep.mubr.f32.mxu0 0.0
    %6951 = vmatmul.mubr.f32.gmra.mrb[0].mxu0 %v6858
    %v6952 = vpop.f32.mrb[0].mxu0
    %v6953 = vadd.f32 0.0, %v6952
    %v6954 = vpop.f32.mrb[0].mxu0
    %6955 = vmatprep.mubr.f32.mxu0 0.0
    %6956 = vmatmul.mubr.f32.gmra.mrb[0].mxu0 %v6860
    %v6957 = vpop.f32.mrb[0].mxu0
    %v6958 = vadd.f32 0.0, %v6957
    %v6959 = vpop.f32.mrb[0].mxu0
    %6960 = vmatprep.mubr.f32.mxu0 0.0
    %6961 = vmatmul.mubr.f32.gmra.mrb[0].mxu0 %v6862
    %v6962 = vpop.f32.mrb[0].mxu0
    %v6963 = vadd.f32 0.0, %v6962
    %v6964 = vpop.f32.mrb[0].mxu0
    %6965 = vmatprep.mubr.f32.mxu0 0.0
    %6966 = vmatmul.mubr.f32.gmra.mrb[0].mxu0 %v6864
    %v6967 = vpop.f32.mrb[0].mxu0
    %v6968 = vadd.f32 0.0, %v6967
    %v6969 = vpop.f32.mrb[0].mxu0
    %6970 = vdwg.mxu0
    %v6971 = vsel %vm1413, %v6933, -inf
    %6972 = vmax.xlane.f32.xlu0 %v6971
    %v6973 = vpop.xlane.xlu0 %6972
    %v6974 = vsel %vm1413, %v6938, -inf
    %6975 = vmax.xlane.f32.xlu0 %v6974
    %v6976 = vpop.xlane.xlu0 %6975
    %v6977 = vsel %vm1413, %v6943, -inf
    %6978 = vmax.xlane.f32.xlu0 %v6977
    %v6979 = vpop.xlane.xlu0 %6978
    %v6980 = vsel %vm1413, %v6948, -inf
    %6981 = vmax.xlane.f32.xlu0 %v6980
    %v6982 = vpop.xlane.xlu0 %6981
    %v6983 = vsel %vm1413, %v6953, -inf
    %6984 = vmax.xlane.f32.xlu0 %v6983
    %v6985 = vpop.xlane.xlu0 %6984
    %v6986 = vsel %vm1413, %v6958, -inf
    %6987 = vmax.xlane.f32.xlu0 %v6986
    %v6988 = vpop.xlane.xlu0 %6987
    %v6989 = vsel %vm1413, %v6963, -inf
    %6990 = vmax.xlane.f32.xlu0 %v6989
    %v6991 = vpop.xlane.xlu0 %6990
    %v6992 = vsel %vm1413, %v6968, -inf
    %6993 = vmax.xlane.f32.xlu0 %v6992
    %v6994 = vpop.xlane.xlu0 %6993
    %v6995 = vsub.f32 %v6933, %v6973
    %v6996 = vsub.f32 %v6938, %v6976
    %v6997 = vsub.f32 %v6943, %v6979
    %v6998 = vsub.f32 %v6948, %v6982
    %v6999 = vsub.f32 %v6953, %v6985
    %v7000 = vsub.f32 %v6958, %v6988
    %v7001 = vsub.f32 %v6963, %v6991
    %v7002 = vsub.f32 %v6968, %v6994
    %v7003 = vmul.f32 %v6995, 1.442695
    %v7004 = vpow.pop %v7003
    %v7005 = vmul.f32 %v6996, 1.442695
    %v7006 = vpow.pop %v7005
    %v7007 = vmul.f32 %v6997, 1.442695
    %v7008 = vpow.pop %v7007
    %v7009 = vmul.f32 %v6998, 1.442695
    %v7010 = vpow.pop %v7009
    %v7011 = vmul.f32 %v6999, 1.442695
    %v7012 = vpow.pop %v7011
    %v7013 = vmul.f32 %v7000, 1.442695
    %v7014 = vpow.pop %v7013
    %v7015 = vmul.f32 %v7001, 1.442695
    %v7016 = vpow.pop %v7015
    %v7017 = vmul.f32 %v7002, 1.442695
    %v7018 = vpow.pop %v7017
    %v7019 = vsel %vm1413, %v7004, 0.0
    %7020 = vadd.xlane.f32.xlu0 %v7019
    %v7021 = vpop.xlane.xlu0 %7020
    %v7022 = vsel %vm1413, %v7006, 0.0
    %7023 = vadd.xlane.f32.xlu0 %v7022
    %v7024 = vpop.xlane.xlu0 %7023
    %v7025 = vsel %vm1413, %v7008, 0.0
    %7026 = vadd.xlane.f32.xlu0 %v7025
    %v7027 = vpop.xlane.xlu0 %7026
    %v7028 = vsel %vm1413, %v7010, 0.0
    %7029 = vadd.xlane.f32.xlu0 %v7028
    %v7030 = vpop.xlane.xlu0 %7029
    %v7031 = vsel %vm1413, %v7012, 0.0
    %7032 = vadd.xlane.f32.xlu0 %v7031
    %v7033 = vpop.xlane.xlu0 %7032
    %v7034 = vsel %vm1413, %v7014, 0.0
    %7035 = vadd.xlane.f32.xlu0 %v7034
    %v7036 = vpop.xlane.xlu0 %7035
    %v7037 = vsel %vm1413, %v7016, 0.0
    %7038 = vadd.xlane.f32.xlu0 %v7037
    %v7039 = vpop.xlane.xlu0 %7038
    %v7040 = vsel %vm1413, %v7018, 0.0
    %7041 = vadd.xlane.f32.xlu0 %v7040
    %v7042 = vpop.xlane.xlu0 %7041
    %v7043 = vrcp.pop %v7021
    %v7044 = vrcp.pop %v7024
    %v7045 = vrcp.pop %v7027
    %v7046 = vrcp.pop %v7030
    %v7047 = vrcp.pop %v7033
    %v7048 = vrcp.pop %v7036
    %v7049 = vrcp.pop %v7039
    %v7050 = vrcp.pop %v7042
    %v7051 = vmul.f32 %v7021, %v7043
    %v7052 = vmul.f32 %v7024, %v7044
    %v7053 = vmul.f32 %v7027, %v7045
    %v7054 = vmul.f32 %v7030, %v7046
    %v7055 = vmul.f32 %v7033, %v7047
    %v7056 = vmul.f32 %v7036, %v7048
    %v7057 = vmul.f32 %v7039, %v7049
    %v7058 = vmul.f32 %v7042, %v7050
    %v7059 = vsub.f32 2.0, %v7051
    %v7060 = vsub.f32 2.0, %v7052
    %v7061 = vsub.f32 2.0, %v7053
    %v7062 = vsub.f32 2.0, %v7054
    %v7063 = vsub.f32 2.0, %v7055
    %v7064 = vsub.f32 2.0, %v7056
    %v7065 = vsub.f32 2.0, %v7057
    %v7066 = vsub.f32 2.0, %v7058
    %v7067 = vmul.f32 %v7043, %v7059
    %v7068 = vmul.f32 %v7044, %v7060
    %v7069 = vmul.f32 %v7045, %v7061
    %v7070 = vmul.f32 %v7046, %v7062
    %v7071 = vmul.f32 %v7047, %v7063
    %v7072 = vmul.f32 %v7048, %v7064
    %v7073 = vmul.f32 %v7049, %v7065
    %v7074 = vmul.f32 %v7050, %v7066
    %v7075 = vmul.f32 %v7004, %v7067
    %v7076 = vmul.f32 %v7006, %v7068
    %v7077 = vmul.f32 %v7008, %v7069
    %v7078 = vmul.f32 %v7010, %v7070
    %v7079 = vmul.f32 %v7012, %v7071
    %v7080 = vmul.f32 %v7014, %v7072
    %v7081 = vmul.f32 %v7016, %v7073
    %v7082 = vmul.f32 %v7018, %v7074
    %7083 = vrot.lane.b32.xlu0 %v1225, 64
    %v7084 = vpop.permute.xlu0 %7083
    %7085 = vrot.lane.b32.xlu0 %v1230, 64
    %v7086 = vpop.permute.xlu0 %7085
    %7087 = vrot.lane.b32.xlu0 %v1235, 64
    %v7088 = vpop.permute.xlu0 %7087
    %7089 = vrot.lane.b32.xlu0 %v1240, 64
    %v7090 = vpop.permute.xlu0 %7089
    %v7092 = vsel %vm1413, %v7075, 0
    %v7095 = vsel %vm1413, %v7076, 0
    %v7098 = vsel %vm1413, %v7077, 0
    %v7101 = vsel %vm1413, %v7078, 0
    %v7104 = vsel %vm1413, %v7079, 0
    %v7107 = vsel %vm1413, %v7080, 0
    %v7110 = vsel %vm1413, %v7081, 0
    %v7113 = vsel %vm1413, %v7082, 0
    %v7115 = vsel %vm1413, %v7084, 0
    %v7117 = vsel %vm1413, %v7086, 0
    %v7119 = vsel %vm1413, %v7088, 0
    %v7121 = vsel %vm1413, %v7090, 0
    %7123 = vmatprep.subr.mxu0 0.0
    %7124 = vmatpush1.xpose.msra.mxu0 %v7115
    %7125 = vmatprep.subr.mxu0 0.0
    %7126 = vmatpush1.xpose.msra.mxu0 %v7117
    %7127 = vmatprep.subr.mxu0 0.0
    %7128 = vmatpush1.xpose.msra.mxu0 %v7119
    %7129 = vmatprep.subr.mxu0 0.0
    %7130 = vmatpush1.xpose.msra.mxu0 %v7121
    %7131 = vmatprep.subr.mxu0 0.0
    %7132 = vmatpush1.xpose.msra.mxu0 0.0
    %7133 = vmatprep.subr.mxu0 0.0
    %7134 = vmatpush1.xpose.msra.mxu0 0.0
    %7135 = vmatprep.subr.mxu0 0.0
    %7136 = vmatpush1.xpose.msra.mxu0 0.0
    %7137 = vmatprep.subr.mxu0 0.0
    %7138 = vmatpush1.xpose.msra.mxu0 0.0
    %7139 = vmatprep.subr.mxu0 0.0
    %7140 = vmatpush1.xpose.msra.mxu0 0.0
    %7141 = vmatprep.subr.mxu0 0.0
    %7142 = vmatpush1.xpose.msra.mxu0 0.0
    %7143 = vmatprep.subr.mxu0 0.0
    %7144 = vmatpush1.xpose.msra.mxu0 0.0
    %7145 = vmatprep.subr.mxu0 0.0
    %7146 = vmatpush1.xpose.msra.mxu0 0.0
    %7147 = vmatprep.subr.mxu0 0.0
    %7148 = vmatpush1.xpose.msra.mxu0 0.0
    %7149 = vmatprep.subr.mxu0 0.0
    %7150 = vmatpush1.xpose.msra.mxu0 0.0
    %7151 = vmatprep.subr.mxu0 0.0
    %7152 = vmatpush1.xpose.msra.mxu0 0.0
    %7153 = vmatprep.subr.mxu0 0.0
    %7154 = vmatpush1.xpose.msra.mxu0 0.0
    %7155 = vmatprep.subr.mxu0 0.0
    %7156 = vmatpush1.xpose.msra.mxu0 0.0
    %7157 = vmatprep.subr.mxu0 0.0
    %7158 = vmatpush1.xpose.msra.mxu0 0.0
    %7159 = vmatprep.subr.mxu0 0.0
    %7160 = vmatpush1.xpose.msra.mxu0 0.0
    %7161 = vmatprep.subr.mxu0 0.0
    %7162 = vmatpush1.xpose.msra.mxu0 0.0
    %7163 = vmatprep.subr.mxu0 0.0
    %7164 = vmatpush1.xpose.msra.mxu0 0.0
    %7165 = vmatprep.subr.mxu0 0.0
    %7166 = vmatpush1.xpose.msra.mxu0 0.0
    %7167 = vmatprep.subr.mxu0 0.0
    %7168 = vmatpush1.xpose.msra.mxu0 0.0
    %7169 = vmatprep.subr.mxu0 0.0
    %7170 = vmatpush1.xpose.msra.mxu0 0.0
    %7171 = vmatprep.subr.mxu0 0.0
    %7172 = vmatpush1.xpose.msra.mxu0 0.0
    %7173 = vmatprep.subr.mxu0 0.0
    %7174 = vmatpush1.xpose.msra.mxu0 0.0
    %7175 = vmatprep.subr.mxu0 0.0
    %7176 = vmatpush1.xpose.msra.mxu0 0.0
    %7177 = vmatprep.subr.mxu0 0.0
    %7178 = vmatpush1.xpose.msra.mxu0 0.0
    %7179 = vmatprep.subr.mxu0 0.0
    %7180 = vmatpush1.xpose.msra.mxu0 0.0
    %7181 = vmatprep.subr.mxu0 0.0
    %7182 = vmatpush1.xpose.msra.mxu0 0.0
    %7183 = vmatprep.subr.mxu0 0.0
    %7184 = vmatpush1.xpose.msra.mxu0 0.0
    %7185 = vmatprep.subr.mxu0 0.0
    %7186 = vmatpush1.xpose.msra.mxu0 0.0
    %7187 = vmatprep.mubr.f32.mxu0 0.0
    %7188 = vmatmul.mubr.f32.gmra.mrb[0].mxu0 %v7092
    %v7189 = vpop.f32.mrb[0].mxu0
    %v7190 = vadd.f32 0.0, %v7189
    %v7191 = vpop.f32.mrb[0].mxu0
    %7192 = vmatprep.mubr.f32.mxu0 0.0
    %7193 = vmatmul.mubr.f32.gmra.mrb[0].mxu0 %v7095
    %v7194 = vpop.f32.mrb[0].mxu0
    %v7195 = vadd.f32 0.0, %v7194
    %v7196 = vpop.f32.mrb[0].mxu0
    %7197 = vmatprep.mubr.f32.mxu0 0.0
    %7198 = vmatmul.mubr.f32.gmra.mrb[0].mxu0 %v7098
    %v7199 = vpop.f32.mrb[0].mxu0
    %v7200 = vadd.f32 0.0, %v7199
    %v7201 = vpop.f32.mrb[0].mxu0
    %7202 = vmatprep.mubr.f32.mxu0 0.0
    %7203 = vmatmul.mubr.f32.gmra.mrb[0].mxu0 %v7101
    %v7204 = vpop.f32.mrb[0].mxu0
    %v7205 = vadd.f32 0.0, %v7204
    %v7206 = vpop.f32.mrb[0].mxu0
    %7207 = vmatprep.mubr.f32.mxu0 0.0
    %7208 = vmatmul.mubr.f32.gmra.mrb[0].mxu0 %v7104
    %v7209 = vpop.f32.mrb[0].mxu0
    %v7210 = vadd.f32 0.0, %v7209
    %v7211 = vpop.f32.mrb[0].mxu0
    %7212 = vmatprep.mubr.f32.mxu0 0.0
    %7213 = vmatmul.mubr.f32.gmra.mrb[0].mxu0 %v7107
    %v7214 = vpop.f32.mrb[0].mxu0
    %v7215 = vadd.f32 0.0, %v7214
    %v7216 = vpop.f32.mrb[0].mxu0
    %7217 = vmatprep.mubr.f32.mxu0 0.0
    %7218 = vmatmul.mubr.f32.gmra.mrb[0].mxu0 %v7110
    %v7219 = vpop.f32.mrb[0].mxu0
    %v7220 = vadd.f32 0.0, %v7219
    %v7221 = vpop.f32.mrb[0].mxu0
    %7222 = vmatprep.mubr.f32.mxu0 0.0
    %7223 = vmatmul.mubr.f32.gmra.mrb[0].mxu0 %v7113
    %v7224 = vpop.f32.mrb[0].mxu0
    %v7225 = vadd.f32 0.0, %v7224
    %v7226 = vpop.f32.mrb[0].mxu0
    %7227 = vdwg.mxu0
    %7236 = vrot.lane.b32.xlu0 %v7190, 32
    %v7237 = vpop.permute.xlu0 %7236
    %7238 = vrot.lane.b32.xlu0 %v7195, 32
    %v7239 = vpop.permute.xlu0 %7238
    %7240 = vrot.lane.b32.xlu0 %v7200, 32
    %v7241 = vpop.permute.xlu0 %7240
    %7242 = vrot.lane.b32.xlu0 %v7205, 32
    %v7243 = vpop.permute.xlu0 %7242
    %7244 = vrot.lane.b32.xlu0 %v7210, 32
    %v7245 = vpop.permute.xlu0 %7244
    %7246 = vrot.lane.b32.xlu0 %v7215, 32
    %v7247 = vpop.permute.xlu0 %7246
    %7248 = vrot.lane.b32.xlu0 %v7220, 32
    %v7249 = vpop.permute.xlu0 %7248
    %7250 = vrot.lane.b32.xlu0 %v7225, 32
    %v7251 = vpop.permute.xlu0 %7250
    %7260 = vst.msk [vmem:[#allocation2 + $0x88] sm:$0xff] %vm2097, %v7237
    %7261 = vst.msk [vmem:[#allocation2 + $0x98] sm:$0xff] %vm2097, %v7239
    %7262 = vst.msk [vmem:[#allocation2 + $0xa8] sm:$0xff] %vm2097, %v7241
    %7263 = vst.msk [vmem:[#allocation2 + $0xb8] sm:$0xff] %vm2097, %v7243
    %7264 = vst.msk [vmem:[#allocation2 + $0xc8] sm:$0xff] %vm2097, %v7245
    %7265 = vst.msk [vmem:[#allocation2 + $0xd8] sm:$0xff] %vm2097, %v7247
    %7266 = vst.msk [vmem:[#allocation2 + $0xe8] sm:$0xff] %vm2097, %v7249
    %7267 = vst.msk [vmem:[#allocation2 + $0xf8] sm:$0xff] %vm2097, %v7251
    %7268 = vrot.lane.b32.xlu0 %v342, 64
    %v7269 = vpop.permute.xlu0 %7268
    %7270 = vrot.lane.b32.xlu0 %v348, 64
    %v7271 = vpop.permute.xlu0 %7270
    %7272 = vrot.lane.b32.xlu0 %v354, 64
    %v7273 = vpop.permute.xlu0 %7272
    %7274 = vrot.lane.b32.xlu0 %v360, 64
    %v7275 = vpop.permute.xlu0 %7274
    %7276 = vrot.lane.b32.xlu0 %v366, 64
    %v7277 = vpop.permute.xlu0 %7276
    %7278 = vrot.lane.b32.xlu0 %v372, 64
    %v7279 = vpop.permute.xlu0 %7278
    %7280 = vrot.lane.b32.xlu0 %v378, 64
    %v7281 = vpop.permute.xlu0 %7280
    %7282 = vrot.lane.b32.xlu0 %v384, 64
    %v7283 = vpop.permute.xlu0 %7282
    %7288 = vrot.lane.b32.xlu0 %v1085, 64
    %v7289 = vpop.permute.xlu0 %7288
    %7290 = vrot.lane.b32.xlu0 %v1090, 64
    %v7291 = vpop.permute.xlu0 %7290
    %7292 = vrot.lane.b32.xlu0 %v1095, 64
    %v7293 = vpop.permute.xlu0 %7292
    %7294 = vrot.lane.b32.xlu0 %v1100, 64
    %v7295 = vpop.permute.xlu0 %7294
    %v7300 = vsel %vm1283, %v7269, 0
    %v7302 = vsel %vm1283, %v7271, 0
    %v7304 = vsel %vm1283, %v7273, 0
    %v7306 = vsel %vm1283, %v7275, 0
    %v7308 = vsel %vm1283, %v7277, 0
    %v7310 = vsel %vm1283, %v7279, 0
    %v7312 = vsel %vm1283, %v7281, 0
    %v7314 = vsel %vm1283, %v7283, 0
    %7316 = vmatprep.subr.mxu0 0.0
    %7317 = vmatpush1.msra.mxu0 %v7289
    %7318 = vmatprep.subr.mxu0 0.0
    %7319 = vmatpush1.msra.mxu0 %v7291
    %7320 = vmatprep.subr.mxu0 0.0
    %7321 = vmatpush1.msra.mxu0 %v7293
    %7322 = vmatprep.subr.mxu0 0.0
    %7323 = vmatpush1.msra.mxu0 %v7295
    %7324 = vmatprep.subr.mxu0 0.0
    %7325 = vmatpush1.msra.mxu0 0.0
    %7326 = vmatprep.subr.mxu0 0.0
    %7327 = vmatpush1.msra.mxu0 0.0
    %7328 = vmatprep.subr.mxu0 0.0
    %7329 = vmatpush1.msra.mxu0 0.0
    %7330 = vmatprep.subr.mxu0 0.0
    %7331 = vmatpush1.msra.mxu0 0.0
    %7332 = vmatprep.subr.mxu0 0.0
    %7333 = vmatpush1.msra.mxu0 0.0
    %7334 = vmatprep.subr.mxu0 0.0
    %7335 = vmatpush1.msra.mxu0 0.0
    %7336 = vmatprep.subr.mxu0 0.0
    %7337 = vmatpush1.msra.mxu0 0.0
    %7338 = vmatprep.subr.mxu0 0.0
    %7339 = vmatpush1.msra.mxu0 0.0
    %7340 = vmatprep.subr.mxu0 0.0
    %7341 = vmatpush1.msra.mxu0 0.0
    %7342 = vmatprep.subr.mxu0 0.0
    %7343 = vmatpush1.msra.mxu0 0.0
    %7344 = vmatprep.subr.mxu0 0.0
    %7345 = vmatpush1.msra.mxu0 0.0
    %7346 = vmatprep.subr.mxu0 0.0
    %7347 = vmatpush1.msra.mxu0 0.0
    %7348 = vmatprep.subr.mxu0 0.0
    %7349 = vmatpush1.msra.mxu0 0.0
    %7350 = vmatprep.subr.mxu0 0.0
    %7351 = vmatpush1.msra.mxu0 0.0
    %7352 = vmatprep.subr.mxu0 0.0
    %7353 = vmatpush1.msra.mxu0 0.0
    %7354 = vmatprep.subr.mxu0 0.0
    %7355 = vmatpush1.msra.mxu0 0.0
    %7356 = vmatprep.subr.mxu0 0.0
    %7357 = vmatpush1.msra.mxu0 0.0
    %7358 = vmatprep.subr.mxu0 0.0
    %7359 = vmatpush1.msra.mxu0 0.0
    %7360 = vmatprep.subr.mxu0 0.0
    %7361 = vmatpush1.msra.mxu0 0.0
    %7362 = vmatprep.subr.mxu0 0.0
    %7363 = vmatpush1.msra.mxu0 0.0
    %7364 = vmatprep.subr.mxu0 0.0
    %7365 = vmatpush1.msra.mxu0 0.0
    %7366 = vmatprep.subr.mxu0 0.0
    %7367 = vmatpush1.msra.mxu0 0.0
    %7368 = vmatprep.subr.mxu0 0.0
    %7369 = vmatpush1.msra.mxu0 0.0
    %7370 = vmatprep.subr.mxu0 0.0
    %7371 = vmatpush1.msra.mxu0 0.0
    %7372 = vmatprep.subr.mxu0 0.0
    %7373 = vmatpush1.msra.mxu0 0.0
    %7374 = vmatprep.subr.mxu0 0.0
    %7375 = vmatpush1.msra.mxu0 0.0
    %7376 = vmatprep.subr.mxu0 0.0
    %7377 = vmatpush1.msra.mxu0 0.0
    %7378 = vmatprep.subr.mxu0 0.0
    %7379 = vmatpush1.msra.mxu0 0.0
    %7380 = vmatprep.mubr.f32.mxu0 0.0
    %7381 = vmatmul.mubr.f32.gmra.mrb[0].mxu0 %v7300
    %v7382 = vpop.f32.mrb[0].mxu0
    %v7383 = vadd.f32 0.0, %v7382
    %v7384 = vpop.f32.mrb[0].mxu0
    %7385 = vmatprep.mubr.f32.mxu0 0.0
    %7386 = vmatmul.mubr.f32.gmra.mrb[0].mxu0 %v7302
    %v7387 = vpop.f32.mrb[0].mxu0
    %v7388 = vadd.f32 0.0, %v7387
    %v7389 = vpop.f32.mrb[0].mxu0
    %7390 = vmatprep.mubr.f32.mxu0 0.0
    %7391 = vmatmul.mubr.f32.gmra.mrb[0].mxu0 %v7304
    %v7392 = vpop.f32.mrb[0].mxu0
    %v7393 = vadd.f32 0.0, %v7392
    %v7394 = vpop.f32.mrb[0].mxu0
    %7395 = vmatprep.mubr.f32.mxu0 0.0
    %7396 = vmatmul.mubr.f32.gmra.mrb[0].mxu0 %v7306
    %v7397 = vpop.f32.mrb[0].mxu0
    %v7398 = vadd.f32 0.0, %v7397
    %v7399 = vpop.f32.mrb[0].mxu0
    %7400 = vmatprep.mubr.f32.mxu0 0.0
    %7401 = vmatmul.mubr.f32.gmra.mrb[0].mxu0 %v7308
    %v7402 = vpop.f32.mrb[0].mxu0
    %v7403 = vadd.f32 0.0, %v7402
    %v7404 = vpop.f32.mrb[0].mxu0
    %7405 = vmatprep.mubr.f32.mxu0 0.0
    %7406 = vmatmul.mubr.f32.gmra.mrb[0].mxu0 %v7310
    %v7407 = vpop.f32.mrb[0].mxu0
    %v7408 = vadd.f32 0.0, %v7407
    %v7409 = vpop.f32.mrb[0].mxu0
    %7410 = vmatprep.mubr.f32.mxu0 0.0
    %7411 = vmatmul.mubr.f32.gmra.mrb[0].mxu0 %v7312
    %v7412 = vpop.f32.mrb[0].mxu0
    %v7413 = vadd.f32 0.0, %v7412
    %v7414 = vpop.f32.mrb[0].mxu0
    %7415 = vmatprep.mubr.f32.mxu0 0.0
    %7416 = vmatmul.mubr.f32.gmra.mrb[0].mxu0 %v7314
    %v7417 = vpop.f32.mrb[0].mxu0
    %v7418 = vadd.f32 0.0, %v7417
    %v7419 = vpop.f32.mrb[0].mxu0
    %7420 = vdwg.mxu0
    %v7421 = vsel %vm1413, %v7383, -inf
    %7422 = vmax.xlane.f32.xlu0 %v7421
    %v7423 = vpop.xlane.xlu0 %7422
    %v7424 = vsel %vm1413, %v7388, -inf
    %7425 = vmax.xlane.f32.xlu0 %v7424
    %v7426 = vpop.xlane.xlu0 %7425
    %v7427 = vsel %vm1413, %v7393, -inf
    %7428 = vmax.xlane.f32.xlu0 %v7427
    %v7429 = vpop.xlane.xlu0 %7428
    %v7430 = vsel %vm1413, %v7398, -inf
    %7431 = vmax.xlane.f32.xlu0 %v7430
    %v7432 = vpop.xlane.xlu0 %7431
    %v7433 = vsel %vm1413, %v7403, -inf
    %7434 = vmax.xlane.f32.xlu0 %v7433
    %v7435 = vpop.xlane.xlu0 %7434
    %v7436 = vsel %vm1413, %v7408, -inf
    %7437 = vmax.xlane.f32.xlu0 %v7436
    %v7438 = vpop.xlane.xlu0 %7437
    %v7439 = vsel %vm1413, %v7413, -inf
    %7440 = vmax.xlane.f32.xlu0 %v7439
    %v7441 = vpop.xlane.xlu0 %7440
    %v7442 = vsel %vm1413, %v7418, -inf
    %7443 = vmax.xlane.f32.xlu0 %v7442
    %v7444 = vpop.xlane.xlu0 %7443
    %v7445 = vsub.f32 %v7383, %v7423
    %v7446 = vsub.f32 %v7388, %v7426
    %v7447 = vsub.f32 %v7393, %v7429
    %v7448 = vsub.f32 %v7398, %v7432
    %v7449 = vsub.f32 %v7403, %v7435
    %v7450 = vsub.f32 %v7408, %v7438
    %v7451 = vsub.f32 %v7413, %v7441
    %v7452 = vsub.f32 %v7418, %v7444
    %v7453 = vmul.f32 %v7445, 1.442695
    %v7454 = vpow.pop %v7453
    %v7455 = vmul.f32 %v7446, 1.442695
    %v7456 = vpow.pop %v7455
    %v7457 = vmul.f32 %v7447, 1.442695
    %v7458 = vpow.pop %v7457
    %v7459 = vmul.f32 %v7448, 1.442695
    %v7460 = vpow.pop %v7459
    %v7461 = vmul.f32 %v7449, 1.442695
    %v7462 = vpow.pop %v7461
    %v7463 = vmul.f32 %v7450, 1.442695
    %v7464 = vpow.pop %v7463
    %v7465 = vmul.f32 %v7451, 1.442695
    %v7466 = vpow.pop %v7465
    %v7467 = vmul.f32 %v7452, 1.442695
    %v7468 = vpow.pop %v7467
    %v7469 = vsel %vm1413, %v7454, 0.0
    %7470 = vadd.xlane.f32.xlu0 %v7469
    %v7471 = vpop.xlane.xlu0 %7470
    %v7472 = vsel %vm1413, %v7456, 0.0
    %7473 = vadd.xlane.f32.xlu0 %v7472
    %v7474 = vpop.xlane.xlu0 %7473
    %v7475 = vsel %vm1413, %v7458, 0.0
    %7476 = vadd.xlane.f32.xlu0 %v7475
    %v7477 = vpop.xlane.xlu0 %7476
    %v7478 = vsel %vm1413, %v7460, 0.0
    %7479 = vadd.xlane.f32.xlu0 %v7478
    %v7480 = vpop.xlane.xlu0 %7479
    %v7481 = vsel %vm1413, %v7462, 0.0
    %7482 = vadd.xlane.f32.xlu0 %v7481
    %v7483 = vpop.xlane.xlu0 %7482
    %v7484 = vsel %vm1413, %v7464, 0.0
    %7485 = vadd.xlane.f32.xlu0 %v7484
    %v7486 = vpop.xlane.xlu0 %7485
    %v7487 = vsel %vm1413, %v7466, 0.0
    %7488 = vadd.xlane.f32.xlu0 %v7487
    %v7489 = vpop.xlane.xlu0 %7488
    %v7490 = vsel %vm1413, %v7468, 0.0
    %7491 = vadd.xlane.f32.xlu0 %v7490
    %v7492 = vpop.xlane.xlu0 %7491
    %v7493 = vrcp.pop %v7471
    %v7494 = vrcp.pop %v7474
    %v7495 = vrcp.pop %v7477
    %v7496 = vrcp.pop %v7480
    %v7497 = vrcp.pop %v7483
    %v7498 = vrcp.pop %v7486
    %v7499 = vrcp.pop %v7489
    %v7500 = vrcp.pop %v7492
    %v7501 = vmul.f32 %v7471, %v7493
    %v7502 = vmul.f32 %v7474, %v7494
    %v7503 = vmul.f32 %v7477, %v7495
    %v7504 = vmul.f32 %v7480, %v7496
    %v7505 = vmul.f32 %v7483, %v7497
    %v7506 = vmul.f32 %v7486, %v7498
    %v7507 = vmul.f32 %v7489, %v7499
    %v7508 = vmul.f32 %v7492, %v7500
    %v7509 = vsub.f32 2.0, %v7501
    %v7510 = vsub.f32 2.0, %v7502
    %v7511 = vsub.f32 2.0, %v7503
    %v7512 = vsub.f32 2.0, %v7504
    %v7513 = vsub.f32 2.0, %v7505
    %v7514 = vsub.f32 2.0, %v7506
    %v7515 = vsub.f32 2.0, %v7507
    %v7516 = vsub.f32 2.0, %v7508
    %v7517 = vmul.f32 %v7493, %v7509
    %v7518 = vmul.f32 %v7494, %v7510
    %v7519 = vmul.f32 %v7495, %v7511
    %v7520 = vmul.f32 %v7496, %v7512
    %v7521 = vmul.f32 %v7497, %v7513
    %v7522 = vmul.f32 %v7498, %v7514
    %v7523 = vmul.f32 %v7499, %v7515
    %v7524 = vmul.f32 %v7500, %v7516
    %v7525 = vmul.f32 %v7454, %v7517
    %v7526 = vmul.f32 %v7456, %v7518
    %v7527 = vmul.f32 %v7458, %v7519
    %v7528 = vmul.f32 %v7460, %v7520
    %v7529 = vmul.f32 %v7462, %v7521
    %v7530 = vmul.f32 %v7464, %v7522
    %v7531 = vmul.f32 %v7466, %v7523
    %v7532 = vmul.f32 %v7468, %v7524
    %7533 = vrot.lane.b32.xlu0 %v1245, 64
    %v7534 = vpop.permute.xlu0 %7533
    %7535 = vrot.lane.b32.xlu0 %v1250, 64
    %v7536 = vpop.permute.xlu0 %7535
    %7537 = vrot.lane.b32.xlu0 %v1255, 64
    %v7538 = vpop.permute.xlu0 %7537
    %7539 = vrot.lane.b32.xlu0 %v1260, 64
    %v7540 = vpop.permute.xlu0 %7539
    %v7542 = vsel %vm1413, %v7525, 0
    %v7545 = vsel %vm1413, %v7526, 0
    %v7548 = vsel %vm1413, %v7527, 0
    %v7551 = vsel %vm1413, %v7528, 0
    %v7554 = vsel %vm1413, %v7529, 0
    %v7557 = vsel %vm1413, %v7530, 0
    %v7560 = vsel %vm1413, %v7531, 0
    %v7563 = vsel %vm1413, %v7532, 0
    %v7565 = vsel %vm1413, %v7534, 0
    %v7567 = vsel %vm1413, %v7536, 0
    %v7569 = vsel %vm1413, %v7538, 0
    %v7571 = vsel %vm1413, %v7540, 0
    %7573 = vmatprep.subr.mxu0 0.0
    %7574 = vmatpush1.xpose.msra.mxu0 %v7565
    %7575 = vmatprep.subr.mxu0 0.0
    %7576 = vmatpush1.xpose.msra.mxu0 %v7567
    %7577 = vmatprep.subr.mxu0 0.0
    %7578 = vmatpush1.xpose.msra.mxu0 %v7569
    %7579 = vmatprep.subr.mxu0 0.0
    %7580 = vmatpush1.xpose.msra.mxu0 %v7571
    %7581 = vmatprep.subr.mxu0 0.0
    %7582 = vmatpush1.xpose.msra.mxu0 0.0
    %7583 = vmatprep.subr.mxu0 0.0
    %7584 = vmatpush1.xpose.msra.mxu0 0.0
    %7585 = vmatprep.subr.mxu0 0.0
    %7586 = vmatpush1.xpose.msra.mxu0 0.0
    %7587 = vmatprep.subr.mxu0 0.0
    %7588 = vmatpush1.xpose.msra.mxu0 0.0
    %7589 = vmatprep.subr.mxu0 0.0
    %7590 = vmatpush1.xpose.msra.mxu0 0.0
    %7591 = vmatprep.subr.mxu0 0.0
    %7592 = vmatpush1.xpose.msra.mxu0 0.0
    %7593 = vmatprep.subr.mxu0 0.0
    %7594 = vmatpush1.xpose.msra.mxu0 0.0
    %7595 = vmatprep.subr.mxu0 0.0
    %7596 = vmatpush1.xpose.msra.mxu0 0.0
    %7597 = vmatprep.subr.mxu0 0.0
    %7598 = vmatpush1.xpose.msra.mxu0 0.0
    %7599 = vmatprep.subr.mxu0 0.0
    %7600 = vmatpush1.xpose.msra.mxu0 0.0
    %7601 = vmatprep.subr.mxu0 0.0
    %7602 = vmatpush1.xpose.msra.mxu0 0.0
    %7603 = vmatprep.subr.mxu0 0.0
    %7604 = vmatpush1.xpose.msra.mxu0 0.0
    %7605 = vmatprep.subr.mxu0 0.0
    %7606 = vmatpush1.xpose.msra.mxu0 0.0
    %7607 = vmatprep.subr.mxu0 0.0
    %7608 = vmatpush1.xpose.msra.mxu0 0.0
    %7609 = vmatprep.subr.mxu0 0.0
    %7610 = vmatpush1.xpose.msra.mxu0 0.0
    %7611 = vmatprep.subr.mxu0 0.0
    %7612 = vmatpush1.xpose.msra.mxu0 0.0
    %7613 = vmatprep.subr.mxu0 0.0
    %7614 = vmatpush1.xpose.msra.mxu0 0.0
    %7615 = vmatprep.subr.mxu0 0.0
    %7616 = vmatpush1.xpose.msra.mxu0 0.0
    %7617 = vmatprep.subr.mxu0 0.0
    %7618 = vmatpush1.xpose.msra.mxu0 0.0
    %7619 = vmatprep.subr.mxu0 0.0
    %7620 = vmatpush1.xpose.msra.mxu0 0.0
    %7621 = vmatprep.subr.mxu0 0.0
    %7622 = vmatpush1.xpose.msra.mxu0 0.0
    %7623 = vmatprep.subr.mxu0 0.0
    %7624 = vmatpush1.xpose.msra.mxu0 0.0
    %7625 = vmatprep.subr.mxu0 0.0
    %7626 = vmatpush1.xpose.msra.mxu0 0.0
    %7627 = vmatprep.subr.mxu0 0.0
    %7628 = vmatpush1.xpose.msra.mxu0 0.0
    %7629 = vmatprep.subr.mxu0 0.0
    %7630 = vmatpush1.xpose.msra.mxu0 0.0
    %7631 = vmatprep.subr.mxu0 0.0
    %7632 = vmatpush1.xpose.msra.mxu0 0.0
    %7633 = vmatprep.subr.mxu0 0.0
    %7634 = vmatpush1.xpose.msra.mxu0 0.0
    %7635 = vmatprep.subr.mxu0 0.0
    %7636 = vmatpush1.xpose.msra.mxu0 0.0
    %7637 = vmatprep.mubr.f32.mxu0 0.0
    %7638 = vmatmul.mubr.f32.gmra.mrb[0].mxu0 %v7542
    %v7639 = vpop.f32.mrb[0].mxu0
    %v7640 = vadd.f32 0.0, %v7639
    %v7641 = vpop.f32.mrb[0].mxu0
    %7642 = vmatprep.mubr.f32.mxu0 0.0
    %7643 = vmatmul.mubr.f32.gmra.mrb[0].mxu0 %v7545
    %v7644 = vpop.f32.mrb[0].mxu0
    %v7645 = vadd.f32 0.0, %v7644
    %v7646 = vpop.f32.mrb[0].mxu0
    %7647 = vmatprep.mubr.f32.mxu0 0.0
    %7648 = vmatmul.mubr.f32.gmra.mrb[0].mxu0 %v7548
    %v7649 = vpop.f32.mrb[0].mxu0
    %v7650 = vadd.f32 0.0, %v7649
    %v7651 = vpop.f32.mrb[0].mxu0
    %7652 = vmatprep.mubr.f32.mxu0 0.0
    %7653 = vmatmul.mubr.f32.gmra.mrb[0].mxu0 %v7551
    %v7654 = vpop.f32.mrb[0].mxu0
    %v7655 = vadd.f32 0.0, %v7654
    %v7656 = vpop.f32.mrb[0].mxu0
    %7657 = vmatprep.mubr.f32.mxu0 0.0
    %7658 = vmatmul.mubr.f32.gmra.mrb[0].mxu0 %v7554
    %v7659 = vpop.f32.mrb[0].mxu0
    %v7660 = vadd.f32 0.0, %v7659
    %v7661 = vpop.f32.mrb[0].mxu0
    %7662 = vmatprep.mubr.f32.mxu0 0.0
    %7663 = vmatmul.mubr.f32.gmra.mrb[0].mxu0 %v7557
    %v7664 = vpop.f32.mrb[0].mxu0
    %v7665 = vadd.f32 0.0, %v7664
    %v7666 = vpop.f32.mrb[0].mxu0
    %7667 = vmatprep.mubr.f32.mxu0 0.0
    %7668 = vmatmul.mubr.f32.gmra.mrb[0].mxu0 %v7560
    %v7669 = vpop.f32.mrb[0].mxu0
    %v7670 = vadd.f32 0.0, %v7669
    %v7671 = vpop.f32.mrb[0].mxu0
    %7672 = vmatprep.mubr.f32.mxu0 0.0
    %7673 = vmatmul.mubr.f32.gmra.mrb[0].mxu0 %v7563
    %v7674 = vpop.f32.mrb[0].mxu0
    %v7675 = vadd.f32 0.0, %v7674
    %v7676 = vpop.f32.mrb[0].mxu0
    %7677 = vdwg.mxu0
    %7686 = vrot.lane.b32.xlu0 %v7640, 64
    %v7687 = vpop.permute.xlu0 %7686
    %7688 = vrot.lane.b32.xlu0 %v7645, 64
    %v7689 = vpop.permute.xlu0 %7688
    %7690 = vrot.lane.b32.xlu0 %v7650, 64
    %v7691 = vpop.permute.xlu0 %7690
    %7692 = vrot.lane.b32.xlu0 %v7655, 64
    %v7693 = vpop.permute.xlu0 %7692
    %7694 = vrot.lane.b32.xlu0 %v7660, 64
    %v7695 = vpop.permute.xlu0 %7694
    %7696 = vrot.lane.b32.xlu0 %v7665, 64
    %v7697 = vpop.permute.xlu0 %7696
    %7698 = vrot.lane.b32.xlu0 %v7670, 64
    %v7699 = vpop.permute.xlu0 %7698
    %7700 = vrot.lane.b32.xlu0 %v7675, 64
    %v7701 = vpop.permute.xlu0 %7700
    %7710 = vst.msk [vmem:[#allocation2 + $0x88] sm:$0xff] %vm2528, %v7687
    %7711 = vst.msk [vmem:[#allocation2 + $0x98] sm:$0xff] %vm2528, %v7689
    %7712 = vst.msk [vmem:[#allocation2 + $0xa8] sm:$0xff] %vm2528, %v7691
    %7713 = vst.msk [vmem:[#allocation2 + $0xb8] sm:$0xff] %vm2528, %v7693
    %7714 = vst.msk [vmem:[#allocation2 + $0xc8] sm:$0xff] %vm2528, %v7695
    %7715 = vst.msk [vmem:[#allocation2 + $0xd8] sm:$0xff] %vm2528, %v7697
    %7716 = vst.msk [vmem:[#allocation2 + $0xe8] sm:$0xff] %vm2528, %v7699
    %7717 = vst.msk [vmem:[#allocation2 + $0xf8] sm:$0xff] %vm2528, %v7701
    %7718 = vrot.lane.b32.xlu0 %v342, 32
    %v7719 = vpop.permute.xlu0 %7718
    %7720 = vrot.lane.b32.xlu0 %v348, 32
    %v7721 = vpop.permute.xlu0 %7720
    %7722 = vrot.lane.b32.xlu0 %v354, 32
    %v7723 = vpop.permute.xlu0 %7722
    %7724 = vrot.lane.b32.xlu0 %v360, 32
    %v7725 = vpop.permute.xlu0 %7724
    %7726 = vrot.lane.b32.xlu0 %v366, 32
    %v7727 = vpop.permute.xlu0 %7726
    %7728 = vrot.lane.b32.xlu0 %v372, 32
    %v7729 = vpop.permute.xlu0 %7728
    %7730 = vrot.lane.b32.xlu0 %v378, 32
    %v7731 = vpop.permute.xlu0 %7730
    %7732 = vrot.lane.b32.xlu0 %v384, 32
    %v7733 = vpop.permute.xlu0 %7732
    %7738 = vrot.lane.b32.xlu0 %v1105, 64
    %v7739 = vpop.permute.xlu0 %7738
    %7740 = vrot.lane.b32.xlu0 %v1110, 64
    %v7741 = vpop.permute.xlu0 %7740
    %7742 = vrot.lane.b32.xlu0 %v1115, 64
    %v7743 = vpop.permute.xlu0 %7742
    %7744 = vrot.lane.b32.xlu0 %v1120, 64
    %v7745 = vpop.permute.xlu0 %7744
    %v7750 = vsel %vm1283, %v7719, 0
    %v7752 = vsel %vm1283, %v7721, 0
    %v7754 = vsel %vm1283, %v7723, 0
    %v7756 = vsel %vm1283, %v7725, 0
    %v7758 = vsel %vm1283, %v7727, 0
    %v7760 = vsel %vm1283, %v7729, 0
    %v7762 = vsel %vm1283, %v7731, 0
    %v7764 = vsel %vm1283, %v7733, 0
    %7766 = vmatprep.subr.mxu0 0.0
    %7767 = vmatpush1.msra.mxu0 %v7739
    %7768 = vmatprep.subr.mxu0 0.0
    %7769 = vmatpush1.msra.mxu0 %v7741
    %7770 = vmatprep.subr.mxu0 0.0
    %7771 = vmatpush1.msra.mxu0 %v7743
    %7772 = vmatprep.subr.mxu0 0.0
    %7773 = vmatpush1.msra.mxu0 %v7745
    %7774 = vmatprep.subr.mxu0 0.0
    %7775 = vmatpush1.msra.mxu0 0.0
    %7776 = vmatprep.subr.mxu0 0.0
    %7777 = vmatpush1.msra.mxu0 0.0
    %7778 = vmatprep.subr.mxu0 0.0
    %7779 = vmatpush1.msra.mxu0 0.0
    %7780 = vmatprep.subr.mxu0 0.0
    %7781 = vmatpush1.msra.mxu0 0.0
    %7782 = vmatprep.subr.mxu0 0.0
    %7783 = vmatpush1.msra.mxu0 0.0
    %7784 = vmatprep.subr.mxu0 0.0
    %7785 = vmatpush1.msra.mxu0 0.0
    %7786 = vmatprep.subr.mxu0 0.0
    %7787 = vmatpush1.msra.mxu0 0.0
    %7788 = vmatprep.subr.mxu0 0.0
    %7789 = vmatpush1.msra.mxu0 0.0
    %7790 = vmatprep.subr.mxu0 0.0
    %7791 = vmatpush1.msra.mxu0 0.0
    %7792 = vmatprep.subr.mxu0 0.0
    %7793 = vmatpush1.msra.mxu0 0.0
    %7794 = vmatprep.subr.mxu0 0.0
    %7795 = vmatpush1.msra.mxu0 0.0
    %7796 = vmatprep.subr.mxu0 0.0
    %7797 = vmatpush1.msra.mxu0 0.0
    %7798 = vmatprep.subr.mxu0 0.0
    %7799 = vmatpush1.msra.mxu0 0.0
    %7800 = vmatprep.subr.mxu0 0.0
    %7801 = vmatpush1.msra.mxu0 0.0
    %7802 = vmatprep.subr.mxu0 0.0
    %7803 = vmatpush1.msra.mxu0 0.0
    %7804 = vmatprep.subr.mxu0 0.0
    %7805 = vmatpush1.msra.mxu0 0.0
    %7806 = vmatprep.subr.mxu0 0.0
    %7807 = vmatpush1.msra.mxu0 0.0
    %7808 = vmatprep.subr.mxu0 0.0
    %7809 = vmatpush1.msra.mxu0 0.0
    %7810 = vmatprep.subr.mxu0 0.0
    %7811 = vmatpush1.msra.mxu0 0.0
    %7812 = vmatprep.subr.mxu0 0.0
    %7813 = vmatpush1.msra.mxu0 0.0
    %7814 = vmatprep.subr.mxu0 0.0
    %7815 = vmatpush1.msra.mxu0 0.0
    %7816 = vmatprep.subr.mxu0 0.0
    %7817 = vmatpush1.msra.mxu0 0.0
    %7818 = vmatprep.subr.mxu0 0.0
    %7819 = vmatpush1.msra.mxu0 0.0
    %7820 = vmatprep.subr.mxu0 0.0
    %7821 = vmatpush1.msra.mxu0 0.0
    %7822 = vmatprep.subr.mxu0 0.0
    %7823 = vmatpush1.msra.mxu0 0.0
    %7824 = vmatprep.subr.mxu0 0.0
    %7825 = vmatpush1.msra.mxu0 0.0
    %7826 = vmatprep.subr.mxu0 0.0
    %7827 = vmatpush1.msra.mxu0 0.0
    %7828 = vmatprep.subr.mxu0 0.0
    %7829 = vmatpush1.msra.mxu0 0.0
    %7830 = vmatprep.mubr.f32.mxu0 0.0
    %7831 = vmatmul.mubr.f32.gmra.mrb[0].mxu0 %v7750
    %v7832 = vpop.f32.mrb[0].mxu0
    %v7833 = vadd.f32 0.0, %v7832
    %v7834 = vpop.f32.mrb[0].mxu0
    %7835 = vmatprep.mubr.f32.mxu0 0.0
    %7836 = vmatmul.mubr.f32.gmra.mrb[0].mxu0 %v7752
    %v7837 = vpop.f32.mrb[0].mxu0
    %v7838 = vadd.f32 0.0, %v7837
    %v7839 = vpop.f32.mrb[0].mxu0
    %7840 = vmatprep.mubr.f32.mxu0 0.0
    %7841 = vmatmul.mubr.f32.gmra.mrb[0].mxu0 %v7754
    %v7842 = vpop.f32.mrb[0].mxu0
    %v7843 = vadd.f32 0.0, %v7842
    %v7844 = vpop.f32.mrb[0].mxu0
    %7845 = vmatprep.mubr.f32.mxu0 0.0
    %7846 = vmatmul.mubr.f32.gmra.mrb[0].mxu0 %v7756
    %v7847 = vpop.f32.mrb[0].mxu0
    %v7848 = vadd.f32 0.0, %v7847
    %v7849 = vpop.f32.mrb[0].mxu0
    %7850 = vmatprep.mubr.f32.mxu0 0.0
    %7851 = vmatmul.mubr.f32.gmra.mrb[0].mxu0 %v7758
    %v7852 = vpop.f32.mrb[0].mxu0
    %v7853 = vadd.f32 0.0, %v7852
    %v7854 = vpop.f32.mrb[0].mxu0
    %7855 = vmatprep.mubr.f32.mxu0 0.0
    %7856 = vmatmul.mubr.f32.gmra.mrb[0].mxu0 %v7760
    %v7857 = vpop.f32.mrb[0].mxu0
    %v7858 = vadd.f32 0.0, %v7857
    %v7859 = vpop.f32.mrb[0].mxu0
    %7860 = vmatprep.mubr.f32.mxu0 0.0
    %7861 = vmatmul.mubr.f32.gmra.mrb[0].mxu0 %v7762
    %v7862 = vpop.f32.mrb[0].mxu0
    %v7863 = vadd.f32 0.0, %v7862
    %v7864 = vpop.f32.mrb[0].mxu0
    %7865 = vmatprep.mubr.f32.mxu0 0.0
    %7866 = vmatmul.mubr.f32.gmra.mrb[0].mxu0 %v7764
    %v7867 = vpop.f32.mrb[0].mxu0
    %v7868 = vadd.f32 0.0, %v7867
    %v7869 = vpop.f32.mrb[0].mxu0
    %7870 = vdwg.mxu0
    %v7871 = vsel %vm1413, %v7833, -inf
    %7872 = vmax.xlane.f32.xlu0 %v7871
    %v7873 = vpop.xlane.xlu0 %7872
    %v7874 = vsel %vm1413, %v7838, -inf
    %7875 = vmax.xlane.f32.xlu0 %v7874
    %v7876 = vpop.xlane.xlu0 %7875
    %v7877 = vsel %vm1413, %v7843, -inf
    %7878 = vmax.xlane.f32.xlu0 %v7877
    %v7879 = vpop.xlane.xlu0 %7878
    %v7880 = vsel %vm1413, %v7848, -inf
    %7881 = vmax.xlane.f32.xlu0 %v7880
    %v7882 = vpop.xlane.xlu0 %7881
    %v7883 = vsel %vm1413, %v7853, -inf
    %7884 = vmax.xlane.f32.xlu0 %v7883
    %v7885 = vpop.xlane.xlu0 %7884
    %v7886 = vsel %vm1413, %v7858, -inf
    %7887 = vmax.xlane.f32.xlu0 %v7886
    %v7888 = vpop.xlane.xlu0 %7887
    %v7889 = vsel %vm1413, %v7863, -inf
    %7890 = vmax.xlane.f32.xlu0 %v7889
    %v7891 = vpop.xlane.xlu0 %7890
    %v7892 = vsel %vm1413, %v7868, -inf
    %7893 = vmax.xlane.f32.xlu0 %v7892
    %v7894 = vpop.xlane.xlu0 %7893
    %v7895 = vsub.f32 %v7833, %v7873
    %v7896 = vsub.f32 %v7838, %v7876
    %v7897 = vsub.f32 %v7843, %v7879
    %v7898 = vsub.f32 %v7848, %v7882
    %v7899 = vsub.f32 %v7853, %v7885
    %v7900 = vsub.f32 %v7858, %v7888
    %v7901 = vsub.f32 %v7863, %v7891
    %v7902 = vsub.f32 %v7868, %v7894
    %v7903 = vmul.f32 %v7895, 1.442695
    %v7904 = vpow.pop %v7903
    %v7905 = vmul.f32 %v7896, 1.442695
    %v7906 = vpow.pop %v7905
    %v7907 = vmul.f32 %v7897, 1.442695
    %v7908 = vpow.pop %v7907
    %v7909 = vmul.f32 %v7898, 1.442695
    %v7910 = vpow.pop %v7909
    %v7911 = vmul.f32 %v7899, 1.442695
    %v7912 = vpow.pop %v7911
    %v7913 = vmul.f32 %v7900, 1.442695
    %v7914 = vpow.pop %v7913
    %v7915 = vmul.f32 %v7901, 1.442695
    %v7916 = vpow.pop %v7915
    %v7917 = vmul.f32 %v7902, 1.442695
    %v7918 = vpow.pop %v7917
    %v7919 = vsel %vm1413, %v7904, 0.0
    %7920 = vadd.xlane.f32.xlu0 %v7919
    %v7921 = vpop.xlane.xlu0 %7920
    %v7922 = vsel %vm1413, %v7906, 0.0
    %7923 = vadd.xlane.f32.xlu0 %v7922
    %v7924 = vpop.xlane.xlu0 %7923
    %v7925 = vsel %vm1413, %v7908, 0.0
    %7926 = vadd.xlane.f32.xlu0 %v7925
    %v7927 = vpop.xlane.xlu0 %7926
    %v7928 = vsel %vm1413, %v7910, 0.0
    %7929 = vadd.xlane.f32.xlu0 %v7928
    %v7930 = vpop.xlane.xlu0 %7929
    %v7931 = vsel %vm1413, %v7912, 0.0
    %7932 = vadd.xlane.f32.xlu0 %v7931
    %v7933 = vpop.xlane.xlu0 %7932
    %v7934 = vsel %vm1413, %v7914, 0.0
    %7935 = vadd.xlane.f32.xlu0 %v7934
    %v7936 = vpop.xlane.xlu0 %7935
    %v7937 = vsel %vm1413, %v7916, 0.0
    %7938 = vadd.xlane.f32.xlu0 %v7937
    %v7939 = vpop.xlane.xlu0 %7938
    %v7940 = vsel %vm1413, %v7918, 0.0
    %7941 = vadd.xlane.f32.xlu0 %v7940
    %v7942 = vpop.xlane.xlu0 %7941
    %v7943 = vrcp.pop %v7921
    %v7944 = vrcp.pop %v7924
    %v7945 = vrcp.pop %v7927
    %v7946 = vrcp.pop %v7930
    %v7947 = vrcp.pop %v7933
    %v7948 = vrcp.pop %v7936
    %v7949 = vrcp.pop %v7939
    %v7950 = vrcp.pop %v7942
    %v7951 = vmul.f32 %v7921, %v7943
    %v7952 = vmul.f32 %v7924, %v7944
    %v7953 = vmul.f32 %v7927, %v7945
    %v7954 = vmul.f32 %v7930, %v7946
    %v7955 = vmul.f32 %v7933, %v7947
    %v7956 = vmul.f32 %v7936, %v7948
    %v7957 = vmul.f32 %v7939, %v7949
    %v7958 = vmul.f32 %v7942, %v7950
    %v7959 = vsub.f32 2.0, %v7951
    %v7960 = vsub.f32 2.0, %v7952
    %v7961 = vsub.f32 2.0, %v7953
    %v7962 = vsub.f32 2.0, %v7954
    %v7963 = vsub.f32 2.0, %v7955
    %v7964 = vsub.f32 2.0, %v7956
    %v7965 = vsub.f32 2.0, %v7957
    %v7966 = vsub.f32 2.0, %v7958
    %v7967 = vmul.f32 %v7943, %v7959
    %v7968 = vmul.f32 %v7944, %v7960
    %v7969 = vmul.f32 %v7945, %v7961
    %v7970 = vmul.f32 %v7946, %v7962
    %v7971 = vmul.f32 %v7947, %v7963
    %v7972 = vmul.f32 %v7948, %v7964
    %v7973 = vmul.f32 %v7949, %v7965
    %v7974 = vmul.f32 %v7950, %v7966
    %v7975 = vmul.f32 %v7904, %v7967
    %v7976 = vmul.f32 %v7906, %v7968
    %v7977 = vmul.f32 %v7908, %v7969
    %v7978 = vmul.f32 %v7910, %v7970
    %v7979 = vmul.f32 %v7912, %v7971
    %v7980 = vmul.f32 %v7914, %v7972
    %v7981 = vmul.f32 %v7916, %v7973
    %v7982 = vmul.f32 %v7918, %v7974
    %7983 = vrot.lane.b32.xlu0 %v1265, 64
    %v7984 = vpop.permute.xlu0 %7983
    %7985 = vrot.lane.b32.xlu0 %v1270, 64
    %v7986 = vpop.permute.xlu0 %7985
    %7987 = vrot.lane.b32.xlu0 %v1275, 64
    %v7988 = vpop.permute.xlu0 %7987
    %7989 = vrot.lane.b32.xlu0 %v1280, 64
    %v7990 = vpop.permute.xlu0 %7989
    %v7992 = vsel %vm1413, %v7975, 0
    %v7995 = vsel %vm1413, %v7976, 0
    %v7998 = vsel %vm1413, %v7977, 0
    %v8001 = vsel %vm1413, %v7978, 0
    %v8004 = vsel %vm1413, %v7979, 0
    %v8007 = vsel %vm1413, %v7980, 0
    %v8010 = vsel %vm1413, %v7981, 0
    %v8013 = vsel %vm1413, %v7982, 0
    %v8015 = vsel %vm1413, %v7984, 0
    %v8017 = vsel %vm1413, %v7986, 0
    %v8019 = vsel %vm1413, %v7988, 0
    %v8021 = vsel %vm1413, %v7990, 0
    %8023 = vmatprep.subr.mxu0 0.0
    %8024 = vmatpush1.xpose.msra.mxu0 %v8015
    %8025 = vmatprep.subr.mxu0 0.0
    %8026 = vmatpush1.xpose.msra.mxu0 %v8017
    %8027 = vmatprep.subr.mxu0 0.0
    %8028 = vmatpush1.xpose.msra.mxu0 %v8019
    %8029 = vmatprep.subr.mxu0 0.0
    %8030 = vmatpush1.xpose.msra.mxu0 %v8021
    %8031 = vmatprep.subr.mxu0 0.0
    %8032 = vmatpush1.xpose.msra.mxu0 0.0
    %8033 = vmatprep.subr.mxu0 0.0
    %8034 = vmatpush1.xpose.msra.mxu0 0.0
    %8035 = vmatprep.subr.mxu0 0.0
    %8036 = vmatpush1.xpose.msra.mxu0 0.0
    %8037 = vmatprep.subr.mxu0 0.0
    %8038 = vmatpush1.xpose.msra.mxu0 0.0
    %8039 = vmatprep.subr.mxu0 0.0
    %8040 = vmatpush1.xpose.msra.mxu0 0.0
    %8041 = vmatprep.subr.mxu0 0.0
    %8042 = vmatpush1.xpose.msra.mxu0 0.0
    %8043 = vmatprep.subr.mxu0 0.0
    %8044 = vmatpush1.xpose.msra.mxu0 0.0
    %8045 = vmatprep.subr.mxu0 0.0
    %8046 = vmatpush1.xpose.msra.mxu0 0.0
    %8047 = vmatprep.subr.mxu0 0.0
    %8048 = vmatpush1.xpose.msra.mxu0 0.0
    %8049 = vmatprep.subr.mxu0 0.0
    %8050 = vmatpush1.xpose.msra.mxu0 0.0
    %8051 = vmatprep.subr.mxu0 0.0
    %8052 = vmatpush1.xpose.msra.mxu0 0.0
    %8053 = vmatprep.subr.mxu0 0.0
    %8054 = vmatpush1.xpose.msra.mxu0 0.0
    %8055 = vmatprep.subr.mxu0 0.0
    %8056 = vmatpush1.xpose.msra.mxu0 0.0
    %8057 = vmatprep.subr.mxu0 0.0
    %8058 = vmatpush1.xpose.msra.mxu0 0.0
    %8059 = vmatprep.subr.mxu0 0.0
    %8060 = vmatpush1.xpose.msra.mxu0 0.0
    %8061 = vmatprep.subr.mxu0 0.0
    %8062 = vmatpush1.xpose.msra.mxu0 0.0
    %8063 = vmatprep.subr.mxu0 0.0
    %8064 = vmatpush1.xpose.msra.mxu0 0.0
    %8065 = vmatprep.subr.mxu0 0.0
    %8066 = vmatpush1.xpose.msra.mxu0 0.0
    %8067 = vmatprep.subr.mxu0 0.0
    %8068 = vmatpush1.xpose.msra.mxu0 0.0
    %8069 = vmatprep.subr.mxu0 0.0
    %8070 = vmatpush1.xpose.msra.mxu0 0.0
    %8071 = vmatprep.subr.mxu0 0.0
    %8072 = vmatpush1.xpose.msra.mxu0 0.0
    %8073 = vmatprep.subr.mxu0 0.0
    %8074 = vmatpush1.xpose.msra.mxu0 0.0
    %8075 = vmatprep.subr.mxu0 0.0
    %8076 = vmatpush1.xpose.msra.mxu0 0.0
    %8077 = vmatprep.subr.mxu0 0.0
    %8078 = vmatpush1.xpose.msra.mxu0 0.0
    %8079 = vmatprep.subr.mxu0 0.0
    %8080 = vmatpush1.xpose.msra.mxu0 0.0
    %8081 = vmatprep.subr.mxu0 0.0
    %8082 = vmatpush1.xpose.msra.mxu0 0.0
    %8083 = vmatprep.subr.mxu0 0.0
    %8084 = vmatpush1.xpose.msra.mxu0 0.0
    %8085 = vmatprep.subr.mxu0 0.0
    %8086 = vmatpush1.xpose.msra.mxu0 0.0
    %8087 = vmatprep.mubr.f32.mxu0 0.0
    %8088 = vmatmul.mubr.f32.gmra.mrb[0].mxu0 %v7992
    %v8089 = vpop.f32.mrb[0].mxu0
    %v8090 = vadd.f32 0.0, %v8089
    %v8091 = vpop.f32.mrb[0].mxu0
    %8092 = vmatprep.mubr.f32.mxu0 0.0
    %8093 = vmatmul.mubr.f32.gmra.mrb[0].mxu0 %v7995
    %v8094 = vpop.f32.mrb[0].mxu0
    %v8095 = vadd.f32 0.0, %v8094
    %v8096 = vpop.f32.mrb[0].mxu0
    %8097 = vmatprep.mubr.f32.mxu0 0.0
    %8098 = vmatmul.mubr.f32.gmra.mrb[0].mxu0 %v7998
    %v8099 = vpop.f32.mrb[0].mxu0
    %v8100 = vadd.f32 0.0, %v8099
    %v8101 = vpop.f32.mrb[0].mxu0
    %8102 = vmatprep.mubr.f32.mxu0 0.0
    %8103 = vmatmul.mubr.f32.gmra.mrb[0].mxu0 %v8001
    %v8104 = vpop.f32.mrb[0].mxu0
    %v8105 = vadd.f32 0.0, %v8104
    %v8106 = vpop.f32.mrb[0].mxu0
    %8107 = vmatprep.mubr.f32.mxu0 0.0
    %8108 = vmatmul.mubr.f32.gmra.mrb[0].mxu0 %v8004
    %v8109 = vpop.f32.mrb[0].mxu0
    %v8110 = vadd.f32 0.0, %v8109
    %v8111 = vpop.f32.mrb[0].mxu0
    %8112 = vmatprep.mubr.f32.mxu0 0.0
    %8113 = vmatmul.mubr.f32.gmra.mrb[0].mxu0 %v8007
    %v8114 = vpop.f32.mrb[0].mxu0
    %v8115 = vadd.f32 0.0, %v8114
    %v8116 = vpop.f32.mrb[0].mxu0
    %8117 = vmatprep.mubr.f32.mxu0 0.0
    %8118 = vmatmul.mubr.f32.gmra.mrb[0].mxu0 %v8010
    %v8119 = vpop.f32.mrb[0].mxu0
    %v8120 = vadd.f32 0.0, %v8119
    %v8121 = vpop.f32.mrb[0].mxu0
    %8122 = vmatprep.mubr.f32.mxu0 0.0
    %8123 = vmatmul.mubr.f32.gmra.mrb[0].mxu0 %v8013
    %v8124 = vpop.f32.mrb[0].mxu0
    %v8125 = vadd.f32 0.0, %v8124
    %v8126 = vpop.f32.mrb[0].mxu0
    %8127 = vdwg.mxu0
    %8136 = vrot.lane.b32.xlu0 %v8090, 96
    %v8137 = vpop.permute.xlu0 %8136
    %8138 = vrot.lane.b32.xlu0 %v8095, 96
    %v8139 = vpop.permute.xlu0 %8138
    %8140 = vrot.lane.b32.xlu0 %v8100, 96
    %v8141 = vpop.permute.xlu0 %8140
    %8142 = vrot.lane.b32.xlu0 %v8105, 96
    %v8143 = vpop.permute.xlu0 %8142
    %8144 = vrot.lane.b32.xlu0 %v8110, 96
    %v8145 = vpop.permute.xlu0 %8144
    %8146 = vrot.lane.b32.xlu0 %v8115, 96
    %v8147 = vpop.permute.xlu0 %8146
    %8148 = vrot.lane.b32.xlu0 %v8120, 96
    %v8149 = vpop.permute.xlu0 %8148
    %8150 = vrot.lane.b32.xlu0 %v8125, 96
    %v8151 = vpop.permute.xlu0 %8150
    %8160 = vst.msk [vmem:[#allocation2 + $0x88] sm:$0xff] %vm2959, %v8137
    %8161 = vst.msk [vmem:[#allocation2 + $0x98] sm:$0xff] %vm2959, %v8139
    %8162 = vst.msk [vmem:[#allocation2 + $0xa8] sm:$0xff] %vm2959, %v8141
    %8163 = vst.msk [vmem:[#allocation2 + $0xb8] sm:$0xff] %vm2959, %v8143
    %8164 = vst.msk [vmem:[#allocation2 + $0xc8] sm:$0xff] %vm2959, %v8145
    %8165 = vst.msk [vmem:[#allocation2 + $0xd8] sm:$0xff] %vm2959, %v8147
    %8166 = vst.msk [vmem:[#allocation2 + $0xe8] sm:$0xff] %vm2959, %v8149
    %8167 = vst.msk [vmem:[#allocation2 + $0xf8] sm:$0xff] %vm2959, %v8151
    %v8168 = vld [vmem:[#allocation2] sm:$0xff]
    %v8169 = vld [vmem:[#allocation2 + $0x8] sm:$0xff]
    %v8170 = vld [vmem:[#allocation2 + $0x10] sm:$0xff]
    %v8171 = vld [vmem:[#allocation2 + $0x18] sm:$0xff]
    %v8172 = vld [vmem:[#allocation2 + $0x20] sm:$0xff]
    %v8173 = vld [vmem:[#allocation2 + $0x28] sm:$0xff]
    %v8174 = vld [vmem:[#allocation2 + $0x30] sm:$0xff]
    %v8175 = vld [vmem:[#allocation2 + $0x38] sm:$0xff]
    %v8176 = vld [vmem:[#allocation2 + $0x40] sm:$0xff]
    %v8177 = vld [vmem:[#allocation2 + $0x48] sm:$0xff]
    %v8178 = vld [vmem:[#allocation2 + $0x50] sm:$0xff]
    %v8179 = vld [vmem:[#allocation2 + $0x58] sm:$0xff]
    %v8180 = vld [vmem:[#allocation2 + $0x60] sm:$0xff]
    %v8181 = vld [vmem:[#allocation2 + $0x68] sm:$0xff]
    %v8182 = vld [vmem:[#allocation2 + $0x70] sm:$0xff]
    %v8183 = vld [vmem:[#allocation2 + $0x78] sm:$0xff]
    %v8184 = vld [vmem:[#allocation2 + $0x80] sm:$0xff]
    %v8185 = vld [vmem:[#allocation2 + $0x88] sm:$0xff]
    %v8186 = vld [vmem:[#allocation2 + $0x90] sm:$0xff]
    %v8187 = vld [vmem:[#allocation2 + $0x98] sm:$0xff]
    %v8188 = vld [vmem:[#allocation2 + $0xa0] sm:$0xff]
    %v8189 = vld [vmem:[#allocation2 + $0xa8] sm:$0xff]
    %v8190 = vld [vmem:[#allocation2 + $0xb0] sm:$0xff]
    %v8191 = vld [vmem:[#allocation2 + $0xb8] sm:$0xff]
    %v8192 = vld [vmem:[#allocation2 + $0xc0] sm:$0xff]
    %v8193 = vld [vmem:[#allocation2 + $0xc8] sm:$0xff]
    %v8194 = vld [vmem:[#allocation2 + $0xd0] sm:$0xff]
    %v8195 = vld [vmem:[#allocation2 + $0xd8] sm:$0xff]
    %v8196 = vld [vmem:[#allocation2 + $0xe0] sm:$0xff]
    %v8197 = vld [vmem:[#allocation2 + $0xe8] sm:$0xff]
    %v8198 = vld [vmem:[#allocation2 + $0xf0] sm:$0xff]
    %v8199 = vld [vmem:[#allocation2 + $0xf8] sm:$0xff]
    %v8200 = vld [vmem:[#allocation9] sm:$0xff]
    %v8201 = vld [vmem:[#allocation9 + $0x8] sm:$0xff]
    %v8202 = vld [vmem:[#allocation9 + $0x10] sm:$0xff]
    %v8203 = vld [vmem:[#allocation9 + $0x18] sm:$0xff]
    %v8204 = vld [vmem:[#allocation9 + $0x20] sm:$0xff]
    %v8205 = vld [vmem:[#allocation9 + $0x28] sm:$0xff]
    %v8206 = vld [vmem:[#allocation9 + $0x30] sm:$0xff]
    %v8207 = vld [vmem:[#allocation9 + $0x38] sm:$0xff]
    %v8208 = vld [vmem:[#allocation9 + $0x40] sm:$0xff]
    %v8209 = vld [vmem:[#allocation9 + $0x48] sm:$0xff]
    %v8210 = vld [vmem:[#allocation9 + $0x50] sm:$0xff]
    %v8211 = vld [vmem:[#allocation9 + $0x58] sm:$0xff]
    %v8212 = vld [vmem:[#allocation9 + $0x60] sm:$0xff]
    %v8213 = vld [vmem:[#allocation9 + $0x68] sm:$0xff]
    %v8214 = vld [vmem:[#allocation9 + $0x70] sm:$0xff]
    %v8215 = vld [vmem:[#allocation9 + $0x78] sm:$0xff]
    %v8216 = vld [vmem:[#allocation9 + $0x80] sm:$0xff]
    %v8217 = vld [vmem:[#allocation9 + $0x88] sm:$0xff]
    %v8218 = vld [vmem:[#allocation9 + $0x90] sm:$0xff]
    %v8219 = vld [vmem:[#allocation9 + $0x98] sm:$0xff]
    %v8220 = vld [vmem:[#allocation9 + $0xa0] sm:$0xff]
    %v8221 = vld [vmem:[#allocation9 + $0xa8] sm:$0xff]
    %v8222 = vld [vmem:[#allocation9 + $0xb0] sm:$0xff]
    %v8223 = vld [vmem:[#allocation9 + $0xb8] sm:$0xff]
    %v8224 = vld [vmem:[#allocation9 + $0xc0] sm:$0xff]
    %v8225 = vld [vmem:[#allocation9 + $0xc8] sm:$0xff]
    %v8226 = vld [vmem:[#allocation9 + $0xd0] sm:$0xff]
    %v8227 = vld [vmem:[#allocation9 + $0xd8] sm:$0xff]
    %v8228 = vld [vmem:[#allocation9 + $0xe0] sm:$0xff]
    %v8229 = vld [vmem:[#allocation9 + $0xe8] sm:$0xff]
    %v8230 = vld [vmem:[#allocation9 + $0xf0] sm:$0xff]
    %v8231 = vld [vmem:[#allocation9 + $0xf8] sm:$0xff]
    %v8232 = vld [vmem:[#allocation9 + $0x100] sm:$0xff]
    %v8233 = vld [vmem:[#allocation9 + $0x108] sm:$0xff]
    %v8234 = vld [vmem:[#allocation9 + $0x110] sm:$0xff]
    %v8235 = vld [vmem:[#allocation9 + $0x118] sm:$0xff]
    %v8236 = vld [vmem:[#allocation9 + $0x120] sm:$0xff]
    %v8237 = vld [vmem:[#allocation9 + $0x128] sm:$0xff]
    %v8238 = vld [vmem:[#allocation9 + $0x130] sm:$0xff]
    %v8239 = vld [vmem:[#allocation9 + $0x138] sm:$0xff]
    %v8240 = vld [vmem:[#allocation9 + $0x140] sm:$0xff]
    %v8241 = vld [vmem:[#allocation9 + $0x148] sm:$0xff]
    %v8242 = vld [vmem:[#allocation9 + $0x150] sm:$0xff]
    %v8243 = vld [vmem:[#allocation9 + $0x158] sm:$0xff]
    %v8244 = vld [vmem:[#allocation9 + $0x160] sm:$0xff]
    %v8245 = vld [vmem:[#allocation9 + $0x168] sm:$0xff]
    %v8246 = vld [vmem:[#allocation9 + $0x170] sm:$0xff]
    %v8247 = vld [vmem:[#allocation9 + $0x178] sm:$0xff]
    %v8248 = vld [vmem:[#allocation9 + $0x180] sm:$0xff]
    %v8249 = vld [vmem:[#allocation9 + $0x188] sm:$0xff]
    %v8250 = vld [vmem:[#allocation9 + $0x190] sm:$0xff]
    %v8251 = vld [vmem:[#allocation9 + $0x198] sm:$0xff]
    %v8252 = vld [vmem:[#allocation9 + $0x1a0] sm:$0xff]
    %v8253 = vld [vmem:[#allocation9 + $0x1a8] sm:$0xff]
    %v8254 = vld [vmem:[#allocation9 + $0x1b0] sm:$0xff]
    %v8255 = vld [vmem:[#allocation9 + $0x1b8] sm:$0xff]
    %v8256 = vld [vmem:[#allocation9 + $0x1c0] sm:$0xff]
    %v8257 = vld [vmem:[#allocation9 + $0x1c8] sm:$0xff]
    %v8258 = vld [vmem:[#allocation9 + $0x1d0] sm:$0xff]
    %v8259 = vld [vmem:[#allocation9 + $0x1d8] sm:$0xff]
    %v8260 = vld [vmem:[#allocation9 + $0x1e0] sm:$0xff]
    %v8261 = vld [vmem:[#allocation9 + $0x1e8] sm:$0xff]
    %v8262 = vld [vmem:[#allocation9 + $0x1f0] sm:$0xff]
    %v8263 = vld [vmem:[#allocation9 + $0x1f8] sm:$0xff]
    %v8264 = vld [vmem:[%s7] sm:$0x3]
    %v8266 = vlaneseq
    %v8267 = vshrl.u32 %v8266, 7
    %v8268 = vsub.s32 0, %v8267
    %v8269 = vrot.slane %v8264, %v8268
    %v8270 = vlaneseq
    %v8271 = vshrl.u32 %v8270, 7
    %v8272 = vsub.s32 1, %v8271
    %v8273 = vrot.slane %v8264, %v8272
    %8276 = vmatprep.subr.mxu0 %v8201
    %8277 = vmatpush1.msra.mxu0 %v8200
    %8278 = vmatprep.subr.mxu0 %v8203
    %8279 = vmatpush1.msra.mxu0 %v8202
    %8280 = vmatprep.subr.mxu0 %v8205
    %8281 = vmatpush1.msra.mxu0 %v8204
    %8282 = vmatprep.subr.mxu0 %v8207
    %8283 = vmatpush1.msra.mxu0 %v8206
    %8284 = vmatprep.subr.mxu0 %v8209
    %8285 = vmatpush1.msra.mxu0 %v8208
    %8286 = vmatprep.subr.mxu0 %v8211
    %8287 = vmatpush1.msra.mxu0 %v8210
    %8288 = vmatprep.subr.mxu0 %v8213
    %8289 = vmatpush1.msra.mxu0 %v8212
    %8290 = vmatprep.subr.mxu0 %v8215
    %8291 = vmatpush1.msra.mxu0 %v8214
    %8292 = vmatprep.subr.mxu0 %v8217
    %8293 = vmatpush1.msra.mxu0 %v8216
    %8294 = vmatprep.subr.mxu0 %v8219
    %8295 = vmatpush1.msra.mxu0 %v8218
    %8296 = vmatprep.subr.mxu0 %v8221
    %8297 = vmatpush1.msra.mxu0 %v8220
    %8298 = vmatprep.subr.mxu0 %v8223
    %8299 = vmatpush1.msra.mxu0 %v8222
    %8300 = vmatprep.subr.mxu0 %v8225
    %8301 = vmatpush1.msra.mxu0 %v8224
    %8302 = vmatprep.subr.mxu0 %v8227
    %8303 = vmatpush1.msra.mxu0 %v8226
    %8304 = vmatprep.subr.mxu0 %v8229
    %8305 = vmatpush1.msra.mxu0 %v8228
    %8306 = vmatprep.subr.mxu0 %v8231
    %8307 = vmatpush1.msra.mxu0 %v8230
    %8308 = vmatprep.subr.mxu0 %v8233
    %8309 = vmatpush1.msra.mxu0 %v8232
    %8310 = vmatprep.subr.mxu0 %v8235
    %8311 = vmatpush1.msra.mxu0 %v8234
    %8312 = vmatprep.subr.mxu0 %v8237
    %8313 = vmatpush1.msra.mxu0 %v8236
    %8314 = vmatprep.subr.mxu0 %v8239
    %8315 = vmatpush1.msra.mxu0 %v8238
    %8316 = vmatprep.subr.mxu0 %v8241
    %8317 = vmatpush1.msra.mxu0 %v8240
    %8318 = vmatprep.subr.mxu0 %v8243
    %8319 = vmatpush1.msra.mxu0 %v8242
    %8320 = vmatprep.subr.mxu0 %v8245
    %8321 = vmatpush1.msra.mxu0 %v8244
    %8322 = vmatprep.subr.mxu0 %v8247
    %8323 = vmatpush1.msra.mxu0 %v8246
    %8324 = vmatprep.subr.mxu0 %v8249
    %8325 = vmatpush1.msra.mxu0 %v8248
    %8326 = vmatprep.subr.mxu0 %v8251
    %8327 = vmatpush1.msra.mxu0 %v8250
    %8328 = vmatprep.subr.mxu0 %v8253
    %8329 = vmatpush1.msra.mxu0 %v8252
    %8330 = vmatprep.subr.mxu0 %v8255
    %8331 = vmatpush1.msra.mxu0 %v8254
    %8332 = vmatprep.subr.mxu0 %v8257
    %8333 = vmatpush1.msra.mxu0 %v8256
    %8334 = vmatprep.subr.mxu0 %v8259
    %8335 = vmatpush1.msra.mxu0 %v8258
    %8336 = vmatprep.subr.mxu0 %v8261
    %8337 = vmatpush1.msra.mxu0 %v8260
    %8338 = vmatprep.subr.mxu0 %v8263
    %8339 = vmatpush1.msra.mxu0 %v8262
    %8340 = vmatprep.mubr.f32.mxu0 %v8169
    %8341 = vmatmul.mubr.f32.gmra.mrb[0].mxu0 %v8168
    %v8342 = vpop.f32.mrb[0].mxu0
    %v8343 = vadd.f32 %v8269, %v8342
    %v8344 = vpop.f32.mrb[0].mxu0
    %v8345 = vadd.f32 %v8273, %v8344
    %8346 = vmatprep.mubr.f32.mxu0 %v8171
    %8347 = vmatmul.mubr.f32.gmra.mrb[0].mxu0 %v8170
    %v8348 = vpop.f32.mrb[0].mxu0
    %v8349 = vadd.f32 %v8269, %v8348
    %v8350 = vpop.f32.mrb[0].mxu0
    %v8351 = vadd.f32 %v8273, %v8350
    %8352 = vmatprep.mubr.f32.mxu0 %v8173
    %8353 = vmatmul.mubr.f32.gmra.mrb[0].mxu0 %v8172
    %v8354 = vpop.f32.mrb[0].mxu0
    %v8355 = vadd.f32 %v8269, %v8354
    %v8356 = vpop.f32.mrb[0].mxu0
    %v8357 = vadd.f32 %v8273, %v8356
    %8358 = vmatprep.mubr.f32.mxu0 %v8175
    %8359 = vmatmul.mubr.f32.gmra.mrb[0].mxu0 %v8174
    %v8360 = vpop.f32.mrb[0].mxu0
    %v8361 = vadd.f32 %v8269, %v8360
    %v8362 = vpop.f32.mrb[0].mxu0
    %v8363 = vadd.f32 %v8273, %v8362
    %8364 = vmatprep.mubr.f32.mxu0 %v8177
    %8365 = vmatmul.mubr.f32.gmra.mrb[0].mxu0 %v8176
    %v8366 = vpop.f32.mrb[0].mxu0
    %v8367 = vadd.f32 %v8269, %v8366
    %v8368 = vpop.f32.mrb[0].mxu0
    %v8369 = vadd.f32 %v8273, %v8368
    %8370 = vmatprep.mubr.f32.mxu0 %v8179
    %8371 = vmatmul.mubr.f32.gmra.mrb[0].mxu0 %v8178
    %v8372 = vpop.f32.mrb[0].mxu0
    %v8373 = vadd.f32 %v8269, %v8372
    %v8374 = vpop.f32.mrb[0].mxu0
    %v8375 = vadd.f32 %v8273, %v8374
    %8376 = vmatprep.mubr.f32.mxu0 %v8181
    %8377 = vmatmul.mubr.f32.gmra.mrb[0].mxu0 %v8180
    %v8378 = vpop.f32.mrb[0].mxu0
    %v8379 = vadd.f32 %v8269, %v8378
    %v8380 = vpop.f32.mrb[0].mxu0
    %v8381 = vadd.f32 %v8273, %v8380
    %8382 = vmatprep.mubr.f32.mxu0 %v8183
    %8383 = vmatmul.mubr.f32.gmra.mrb[0].mxu0 %v8182
    %v8384 = vpop.f32.mrb[0].mxu0
    %v8385 = vadd.f32 %v8269, %v8384
    %v8386 = vpop.f32.mrb[0].mxu0
    %v8387 = vadd.f32 %v8273, %v8386
    %8388 = vmatprep.mubr.f32.mxu0 %v8185
    %8389 = vmatmul.mubr.f32.gmra.mrb[0].mxu0 %v8184
    %v8390 = vpop.f32.mrb[0].mxu0
    %v8391 = vadd.f32 %v8269, %v8390
    %v8392 = vpop.f32.mrb[0].mxu0
    %v8393 = vadd.f32 %v8273, %v8392
    %8394 = vmatprep.mubr.f32.mxu0 %v8187
    %8395 = vmatmul.mubr.f32.gmra.mrb[0].mxu0 %v8186
    %v8396 = vpop.f32.mrb[0].mxu0
    %v8397 = vadd.f32 %v8269, %v8396
    %v8398 = vpop.f32.mrb[0].mxu0
    %v8399 = vadd.f32 %v8273, %v8398
    %8400 = vmatprep.mubr.f32.mxu0 %v8189
    %8401 = vmatmul.mubr.f32.gmra.mrb[0].mxu0 %v8188
    %v8402 = vpop.f32.mrb[0].mxu0
    %v8403 = vadd.f32 %v8269, %v8402
    %v8404 = vpop.f32.mrb[0].mxu0
    %v8405 = vadd.f32 %v8273, %v8404
    %8406 = vmatprep.mubr.f32.mxu0 %v8191
    %8407 = vmatmul.mubr.f32.gmra.mrb[0].mxu0 %v8190
    %v8408 = vpop.f32.mrb[0].mxu0
    %v8409 = vadd.f32 %v8269, %v8408
    %v8410 = vpop.f32.mrb[0].mxu0
    %v8411 = vadd.f32 %v8273, %v8410
    %8412 = vmatprep.mubr.f32.mxu0 %v8193
    %8413 = vmatmul.mubr.f32.gmra.mrb[0].mxu0 %v8192
    %v8414 = vpop.f32.mrb[0].mxu0
    %v8415 = vadd.f32 %v8269, %v8414
    %v8416 = vpop.f32.mrb[0].mxu0
    %v8417 = vadd.f32 %v8273, %v8416
    %8418 = vmatprep.mubr.f32.mxu0 %v8195
    %8419 = vmatmul.mubr.f32.gmra.mrb[0].mxu0 %v8194
    %v8420 = vpop.f32.mrb[0].mxu0
    %v8421 = vadd.f32 %v8269, %v8420
    %v8422 = vpop.f32.mrb[0].mxu0
    %v8423 = vadd.f32 %v8273, %v8422
    %8424 = vmatprep.mubr.f32.mxu0 %v8197
    %8425 = vmatmul.mubr.f32.gmra.mrb[0].mxu0 %v8196
    %v8426 = vpop.f32.mrb[0].mxu0
    %v8427 = vadd.f32 %v8269, %v8426
    %v8428 = vpop.f32.mrb[0].mxu0
    %v8429 = vadd.f32 %v8273, %v8428
    %8430 = vmatprep.mubr.f32.mxu0 %v8199
    %8431 = vmatmul.mubr.f32.gmra.mrb[0].mxu0 %v8198
    %v8432 = vpop.f32.mrb[0].mxu0
    %v8433 = vadd.f32 %v8269, %v8432
    %v8434 = vpop.f32.mrb[0].mxu0
    %v8435 = vadd.f32 %v8273, %v8434
    %8436 = vdwg.mxu0
    %8437 = vst [vmem:[#allocation11] sm:$0xff] %v8343
    %8438 = vst [vmem:[#allocation11 + $0x8] sm:$0xff] %v8345
    %8439 = vst [vmem:[#allocation11 + $0x10] sm:$0xff] %v8349
    %8440 = vst [vmem:[#allocation11 + $0x18] sm:$0xff] %v8351
    %8441 = vst [vmem:[#allocation11 + $0x20] sm:$0xff] %v8355
    %8442 = vst [vmem:[#allocation11 + $0x28] sm:$0xff] %v8357
    %8443 = vst [vmem:[#allocation11 + $0x30] sm:$0xff] %v8361
    %8444 = vst [vmem:[#allocation11 + $0x38] sm:$0xff] %v8363
    %8445 = vst [vmem:[#allocation11 + $0x40] sm:$0xff] %v8367
    %8446 = vst [vmem:[#allocation11 + $0x48] sm:$0xff] %v8369
    %8447 = vst [vmem:[#allocation11 + $0x50] sm:$0xff] %v8373
    %8448 = vst [vmem:[#allocation11 + $0x58] sm:$0xff] %v8375
    %8449 = vst [vmem:[#allocation11 + $0x60] sm:$0xff] %v8379
    %8450 = vst [vmem:[#allocation11 + $0x68] sm:$0xff] %v8381
    %8451 = vst [vmem:[#allocation11 + $0x70] sm:$0xff] %v8385
    %8452 = vst [vmem:[#allocation11 + $0x78] sm:$0xff] %v8387
    %8453 = vst [vmem:[#allocation11 + $0x80] sm:$0xff] %v8391
    %8454 = vst [vmem:[#allocation11 + $0x88] sm:$0xff] %v8393
    %8455 = vst [vmem:[#allocation11 + $0x90] sm:$0xff] %v8397
    %8456 = vst [vmem:[#allocation11 + $0x98] sm:$0xff] %v8399
    %8457 = vst [vmem:[#allocation11 + $0xa0] sm:$0xff] %v8403
    %8458 = vst [vmem:[#allocation11 + $0xa8] sm:$0xff] %v8405
    %8459 = vst [vmem:[#allocation11 + $0xb0] sm:$0xff] %v8409
    %8460 = vst [vmem:[#allocation11 + $0xb8] sm:$0xff] %v8411
    %8461 = vst [vmem:[#allocation11 + $0xc0] sm:$0xff] %v8415
    %8462 = vst [vmem:[#allocation11 + $0xc8] sm:$0xff] %v8417
    %8463 = vst [vmem:[#allocation11 + $0xd0] sm:$0xff] %v8421
    %8464 = vst [vmem:[#allocation11 + $0xd8] sm:$0xff] %v8423
    %8465 = vst [vmem:[#allocation11 + $0xe0] sm:$0xff] %v8427
    %8466 = vst [vmem:[#allocation11 + $0xe8] sm:$0xff] %v8429
    %8467 = vst [vmem:[#allocation11 + $0xf0] sm:$0xff] %v8433
    %8468 = vst [vmem:[#allocation11 + $0xf8] sm:$0xff] %v8435
    // Predicated region
    $region50: #{tpu_custom_call.1} parent=1 // pred_check
      _
    $region51: #{tpu_custom_call.1} parent=1 // pred_check_branch
      %8470 = sbr.rel (0) target = $region53
    $region52: #{tpu_custom_call.1} parent=1 // pred_region
      %s8472 = ssub.s32 4096, 4096
      %8473 = vsyncadd [#allocation5], %s8472
      %s8474 = sshll.u32 [#allocation11], 4
      %s8475 = int_to_ptr.vmem [resolvable:$true] %s8474
      %8480 = dma.vmem_to_hbm [thread:$0]  %s8475, 4096, %s8, [#allocation5], 256, 256, 16
    $region53: #{tpu_custom_call.1} parent=1 // pred_fallthru
      _
    // Predicated region
    $region54: #{tpu_custom_call.1} parent=1 // pred_check
      _
    $region55: #{tpu_custom_call.1} parent=1 // pred_check_branch
      %8482 = sbr.rel (0) target = $region57
    $region56: #{tpu_custom_call.1} parent=1 // pred_region
      %8483 = dma.done [#allocation5], 4096
    $region57: #{tpu_custom_call.1} parent=1 // pred_fallthru
      _
    %8484 = vsyncpa [#allocation4], 1
    %8485 = vsyncpa [#allocation7], 1
    %8486 = vsyncpa [#allocation10], 1
    %8487 = vsyncpa [#allocation5], 1

</llo_original>
